<compile_context>
chip_gen: v7x
topology: tpu7x:2x2x1
jax: 0.10.0
libtpu: 0.0.40
codegen_flags: <defaults>
</compile_context>

<pallas_src>
import numpy as np
import jax
import jax.numpy as jnp
from jax import lax
from jax.experimental import pallas as pl
from jax.experimental.pallas import tpu as pltpu


def _round_up(x, m):
    return (x + m - 1) // m * m


# --------------------------------------------------------------------------- #
# Constant 0/1 "tap" matrices: fold pad=1 / 3x3 shift / stride-2 / nearest-2x
# upsample into a single gather matmul  x(C, S_in) @ T(S_in, 9*S_out).
# Column k*S_out + i*Wo + j selects the source pixel feeding conv tap k=dy*3+dx
# at output (i, j); columns at the padding boundary are all-zero.
# --------------------------------------------------------------------------- #
def _tap_matrix(h, w, *, stride=1, upsample=1):
    hu, wu = h * upsample, w * upsample
    ho, wo = hu // stride, wu // stride
    s_in, s_out = h * w, ho * wo
    t = np.zeros((s_in, 9 * s_out), np.float32)
    for dy in range(3):
        for dx in range(3):
            k = dy * 3 + dx
            for i in range(ho):
                for j in range(wo):
                    r = stride * i + dy - 1
                    c = stride * j + dx - 1
                    if 0 <= r < hu and 0 <= c < wu:
                        t[(r // upsample) * w + (c // upsample),
                          k * s_out + i * wo + j] = 1.0
    return t


# --------------------------------------------------------------------------- #
# Static network description (layer metadata + deduplicated tap matrices).
# --------------------------------------------------------------------------- #
def build_meta(domain_sizes, input_channel, height, width,
               down_hidden_sizes, res_hidden_sizes, up_hidden_sizes, output_channel):
    n_dom = len(domain_sizes)
    img_group = _round_up(input_channel, 8)

    tap_index, tap_list = {}, []

    def tap_of(h, w, stride, upsample):
        key = (h, w, stride, upsample)
        if key not in tap_index:
            tap_index[key] = len(tap_list)
            tap_list.append(_tap_matrix(h, w, stride=stride, upsample=upsample))
        return tap_index[key]

    layers = []

    def add_layer(cin, cout, h, w, stride, upsample, relu, residual, has_bias,
                  cin_pad=None, col_map=None):
        cin_pad = _round_up(cin, 8) if cin_pad is None else cin_pad
        col_map = list(range(cin)) if col_map is None else col_map
        ho, wo = h * upsample // stride, w * upsample // stride
        layers.append(dict(
            cin=cin, cin_pad=cin_pad, cout=cout, cout_pad=_round_up(cout, 8),
            s_in=h * w, s_out=ho * wo, tap=tap_of(h, w, stride, upsample),
            relu=relu, residual=residual, has_bias=has_bias, col_map=col_map))
        return ho, wo

    h, w = height, width
    cin0 = input_channel + n_dom
    col_map0 = list(range(input_channel)) + [img_group + 8 * i for i in range(n_dom)]
    # initial SizePreservingBlock (no residual)
    h, w = add_layer(cin0, down_hidden_sizes[0], h, w, 1, 1, True, False, True,
                     cin_pad=img_group + 8 * n_dom, col_map=col_map0)
    # ConvDownsampleBlock: stride-2 convs
    for i in range(len(down_hidden_sizes) - 1):
        assert h % 2 == 0 and w % 2 == 0, "stride-2 downsample needs even spatial dims"
        h, w = add_layer(down_hidden_sizes[i], down_hidden_sizes[i + 1],
                         h, w, 2, 1, True, False, True)
    # residual SizePreservingBlocks
    for i in range(len(res_hidden_sizes) - 1):
        assert res_hidden_sizes[i] == res_hidden_sizes[i + 1]
        h, w = add_layer(res_hidden_sizes[i], res_hidden_sizes[i + 1],
                         h, w, 1, 1, True, True, True)
    # UpsampleBlocks (nearest-2x folded into the tap matrix)
    for i in range(len(up_hidden_sizes) - 1):
        h, w = add_layer(up_hidden_sizes[i], up_hidden_sizes[i + 1],
                         h, w, 1, 2, True, False, True)
    # output conv: no bias, no activation
    h, w = add_layer(up_hidden_sizes[-1], output_channel, h, w, 1, 1, False, False, False)

    for prev, cur in zip(layers[:-1], layers[1:]):
        assert cur["cin"] == prev["cout"] and cur["cin_pad"] == prev["cout_pad"]
    for m in layers:
        if m["residual"]:
            assert m["cout_pad"] == m["cin_pad"] and m["s_in"] == m["s_out"]

    return dict(layers=layers, taps=tap_list, img_group=img_group, n_emb=n_dom,
                in_hw=(height, width), out_hw=(h, w), output_channel=output_channel)


# --------------------------------------------------------------------------- #
# Parameters (deterministic synthetic init; PyTorch-like shapes)
# --------------------------------------------------------------------------- #
def init_params(key, domain_sizes, input_channel, height, width,
                down_hidden_sizes, res_hidden_sizes, up_hidden_sizes, output_channel):
    keys = iter(jax.random.split(key, 256))

    def conv_p(cin, cout, bias=True):
        w = 0.1 * jax.random.normal(next(keys), (3, 3, cin, cout), jnp.float32)  # HWIO
        b = (0.1 * jax.random.normal(next(keys), (cout,), jnp.float32)
             if bias else jnp.zeros((cout,), jnp.float32))
        return {"w": w, "b": b}

    hw = height * width
    params = {"emb": [0.1 * jax.random.normal(next(keys), (d, hw), jnp.float32)
                      for d in domain_sizes]}
    convs = [conv_p(input_channel + len(domain_sizes), down_hidden_sizes[0])]
    for i in range(len(down_hidden_sizes) - 1):
        convs.append(conv_p(down_hidden_sizes[i], down_hidden_sizes[i + 1]))
    for i in range(len(res_hidden_sizes) - 1):
        convs.append(conv_p(res_hidden_sizes[i], res_hidden_sizes[i + 1]))
    for i in range(len(up_hidden_sizes) - 1):
        convs.append(conv_p(up_hidden_sizes[i], up_hidden_sizes[i + 1]))
    convs.append(conv_p(up_hidden_sizes[-1], output_channel, bias=False))
    params["convs"] = convs
    return params


def pack_params(params, meta):
    """Pack weights into the kernel layout: W(cout_pad, 9*cin_pad) bf16, b(cout_pad,1) f32,
    embedding tables as (domain, 8, H*W) with the real channel at sub-row 0."""
    layers = meta["layers"]
    packed = {"taps": [jnp.asarray(t, jnp.bfloat16) for t in meta["taps"]]}

    emb = []
    for tbl in params["emb"]:
        t = np.asarray(tbl, np.float32)
        e = np.zeros((t.shape[0], 8, t.shape[1]), np.float32)
        e[:, 0, :] = t
        emb.append(jnp.asarray(e))
    packed["emb"] = emb

    ws, bs = [], []
    for m, conv in zip(layers, params["convs"]):
        w = np.asarray(conv["w"], np.float32)                       # (3, 3, cin, cout)
        cout, cin = m["cout"], m["cin"]
        wk = np.transpose(w, (3, 0, 1, 2)).reshape(cout, 9, cin)    # (cout, tap k, cin)
        wkp = np.zeros((m["cout_pad"], 9, m["cin_pad"]), np.float32)
        wkp[:cout, :, m["col_map"]] = wk
        ws.append(jnp.asarray(wkp.reshape(m["cout_pad"], 9 * m["cin_pad"]), jnp.bfloat16))
        b = np.zeros((m["cout_pad"], 1), np.float32)
        b[:cout, 0] = np.asarray(conv["b"], np.float32)
        bs.append(jnp.asarray(b))
    packed["w"], packed["b"] = ws, bs
    return packed


# --------------------------------------------------------------------------- #
# The single fused kernel: one grid step == one batch sample, whole net in VMEM.
# --------------------------------------------------------------------------- #
def _make_kernel(meta):
    layers = meta["layers"]
    n_emb, n_taps, n_layers = meta["n_emb"], len(meta["taps"]), len(layers)
    out_channel = meta["output_channel"]

    def kernel(cond_ref, img_ref, *refs):
        del cond_ref  # consumed by the embedding-row index_maps (scalar prefetch)
        emb_refs = refs[:n_emb]
        tap_refs = refs[n_emb:n_emb + n_taps]
        w_refs = refs[n_emb + n_taps:n_emb + n_taps + n_layers]
        b_refs = refs[n_emb + n_taps + n_layers:n_emb + n_taps + 2 * n_layers]
        o_ref = refs[n_emb + n_taps + 2 * n_layers]

        # conditioned input: [image group | one 8-row group per domain]  -> (cin_pad0, S0) f32
        x = jnp.concatenate([img_ref[0]] + [e[0] for e in emb_refs], axis=0)

        for li, m in enumerate(layers):
            s_out = m["s_out"]
            # (1) all 9 shifted / strided / upsampled taps via ONE gather matmul
            y = jnp.dot(x.astype(jnp.bfloat16), tap_refs[m["tap"]][...],
                        preferred_element_type=jnp.float32)          # (cin_pad, 9*s_out)
            # (2) im2col slab (9*cin_pad, s_out); pieces are 8-row aligned -> cheap concat
            xcol = jnp.concatenate(
                [y[:, k * s_out:(k + 1) * s_out] for k in range(9)], axis=0)
            # (3) single weight matmul on the MXU, f32 accumulation
            acc = jnp.dot(w_refs[li][...], xcol.astype(jnp.bfloat16),
                          preferred_element_type=jnp.float32)         # (cout_pad, s_out)
            if m["has_bias"]:
                acc = acc + b_refs[li][...]
            if m["relu"]:
                acc = jnp.maximum(acc, 0.0)
            if m["residual"]:
                acc = acc + x  # TODO(synk): residual placement (post-ReLU) is inferred
            x = acc

        o_ref[0] = x[:out_channel, :].astype(o_ref.dtype)

    return kernel


def make_forward(meta):
    layers = meta["layers"]
    n_emb = meta["n_emb"]
    img_group = meta["img_group"]
    out_c = meta["output_channel"]
    ho, wo = meta["out_hw"]
    s_final = ho * wo
    kernel = _make_kernel(meta)

    def forward(packed, image_nchw, conditions):
        n, c_img, h, w = image_nchw.shape
        s0 = h * w
        img = image_nchw.reshape(n, c_img, s0)        # NCHW == channel-major flat spatial
        if img_group > c_img:
            img = jnp.pad(img, ((0, 0), (0, img_group - c_img), (0, 0)))
        conditions = conditions.astype(jnp.int32)

        in_specs = [pl.BlockSpec((1, img_group, s0), lambda i, cond: (i, 0, 0))]
        args = [img]
        for di in range(n_emb):  # data-dependent row selection via scalar prefetch
            in_specs.append(pl.BlockSpec((1, 8, s0),
                                         lambda i, cond, d=di: (cond[i, d], 0, 0)))
            args.append(packed["emb"][di])
        for t in packed["taps"]:
            in_specs.append(pl.BlockSpec(t.shape, lambda i, cond: (0, 0)))
            args.append(t)
        for wm in packed["w"]:
            in_specs.append(pl.BlockSpec(wm.shape, lambda i, cond: (0, 0)))
            args.append(wm)
        for bm in packed["b"]:
            in_specs.append(pl.BlockSpec(bm.shape, lambda i, cond: (0, 0)))
            args.append(bm)

        out = pl.pallas_call(
            kernel,
            out_shape=jax.ShapeDtypeStruct((n, out_c, s_final), jnp.float32),
            grid_spec=pltpu.PrefetchScalarGridSpec(
                num_scalar_prefetch=1,
                grid=(n,),
                in_specs=in_specs,
                out_specs=pl.BlockSpec((1, out_c, s_final), lambda i, cond: (i, 0, 0)),
            ),
            compiler_params=pltpu.CompilerParams(dimension_semantics=("parallel",)),
        )(conditions, *args)
        return out.reshape(n, out_c, ho, wo)

    return forward


# --------------------------------------------------------------------------- #
# Pure-JAX f32 reference (same inferred semantics) for a loose correctness check.
# --------------------------------------------------------------------------- #
def reference_forward(params, image_nchw, conditions, domain_sizes,
                      down_hidden_sizes, res_hidden_sizes, up_hidden_sizes):
    n, _, h, w = image_nchw.shape
    embs = [jnp.take(tbl, conditions[:, i], axis=0).reshape(n, 1, h, w)
            for i, tbl in enumerate(params["emb"])]
    x = jnp.concatenate([image_nchw] + embs, axis=1)

    def conv(x, p, stride=1, bias=True):
        y = lax.conv_general_dilated(
            x, p["w"], window_strides=(stride, stride), padding=((1, 1), (1, 1)),
            dimension_numbers=("NCHW", "HWIO", "NCHW"))
        if bias:
            y = y + p["b"].reshape(1, -1, 1, 1)
        return y

    convs, li = params["convs"], 0
    x = jax.nn.relu(conv(x, convs[li])); li += 1
    for _ in range(len(down_hidden_sizes) - 1):
        x = jax.nn.relu(conv(x, convs[li], stride=2)); li += 1
    for _ in range(len(res_hidden_sizes) - 1):
        x = jax.nn.relu(conv(x, convs[li])) + x; li += 1
    for _ in range(len(up_hidden_sizes) - 1):
        x = jnp.repeat(jnp.repeat(x, 2, axis=2), 2, axis=3)
        x = jax.nn.relu(conv(x, convs[li])); li += 1
    x = conv(x, convs[li], bias=False)
    return x


# --------------------------------------------------------------------------- #
if __name__ == "__main__":
    key = jax.random.PRNGKey(0)
    k_params, k_img, k_c0, k_c1 = jax.random.split(key, 4)

    domain_sizes = [5, 7]
    input_channel, output_channel = 3, 3
    H = W = 16
    down_hidden_sizes = [8, 16, 32]
    res_hidden_sizes = [32, 32, 32]
    up_hidden_sizes = [32, 16, 8]
    N = 2

    meta = build_meta(domain_sizes, input_channel, H, W, down_hidden_sizes,
                      res_hidden_sizes, up_hidden_sizes, output_channel)
    params = init_params(k_params, domain_sizes, input_channel, H, W,
                         down_hidden_sizes, res_hidden_sizes, up_hidden_sizes,
                         output_channel)
    packed = pack_params(params, meta)

    image = jax.random.normal(k_img, (N, input_channel, H, W), jnp.float32)
    conditions = jnp.stack(
        [jax.random.randint(k_c0, (N,), 0, domain_sizes[0]),
         jax.random.randint(k_c1, (N,), 0, domain_sizes[1])], axis=1).astype(jnp.int32)

    forward = jax.jit(make_forward(meta))
    out = forward(packed, image, conditions)
    jax.block_until_ready(out)
    assert out.shape == (N, output_channel) + meta["out_hw"], out.shape
    assert out.dtype == jnp.float32

    # loose correctness check vs. a pure-JAX f32 reference (kernel matmul inputs are bf16)
    ref = reference_forward(params, image, conditions, domain_sizes,
                            down_hidden_sizes, res_hidden_sizes, up_hidden_sizes)
    err = float(jnp.max(jnp.abs(out - ref)) / (jnp.max(jnp.abs(ref)) + 1e-6))
    assert err < 0.1, f"kernel/reference mismatch: normalized max abs err = {err:.4f}"

    print("KERNEL_OK")
</pallas_src>

<mosaic_0001>
module attributes {stable_mosaic.version = 11 : i64} {
  func.func @kernel(%arg0: i32, %arg1: memref<2x2xi32, #tpu.memory_space<smem>>, %arg2: memref<1x8x256xf32, #tpu.memory_space<vmem>>, %arg3: memref<1x8x256xf32, #tpu.memory_space<vmem>>, %arg4: memref<1x8x256xf32, #tpu.memory_space<vmem>>, %arg5: memref<256x2304xbf16, #tpu.memory_space<vmem>>, %arg6: memref<256x576xbf16, #tpu.memory_space<vmem>>, %arg7: memref<64x144xbf16, #tpu.memory_space<vmem>>, %arg8: memref<16x144xbf16, #tpu.memory_space<vmem>>, %arg9: memref<16x576xbf16, #tpu.memory_space<vmem>>, %arg10: memref<64x2304xbf16, #tpu.memory_space<vmem>>, %arg11: memref<8x216xbf16, #tpu.memory_space<vmem>>, %arg12: memref<16x72xbf16, #tpu.memory_space<vmem>>, %arg13: memref<32x144xbf16, #tpu.memory_space<vmem>>, %arg14: memref<32x288xbf16, #tpu.memory_space<vmem>>, %arg15: memref<32x288xbf16, #tpu.memory_space<vmem>>, %arg16: memref<16x288xbf16, #tpu.memory_space<vmem>>, %arg17: memref<8x144xbf16, #tpu.memory_space<vmem>>, %arg18: memref<8x72xbf16, #tpu.memory_space<vmem>>, %arg19: memref<8x1xf32, #tpu.memory_space<vmem>>, %arg20: memref<16x1xf32, #tpu.memory_space<vmem>>, %arg21: memref<32x1xf32, #tpu.memory_space<vmem>>, %arg22: memref<32x1xf32, #tpu.memory_space<vmem>>, %arg23: memref<32x1xf32, #tpu.memory_space<vmem>>, %arg24: memref<16x1xf32, #tpu.memory_space<vmem>>, %arg25: memref<8x1xf32, #tpu.memory_space<vmem>>, %arg26: memref<8x1xf32, #tpu.memory_space<vmem>>, %arg27: memref<1x3x256xf32, #tpu.memory_space<vmem>>) attributes {dimension_semantics = [#tpu.dimension_semantics<parallel>], iteration_bounds = array<i64: 2>, scalar_prefetch = 1 : i64, scratch_operands = 0 : i64, tpu.core_type = #tpu.core_type<tc>, window_params = [{transform_indices = @transform_0, window_bounds = array<i64: 1, 8, 256>}, {transform_indices = @transform_1, window_bounds = array<i64: 1, 8, 256>}, {transform_indices = @transform_2, window_bounds = array<i64: 1, 8, 256>}, {pipeline_mode = #tpu.pipeline_mode<synchronous>, transform_indices = @transform_3, window_bounds = array<i64: 256, 2304>}, {pipeline_mode = #tpu.pipeline_mode<synchronous>, transform_indices = @transform_4, window_bounds = array<i64: 256, 576>}, {pipeline_mode = #tpu.pipeline_mode<synchronous>, transform_indices = @transform_5, window_bounds = array<i64: 64, 144>}, {pipeline_mode = #tpu.pipeline_mode<synchronous>, transform_indices = @transform_6, window_bounds = array<i64: 16, 144>}, {pipeline_mode = #tpu.pipeline_mode<synchronous>, transform_indices = @transform_7, window_bounds = array<i64: 16, 576>}, {pipeline_mode = #tpu.pipeline_mode<synchronous>, transform_indices = @transform_8, window_bounds = array<i64: 64, 2304>}, {pipeline_mode = #tpu.pipeline_mode<synchronous>, transform_indices = @transform_9, window_bounds = array<i64: 8, 216>}, {pipeline_mode = #tpu.pipeline_mode<synchronous>, transform_indices = @transform_10, window_bounds = array<i64: 16, 72>}, {pipeline_mode = #tpu.pipeline_mode<synchronous>, transform_indices = @transform_11, window_bounds = array<i64: 32, 144>}, {pipeline_mode = #tpu.pipeline_mode<synchronous>, transform_indices = @transform_12, window_bounds = array<i64: 32, 288>}, {pipeline_mode = #tpu.pipeline_mode<synchronous>, transform_indices = @transform_13, window_bounds = array<i64: 32, 288>}, {pipeline_mode = #tpu.pipeline_mode<synchronous>, transform_indices = @transform_14, window_bounds = array<i64: 16, 288>}, {pipeline_mode = #tpu.pipeline_mode<synchronous>, transform_indices = @transform_15, window_bounds = array<i64: 8, 144>}, {pipeline_mode = #tpu.pipeline_mode<synchronous>, transform_indices = @transform_16, window_bounds = array<i64: 8, 72>}, {pipeline_mode = #tpu.pipeline_mode<synchronous>, transform_indices = @transform_17, window_bounds = array<i64: 8, 1>}, {pipeline_mode = #tpu.pipeline_mode<synchronous>, transform_indices = @transform_18, window_bounds = array<i64: 16, 1>}, {pipeline_mode = #tpu.pipeline_mode<synchronous>, transform_indices = @transform_19, window_bounds = array<i64: 32, 1>}, {pipeline_mode = #tpu.pipeline_mode<synchronous>, transform_indices = @transform_20, window_bounds = array<i64: 32, 1>}, {pipeline_mode = #tpu.pipeline_mode<synchronous>, transform_indices = @transform_21, window_bounds = array<i64: 32, 1>}, {pipeline_mode = #tpu.pipeline_mode<synchronous>, transform_indices = @transform_22, window_bounds = array<i64: 16, 1>}, {pipeline_mode = #tpu.pipeline_mode<synchronous>, transform_indices = @transform_23, window_bounds = array<i64: 8, 1>}, {pipeline_mode = #tpu.pipeline_mode<synchronous>, transform_indices = @transform_24, window_bounds = array<i64: 8, 1>}, {transform_indices = @transform_25, window_bounds = array<i64: 1, 3, 256>}]} {
    %c0 = arith.constant 0 : index
    %c0_0 = arith.constant 0 : index
    %c0_1 = arith.constant 0 : index
    %0 = vector.load %arg2[%c0, %c0_0, %c0_1] : memref<1x8x256xf32, #tpu.memory_space<vmem>>, vector<1x8x256xf32>
    %1 = vector.shape_cast %0 : vector<1x8x256xf32> to vector<8x256xf32>
    %c0_2 = arith.constant 0 : index
    %c0_3 = arith.constant 0 : index
    %c0_4 = arith.constant 0 : index
    %2 = vector.load %arg3[%c0_2, %c0_3, %c0_4] : memref<1x8x256xf32, #tpu.memory_space<vmem>>, vector<1x8x256xf32>
    %3 = vector.shape_cast %2 : vector<1x8x256xf32> to vector<8x256xf32>
    %c0_5 = arith.constant 0 : index
    %c0_6 = arith.constant 0 : index
    %c0_7 = arith.constant 0 : index
    %4 = vector.load %arg4[%c0_5, %c0_6, %c0_7] : memref<1x8x256xf32, #tpu.memory_space<vmem>>, vector<1x8x256xf32>
    %5 = vector.shape_cast %4 : vector<1x8x256xf32> to vector<8x256xf32>
    %6 = tpu.concatenate %1, %3, %5 in 0 : vector<8x256xf32>, vector<8x256xf32>, vector<8x256xf32> -> vector<24x256xf32>
    %7 = arith.truncf %6 : vector<24x256xf32> to vector<24x256xbf16>
    %c0_8 = arith.constant 0 : index
    %c0_9 = arith.constant 0 : index
    %8 = vector.load %arg5[%c0_8, %c0_9] : memref<256x2304xbf16, #tpu.memory_space<vmem>>, vector<256x2304xbf16>
    %cst = arith.constant dense<0.000000e+00> : vector<24x2304xf32>
    %9 = tpu.matmul %7, %8, %cst {dimension_numbers = #tpu.dot_dimension_numbers<[1], [0], [0], [1], [0, 0, 1, 1], [], []>} : vector<24x256xbf16>, vector<256x2304xbf16>, vector<24x2304xf32> -> vector<24x2304xf32>
    %10 = vector.extract_strided_slice %9 {offsets = [0, 0], sizes = [24, 256], strides = [1, 1]} : vector<24x2304xf32> to vector<24x256xf32>
    %11 = vector.extract_strided_slice %9 {offsets = [0, 256], sizes = [24, 256], strides = [1, 1]} : vector<24x2304xf32> to vector<24x256xf32>
    %12 = vector.extract_strided_slice %9 {offsets = [0, 512], sizes = [24, 256], strides = [1, 1]} : vector<24x2304xf32> to vector<24x256xf32>
    %13 = vector.extract_strided_slice %9 {offsets = [0, 768], sizes = [24, 256], strides = [1, 1]} : vector<24x2304xf32> to vector<24x256xf32>
    %14 = vector.extract_strided_slice %9 {offsets = [0, 1024], sizes = [24, 256], strides = [1, 1]} : vector<24x2304xf32> to vector<24x256xf32>
    %15 = vector.extract_strided_slice %9 {offsets = [0, 1280], sizes = [24, 256], strides = [1, 1]} : vector<24x2304xf32> to vector<24x256xf32>
    %16 = vector.extract_strided_slice %9 {offsets = [0, 1536], sizes = [24, 256], strides = [1, 1]} : vector<24x2304xf32> to vector<24x256xf32>
    %17 = vector.extract_strided_slice %9 {offsets = [0, 1792], sizes = [24, 256], strides = [1, 1]} : vector<24x2304xf32> to vector<24x256xf32>
    %18 = vector.extract_strided_slice %9 {offsets = [0, 2048], sizes = [24, 256], strides = [1, 1]} : vector<24x2304xf32> to vector<24x256xf32>
    %19 = tpu.concatenate %10, %11, %12, %13, %14, %15, %16, %17, %18 in 0 : vector<24x256xf32>, vector<24x256xf32>, vector<24x256xf32>, vector<24x256xf32>, vector<24x256xf32>, vector<24x256xf32>, vector<24x256xf32>, vector<24x256xf32>, vector<24x256xf32> -> vector<216x256xf32>
    %c0_10 = arith.constant 0 : index
    %c0_11 = arith.constant 0 : index
    %20 = vector.load %arg11[%c0_10, %c0_11] : memref<8x216xbf16, #tpu.memory_space<vmem>>, vector<8x216xbf16>
    %21 = arith.truncf %19 : vector<216x256xf32> to vector<216x256xbf16>
    %cst_12 = arith.constant dense<0.000000e+00> : vector<8x256xf32>
    %22 = tpu.matmul %20, %21, %cst_12 {dimension_numbers = #tpu.dot_dimension_numbers<[1], [0], [0], [1], [0, 0, 1, 1], [], []>} : vector<8x216xbf16>, vector<216x256xbf16>, vector<8x256xf32> -> vector<8x256xf32>
    %c0_13 = arith.constant 0 : index
    %c0_14 = arith.constant 0 : index
    %23 = vector.load %arg19[%c0_13, %c0_14] : memref<8x1xf32, #tpu.memory_space<vmem>>, vector<8x1xf32>
    %24 = vector.broadcast %23 : vector<8x1xf32> to vector<8x256xf32>
    %25 = arith.addf %22, %24 : vector<8x256xf32>
    %cst_15 = arith.constant 0.000000e+00 : f32
    %26 = vector.broadcast %cst_15 : f32 to vector<8x256xf32>
    %27 = arith.maximumf %25, %26 : vector<8x256xf32>
    %28 = arith.truncf %27 : vector<8x256xf32> to vector<8x256xbf16>
    %c0_16 = arith.constant 0 : index
    %c0_17 = arith.constant 0 : index
    %29 = vector.load %arg6[%c0_16, %c0_17] : memref<256x576xbf16, #tpu.memory_space<vmem>>, vector<256x576xbf16>
    %cst_18 = arith.constant dense<0.000000e+00> : vector<8x576xf32>
    %30 = tpu.matmul %28, %29, %cst_18 {dimension_numbers = #tpu.dot_dimension_numbers<[1], [0], [0], [1], [0, 0, 1, 1], [], []>} : vector<8x256xbf16>, vector<256x576xbf16>, vector<8x576xf32> -> vector<8x576xf32>
    %31 = vector.extract_strided_slice %30 {offsets = [0, 0], sizes = [8, 64], strides = [1, 1]} : vector<8x576xf32> to vector<8x64xf32>
    %32 = vector.extract_strided_slice %30 {offsets = [0, 64], sizes = [8, 64], strides = [1, 1]} : vector<8x576xf32> to vector<8x64xf32>
    %33 = vector.extract_strided_slice %30 {offsets = [0, 128], sizes = [8, 64], strides = [1, 1]} : vector<8x576xf32> to vector<8x64xf32>
    %34 = vector.extract_strided_slice %30 {offsets = [0, 192], sizes = [8, 64], strides = [1, 1]} : vector<8x576xf32> to vector<8x64xf32>
    %35 = vector.extract_strided_slice %30 {offsets = [0, 256], sizes = [8, 64], strides = [1, 1]} : vector<8x576xf32> to vector<8x64xf32>
    %36 = vector.extract_strided_slice %30 {offsets = [0, 320], sizes = [8, 64], strides = [1, 1]} : vector<8x576xf32> to vector<8x64xf32>
    %37 = vector.extract_strided_slice %30 {offsets = [0, 384], sizes = [8, 64], strides = [1, 1]} : vector<8x576xf32> to vector<8x64xf32>
    %38 = vector.extract_strided_slice %30 {offsets = [0, 448], sizes = [8, 64], strides = [1, 1]} : vector<8x576xf32> to vector<8x64xf32>
    %39 = vector.extract_strided_slice %30 {offsets = [0, 512], sizes = [8, 64], strides = [1, 1]} : vector<8x576xf32> to vector<8x64xf32>
    %40 = tpu.concatenate %31, %32, %33, %34, %35, %36, %37, %38, %39 in 0 : vector<8x64xf32>, vector<8x64xf32>, vector<8x64xf32>, vector<8x64xf32>, vector<8x64xf32>, vector<8x64xf32>, vector<8x64xf32>, vector<8x64xf32>, vector<8x64xf32> -> vector<72x64xf32>
    %c0_19 = arith.constant 0 : index
    %c0_20 = arith.constant 0 : index
    %41 = vector.load %arg12[%c0_19, %c0_20] : memref<16x72xbf16, #tpu.memory_space<vmem>>, vector<16x72xbf16>
    %42 = arith.truncf %40 : vector<72x64xf32> to vector<72x64xbf16>
    %cst_21 = arith.constant dense<0.000000e+00> : vector<16x64xf32>
    %43 = tpu.matmul %41, %42, %cst_21 {dimension_numbers = #tpu.dot_dimension_numbers<[1], [0], [0], [1], [0, 0, 1, 1], [], []>} : vector<16x72xbf16>, vector<72x64xbf16>, vector<16x64xf32> -> vector<16x64xf32>
    %c0_22 = arith.constant 0 : index
    %c0_23 = arith.constant 0 : index
    %44 = vector.load %arg20[%c0_22, %c0_23] : memref<16x1xf32, #tpu.memory_space<vmem>>, vector<16x1xf32>
    %45 = vector.broadcast %44 : vector<16x1xf32> to vector<16x64xf32>
    %46 = arith.addf %43, %45 : vector<16x64xf32>
    %cst_24 = arith.constant 0.000000e+00 : f32
    %47 = vector.broadcast %cst_24 : f32 to vector<16x64xf32>
    %48 = arith.maximumf %46, %47 : vector<16x64xf32>
    %49 = arith.truncf %48 : vector<16x64xf32> to vector<16x64xbf16>
    %c0_25 = arith.constant 0 : index
    %c0_26 = arith.constant 0 : index
    %50 = vector.load %arg7[%c0_25, %c0_26] : memref<64x144xbf16, #tpu.memory_space<vmem>>, vector<64x144xbf16>
    %cst_27 = arith.constant dense<0.000000e+00> : vector<16x144xf32>
    %51 = tpu.matmul %49, %50, %cst_27 {dimension_numbers = #tpu.dot_dimension_numbers<[1], [0], [0], [1], [0, 0, 1, 1], [], []>} : vector<16x64xbf16>, vector<64x144xbf16>, vector<16x144xf32> -> vector<16x144xf32>
    %52 = vector.extract_strided_slice %51 {offsets = [0, 0], sizes = [16, 16], strides = [1, 1]} : vector<16x144xf32> to vector<16x16xf32>
    %53 = vector.extract_strided_slice %51 {offsets = [0, 16], sizes = [16, 16], strides = [1, 1]} : vector<16x144xf32> to vector<16x16xf32>
    %54 = vector.extract_strided_slice %51 {offsets = [0, 32], sizes = [16, 16], strides = [1, 1]} : vector<16x144xf32> to vector<16x16xf32>
    %55 = vector.extract_strided_slice %51 {offsets = [0, 48], sizes = [16, 16], strides = [1, 1]} : vector<16x144xf32> to vector<16x16xf32>
    %56 = vector.extract_strided_slice %51 {offsets = [0, 64], sizes = [16, 16], strides = [1, 1]} : vector<16x144xf32> to vector<16x16xf32>
    %57 = vector.extract_strided_slice %51 {offsets = [0, 80], sizes = [16, 16], strides = [1, 1]} : vector<16x144xf32> to vector<16x16xf32>
    %58 = vector.extract_strided_slice %51 {offsets = [0, 96], sizes = [16, 16], strides = [1, 1]} : vector<16x144xf32> to vector<16x16xf32>
    %59 = vector.extract_strided_slice %51 {offsets = [0, 112], sizes = [16, 16], strides = [1, 1]} : vector<16x144xf32> to vector<16x16xf32>
    %60 = vector.extract_strided_slice %51 {offsets = [0, 128], sizes = [16, 16], strides = [1, 1]} : vector<16x144xf32> to vector<16x16xf32>
    %61 = tpu.concatenate %52, %53, %54, %55, %56, %57, %58, %59, %60 in 0 : vector<16x16xf32>, vector<16x16xf32>, vector<16x16xf32>, vector<16x16xf32>, vector<16x16xf32>, vector<16x16xf32>, vector<16x16xf32>, vector<16x16xf32>, vector<16x16xf32> -> vector<144x16xf32>
    %c0_28 = arith.constant 0 : index
    %c0_29 = arith.constant 0 : index
    %62 = vector.load %arg13[%c0_28, %c0_29] : memref<32x144xbf16, #tpu.memory_space<vmem>>, vector<32x144xbf16>
    %63 = arith.truncf %61 : vector<144x16xf32> to vector<144x16xbf16>
    %cst_30 = arith.constant dense<0.000000e+00> : vector<32x16xf32>
    %64 = tpu.matmul %62, %63, %cst_30 {dimension_numbers = #tpu.dot_dimension_numbers<[1], [0], [0], [1], [0, 0, 1, 1], [], []>} : vector<32x144xbf16>, vector<144x16xbf16>, vector<32x16xf32> -> vector<32x16xf32>
    %c0_31 = arith.constant 0 : index
    %c0_32 = arith.constant 0 : index
    %65 = vector.load %arg21[%c0_31, %c0_32] : memref<32x1xf32, #tpu.memory_space<vmem>>, vector<32x1xf32>
    %66 = vector.broadcast %65 : vector<32x1xf32> to vector<32x16xf32>
    %67 = arith.addf %64, %66 : vector<32x16xf32>
    %cst_33 = arith.constant 0.000000e+00 : f32
    %68 = vector.broadcast %cst_33 : f32 to vector<32x16xf32>
    %69 = arith.maximumf %67, %68 : vector<32x16xf32>
    %70 = arith.truncf %69 : vector<32x16xf32> to vector<32x16xbf16>
    %c0_34 = arith.constant 0 : index
    %c0_35 = arith.constant 0 : index
    %71 = vector.load %arg8[%c0_34, %c0_35] : memref<16x144xbf16, #tpu.memory_space<vmem>>, vector<16x144xbf16>
    %cst_36 = arith.constant dense<0.000000e+00> : vector<32x144xf32>
    %72 = tpu.matmul %70, %71, %cst_36 {dimension_numbers = #tpu.dot_dimension_numbers<[1], [0], [0], [1], [0, 0, 1, 1], [], []>} : vector<32x16xbf16>, vector<16x144xbf16>, vector<32x144xf32> -> vector<32x144xf32>
    %73 = vector.extract_strided_slice %72 {offsets = [0, 0], sizes = [32, 16], strides = [1, 1]} : vector<32x144xf32> to vector<32x16xf32>
    %74 = vector.extract_strided_slice %72 {offsets = [0, 16], sizes = [32, 16], strides = [1, 1]} : vector<32x144xf32> to vector<32x16xf32>
    %75 = vector.extract_strided_slice %72 {offsets = [0, 32], sizes = [32, 16], strides = [1, 1]} : vector<32x144xf32> to vector<32x16xf32>
    %76 = vector.extract_strided_slice %72 {offsets = [0, 48], sizes = [32, 16], strides = [1, 1]} : vector<32x144xf32> to vector<32x16xf32>
    %77 = vector.extract_strided_slice %72 {offsets = [0, 64], sizes = [32, 16], strides = [1, 1]} : vector<32x144xf32> to vector<32x16xf32>
    %78 = vector.extract_strided_slice %72 {offsets = [0, 80], sizes = [32, 16], strides = [1, 1]} : vector<32x144xf32> to vector<32x16xf32>
    %79 = vector.extract_strided_slice %72 {offsets = [0, 96], sizes = [32, 16], strides = [1, 1]} : vector<32x144xf32> to vector<32x16xf32>
    %80 = vector.extract_strided_slice %72 {offsets = [0, 112], sizes = [32, 16], strides = [1, 1]} : vector<32x144xf32> to vector<32x16xf32>
    %81 = vector.extract_strided_slice %72 {offsets = [0, 128], sizes = [32, 16], strides = [1, 1]} : vector<32x144xf32> to vector<32x16xf32>
    %82 = tpu.concatenate %73, %74, %75, %76, %77, %78, %79, %80, %81 in 0 : vector<32x16xf32>, vector<32x16xf32>, vector<32x16xf32>, vector<32x16xf32>, vector<32x16xf32>, vector<32x16xf32>, vector<32x16xf32>, vector<32x16xf32>, vector<32x16xf32> -> vector<288x16xf32>
    %c0_37 = arith.constant 0 : index
    %c0_38 = arith.constant 0 : index
    %83 = vector.load %arg14[%c0_37, %c0_38] : memref<32x288xbf16, #tpu.memory_space<vmem>>, vector<32x288xbf16>
    %84 = arith.truncf %82 : vector<288x16xf32> to vector<288x16xbf16>
    %cst_39 = arith.constant dense<0.000000e+00> : vector<32x16xf32>
    %85 = tpu.matmul %83, %84, %cst_39 {dimension_numbers = #tpu.dot_dimension_numbers<[1], [0], [0], [1], [0, 0, 1, 1], [], []>} : vector<32x288xbf16>, vector<288x16xbf16>, vector<32x16xf32> -> vector<32x16xf32>
    %c0_40 = arith.constant 0 : index
    %c0_41 = arith.constant 0 : index
    %86 = vector.load %arg22[%c0_40, %c0_41] : memref<32x1xf32, #tpu.memory_space<vmem>>, vector<32x1xf32>
    %87 = vector.broadcast %86 : vector<32x1xf32> to vector<32x16xf32>
    %88 = arith.addf %85, %87 : vector<32x16xf32>
    %cst_42 = arith.constant 0.000000e+00 : f32
    %89 = vector.broadcast %cst_42 : f32 to vector<32x16xf32>
    %90 = arith.maximumf %88, %89 : vector<32x16xf32>
    %91 = arith.addf %90, %69 : vector<32x16xf32>
    %92 = arith.truncf %91 : vector<32x16xf32> to vector<32x16xbf16>
    %c0_43 = arith.constant 0 : index
    %c0_44 = arith.constant 0 : index
    %93 = vector.load %arg8[%c0_43, %c0_44] : memref<16x144xbf16, #tpu.memory_space<vmem>>, vector<16x144xbf16>
    %cst_45 = arith.constant dense<0.000000e+00> : vector<32x144xf32>
    %94 = tpu.matmul %92, %93, %cst_45 {dimension_numbers = #tpu.dot_dimension_numbers<[1], [0], [0], [1], [0, 0, 1, 1], [], []>} : vector<32x16xbf16>, vector<16x144xbf16>, vector<32x144xf32> -> vector<32x144xf32>
    %95 = vector.extract_strided_slice %94 {offsets = [0, 0], sizes = [32, 16], strides = [1, 1]} : vector<32x144xf32> to vector<32x16xf32>
    %96 = vector.extract_strided_slice %94 {offsets = [0, 16], sizes = [32, 16], strides = [1, 1]} : vector<32x144xf32> to vector<32x16xf32>
    %97 = vector.extract_strided_slice %94 {offsets = [0, 32], sizes = [32, 16], strides = [1, 1]} : vector<32x144xf32> to vector<32x16xf32>
    %98 = vector.extract_strided_slice %94 {offsets = [0, 48], sizes = [32, 16], strides = [1, 1]} : vector<32x144xf32> to vector<32x16xf32>
    %99 = vector.extract_strided_slice %94 {offsets = [0, 64], sizes = [32, 16], strides = [1, 1]} : vector<32x144xf32> to vector<32x16xf32>
    %100 = vector.extract_strided_slice %94 {offsets = [0, 80], sizes = [32, 16], strides = [1, 1]} : vector<32x144xf32> to vector<32x16xf32>
    %101 = vector.extract_strided_slice %94 {offsets = [0, 96], sizes = [32, 16], strides = [1, 1]} : vector<32x144xf32> to vector<32x16xf32>
    %102 = vector.extract_strided_slice %94 {offsets = [0, 112], sizes = [32, 16], strides = [1, 1]} : vector<32x144xf32> to vector<32x16xf32>
    %103 = vector.extract_strided_slice %94 {offsets = [0, 128], sizes = [32, 16], strides = [1, 1]} : vector<32x144xf32> to vector<32x16xf32>
    %104 = tpu.concatenate %95, %96, %97, %98, %99, %100, %101, %102, %103 in 0 : vector<32x16xf32>, vector<32x16xf32>, vector<32x16xf32>, vector<32x16xf32>, vector<32x16xf32>, vector<32x16xf32>, vector<32x16xf32>, vector<32x16xf32>, vector<32x16xf32> -> vector<288x16xf32>
    %c0_46 = arith.constant 0 : index
    %c0_47 = arith.constant 0 : index
    %105 = vector.load %arg15[%c0_46, %c0_47] : memref<32x288xbf16, #tpu.memory_space<vmem>>, vector<32x288xbf16>
    %106 = arith.truncf %104 : vector<288x16xf32> to vector<288x16xbf16>
    %cst_48 = arith.constant dense<0.000000e+00> : vector<32x16xf32>
    %107 = tpu.matmul %105, %106, %cst_48 {dimension_numbers = #tpu.dot_dimension_numbers<[1], [0], [0], [1], [0, 0, 1, 1], [], []>} : vector<32x288xbf16>, vector<288x16xbf16>, vector<32x16xf32> -> vector<32x16xf32>
    %c0_49 = arith.constant 0 : index
    %c0_50 = arith.constant 0 : index
    %108 = vector.load %arg23[%c0_49, %c0_50] : memref<32x1xf32, #tpu.memory_space<vmem>>, vector<32x1xf32>
    %109 = vector.broadcast %108 : vector<32x1xf32> to vector<32x16xf32>
    %110 = arith.addf %107, %109 : vector<32x16xf32>
    %cst_51 = arith.constant 0.000000e+00 : f32
    %111 = vector.broadcast %cst_51 : f32 to vector<32x16xf32>
    %112 = arith.maximumf %110, %111 : vector<32x16xf32>
    %113 = arith.addf %112, %91 : vector<32x16xf32>
    %114 = arith.truncf %113 : vector<32x16xf32> to vector<32x16xbf16>
    %c0_52 = arith.constant 0 : index
    %c0_53 = arith.constant 0 : index
    %115 = vector.load %arg9[%c0_52, %c0_53] : memref<16x576xbf16, #tpu.memory_space<vmem>>, vector<16x576xbf16>
    %cst_54 = arith.constant dense<0.000000e+00> : vector<32x576xf32>
    %116 = tpu.matmul %114, %115, %cst_54 {dimension_numbers = #tpu.dot_dimension_numbers<[1], [0], [0], [1], [0, 0, 1, 1], [], []>} : vector<32x16xbf16>, vector<16x576xbf16>, vector<32x576xf32> -> vector<32x576xf32>
    %117 = vector.extract_strided_slice %116 {offsets = [0, 0], sizes = [32, 64], strides = [1, 1]} : vector<32x576xf32> to vector<32x64xf32>
    %118 = vector.extract_strided_slice %116 {offsets = [0, 64], sizes = [32, 64], strides = [1, 1]} : vector<32x576xf32> to vector<32x64xf32>
    %119 = vector.extract_strided_slice %116 {offsets = [0, 128], sizes = [32, 64], strides = [1, 1]} : vector<32x576xf32> to vector<32x64xf32>
    %120 = vector.extract_strided_slice %116 {offsets = [0, 192], sizes = [32, 64], strides = [1, 1]} : vector<32x576xf32> to vector<32x64xf32>
    %121 = vector.extract_strided_slice %116 {offsets = [0, 256], sizes = [32, 64], strides = [1, 1]} : vector<32x576xf32> to vector<32x64xf32>
    %122 = vector.extract_strided_slice %116 {offsets = [0, 320], sizes = [32, 64], strides = [1, 1]} : vector<32x576xf32> to vector<32x64xf32>
    %123 = vector.extract_strided_slice %116 {offsets = [0, 384], sizes = [32, 64], strides = [1, 1]} : vector<32x576xf32> to vector<32x64xf32>
    %124 = vector.extract_strided_slice %116 {offsets = [0, 448], sizes = [32, 64], strides = [1, 1]} : vector<32x576xf32> to vector<32x64xf32>
    %125 = vector.extract_strided_slice %116 {offsets = [0, 512], sizes = [32, 64], strides = [1, 1]} : vector<32x576xf32> to vector<32x64xf32>
    %126 = tpu.concatenate %117, %118, %119, %120, %121, %122, %123, %124, %125 in 0 : vector<32x64xf32>, vector<32x64xf32>, vector<32x64xf32>, vector<32x64xf32>, vector<32x64xf32>, vector<32x64xf32>, vector<32x64xf32>, vector<32x64xf32>, vector<32x64xf32> -> vector<288x64xf32>
    %c0_55 = arith.constant 0 : index
    %c0_56 = arith.constant 0 : index
    %127 = vector.load %arg16[%c0_55, %c0_56] : memref<16x288xbf16, #tpu.memory_space<vmem>>, vector<16x288xbf16>
    %128 = arith.truncf %126 : vector<288x64xf32> to vector<288x64xbf16>
    %cst_57 = arith.constant dense<0.000000e+00> : vector<16x64xf32>
    %129 = tpu.matmul %127, %128, %cst_57 {dimension_numbers = #tpu.dot_dimension_numbers<[1], [0], [0], [1], [0, 0, 1, 1], [], []>} : vector<16x288xbf16>, vector<288x64xbf16>, vector<16x64xf32> -> vector<16x64xf32>
    %c0_58 = arith.constant 0 : index
    %c0_59 = arith.constant 0 : index
    %130 = vector.load %arg24[%c0_58, %c0_59] : memref<16x1xf32, #tpu.memory_space<vmem>>, vector<16x1xf32>
    %131 = vector.broadcast %130 : vector<16x1xf32> to vector<16x64xf32>
    %132 = arith.addf %129, %131 : vector<16x64xf32>
    %cst_60 = arith.constant 0.000000e+00 : f32
    %133 = vector.broadcast %cst_60 : f32 to vector<16x64xf32>
    %134 = arith.maximumf %132, %133 : vector<16x64xf32>
    %135 = arith.truncf %134 : vector<16x64xf32> to vector<16x64xbf16>
    %c0_61 = arith.constant 0 : index
    %c0_62 = arith.constant 0 : index
    %136 = vector.load %arg10[%c0_61, %c0_62] : memref<64x2304xbf16, #tpu.memory_space<vmem>>, vector<64x2304xbf16>
    %cst_63 = arith.constant dense<0.000000e+00> : vector<16x2304xf32>
    %137 = tpu.matmul %135, %136, %cst_63 {dimension_numbers = #tpu.dot_dimension_numbers<[1], [0], [0], [1], [0, 0, 1, 1], [], []>} : vector<16x64xbf16>, vector<64x2304xbf16>, vector<16x2304xf32> -> vector<16x2304xf32>
    %138 = vector.extract_strided_slice %137 {offsets = [0, 0], sizes = [16, 256], strides = [1, 1]} : vector<16x2304xf32> to vector<16x256xf32>
    %139 = vector.extract_strided_slice %137 {offsets = [0, 256], sizes = [16, 256], strides = [1, 1]} : vector<16x2304xf32> to vector<16x256xf32>
    %140 = vector.extract_strided_slice %137 {offsets = [0, 512], sizes = [16, 256], strides = [1, 1]} : vector<16x2304xf32> to vector<16x256xf32>
    %141 = vector.extract_strided_slice %137 {offsets = [0, 768], sizes = [16, 256], strides = [1, 1]} : vector<16x2304xf32> to vector<16x256xf32>
    %142 = vector.extract_strided_slice %137 {offsets = [0, 1024], sizes = [16, 256], strides = [1, 1]} : vector<16x2304xf32> to vector<16x256xf32>
    %143 = vector.extract_strided_slice %137 {offsets = [0, 1280], sizes = [16, 256], strides = [1, 1]} : vector<16x2304xf32> to vector<16x256xf32>
    %144 = vector.extract_strided_slice %137 {offsets = [0, 1536], sizes = [16, 256], strides = [1, 1]} : vector<16x2304xf32> to vector<16x256xf32>
    %145 = vector.extract_strided_slice %137 {offsets = [0, 1792], sizes = [16, 256], strides = [1, 1]} : vector<16x2304xf32> to vector<16x256xf32>
    %146 = vector.extract_strided_slice %137 {offsets = [0, 2048], sizes = [16, 256], strides = [1, 1]} : vector<16x2304xf32> to vector<16x256xf32>
    %147 = tpu.concatenate %138, %139, %140, %141, %142, %143, %144, %145, %146 in 0 : vector<16x256xf32>, vector<16x256xf32>, vector<16x256xf32>, vector<16x256xf32>, vector<16x256xf32>, vector<16x256xf32>, vector<16x256xf32>, vector<16x256xf32>, vector<16x256xf32> -> vector<144x256xf32>
    %c0_64 = arith.constant 0 : index
    %c0_65 = arith.constant 0 : index
    %148 = vector.load %arg17[%c0_64, %c0_65] : memref<8x144xbf16, #tpu.memory_space<vmem>>, vector<8x144xbf16>
    %149 = arith.truncf %147 : vector<144x256xf32> to vector<144x256xbf16>
    %cst_66 = arith.constant dense<0.000000e+00> : vector<8x256xf32>
    %150 = tpu.matmul %148, %149, %cst_66 {dimension_numbers = #tpu.dot_dimension_numbers<[1], [0], [0], [1], [0, 0, 1, 1], [], []>} : vector<8x144xbf16>, vector<144x256xbf16>, vector<8x256xf32> -> vector<8x256xf32>
    %c0_67 = arith.constant 0 : index
    %c0_68 = arith.constant 0 : index
    %151 = vector.load %arg25[%c0_67, %c0_68] : memref<8x1xf32, #tpu.memory_space<vmem>>, vector<8x1xf32>
    %152 = vector.broadcast %151 : vector<8x1xf32> to vector<8x256xf32>
    %153 = arith.addf %150, %152 : vector<8x256xf32>
    %cst_69 = arith.constant 0.000000e+00 : f32
    %154 = vector.broadcast %cst_69 : f32 to vector<8x256xf32>
    %155 = arith.maximumf %153, %154 : vector<8x256xf32>
    %156 = arith.truncf %155 : vector<8x256xf32> to vector<8x256xbf16>
    %c0_70 = arith.constant 0 : index
    %c0_71 = arith.constant 0 : index
    %157 = vector.load %arg5[%c0_70, %c0_71] : memref<256x2304xbf16, #tpu.memory_space<vmem>>, vector<256x2304xbf16>
    %cst_72 = arith.constant dense<0.000000e+00> : vector<8x2304xf32>
    %158 = tpu.matmul %156, %157, %cst_72 {dimension_numbers = #tpu.dot_dimension_numbers<[1], [0], [0], [1], [0, 0, 1, 1], [], []>} : vector<8x256xbf16>, vector<256x2304xbf16>, vector<8x2304xf32> -> vector<8x2304xf32>
    %159 = vector.extract_strided_slice %158 {offsets = [0, 0], sizes = [8, 256], strides = [1, 1]} : vector<8x2304xf32> to vector<8x256xf32>
    %160 = vector.extract_strided_slice %158 {offsets = [0, 256], sizes = [8, 256], strides = [1, 1]} : vector<8x2304xf32> to vector<8x256xf32>
    %161 = vector.extract_strided_slice %158 {offsets = [0, 512], sizes = [8, 256], strides = [1, 1]} : vector<8x2304xf32> to vector<8x256xf32>
    %162 = vector.extract_strided_slice %158 {offsets = [0, 768], sizes = [8, 256], strides = [1, 1]} : vector<8x2304xf32> to vector<8x256xf32>
    %163 = vector.extract_strided_slice %158 {offsets = [0, 1024], sizes = [8, 256], strides = [1, 1]} : vector<8x2304xf32> to vector<8x256xf32>
    %164 = vector.extract_strided_slice %158 {offsets = [0, 1280], sizes = [8, 256], strides = [1, 1]} : vector<8x2304xf32> to vector<8x256xf32>
    %165 = vector.extract_strided_slice %158 {offsets = [0, 1536], sizes = [8, 256], strides = [1, 1]} : vector<8x2304xf32> to vector<8x256xf32>
    %166 = vector.extract_strided_slice %158 {offsets = [0, 1792], sizes = [8, 256], strides = [1, 1]} : vector<8x2304xf32> to vector<8x256xf32>
    %167 = vector.extract_strided_slice %158 {offsets = [0, 2048], sizes = [8, 256], strides = [1, 1]} : vector<8x2304xf32> to vector<8x256xf32>
    %168 = tpu.concatenate %159, %160, %161, %162, %163, %164, %165, %166, %167 in 0 : vector<8x256xf32>, vector<8x256xf32>, vector<8x256xf32>, vector<8x256xf32>, vector<8x256xf32>, vector<8x256xf32>, vector<8x256xf32>, vector<8x256xf32>, vector<8x256xf32> -> vector<72x256xf32>
    %c0_73 = arith.constant 0 : index
    %c0_74 = arith.constant 0 : index
    %169 = vector.load %arg18[%c0_73, %c0_74] : memref<8x72xbf16, #tpu.memory_space<vmem>>, vector<8x72xbf16>
    %170 = arith.truncf %168 : vector<72x256xf32> to vector<72x256xbf16>
    %cst_75 = arith.constant dense<0.000000e+00> : vector<8x256xf32>
    %171 = tpu.matmul %169, %170, %cst_75 {dimension_numbers = #tpu.dot_dimension_numbers<[1], [0], [0], [1], [0, 0, 1, 1], [], []>} : vector<8x72xbf16>, vector<72x256xbf16>, vector<8x256xf32> -> vector<8x256xf32>
    %172 = vector.extract_strided_slice %171 {offsets = [0, 0], sizes = [3, 256], strides = [1, 1]} : vector<8x256xf32> to vector<3x256xf32>
    %c0_76 = arith.constant 0 : index
    %c0_77 = arith.constant 0 : index
    %c0_78 = arith.constant 0 : index
    %173 = vector.load %arg27[%c0_76, %c0_77, %c0_78] : memref<1x3x256xf32, #tpu.memory_space<vmem>>, vector<1x3x256xf32>
    %174 = vector.shape_cast %173 : vector<1x3x256xf32> to vector<3x256xf32>
    %175 = vector.shape_cast %172 : vector<3x256xf32> to vector<1x3x256xf32>
    tpu.vector_store %arg27[%c0_76, %c0_77, %c0_78], %175 {strides = array<i32>} : memref<1x3x256xf32, #tpu.memory_space<vmem>>, vector<1x3x256xf32>,
    return
  }
  func.func @transform_0(%arg0: i32, %arg1: memref<2x2xi32, #tpu.memory_space<smem>>) -> (i32, i32, i32) {
    %c0_i32 = arith.constant 0 : i32
    %c0_i32_0 = arith.constant 0 : i32
    %c0_i32_1 = arith.constant 0 : i32
    return %arg0, %c0_i32, %c0_i32_0 : i32, i32, i32
  }
  func.func @transform_1(%arg0: i32, %arg1: memref<2x2xi32, #tpu.memory_space<smem>>) -> (i32, i32, i32) {
    %0 = arith.index_cast %arg0 : i32 to index
    %c0 = arith.constant 0 : index
    %1 = memref.load %arg1[%0, %c0] : memref<2x2xi32, #tpu.memory_space<smem>>
    %c0_i32 = arith.constant 0 : i32
    %c0_i32_0 = arith.constant 0 : i32
    %c0_i32_1 = arith.constant 0 : i32
    return %1, %c0_i32, %c0_i32_0 : i32, i32, i32
  }
  func.func @transform_2(%arg0: i32, %arg1: memref<2x2xi32, #tpu.memory_space<smem>>) -> (i32, i32, i32) {
    %0 = arith.index_cast %arg0 : i32 to index
    %c1 = arith.constant 1 : index
    %1 = memref.load %arg1[%0, %c1] : memref<2x2xi32, #tpu.memory_space<smem>>
    %c0_i32 = arith.constant 0 : i32
    %c0_i32_0 = arith.constant 0 : i32
    %c0_i32_1 = arith.constant 0 : i32
    return %1, %c0_i32, %c0_i32_0 : i32, i32, i32
  }
  func.func @transform_3(%arg0: i32, %arg1: memref<2x2xi32, #tpu.memory_space<smem>>) -> (i32, i32) {
    %c0_i32 = arith.constant 0 : i32
    %c0_i32_0 = arith.constant 0 : i32
    %c0_i32_1 = arith.constant 0 : i32
    return %c0_i32, %c0_i32_0 : i32, i32
  }
  func.func @transform_4(%arg0: i32, %arg1: memref<2x2xi32, #tpu.memory_space<smem>>) -> (i32, i32) {
    %c0_i32 = arith.constant 0 : i32
    %c0_i32_0 = arith.constant 0 : i32
    %c0_i32_1 = arith.constant 0 : i32
    return %c0_i32, %c0_i32_0 : i32, i32
  }
  func.func @transform_5(%arg0: i32, %arg1: memref<2x2xi32, #tpu.memory_space<smem>>) -> (i32, i32) {
    %c0_i32 = arith.constant 0 : i32
    %c0_i32_0 = arith.constant 0 : i32
    %c0_i32_1 = arith.constant 0 : i32
    return %c0_i32, %c0_i32_0 : i32, i32
  }
  func.func @transform_6(%arg0: i32, %arg1: memref<2x2xi32, #tpu.memory_space<smem>>) -> (i32, i32) {
    %c0_i32 = arith.constant 0 : i32
    %c0_i32_0 = arith.constant 0 : i32
    %c0_i32_1 = arith.constant 0 : i32
    return %c0_i32, %c0_i32_0 : i32, i32
  }
  func.func @transform_7(%arg0: i32, %arg1: memref<2x2xi32, #tpu.memory_space<smem>>) -> (i32, i32) {
    %c0_i32 = arith.constant 0 : i32
    %c0_i32_0 = arith.constant 0 : i32
    %c0_i32_1 = arith.constant 0 : i32
    return %c0_i32, %c0_i32_0 : i32, i32
  }
  func.func @transform_8(%arg0: i32, %arg1: memref<2x2xi32, #tpu.memory_space<smem>>) -> (i32, i32) {
    %c0_i32 = arith.constant 0 : i32
    %c0_i32_0 = arith.constant 0 : i32
    %c0_i32_1 = arith.constant 0 : i32
    return %c0_i32, %c0_i32_0 : i32, i32
  }
  func.func @transform_9(%arg0: i32, %arg1: memref<2x2xi32, #tpu.memory_space<smem>>) -> (i32, i32) {
    %c0_i32 = arith.constant 0 : i32
    %c0_i32_0 = arith.constant 0 : i32
    %c0_i32_1 = arith.constant 0 : i32
    return %c0_i32, %c0_i32_0 : i32, i32
  }
  func.func @transform_10(%arg0: i32, %arg1: memref<2x2xi32, #tpu.memory_space<smem>>) -> (i32, i32) {
    %c0_i32 = arith.constant 0 : i32
    %c0_i32_0 = arith.constant 0 : i32
    %c0_i32_1 = arith.constant 0 : i32
    return %c0_i32, %c0_i32_0 : i32, i32
  }
  func.func @transform_11(%arg0: i32, %arg1: memref<2x2xi32, #tpu.memory_space<smem>>) -> (i32, i32) {
    %c0_i32 = arith.constant 0 : i32
    %c0_i32_0 = arith.constant 0 : i32
    %c0_i32_1 = arith.constant 0 : i32
    return %c0_i32, %c0_i32_0 : i32, i32
  }
  func.func @transform_12(%arg0: i32, %arg1: memref<2x2xi32, #tpu.memory_space<smem>>) -> (i32, i32) {
    %c0_i32 = arith.constant 0 : i32
    %c0_i32_0 = arith.constant 0 : i32
    %c0_i32_1 = arith.constant 0 : i32
    return %c0_i32, %c0_i32_0 : i32, i32
  }
  func.func @transform_13(%arg0: i32, %arg1: memref<2x2xi32, #tpu.memory_space<smem>>) -> (i32, i32) {
    %c0_i32 = arith.constant 0 : i32
    %c0_i32_0 = arith.constant 0 : i32
    %c0_i32_1 = arith.constant 0 : i32
    return %c0_i32, %c0_i32_0 : i32, i32
  }
  func.func @transform_14(%arg0: i32, %arg1: memref<2x2xi32, #tpu.memory_space<smem>>) -> (i32, i32) {
    %c0_i32 = arith.constant 0 : i32
    %c0_i32_0 = arith.constant 0 : i32
    %c0_i32_1 = arith.constant 0 : i32
    return %c0_i32, %c0_i32_0 : i32, i32
  }
  func.func @transform_15(%arg0: i32, %arg1: memref<2x2xi32, #tpu.memory_space<smem>>) -> (i32, i32) {
    %c0_i32 = arith.constant 0 : i32
    %c0_i32_0 = arith.constant 0 : i32
    %c0_i32_1 = arith.constant 0 : i32
    return %c0_i32, %c0_i32_0 : i32, i32
  }
  func.func @transform_16(%arg0: i32, %arg1: memref<2x2xi32, #tpu.memory_space<smem>>) -> (i32, i32) {
    %c0_i32 = arith.constant 0 : i32
    %c0_i32_0 = arith.constant 0 : i32
    %c0_i32_1 = arith.constant 0 : i32
    return %c0_i32, %c0_i32_0 : i32, i32
  }
  func.func @transform_17(%arg0: i32, %arg1: memref<2x2xi32, #tpu.memory_space<smem>>) -> (i32, i32) {
    %c0_i32 = arith.constant 0 : i32
    %c0_i32_0 = arith.constant 0 : i32
    %c0_i32_1 = arith.constant 0 : i32
    return %c0_i32, %c0_i32_0 : i32, i32
  }
  func.func @transform_18(%arg0: i32, %arg1: memref<2x2xi32, #tpu.memory_space<smem>>) -> (i32, i32) {
    %c0_i32 = arith.constant 0 : i32
    %c0_i32_0 = arith.constant 0 : i32
    %c0_i32_1 = arith.constant 0 : i32
    return %c0_i32, %c0_i32_0 : i32, i32
  }
  func.func @transform_19(%arg0: i32, %arg1: memref<2x2xi32, #tpu.memory_space<smem>>) -> (i32, i32) {
    %c0_i32 = arith.constant 0 : i32
    %c0_i32_0 = arith.constant 0 : i32
    %c0_i32_1 = arith.constant 0 : i32
    return %c0_i32, %c0_i32_0 : i32, i32
  }
  func.func @transform_20(%arg0: i32, %arg1: memref<2x2xi32, #tpu.memory_space<smem>>) -> (i32, i32) {
    %c0_i32 = arith.constant 0 : i32
    %c0_i32_0 = arith.constant 0 : i32
    %c0_i32_1 = arith.constant 0 : i32
    return %c0_i32, %c0_i32_0 : i32, i32
  }
  func.func @transform_21(%arg0: i32, %arg1: memref<2x2xi32, #tpu.memory_space<smem>>) -> (i32, i32) {
    %c0_i32 = arith.constant 0 : i32
    %c0_i32_0 = arith.constant 0 : i32
    %c0_i32_1 = arith.constant 0 : i32
    return %c0_i32, %c0_i32_0 : i32, i32
  }
  func.func @transform_22(%arg0: i32, %arg1: memref<2x2xi32, #tpu.memory_space<smem>>) -> (i32, i32) {
    %c0_i32 = arith.constant 0 : i32
    %c0_i32_0 = arith.constant 0 : i32
    %c0_i32_1 = arith.constant 0 : i32
    return %c0_i32, %c0_i32_0 : i32, i32
  }
  func.func @transform_23(%arg0: i32, %arg1: memref<2x2xi32, #tpu.memory_space<smem>>) -> (i32, i32) {
    %c0_i32 = arith.constant 0 : i32
    %c0_i32_0 = arith.constant 0 : i32
    %c0_i32_1 = arith.constant 0 : i32
    return %c0_i32, %c0_i32_0 : i32, i32
  }
  func.func @transform_24(%arg0: i32, %arg1: memref<2x2xi32, #tpu.memory_space<smem>>) -> (i32, i32) {
    %c0_i32 = arith.constant 0 : i32
    %c0_i32_0 = arith.constant 0 : i32
    %c0_i32_1 = arith.constant 0 : i32
    return %c0_i32, %c0_i32_0 : i32, i32
  }
  func.func @transform_25(%arg0: i32, %arg1: memref<2x2xi32, #tpu.memory_space<smem>>) -> (i32, i32, i32) {
    %c0_i32 = arith.constant 0 : i32
    %c0_i32_0 = arith.constant 0 : i32
    %c0_i32_1 = arith.constant 0 : i32
    return %arg0, %c0_i32, %c0_i32_0 : i32, i32, i32
  }
}

</mosaic_0001>

<llo_original>
// kernel: forward.1
$region0: #{forward.1}
  #allocation0 [shape = 'u32[]', space=smem, size = 0x4, offset = 0x4, fixed_abs, tag = 'smem constant byte address 0x4 - core index']
  #allocation1 [shape = 'u32[144,128]{1,0:T(1,128)}', space=vmem, size = 0x12000, scoped, tag = 'internal scratch']
  #allocation2 [shape = 's32[1]{0}', space=sflag, size = 0x4, scoped, tag = 'scoped memory for forward.1']
  #allocation3 [shape = 'u8[1024]{0}', space=smem, size = 0x400, scoped, tag = 'prefetched SMEM operand 0']
  %s0 = inlined_call_operand.hbm [shape: s32[2,2], index: 0, kind: input, shape index: {}]
  %s1 = inlined_call_operand.vmem [shape: f32[2,8,256], index: 1, kind: input, shape index: {}]
  %s2 = inlined_call_operand.hbm [shape: f32[5,8,256], index: 2, kind: input, shape index: {}]
  %s3 = inlined_call_operand.hbm [shape: f32[7,8,256], index: 3, kind: input, shape index: {}]
  %s4 = inlined_call_operand.hbm [shape: bf16[256,2304], index: 4, kind: input, shape index: {}]
  %s5 = inlined_call_operand.vmem [shape: bf16[256,576], index: 5, kind: input, shape index: {}]
  %s6 = inlined_call_operand.hbm [shape: bf16[64,144], index: 6, kind: input, shape index: {}]
  %s7 = inlined_call_operand.hbm [shape: bf16[16,144], index: 7, kind: input, shape index: {}]
  %s8 = inlined_call_operand.hbm [shape: bf16[16,576], index: 8, kind: input, shape index: {}]
  %s9 = inlined_call_operand.hbm [shape: bf16[64,2304], index: 9, kind: input, shape index: {}]
  %s10 = inlined_call_operand.hbm [shape: bf16[8,216], index: 10, kind: input, shape index: {}]
  %s11 = inlined_call_operand.hbm [shape: bf16[16,72], index: 11, kind: input, shape index: {}]
  %s12 = inlined_call_operand.hbm [shape: bf16[32,144], index: 12, kind: input, shape index: {}]
  %s13 = inlined_call_operand.hbm [shape: bf16[32,288], index: 13, kind: input, shape index: {}]
  %s14 = inlined_call_operand.hbm [shape: bf16[32,288], index: 14, kind: input, shape index: {}]
  %s15 = inlined_call_operand.hbm [shape: bf16[16,288], index: 15, kind: input, shape index: {}]
  %s16 = inlined_call_operand.hbm [shape: bf16[8,144], index: 16, kind: input, shape index: {}]
  %s17 = inlined_call_operand.hbm [shape: bf16[8,72], index: 17, kind: input, shape index: {}]
  %s18 = inlined_call_operand.vmem [shape: f32[8,1], index: 18, kind: input, shape index: {}]
  %s19 = inlined_call_operand.vmem [shape: f32[16,1], index: 19, kind: input, shape index: {}]
  %s20 = inlined_call_operand.vmem [shape: f32[32,1], index: 20, kind: input, shape index: {}]
  %s21 = inlined_call_operand.vmem [shape: f32[32,1], index: 21, kind: input, shape index: {}]
  %s22 = inlined_call_operand.vmem [shape: f32[32,1], index: 22, kind: input, shape index: {}]
  %s23 = inlined_call_operand.vmem [shape: f32[16,1], index: 23, kind: input, shape index: {}]
  %s24 = inlined_call_operand.vmem [shape: f32[8,1], index: 24, kind: input, shape index: {}]
  %s25 = inlined_call_operand.vmem [shape: f32[8,1], index: 25, kind: input, shape index: {}]
  %s26 = inlined_call_operand.vmem [shape: f32[2,3,256], index: 26, kind: output, shape index: {}]
  %s27 = sld [smem:[#allocation0]]
  $region193: #{forward.1} parent=0
    _
  %s29 = ssub.s32 1, %s27
  %s30 = scalar_select 0, %s29, %s27
  %32 = dma.hbm_to_smem %s0, 32, [#allocation3], [#allocation2]
  %33 = dma.done [#allocation2], 32
  %34 = sfence
  $region1: #{forward.1} parent=0
    #allocation4 [shape = 'u8[16384]{0}', space=vmem, size = 0x4000, scoped, tag = 'input window, operand 2']
    #allocation5 [shape = 's32[2]{0}', space=sflag, size = 0x8, scoped, tag = 'scoped memory for forward.1']
    #allocation6 [shape = 'u8[16384]{0}', space=vmem, size = 0x4000, scoped, tag = 'input window, operand 3']
    #allocation7 [shape = 's32[2]{0}', space=sflag, size = 0x8, scoped, tag = 'scoped memory for forward.1']
    #allocation8 [shape = 'u8[1179648]{0}', space=vmem, size = 0x120000, scoped, tag = 'input window, operand 4, single buffered']
    #allocation9 [shape = 'u8[32768]{0}', space=vmem, size = 0x8000, scoped, tag = 'input window, operand 6, single buffered']
    #allocation10 [shape = 's32[1]{0}', space=sflag, size = 0x4, scoped, tag = 'scoped memory for forward.1']
    #allocation11 [shape = 'u8[8192]{0}', space=vmem, size = 0x2000, scoped, tag = 'input window, operand 7, single buffered']
    #allocation12 [shape = 'u8[20480]{0}', space=vmem, size = 0x5000, scoped, tag = 'input window, operand 8, single buffered']
    #allocation13 [shape = 's32[1]{0}', space=sflag, size = 0x4, scoped, tag = 'scoped memory for forward.1']
    #allocation14 [shape = 'u8[294912]{0}', space=vmem, size = 0x48000, scoped, tag = 'input window, operand 9, single buffered']
    #allocation15 [shape = 'u8[4096]{0}', space=vmem, size = 0x1000, scoped, tag = 'input window, operand 10, single buffered']
    #allocation16 [shape = 's32[1]{0}', space=sflag, size = 0x4, scoped, tag = 'scoped memory for forward.1']
    #allocation17 [shape = 'u8[4096]{0}', space=vmem, size = 0x1000, scoped, tag = 'input window, operand 11, single buffered']
    #allocation18 [shape = 'u8[16384]{0}', space=vmem, size = 0x4000, scoped, tag = 'input window, operand 12, single buffered']
    #allocation19 [shape = 's32[1]{0}', space=sflag, size = 0x4, scoped, tag = 'scoped memory for forward.1']
    #allocation20 [shape = 'u8[24576]{0}', space=vmem, size = 0x6000, scoped, tag = 'input window, operand 13, single buffered']
    #allocation21 [shape = 'u8[24576]{0}', space=vmem, size = 0x6000, scoped, tag = 'input window, operand 14, single buffered']
    #allocation22 [shape = 's32[1]{0}', space=sflag, size = 0x4, scoped, tag = 'scoped memory for forward.1']
    #allocation23 [shape = 'u8[12288]{0}', space=vmem, size = 0x3000, scoped, tag = 'input window, operand 15, single buffered']
    #allocation24 [shape = 'u8[4096]{0}', space=vmem, size = 0x1000, scoped, tag = 'input window, operand 16, single buffered']
    #allocation25 [shape = 's32[1]{0}', space=sflag, size = 0x4, scoped, tag = 'scoped memory for forward.1']
    #allocation26 [shape = 'u8[2048]{0}', space=vmem, size = 0x800, scoped, tag = 'input window, operand 17, single buffered']
    %35 = vsyncpa [#allocation5], 0
    %s36 = scalar_lea.sflag [#allocation5], 1
    %37 = vsyncpa %s36, 0
    %38 = vsyncpa [#allocation7], 0
    %s39 = scalar_lea.sflag [#allocation7], 1
    %40 = vsyncpa %s39, 0
    %41 = vsyncpa [#allocation10], 0
    %42 = vsyncpa [#allocation13], 0
    %43 = vsyncpa [#allocation16], 0
    %44 = vsyncpa [#allocation19], 0
    %45 = vsyncpa [#allocation22], 0
    %46 = vsyncpa [#allocation25], 0
    loop: start=0, step=1, limit=4
    $region2: #{forward.1} parent=1 // loop_pre_header
      _
    $region3: #{forward.1} parent=1 // loop_header
      %s48 = sphi 0, %s52
      %p49 = scmp.ge.s32.totalorder %s48, 4
      %s58 = sphi 0, %s60
      %s61 = sphi 0, %s58
      %s62 = sphi 0, %s61
      %s78 = sphi 0, %s62
      %s88 = sphi 0, %s90
      %s91 = sphi 0, %s88
      %s92 = sphi 0, %s91
      %s108 = sphi 0, %s92
      %s120 = sphi 0, %s122
      %s123 = sphi 0, %s120
      %s124 = sphi 0, %s123
      %s140 = sphi 0, %s124
      %s144 = sphi 0, %s144
      %s146 = sphi 0, %s144
      %s147 = sphi 0, %s146
      %s161 = sphi 0, %s147
      %s165 = sphi 0, %s165
      %s167 = sphi 0, %s165
      %s168 = sphi 0, %s167
      %s182 = sphi 0, %s168
      %s186 = sphi 0, %s186
      %s188 = sphi 0, %s186
      %s189 = sphi 0, %s188
      %s203 = sphi 0, %s189
      %s207 = sphi 0, %s207
      %s209 = sphi 0, %s207
      %s210 = sphi 0, %s209
      %s224 = sphi 0, %s210
      %s228 = sphi 0, %s228
      %s230 = sphi 0, %s228
      %s231 = sphi 0, %s230
      %s245 = sphi 0, %s231
      %s249 = sphi 0, %s249
      %s251 = sphi 0, %s249
      %s252 = sphi 0, %s251
      %s266 = sphi 0, %s252
      %s270 = sphi 0, %s270
      %s272 = sphi 0, %s270
      %s273 = sphi 0, %s272
      %s287 = sphi 0, %s273
      %s291 = sphi 0, %s291
      %s293 = sphi 0, %s291
      %s294 = sphi 0, %s293
      %s308 = sphi 0, %s294
      %s312 = sphi 0, %s312
      %s314 = sphi 0, %s312
      %s315 = sphi 0, %s314
      %s329 = sphi 0, %s315
      %s333 = sphi 0, %s333
      %s335 = sphi 0, %s333
      %s336 = sphi 0, %s335
      %s350 = sphi 0, %s336
      %s354 = sphi 0, %s354
      %s356 = sphi 0, %s354
      %s357 = sphi 0, %s356
      %s371 = sphi 0, %s357
      %s375 = sphi 0, %s375
      %s377 = sphi 0, %s375
      %s378 = sphi 0, %s377
      %s392 = sphi 0, %s378
      %s396 = sphi 0, %s396
      %s398 = sphi 0, %s396
      %s399 = sphi 0, %s398
      %s413 = sphi 0, %s399
      %s417 = sphi 0, %s417
      %s419 = sphi 0, %s417
      %s420 = sphi 0, %s419
      %s434 = sphi 0, %s420
      %s438 = sphi 0, %s438
      %s440 = sphi 0, %s438
      %s441 = sphi 0, %s440
      %s455 = sphi 0, %s441
      %s459 = sphi 0, %s459
      %s461 = sphi 0, %s459
      %s462 = sphi 0, %s461
      %s476 = sphi 0, %s462
      %s480 = sphi 0, %s480
      %s482 = sphi 0, %s480
      %s483 = sphi 0, %s482
      %s497 = sphi 0, %s483
      %s501 = sphi 0, %s501
      %s503 = sphi 0, %s501
      %s504 = sphi 0, %s503
      %s518 = sphi 0, %s504
      %s522 = sphi 0, %s522
      %s524 = sphi 0, %s522
      %s525 = sphi 0, %s524
      %s539 = sphi 0, %s525
      %s543 = sphi 0, %s543
      %s545 = sphi 0, %s543
      %s546 = sphi 0, %s545
      %s560 = sphi 0, %s546
      %s564 = sphi 0, %s564
      %s566 = sphi 0, %s564
      %s567 = sphi 0, %s566
      %s581 = sphi 0, %s567
      %s585 = sphi 0, %s585
      %s587 = sphi 0, %s585
      %s588 = sphi 0, %s587
      %s602 = sphi 0, %s588
      %s608 = sphi 0, %s610
      %s611 = sphi 0, %s608
      %s612 = sphi 0, %s611
      %s628 = sphi 0, %s612
    $region4: #{forward.1} parent=1 // loop_header_branch
      %51 = sbr.rel (%p49) target = $region8
    $region5: #{forward.1} parent=1 // loop_body
      %s53 = ssub.s32 %s48, 1
      %s54 = ssub.s32 %s48, 2
      %s55 = sadd.s32 %s48, 1
      %s56 = ssub.s32 %s48, %s55
      %p57 = scmp.eq.s32.totalorder %s56, 0
      %s59 = sadd.s32 %s58, 1
      %s60 = scalar_select %p57, %s58, %s59
      %p63 = pneg %p57
      %p64 = scmp.eq.s32.totalorder %s48, 1
      %p65 = por %p63, %p64
      %p66 = scmp.ne.s32.totalorder %s58, %s61
      %p67 = scmp.eq.s32.totalorder %s48, 0
      %p68 = por %p66, %p67
      %p69 = scmp.ne.s32.totalorder %s58, %s61
      %p70 = scmp.eq.s32.totalorder %s53, 1
      %p71 = por %p69, %p70
      %p72 = scmp.ne.s32.totalorder %s61, %s62
      %p73 = scmp.eq.s32.totalorder %s53, 0
      %p74 = por %p72, %p73
      %p75 = scmp.ne.s32.totalorder %s61, %s62
      %p76 = scmp.eq.s32.totalorder %s54, 1
      %p77 = por %p75, %p76
      %p79 = scmp.ne.s32.totalorder %s62, %s78
      %p80 = scmp.eq.s32.totalorder %s54, 0
      %p81 = por %p79, %p80
      %s82 = smul.u32 %s48, 128
      %s83 = sld [smem:[#allocation3 + %s82]]
      %s84 = smul.u32 %s55, 128
      %s85 = sld [smem:[#allocation3 + %s84]]
      %s86 = ssub.s32 %s83, %s85
      %p87 = scmp.eq.s32.totalorder %s86, 0
      %s89 = sadd.s32 %s88, 1
      %s90 = scalar_select %p87, %s88, %s89
      %p93 = pneg %p87
      %p94 = scmp.eq.s32.totalorder %s48, 1
      %p95 = por %p93, %p94
      %p96 = scmp.ne.s32.totalorder %s88, %s91
      %p97 = scmp.eq.s32.totalorder %s48, 0
      %p98 = por %p96, %p97
      %p99 = scmp.ne.s32.totalorder %s88, %s91
      %p100 = scmp.eq.s32.totalorder %s53, 1
      %p101 = por %p99, %p100
      %p102 = scmp.ne.s32.totalorder %s91, %s92
      %p103 = scmp.eq.s32.totalorder %s53, 0
      %p104 = por %p102, %p103
      %p105 = scmp.ne.s32.totalorder %s91, %s92
      %p106 = scmp.eq.s32.totalorder %s54, 1
      %p107 = por %p105, %p106
      %p109 = scmp.ne.s32.totalorder %s92, %s108
      %p110 = scmp.eq.s32.totalorder %s54, 0
      %p111 = por %p109, %p110
      %s112 = smul.u32 %s48, 128
      %s113 = sadd.s32 %s112, 1
      %s114 = sld [smem:[#allocation3 + %s113]]
      %s115 = smul.u32 %s55, 128
      %s116 = sadd.s32 %s115, 1
      %s117 = sld [smem:[#allocation3 + %s116]]
      %s118 = ssub.s32 %s114, %s117
      %p119 = scmp.eq.s32.totalorder %s118, 0
      %s121 = sadd.s32 %s120, 1
      %s122 = scalar_select %p119, %s120, %s121
      %p125 = pneg %p119
      %p126 = scmp.eq.s32.totalorder %s48, 1
      %p127 = por %p125, %p126
      %p128 = scmp.ne.s32.totalorder %s120, %s123
      %p129 = scmp.eq.s32.totalorder %s48, 0
      %p130 = por %p128, %p129
      %p131 = scmp.ne.s32.totalorder %s120, %s123
      %p132 = scmp.eq.s32.totalorder %s53, 1
      %p133 = por %p131, %p132
      %p134 = scmp.ne.s32.totalorder %s123, %s124
      %p135 = scmp.eq.s32.totalorder %s53, 0
      %p136 = por %p134, %p135
      %p137 = scmp.ne.s32.totalorder %s123, %s124
      %p138 = scmp.eq.s32.totalorder %s54, 1
      %p139 = por %p137, %p138
      %p141 = scmp.ne.s32.totalorder %s124, %s140
      %p142 = scmp.eq.s32.totalorder %s54, 0
      %p143 = por %p141, %p142
      %s145 = sadd.s32 %s144, 1
      %p148 = scmp.eq.s32.totalorder %s48, 1
      %p149 = scmp.ne.s32.totalorder %s144, %s146
      %p150 = scmp.eq.s32.totalorder %s48, 0
      %p151 = por %p149, %p150
      %p152 = scmp.ne.s32.totalorder %s144, %s146
      %p153 = scmp.eq.s32.totalorder %s53, 1
      %p154 = por %p152, %p153
      %p155 = scmp.ne.s32.totalorder %s146, %s147
      %p156 = scmp.eq.s32.totalorder %s53, 0
      %p157 = por %p155, %p156
      %p158 = scmp.ne.s32.totalorder %s146, %s147
      %p159 = scmp.eq.s32.totalorder %s54, 1
      %p160 = por %p158, %p159
      %p162 = scmp.ne.s32.totalorder %s147, %s161
      %p163 = scmp.eq.s32.totalorder %s54, 0
      %p164 = por %p162, %p163
      %s166 = sadd.s32 %s165, 1
      %p169 = scmp.eq.s32.totalorder %s48, 1
      %p170 = scmp.ne.s32.totalorder %s165, %s167
      %p171 = scmp.eq.s32.totalorder %s48, 0
      %p172 = por %p170, %p171
      %p173 = scmp.ne.s32.totalorder %s165, %s167
      %p174 = scmp.eq.s32.totalorder %s53, 1
      %p175 = por %p173, %p174
      %p176 = scmp.ne.s32.totalorder %s167, %s168
      %p177 = scmp.eq.s32.totalorder %s53, 0
      %p178 = por %p176, %p177
      %p179 = scmp.ne.s32.totalorder %s167, %s168
      %p180 = scmp.eq.s32.totalorder %s54, 1
      %p181 = por %p179, %p180
      %p183 = scmp.ne.s32.totalorder %s168, %s182
      %p184 = scmp.eq.s32.totalorder %s54, 0
      %p185 = por %p183, %p184
      %s187 = sadd.s32 %s186, 1
      %p190 = scmp.eq.s32.totalorder %s48, 1
      %p191 = scmp.ne.s32.totalorder %s186, %s188
      %p192 = scmp.eq.s32.totalorder %s48, 0
      %p193 = por %p191, %p192
      %p194 = scmp.ne.s32.totalorder %s186, %s188
      %p195 = scmp.eq.s32.totalorder %s53, 1
      %p196 = por %p194, %p195
      %p197 = scmp.ne.s32.totalorder %s188, %s189
      %p198 = scmp.eq.s32.totalorder %s53, 0
      %p199 = por %p197, %p198
      %p200 = scmp.ne.s32.totalorder %s188, %s189
      %p201 = scmp.eq.s32.totalorder %s54, 1
      %p202 = por %p200, %p201
      %p204 = scmp.ne.s32.totalorder %s189, %s203
      %p205 = scmp.eq.s32.totalorder %s54, 0
      %p206 = por %p204, %p205
      %s208 = sadd.s32 %s207, 1
      %p211 = scmp.eq.s32.totalorder %s48, 1
      %p212 = scmp.ne.s32.totalorder %s207, %s209
      %p213 = scmp.eq.s32.totalorder %s48, 0
      %p214 = por %p212, %p213
      %p215 = scmp.ne.s32.totalorder %s207, %s209
      %p216 = scmp.eq.s32.totalorder %s53, 1
      %p217 = por %p215, %p216
      %p218 = scmp.ne.s32.totalorder %s209, %s210
      %p219 = scmp.eq.s32.totalorder %s53, 0
      %p220 = por %p218, %p219
      %p221 = scmp.ne.s32.totalorder %s209, %s210
      %p222 = scmp.eq.s32.totalorder %s54, 1
      %p223 = por %p221, %p222
      %p225 = scmp.ne.s32.totalorder %s210, %s224
      %p226 = scmp.eq.s32.totalorder %s54, 0
      %p227 = por %p225, %p226
      %s229 = sadd.s32 %s228, 1
      %p232 = scmp.eq.s32.totalorder %s48, 1
      %p233 = scmp.ne.s32.totalorder %s228, %s230
      %p234 = scmp.eq.s32.totalorder %s48, 0
      %p235 = por %p233, %p234
      %p236 = scmp.ne.s32.totalorder %s228, %s230
      %p237 = scmp.eq.s32.totalorder %s53, 1
      %p238 = por %p236, %p237
      %p239 = scmp.ne.s32.totalorder %s230, %s231
      %p240 = scmp.eq.s32.totalorder %s53, 0
      %p241 = por %p239, %p240
      %p242 = scmp.ne.s32.totalorder %s230, %s231
      %p243 = scmp.eq.s32.totalorder %s54, 1
      %p244 = por %p242, %p243
      %p246 = scmp.ne.s32.totalorder %s231, %s245
      %p247 = scmp.eq.s32.totalorder %s54, 0
      %p248 = por %p246, %p247
      %s250 = sadd.s32 %s249, 1
      %p253 = scmp.eq.s32.totalorder %s48, 1
      %p254 = scmp.ne.s32.totalorder %s249, %s251
      %p255 = scmp.eq.s32.totalorder %s48, 0
      %p256 = por %p254, %p255
      %p257 = scmp.ne.s32.totalorder %s249, %s251
      %p258 = scmp.eq.s32.totalorder %s53, 1
      %p259 = por %p257, %p258
      %p260 = scmp.ne.s32.totalorder %s251, %s252
      %p261 = scmp.eq.s32.totalorder %s53, 0
      %p262 = por %p260, %p261
      %p263 = scmp.ne.s32.totalorder %s251, %s252
      %p264 = scmp.eq.s32.totalorder %s54, 1
      %p265 = por %p263, %p264
      %p267 = scmp.ne.s32.totalorder %s252, %s266
      %p268 = scmp.eq.s32.totalorder %s54, 0
      %p269 = por %p267, %p268
      %s271 = sadd.s32 %s270, 1
      %p274 = scmp.eq.s32.totalorder %s48, 1
      %p275 = scmp.ne.s32.totalorder %s270, %s272
      %p276 = scmp.eq.s32.totalorder %s48, 0
      %p277 = por %p275, %p276
      %p278 = scmp.ne.s32.totalorder %s270, %s272
      %p279 = scmp.eq.s32.totalorder %s53, 1
      %p280 = por %p278, %p279
      %p281 = scmp.ne.s32.totalorder %s272, %s273
      %p282 = scmp.eq.s32.totalorder %s53, 0
      %p283 = por %p281, %p282
      %p284 = scmp.ne.s32.totalorder %s272, %s273
      %p285 = scmp.eq.s32.totalorder %s54, 1
      %p286 = por %p284, %p285
      %p288 = scmp.ne.s32.totalorder %s273, %s287
      %p289 = scmp.eq.s32.totalorder %s54, 0
      %p290 = por %p288, %p289
      %s292 = sadd.s32 %s291, 1
      %p295 = scmp.eq.s32.totalorder %s48, 1
      %p296 = scmp.ne.s32.totalorder %s291, %s293
      %p297 = scmp.eq.s32.totalorder %s48, 0
      %p298 = por %p296, %p297
      %p299 = scmp.ne.s32.totalorder %s291, %s293
      %p300 = scmp.eq.s32.totalorder %s53, 1
      %p301 = por %p299, %p300
      %p302 = scmp.ne.s32.totalorder %s293, %s294
      %p303 = scmp.eq.s32.totalorder %s53, 0
      %p304 = por %p302, %p303
      %p305 = scmp.ne.s32.totalorder %s293, %s294
      %p306 = scmp.eq.s32.totalorder %s54, 1
      %p307 = por %p305, %p306
      %p309 = scmp.ne.s32.totalorder %s294, %s308
      %p310 = scmp.eq.s32.totalorder %s54, 0
      %p311 = por %p309, %p310
      %s313 = sadd.s32 %s312, 1
      %p316 = scmp.eq.s32.totalorder %s48, 1
      %p317 = scmp.ne.s32.totalorder %s312, %s314
      %p318 = scmp.eq.s32.totalorder %s48, 0
      %p319 = por %p317, %p318
      %p320 = scmp.ne.s32.totalorder %s312, %s314
      %p321 = scmp.eq.s32.totalorder %s53, 1
      %p322 = por %p320, %p321
      %p323 = scmp.ne.s32.totalorder %s314, %s315
      %p324 = scmp.eq.s32.totalorder %s53, 0
      %p325 = por %p323, %p324
      %p326 = scmp.ne.s32.totalorder %s314, %s315
      %p327 = scmp.eq.s32.totalorder %s54, 1
      %p328 = por %p326, %p327
      %p330 = scmp.ne.s32.totalorder %s315, %s329
      %p331 = scmp.eq.s32.totalorder %s54, 0
      %p332 = por %p330, %p331
      %s334 = sadd.s32 %s333, 1
      %p337 = scmp.eq.s32.totalorder %s48, 1
      %p338 = scmp.ne.s32.totalorder %s333, %s335
      %p339 = scmp.eq.s32.totalorder %s48, 0
      %p340 = por %p338, %p339
      %p341 = scmp.ne.s32.totalorder %s333, %s335
      %p342 = scmp.eq.s32.totalorder %s53, 1
      %p343 = por %p341, %p342
      %p344 = scmp.ne.s32.totalorder %s335, %s336
      %p345 = scmp.eq.s32.totalorder %s53, 0
      %p346 = por %p344, %p345
      %p347 = scmp.ne.s32.totalorder %s335, %s336
      %p348 = scmp.eq.s32.totalorder %s54, 1
      %p349 = por %p347, %p348
      %p351 = scmp.ne.s32.totalorder %s336, %s350
      %p352 = scmp.eq.s32.totalorder %s54, 0
      %p353 = por %p351, %p352
      %s355 = sadd.s32 %s354, 1
      %p358 = scmp.eq.s32.totalorder %s48, 1
      %p359 = scmp.ne.s32.totalorder %s354, %s356
      %p360 = scmp.eq.s32.totalorder %s48, 0
      %p361 = por %p359, %p360
      %p362 = scmp.ne.s32.totalorder %s354, %s356
      %p363 = scmp.eq.s32.totalorder %s53, 1
      %p364 = por %p362, %p363
      %p365 = scmp.ne.s32.totalorder %s356, %s357
      %p366 = scmp.eq.s32.totalorder %s53, 0
      %p367 = por %p365, %p366
      %p368 = scmp.ne.s32.totalorder %s356, %s357
      %p369 = scmp.eq.s32.totalorder %s54, 1
      %p370 = por %p368, %p369
      %p372 = scmp.ne.s32.totalorder %s357, %s371
      %p373 = scmp.eq.s32.totalorder %s54, 0
      %p374 = por %p372, %p373
      %s376 = sadd.s32 %s375, 1
      %p379 = scmp.eq.s32.totalorder %s48, 1
      %p380 = scmp.ne.s32.totalorder %s375, %s377
      %p381 = scmp.eq.s32.totalorder %s48, 0
      %p382 = por %p380, %p381
      %p383 = scmp.ne.s32.totalorder %s375, %s377
      %p384 = scmp.eq.s32.totalorder %s53, 1
      %p385 = por %p383, %p384
      %p386 = scmp.ne.s32.totalorder %s377, %s378
      %p387 = scmp.eq.s32.totalorder %s53, 0
      %p388 = por %p386, %p387
      %p389 = scmp.ne.s32.totalorder %s377, %s378
      %p390 = scmp.eq.s32.totalorder %s54, 1
      %p391 = por %p389, %p390
      %p393 = scmp.ne.s32.totalorder %s378, %s392
      %p394 = scmp.eq.s32.totalorder %s54, 0
      %p395 = por %p393, %p394
      %s397 = sadd.s32 %s396, 1
      %p400 = scmp.eq.s32.totalorder %s48, 1
      %p401 = scmp.ne.s32.totalorder %s396, %s398
      %p402 = scmp.eq.s32.totalorder %s48, 0
      %p403 = por %p401, %p402
      %p404 = scmp.ne.s32.totalorder %s396, %s398
      %p405 = scmp.eq.s32.totalorder %s53, 1
      %p406 = por %p404, %p405
      %p407 = scmp.ne.s32.totalorder %s398, %s399
      %p408 = scmp.eq.s32.totalorder %s53, 0
      %p409 = por %p407, %p408
      %p410 = scmp.ne.s32.totalorder %s398, %s399
      %p411 = scmp.eq.s32.totalorder %s54, 1
      %p412 = por %p410, %p411
      %p414 = scmp.ne.s32.totalorder %s399, %s413
      %p415 = scmp.eq.s32.totalorder %s54, 0
      %p416 = por %p414, %p415
      %s418 = sadd.s32 %s417, 1
      %p421 = scmp.eq.s32.totalorder %s48, 1
      %p422 = scmp.ne.s32.totalorder %s417, %s419
      %p423 = scmp.eq.s32.totalorder %s48, 0
      %p424 = por %p422, %p423
      %p425 = scmp.ne.s32.totalorder %s417, %s419
      %p426 = scmp.eq.s32.totalorder %s53, 1
      %p427 = por %p425, %p426
      %p428 = scmp.ne.s32.totalorder %s419, %s420
      %p429 = scmp.eq.s32.totalorder %s53, 0
      %p430 = por %p428, %p429
      %p431 = scmp.ne.s32.totalorder %s419, %s420
      %p432 = scmp.eq.s32.totalorder %s54, 1
      %p433 = por %p431, %p432
      %p435 = scmp.ne.s32.totalorder %s420, %s434
      %p436 = scmp.eq.s32.totalorder %s54, 0
      %p437 = por %p435, %p436
      %s439 = sadd.s32 %s438, 1
      %p442 = scmp.eq.s32.totalorder %s48, 1
      %p443 = scmp.ne.s32.totalorder %s438, %s440
      %p444 = scmp.eq.s32.totalorder %s48, 0
      %p445 = por %p443, %p444
      %p446 = scmp.ne.s32.totalorder %s438, %s440
      %p447 = scmp.eq.s32.totalorder %s53, 1
      %p448 = por %p446, %p447
      %p449 = scmp.ne.s32.totalorder %s440, %s441
      %p450 = scmp.eq.s32.totalorder %s53, 0
      %p451 = por %p449, %p450
      %p452 = scmp.ne.s32.totalorder %s440, %s441
      %p453 = scmp.eq.s32.totalorder %s54, 1
      %p454 = por %p452, %p453
      %p456 = scmp.ne.s32.totalorder %s441, %s455
      %p457 = scmp.eq.s32.totalorder %s54, 0
      %p458 = por %p456, %p457
      %s460 = sadd.s32 %s459, 1
      %p463 = scmp.eq.s32.totalorder %s48, 1
      %p464 = scmp.ne.s32.totalorder %s459, %s461
      %p465 = scmp.eq.s32.totalorder %s48, 0
      %p466 = por %p464, %p465
      %p467 = scmp.ne.s32.totalorder %s459, %s461
      %p468 = scmp.eq.s32.totalorder %s53, 1
      %p469 = por %p467, %p468
      %p470 = scmp.ne.s32.totalorder %s461, %s462
      %p471 = scmp.eq.s32.totalorder %s53, 0
      %p472 = por %p470, %p471
      %p473 = scmp.ne.s32.totalorder %s461, %s462
      %p474 = scmp.eq.s32.totalorder %s54, 1
      %p475 = por %p473, %p474
      %p477 = scmp.ne.s32.totalorder %s462, %s476
      %p478 = scmp.eq.s32.totalorder %s54, 0
      %p479 = por %p477, %p478
      %s481 = sadd.s32 %s480, 1
      %p484 = scmp.eq.s32.totalorder %s48, 1
      %p485 = scmp.ne.s32.totalorder %s480, %s482
      %p486 = scmp.eq.s32.totalorder %s48, 0
      %p487 = por %p485, %p486
      %p488 = scmp.ne.s32.totalorder %s480, %s482
      %p489 = scmp.eq.s32.totalorder %s53, 1
      %p490 = por %p488, %p489
      %p491 = scmp.ne.s32.totalorder %s482, %s483
      %p492 = scmp.eq.s32.totalorder %s53, 0
      %p493 = por %p491, %p492
      %p494 = scmp.ne.s32.totalorder %s482, %s483
      %p495 = scmp.eq.s32.totalorder %s54, 1
      %p496 = por %p494, %p495
      %p498 = scmp.ne.s32.totalorder %s483, %s497
      %p499 = scmp.eq.s32.totalorder %s54, 0
      %p500 = por %p498, %p499
      %s502 = sadd.s32 %s501, 1
      %p505 = scmp.eq.s32.totalorder %s48, 1
      %p506 = scmp.ne.s32.totalorder %s501, %s503
      %p507 = scmp.eq.s32.totalorder %s48, 0
      %p508 = por %p506, %p507
      %p509 = scmp.ne.s32.totalorder %s501, %s503
      %p510 = scmp.eq.s32.totalorder %s53, 1
      %p511 = por %p509, %p510
      %p512 = scmp.ne.s32.totalorder %s503, %s504
      %p513 = scmp.eq.s32.totalorder %s53, 0
      %p514 = por %p512, %p513
      %p515 = scmp.ne.s32.totalorder %s503, %s504
      %p516 = scmp.eq.s32.totalorder %s54, 1
      %p517 = por %p515, %p516
      %p519 = scmp.ne.s32.totalorder %s504, %s518
      %p520 = scmp.eq.s32.totalorder %s54, 0
      %p521 = por %p519, %p520
      %s523 = sadd.s32 %s522, 1
      %p526 = scmp.eq.s32.totalorder %s48, 1
      %p527 = scmp.ne.s32.totalorder %s522, %s524
      %p528 = scmp.eq.s32.totalorder %s48, 0
      %p529 = por %p527, %p528
      %p530 = scmp.ne.s32.totalorder %s522, %s524
      %p531 = scmp.eq.s32.totalorder %s53, 1
      %p532 = por %p530, %p531
      %p533 = scmp.ne.s32.totalorder %s524, %s525
      %p534 = scmp.eq.s32.totalorder %s53, 0
      %p535 = por %p533, %p534
      %p536 = scmp.ne.s32.totalorder %s524, %s525
      %p537 = scmp.eq.s32.totalorder %s54, 1
      %p538 = por %p536, %p537
      %p540 = scmp.ne.s32.totalorder %s525, %s539
      %p541 = scmp.eq.s32.totalorder %s54, 0
      %p542 = por %p540, %p541
      %s544 = sadd.s32 %s543, 1
      %p547 = scmp.eq.s32.totalorder %s48, 1
      %p548 = scmp.ne.s32.totalorder %s543, %s545
      %p549 = scmp.eq.s32.totalorder %s48, 0
      %p550 = por %p548, %p549
      %p551 = scmp.ne.s32.totalorder %s543, %s545
      %p552 = scmp.eq.s32.totalorder %s53, 1
      %p553 = por %p551, %p552
      %p554 = scmp.ne.s32.totalorder %s545, %s546
      %p555 = scmp.eq.s32.totalorder %s53, 0
      %p556 = por %p554, %p555
      %p557 = scmp.ne.s32.totalorder %s545, %s546
      %p558 = scmp.eq.s32.totalorder %s54, 1
      %p559 = por %p557, %p558
      %p561 = scmp.ne.s32.totalorder %s546, %s560
      %p562 = scmp.eq.s32.totalorder %s54, 0
      %p563 = por %p561, %p562
      %s565 = sadd.s32 %s564, 1
      %p568 = scmp.eq.s32.totalorder %s48, 1
      %p569 = scmp.ne.s32.totalorder %s564, %s566
      %p570 = scmp.eq.s32.totalorder %s48, 0
      %p571 = por %p569, %p570
      %p572 = scmp.ne.s32.totalorder %s564, %s566
      %p573 = scmp.eq.s32.totalorder %s53, 1
      %p574 = por %p572, %p573
      %p575 = scmp.ne.s32.totalorder %s566, %s567
      %p576 = scmp.eq.s32.totalorder %s53, 0
      %p577 = por %p575, %p576
      %p578 = scmp.ne.s32.totalorder %s566, %s567
      %p579 = scmp.eq.s32.totalorder %s54, 1
      %p580 = por %p578, %p579
      %p582 = scmp.ne.s32.totalorder %s567, %s581
      %p583 = scmp.eq.s32.totalorder %s54, 0
      %p584 = por %p582, %p583
      %s586 = sadd.s32 %s585, 1
      %p589 = scmp.eq.s32.totalorder %s48, 1
      %p590 = scmp.ne.s32.totalorder %s585, %s587
      %p591 = scmp.eq.s32.totalorder %s48, 0
      %p592 = por %p590, %p591
      %p593 = scmp.ne.s32.totalorder %s585, %s587
      %p594 = scmp.eq.s32.totalorder %s53, 1
      %p595 = por %p593, %p594
      %p596 = scmp.ne.s32.totalorder %s587, %s588
      %p597 = scmp.eq.s32.totalorder %s53, 0
      %p598 = por %p596, %p597
      %p599 = scmp.ne.s32.totalorder %s587, %s588
      %p600 = scmp.eq.s32.totalorder %s54, 1
      %p601 = por %p599, %p600
      %p603 = scmp.ne.s32.totalorder %s588, %s602
      %p604 = scmp.eq.s32.totalorder %s54, 0
      %p605 = por %p603, %p604
      %s606 = ssub.s32 %s48, %s55
      %p607 = scmp.eq.s32.totalorder %s606, 0
      %s609 = sadd.s32 %s608, 1
      %s610 = scalar_select %p607, %s608, %s609
      %p613 = pneg %p607
      %p614 = scmp.eq.s32.totalorder %s48, 1
      %p615 = por %p613, %p614
      %p616 = scmp.ne.s32.totalorder %s608, %s611
      %p617 = scmp.eq.s32.totalorder %s48, 0
      %p618 = por %p616, %p617
      %p619 = scmp.ne.s32.totalorder %s608, %s611
      %p620 = scmp.eq.s32.totalorder %s53, 1
      %p621 = por %p619, %p620
      %p622 = scmp.ne.s32.totalorder %s611, %s612
      %p623 = scmp.eq.s32.totalorder %s53, 0
      %p624 = por %p622, %p623
      %p625 = scmp.ne.s32.totalorder %s611, %s612
      %p626 = scmp.eq.s32.totalorder %s54, 1
      %p627 = por %p625, %p626
      %p629 = scmp.ne.s32.totalorder %s612, %s628
      %p630 = scmp.eq.s32.totalorder %s54, 0
      %p631 = por %p629, %p630
      %p632 = scmp.le.s32.totalorder 1, %s48
      %p633 = scmp.lt.s32.totalorder %s48, 3
      %p634 = pnand %p632, %p633
      %p635 = pneg %p634
      // Predicated region
      $region9: #{forward.1} parent=5 // pred_check
        _
      $region10: #{forward.1} parent=5 // pred_check_branch
        %637 = sbr.rel (%p634) target = $region12
      $region11: #{forward.1} parent=5 // pred_region
        %s638 = ssub.s32 %s48, 1
        // Predicated region
        $region13: #{forward.1} parent=11 // pred_check
          %p639 = pneg %p157
        $region14: #{forward.1} parent=11 // pred_check_branch
          %641 = sbr.rel (%p639) target = $region16
        $region15: #{forward.1} parent=11 // pred_region
          %s643 = ssub.s32 36864, 36864
          %644 = vsyncadd [#allocation7], %s643
          %s645 = sshll.u32 [#allocation8], 4
          %s646 = int_to_ptr.vmem [resolvable:$true] %s645
          %651 = dma.hbm_to_vmem [thread:$0]  %s4, 36864, %s646, [#allocation7], 1152, 1152, 72
        $region16: #{forward.1} parent=11 // pred_fallthru
          _
        // Predicated region
        $region17: #{forward.1} parent=11 // pred_check
          %p652 = pneg %p178
        $region18: #{forward.1} parent=11 // pred_check_branch
          %654 = sbr.rel (%p652) target = $region20
        $region19: #{forward.1} parent=11 // pred_region
          _
        $region20: #{forward.1} parent=11 // pred_fallthru
          _
        // Predicated region
        $region21: #{forward.1} parent=11 // pred_check
          %p655 = pneg %p199
        $region22: #{forward.1} parent=11 // pred_check_branch
          %657 = sbr.rel (%p655) target = $region24
        $region23: #{forward.1} parent=11 // pred_region
          %s659 = ssub.s32 1024, 1024
          %660 = vsyncadd [#allocation10], %s659
          %s661 = sshll.u32 [#allocation9], 4
          %s662 = int_to_ptr.vmem [resolvable:$true] %s661
          %667 = dma.hbm_to_vmem [thread:$0]  %s6, 1024, %s662, [#allocation10], 128, 128, 8
        $region24: #{forward.1} parent=11 // pred_fallthru
          _
        // Predicated region
        $region25: #{forward.1} parent=11 // pred_check
          %p668 = pneg %p220
        $region26: #{forward.1} parent=11 // pred_check_branch
          %670 = sbr.rel (%p668) target = $region28
        $region27: #{forward.1} parent=11 // pred_region
          %s672 = ssub.s32 256, 256
          %673 = vsyncadd [#allocation10], %s672
          %s674 = sshll.u32 [#allocation11], 4
          %s675 = int_to_ptr.vmem [resolvable:$true] %s674
          %680 = dma.hbm_to_vmem [thread:$0]  %s7, 256, %s675, [#allocation10], 128, 128, 8
        $region28: #{forward.1} parent=11 // pred_fallthru
          _
        // Predicated region
        $region29: #{forward.1} parent=11 // pred_check
          %p681 = pneg %p241
        $region30: #{forward.1} parent=11 // pred_check_branch
          %683 = sbr.rel (%p681) target = $region32
        $region31: #{forward.1} parent=11 // pred_region
          %s685 = ssub.s32 640, 640
          %686 = vsyncadd [#allocation13], %s685
          %s687 = sshll.u32 [#allocation12], 4
          %s688 = int_to_ptr.vmem [resolvable:$true] %s687
          %693 = dma.hbm_to_vmem [thread:$0]  %s8, 640, %s688, [#allocation13], 320, 320, 20
        $region32: #{forward.1} parent=11 // pred_fallthru
          _
        // Predicated region
        $region33: #{forward.1} parent=11 // pred_check
          %p694 = pneg %p262
        $region34: #{forward.1} parent=11 // pred_check_branch
          %696 = sbr.rel (%p694) target = $region36
        $region35: #{forward.1} parent=11 // pred_region
          %s698 = ssub.s32 9216, 9216
          %699 = vsyncadd [#allocation13], %s698
          %s700 = sshll.u32 [#allocation14], 4
          %s701 = int_to_ptr.vmem [resolvable:$true] %s700
          %706 = dma.hbm_to_vmem [thread:$0]  %s9, 9216, %s701, [#allocation13], 1152, 1152, 72
        $region36: #{forward.1} parent=11 // pred_fallthru
          _
        // Predicated region
        $region37: #{forward.1} parent=11 // pred_check
          %p707 = pneg %p283
        $region38: #{forward.1} parent=11 // pred_check_branch
          %709 = sbr.rel (%p707) target = $region40
        $region39: #{forward.1} parent=11 // pred_region
          %s711 = ssub.s32 128, 128
          %712 = vsyncadd [#allocation16], %s711
          %s714 = sshll.u32 [#allocation15], 4
          %s715 = int_to_ptr.vmem [resolvable:$true] %s714
          %717 = dma.hbm_to_vmem [thread:$0]  %s10, 128, %s715, [#allocation16]
        $region40: #{forward.1} parent=11 // pred_fallthru
          _
        // Predicated region
        $region41: #{forward.1} parent=11 // pred_check
          %p718 = pneg %p304
        $region42: #{forward.1} parent=11 // pred_check_branch
          %720 = sbr.rel (%p718) target = $region44
        $region43: #{forward.1} parent=11 // pred_region
          %s722 = ssub.s32 128, 128
          %723 = vsyncadd [#allocation16], %s722
          %s724 = sshll.u32 [#allocation17], 4
          %s725 = int_to_ptr.vmem [resolvable:$true] %s724
          %730 = dma.hbm_to_vmem [thread:$0]  %s11, 128, %s725, [#allocation16], 64, 64, 4
        $region44: #{forward.1} parent=11 // pred_fallthru
          _
        // Predicated region
        $region45: #{forward.1} parent=11 // pred_check
          %p731 = pneg %p325
        $region46: #{forward.1} parent=11 // pred_check_branch
          %733 = sbr.rel (%p731) target = $region48
        $region47: #{forward.1} parent=11 // pred_region
          %s735 = ssub.s32 512, 512
          %736 = vsyncadd [#allocation19], %s735
          %s737 = sshll.u32 [#allocation18], 4
          %s738 = int_to_ptr.vmem [resolvable:$true] %s737
          %743 = dma.hbm_to_vmem [thread:$0]  %s12, 512, %s738, [#allocation19], 128, 128, 8
        $region48: #{forward.1} parent=11 // pred_fallthru
          _
        // Predicated region
        $region49: #{forward.1} parent=11 // pred_check
          %p744 = pneg %p346
        $region50: #{forward.1} parent=11 // pred_check_branch
          %746 = sbr.rel (%p744) target = $region52
        $region51: #{forward.1} parent=11 // pred_region
          %s748 = ssub.s32 768, 768
          %749 = vsyncadd [#allocation19], %s748
          %s750 = sshll.u32 [#allocation20], 4
          %s751 = int_to_ptr.vmem [resolvable:$true] %s750
          %756 = dma.hbm_to_vmem [thread:$0]  %s13, 768, %s751, [#allocation19], 192, 192, 12
        $region52: #{forward.1} parent=11 // pred_fallthru
          _
        // Predicated region
        $region53: #{forward.1} parent=11 // pred_check
          %p757 = pneg %p367
        $region54: #{forward.1} parent=11 // pred_check_branch
          %759 = sbr.rel (%p757) target = $region56
        $region55: #{forward.1} parent=11 // pred_region
          %s761 = ssub.s32 768, 768
          %762 = vsyncadd [#allocation22], %s761
          %s763 = sshll.u32 [#allocation21], 4
          %s764 = int_to_ptr.vmem [resolvable:$true] %s763
          %769 = dma.hbm_to_vmem [thread:$0]  %s14, 768, %s764, [#allocation22], 192, 192, 12
        $region56: #{forward.1} parent=11 // pred_fallthru
          _
        // Predicated region
        $region57: #{forward.1} parent=11 // pred_check
          %p770 = pneg %p388
        $region58: #{forward.1} parent=11 // pred_check_branch
          %772 = sbr.rel (%p770) target = $region60
        $region59: #{forward.1} parent=11 // pred_region
          %s774 = ssub.s32 384, 384
          %775 = vsyncadd [#allocation22], %s774
          %s776 = sshll.u32 [#allocation23], 4
          %s777 = int_to_ptr.vmem [resolvable:$true] %s776
          %782 = dma.hbm_to_vmem [thread:$0]  %s15, 384, %s777, [#allocation22], 192, 192, 12
        $region60: #{forward.1} parent=11 // pred_fallthru
          _
        // Predicated region
        $region61: #{forward.1} parent=11 // pred_check
          %p783 = pneg %p409
        $region62: #{forward.1} parent=11 // pred_check_branch
          %785 = sbr.rel (%p783) target = $region64
        $region63: #{forward.1} parent=11 // pred_region
          %s787 = ssub.s32 128, 128
          %788 = vsyncadd [#allocation25], %s787
          %s790 = sshll.u32 [#allocation24], 4
          %s791 = int_to_ptr.vmem [resolvable:$true] %s790
          %793 = dma.hbm_to_vmem [thread:$0]  %s16, 128, %s791, [#allocation25]
        $region64: #{forward.1} parent=11 // pred_fallthru
          _
        // Predicated region
        $region65: #{forward.1} parent=11 // pred_check
          %p794 = pneg %p430
        $region66: #{forward.1} parent=11 // pred_check_branch
          %796 = sbr.rel (%p794) target = $region68
        $region67: #{forward.1} parent=11 // pred_region
          %s798 = ssub.s32 64, 64
          %799 = vsyncadd [#allocation25], %s798
          %s801 = sshll.u32 [#allocation26], 4
          %s802 = int_to_ptr.vmem [resolvable:$true] %s801
          %804 = dma.hbm_to_vmem [thread:$0]  %s17, 64, %s802, [#allocation25]
        $region68: #{forward.1} parent=11 // pred_fallthru
          _
        // Predicated region
        $region69: #{forward.1} parent=11 // pred_check
          %p805 = pneg %p451
        $region70: #{forward.1} parent=11 // pred_check_branch
          %807 = sbr.rel (%p805) target = $region72
        $region71: #{forward.1} parent=11 // pred_region
          _
        $region72: #{forward.1} parent=11 // pred_fallthru
          _
        // Predicated region
        $region73: #{forward.1} parent=11 // pred_check
          %p808 = pneg %p472
        $region74: #{forward.1} parent=11 // pred_check_branch
          %810 = sbr.rel (%p808) target = $region76
        $region75: #{forward.1} parent=11 // pred_region
          _
        $region76: #{forward.1} parent=11 // pred_fallthru
          _
        // Predicated region
        $region77: #{forward.1} parent=11 // pred_check
          %p811 = pneg %p493
        $region78: #{forward.1} parent=11 // pred_check_branch
          %813 = sbr.rel (%p811) target = $region80
        $region79: #{forward.1} parent=11 // pred_region
          _
        $region80: #{forward.1} parent=11 // pred_fallthru
          _
        // Predicated region
        $region81: #{forward.1} parent=11 // pred_check
          %p814 = pneg %p514
        $region82: #{forward.1} parent=11 // pred_check_branch
          %816 = sbr.rel (%p814) target = $region84
        $region83: #{forward.1} parent=11 // pred_region
          _
        $region84: #{forward.1} parent=11 // pred_fallthru
          _
        // Predicated region
        $region85: #{forward.1} parent=11 // pred_check
          %p817 = pneg %p535
        $region86: #{forward.1} parent=11 // pred_check_branch
          %819 = sbr.rel (%p817) target = $region88
        $region87: #{forward.1} parent=11 // pred_region
          _
        $region88: #{forward.1} parent=11 // pred_fallthru
          _
        // Predicated region
        $region89: #{forward.1} parent=11 // pred_check
          %p820 = pneg %p556
        $region90: #{forward.1} parent=11 // pred_check_branch
          %822 = sbr.rel (%p820) target = $region92
        $region91: #{forward.1} parent=11 // pred_region
          _
        $region92: #{forward.1} parent=11 // pred_fallthru
          _
        // Predicated region
        $region93: #{forward.1} parent=11 // pred_check
          %p823 = pneg %p577
        $region94: #{forward.1} parent=11 // pred_check_branch
          %825 = sbr.rel (%p823) target = $region96
        $region95: #{forward.1} parent=11 // pred_region
          _
        $region96: #{forward.1} parent=11 // pred_fallthru
          _
        // Predicated region
        $region97: #{forward.1} parent=11 // pred_check
          %p826 = pneg %p598
        $region98: #{forward.1} parent=11 // pred_check_branch
          %828 = sbr.rel (%p826) target = $region100
        $region99: #{forward.1} parent=11 // pred_region
          _
        $region100: #{forward.1} parent=11 // pred_fallthru
          _
      $region12: #{forward.1} parent=5 // pred_fallthru
        _
      %p829 = scmp.lt.s32.totalorder %s48, 2
      // Predicated region
      $region101: #{forward.1} parent=5 // pred_check
        %p830 = pneg %p829
      $region102: #{forward.1} parent=5 // pred_check_branch
        %832 = sbr.rel (%p830) target = $region104
      $region103: #{forward.1} parent=5 // pred_region
        // Predicated region
        $region105: #{forward.1} parent=103 // pred_check
          %p833 = pneg %p68
        $region106: #{forward.1} parent=103 // pred_check_branch
          %835 = sbr.rel (%p833) target = $region108
        $region107: #{forward.1} parent=103 // pred_region
          %p836 = scmp.lt.s32.totalorder %s48, 1
          %s837 = scalar_select %p836, %s48, 1
          %s838 = smul.addr %s837, 2
          %s839 = smul.addr %s838, 8
          %s840 = scalar_lea.vmem %s1, %s839
        $region108: #{forward.1} parent=103 // pred_fallthru
          _
        // Predicated region
        $region109: #{forward.1} parent=103 // pred_check
          %p841 = pneg %p98
        $region110: #{forward.1} parent=103 // pred_check_branch
          %843 = sbr.rel (%p841) target = $region112
        $region111: #{forward.1} parent=103 // pred_region
          %s844 = sand.u32 %s88, 1
          %s845 = scalar_lea.sflag [#allocation5], %s844
          %s846 = sand.u32 %s88, 1
          %s847 = smul.addr %s846, 16
          %s848 = scalar_lea.vmem [#allocation4], %s847
          %s849 = smul.u32 %s48, 128
          %s850 = sld [smem:[#allocation3 + %s849]]
          %s852 = ssub.s32 256, 256
          %853 = vsyncadd %s845, %s852
          %s854 = smul.addr %s850, 2
          %s855 = smul.addr %s854, 128
          %s856 = scalar_lea.hbm %s2, %s855
          %s858 = sshll.u32 %s848, 4
          %s859 = int_to_ptr.vmem [resolvable:$true] %s858
          %861 = dma.hbm_to_vmem [thread:$0]  %s856, 256, %s859, %s845
        $region112: #{forward.1} parent=103 // pred_fallthru
          _
        // Predicated region
        $region113: #{forward.1} parent=103 // pred_check
          %p862 = pneg %p130
        $region114: #{forward.1} parent=103 // pred_check_branch
          %864 = sbr.rel (%p862) target = $region116
        $region115: #{forward.1} parent=103 // pred_region
          %s865 = sand.u32 %s48, 1
          %s866 = scalar_lea.sflag [#allocation7], %s865
          %s867 = sand.u32 %s120, 1
          %s868 = smul.addr %s867, 16
          %s869 = scalar_lea.vmem [#allocation6], %s868
          %s870 = smul.u32 %s48, 128
          %s871 = sadd.s32 %s870, 1
          %s872 = sld [smem:[#allocation3 + %s871]]
          %s874 = ssub.s32 256, 256
          %875 = vsyncadd %s866, %s874
          %s876 = smul.addr %s872, 2
          %s877 = smul.addr %s876, 128
          %s878 = scalar_lea.hbm %s3, %s877
          %s880 = sshll.u32 %s869, 4
          %s881 = int_to_ptr.vmem [resolvable:$true] %s880
          %883 = dma.hbm_to_vmem [thread:$0]  %s878, 256, %s881, %s866
        $region116: #{forward.1} parent=103 // pred_fallthru
          _
      $region104: #{forward.1} parent=5 // pred_fallthru
        _
      %p884 = scmp.le.s32.totalorder 1, %s48
      %p885 = scmp.lt.s32.totalorder %s48, 3
      %p886 = pnand %p884, %p885
      %p887 = pneg %p886
      // Predicated region
      $region117: #{forward.1} parent=5 // pred_check
        _
      $region118: #{forward.1} parent=5 // pred_check_branch
        %889 = sbr.rel (%p886) target = $region120
      $region119: #{forward.1} parent=5 // pred_region
        %s890 = ssub.s32 %s48, 1
        %s891 = sand.u32 %s91, 1
        %s892 = scalar_lea.sflag [#allocation5], %s891
        %s893 = sand.u32 %s91, 1
        %s894 = smul.addr %s893, 16
        %s895 = scalar_lea.vmem [#allocation4], %s894
        // Predicated region
        $region121: #{forward.1} parent=119 // pred_check
          %p896 = pneg %p104
        $region122: #{forward.1} parent=119 // pred_check_branch
          %898 = sbr.rel (%p896) target = $region124
        $region123: #{forward.1} parent=119 // pred_region
          %899 = dma.done %s892, 256
        $region124: #{forward.1} parent=119 // pred_fallthru
          _
        %s900 = sand.u32 %s53, 1
        %s901 = scalar_lea.sflag [#allocation7], %s900
        %s902 = sand.u32 %s123, 1
        %s903 = smul.addr %s902, 16
        %s904 = scalar_lea.vmem [#allocation6], %s903
        // Predicated region
        $region125: #{forward.1} parent=119 // pred_check
          %p905 = pneg %p136
        $region126: #{forward.1} parent=119 // pred_check_branch
          %907 = sbr.rel (%p905) target = $region128
        $region127: #{forward.1} parent=119 // pred_region
          %908 = dma.done %s901, 256
        $region128: #{forward.1} parent=119 // pred_fallthru
          _
        // Predicated region
        $region129: #{forward.1} parent=119 // pred_check
          %p909 = pneg %p157
        $region130: #{forward.1} parent=119 // pred_check_branch
          %911 = sbr.rel (%p909) target = $region132
        $region131: #{forward.1} parent=119 // pred_region
          %912 = dma.done [#allocation7], 36864
        $region132: #{forward.1} parent=119 // pred_fallthru
          _
        // Predicated region
        $region133: #{forward.1} parent=119 // pred_check
          %p913 = pneg %p199
        $region134: #{forward.1} parent=119 // pred_check_branch
          %915 = sbr.rel (%p913) target = $region136
        $region135: #{forward.1} parent=119 // pred_region
          %916 = dma.done [#allocation10], 1024
        $region136: #{forward.1} parent=119 // pred_fallthru
          _
        // Predicated region
        $region137: #{forward.1} parent=119 // pred_check
          %p917 = pneg %p220
        $region138: #{forward.1} parent=119 // pred_check_branch
          %919 = sbr.rel (%p917) target = $region140
        $region139: #{forward.1} parent=119 // pred_region
          %920 = dma.done [#allocation10], 256
        $region140: #{forward.1} parent=119 // pred_fallthru
          _
        // Predicated region
        $region141: #{forward.1} parent=119 // pred_check
          %p921 = pneg %p241
        $region142: #{forward.1} parent=119 // pred_check_branch
          %923 = sbr.rel (%p921) target = $region144
        $region143: #{forward.1} parent=119 // pred_region
          %924 = dma.done [#allocation13], 640
        $region144: #{forward.1} parent=119 // pred_fallthru
          _
        // Predicated region
        $region145: #{forward.1} parent=119 // pred_check
          %p925 = pneg %p262
        $region146: #{forward.1} parent=119 // pred_check_branch
          %927 = sbr.rel (%p925) target = $region148
        $region147: #{forward.1} parent=119 // pred_region
          %928 = dma.done [#allocation13], 9216
        $region148: #{forward.1} parent=119 // pred_fallthru
          _
        // Predicated region
        $region149: #{forward.1} parent=119 // pred_check
          %p929 = pneg %p283
        $region150: #{forward.1} parent=119 // pred_check_branch
          %931 = sbr.rel (%p929) target = $region152
        $region151: #{forward.1} parent=119 // pred_region
          %932 = dma.done [#allocation16], 128
        $region152: #{forward.1} parent=119 // pred_fallthru
          _
        // Predicated region
        $region153: #{forward.1} parent=119 // pred_check
          %p933 = pneg %p304
        $region154: #{forward.1} parent=119 // pred_check_branch
          %935 = sbr.rel (%p933) target = $region156
        $region155: #{forward.1} parent=119 // pred_region
          %936 = dma.done [#allocation16], 128
        $region156: #{forward.1} parent=119 // pred_fallthru
          _
        // Predicated region
        $region157: #{forward.1} parent=119 // pred_check
          %p937 = pneg %p325
        $region158: #{forward.1} parent=119 // pred_check_branch
          %939 = sbr.rel (%p937) target = $region160
        $region159: #{forward.1} parent=119 // pred_region
          %940 = dma.done [#allocation19], 512
        $region160: #{forward.1} parent=119 // pred_fallthru
          _
        // Predicated region
        $region161: #{forward.1} parent=119 // pred_check
          %p941 = pneg %p346
        $region162: #{forward.1} parent=119 // pred_check_branch
          %943 = sbr.rel (%p941) target = $region164
        $region163: #{forward.1} parent=119 // pred_region
          %944 = dma.done [#allocation19], 768
        $region164: #{forward.1} parent=119 // pred_fallthru
          _
        // Predicated region
        $region165: #{forward.1} parent=119 // pred_check
          %p945 = pneg %p367
        $region166: #{forward.1} parent=119 // pred_check_branch
          %947 = sbr.rel (%p945) target = $region168
        $region167: #{forward.1} parent=119 // pred_region
          %948 = dma.done [#allocation22], 768
        $region168: #{forward.1} parent=119 // pred_fallthru
          _
        // Predicated region
        $region169: #{forward.1} parent=119 // pred_check
          %p949 = pneg %p388
        $region170: #{forward.1} parent=119 // pred_check_branch
          %951 = sbr.rel (%p949) target = $region172
        $region171: #{forward.1} parent=119 // pred_region
          %952 = dma.done [#allocation22], 384
        $region172: #{forward.1} parent=119 // pred_fallthru
          _
        // Predicated region
        $region173: #{forward.1} parent=119 // pred_check
          %p953 = pneg %p409
        $region174: #{forward.1} parent=119 // pred_check_branch
          %955 = sbr.rel (%p953) target = $region176
        $region175: #{forward.1} parent=119 // pred_region
          %956 = dma.done [#allocation25], 128
        $region176: #{forward.1} parent=119 // pred_fallthru
          _
        // Predicated region
        $region177: #{forward.1} parent=119 // pred_check
          %p957 = pneg %p430
        $region178: #{forward.1} parent=119 // pred_check_branch
          %959 = sbr.rel (%p957) target = $region180
        $region179: #{forward.1} parent=119 // pred_region
          %960 = dma.done [#allocation25], 64
        $region180: #{forward.1} parent=119 // pred_fallthru
          _
        %p961 = scmp.lt.s32.totalorder %s53, 1
        %s962 = scalar_select %p961, %s53, 1
        %s963 = smul.addr %s962, 2
        %s964 = smul.addr %s963, 8
        %s965 = scalar_lea.vmem %s1, %s964
        %p966 = pneg %p74
        %p967 = pneg %p71
        %s968 = sand.u32 %s91, 1
        %s969 = scalar_lea.sflag [#allocation5], %s968
        %s970 = sand.u32 %s91, 1
        %s971 = smul.addr %s970, 16
        %s972 = scalar_lea.vmem [#allocation4], %s971
        %p973 = pneg %p104
        %p974 = pneg %p101
        %s975 = sand.u32 %s53, 1
        %s976 = scalar_lea.sflag [#allocation7], %s975
        %s977 = sand.u32 %s123, 1
        %s978 = smul.addr %s977, 16
        %s979 = scalar_lea.vmem [#allocation6], %s978
        %p980 = pneg %p136
        %p981 = pneg %p133
        %p982 = pneg %p157
        %p983 = pneg %p154
        %p984 = pneg %p178
        %p985 = pneg %p175
        %p986 = pneg %p199
        %p987 = pneg %p196
        %p988 = pneg %p220
        %p989 = pneg %p217
        %p990 = pneg %p241
        %p991 = pneg %p238
        %p992 = pneg %p262
        %p993 = pneg %p259
        %p994 = pneg %p283
        %p995 = pneg %p280
        %p996 = pneg %p304
        %p997 = pneg %p301
        %p998 = pneg %p325
        %p999 = pneg %p322
        %p1000 = pneg %p346
        %p1001 = pneg %p343
        %p1002 = pneg %p367
        %p1003 = pneg %p364
        %p1004 = pneg %p388
        %p1005 = pneg %p385
        %p1006 = pneg %p409
        %p1007 = pneg %p406
        %p1008 = pneg %p430
        %p1009 = pneg %p427
        %p1010 = pneg %p451
        %p1011 = pneg %p448
        %p1012 = pneg %p472
        %p1013 = pneg %p469
        %p1014 = pneg %p493
        %p1015 = pneg %p490
        %p1016 = pneg %p514
        %p1017 = pneg %p511
        %p1018 = pneg %p535
        %p1019 = pneg %p532
        %p1020 = pneg %p556
        %p1021 = pneg %p553
        %p1022 = pneg %p577
        %p1023 = pneg %p574
        %p1024 = pneg %p598
        %p1025 = pneg %p595
        %p1026 = pneg %p624
        %p1027 = pneg %p621
        %p1028 = scmp.lt.s32.totalorder %s53, 1
        %s1029 = scalar_select %p1028, %s53, 1
        %s1030 = smul.addr %s1029, 2
        %s1031 = smul.addr %s1030, 4
        %s1032 = scalar_lea.vmem %s26, %s1031
        %p1033 = scmp.lt.s32.totalorder %s53, 1
        %s1034 = scalar_select %p1033, %s53, 1
        %s1035 = smul.addr %s1034, 2
        %s1036 = smul.addr %s1035, 8
        %s1037 = scalar_lea.vmem %s1, %s1036
        %s1038 = smul.u32 %s53, 128
        %s1039 = sld [smem:[#allocation3 + %s1038]]
        %s1040 = smul.u32 %s53, 128
        %s1041 = sadd.s32 %s1040, 1
        %s1042 = sld [smem:[#allocation3 + %s1041]]
        %p1043 = scmp.lt.s32.totalorder %s53, 1
        %s1044 = scalar_select %p1043, %s53, 1
        %s1045 = smul.addr %s1044, 2
        %s1046 = smul.addr %s1045, 4
        %s1047 = scalar_lea.vmem %s26, %s1046
        %v1049 = vld [vmem:[%s1037] sm:$0xff]
        %v1050 = vld [vmem:[%s1037 + $0x8] sm:$0xff]
        %v1051 = vld [vmem:[%s895] sm:$0xff]
        %v1052 = vld [vmem:[%s895 + $0x8] sm:$0xff]
        %v1053 = vld [vmem:[%s904] sm:$0xff]
        %v1054 = vld [vmem:[%s904 + $0x8] sm:$0xff]
        %v1055 = vpack.c.bf16 %v1051, %v1049
        %v1056 = vpack.c.bf16 %v1052, %v1050
        %v1057 = vpack.c.bf16 %v1053, %v1053
        %v1058 = vpack.c.bf16 %v1054, %v1054
        %v1059 = vld [vmem:[#allocation8] sm:$0xff]
        %v1060 = vld [vmem:[#allocation8 + $0x8] sm:$0xff]
        %v1061 = vld [vmem:[#allocation8 + $0x10] sm:$0xff]
        %v1062 = vld [vmem:[#allocation8 + $0x18] sm:$0xff]
        %v1063 = vld [vmem:[#allocation8 + $0x20] sm:$0xff]
        %v1064 = vld [vmem:[#allocation8 + $0x28] sm:$0xff]
        %v1065 = vld [vmem:[#allocation8 + $0x30] sm:$0xff]
        %v1066 = vld [vmem:[#allocation8 + $0x38] sm:$0xff]
        %v1067 = vld [vmem:[#allocation8 + $0x40] sm:$0xff]
        %v1068 = vld [vmem:[#allocation8 + $0x48] sm:$0xff]
        %v1069 = vld [vmem:[#allocation8 + $0x50] sm:$0xff]
        %v1070 = vld [vmem:[#allocation8 + $0x58] sm:$0xff]
        %v1071 = vld [vmem:[#allocation8 + $0x60] sm:$0xff]
        %v1072 = vld [vmem:[#allocation8 + $0x68] sm:$0xff]
        %v1073 = vld [vmem:[#allocation8 + $0x70] sm:$0xff]
        %v1074 = vld [vmem:[#allocation8 + $0x78] sm:$0xff]
        %v1075 = vld [vmem:[#allocation8 + $0x80] sm:$0xff]
        %v1076 = vld [vmem:[#allocation8 + $0x88] sm:$0xff]
        %v1077 = vld [vmem:[#allocation8 + $0x90] sm:$0xff]
        %v1078 = vld [vmem:[#allocation8 + $0x98] sm:$0xff]
        %v1079 = vld [vmem:[#allocation8 + $0xa0] sm:$0xff]
        %v1080 = vld [vmem:[#allocation8 + $0xa8] sm:$0xff]
        %v1081 = vld [vmem:[#allocation8 + $0xb0] sm:$0xff]
        %v1082 = vld [vmem:[#allocation8 + $0xb8] sm:$0xff]
        %v1083 = vld [vmem:[#allocation8 + $0xc0] sm:$0xff]
        %v1084 = vld [vmem:[#allocation8 + $0xc8] sm:$0xff]
        %v1085 = vld [vmem:[#allocation8 + $0xd0] sm:$0xff]
        %v1086 = vld [vmem:[#allocation8 + $0xd8] sm:$0xff]
        %v1087 = vld [vmem:[#allocation8 + $0xe0] sm:$0xff]
        %v1088 = vld [vmem:[#allocation8 + $0xe8] sm:$0xff]
        %v1089 = vld [vmem:[#allocation8 + $0xf0] sm:$0xff]
        %v1090 = vld [vmem:[#allocation8 + $0xf8] sm:$0xff]
        %v1091 = vld [vmem:[#allocation8 + $0x100] sm:$0xff]
        %v1092 = vld [vmem:[#allocation8 + $0x108] sm:$0xff]
        %v1093 = vld [vmem:[#allocation8 + $0x110] sm:$0xff]
        %v1094 = vld [vmem:[#allocation8 + $0x118] sm:$0xff]
        %v1095 = vld [vmem:[#allocation8 + $0x120] sm:$0xff]
        %v1096 = vld [vmem:[#allocation8 + $0x128] sm:$0xff]
        %v1097 = vld [vmem:[#allocation8 + $0x130] sm:$0xff]
        %v1098 = vld [vmem:[#allocation8 + $0x138] sm:$0xff]
        %v1099 = vld [vmem:[#allocation8 + $0x140] sm:$0xff]
        %v1100 = vld [vmem:[#allocation8 + $0x148] sm:$0xff]
        %v1101 = vld [vmem:[#allocation8 + $0x150] sm:$0xff]
        %v1102 = vld [vmem:[#allocation8 + $0x158] sm:$0xff]
        %v1103 = vld [vmem:[#allocation8 + $0x160] sm:$0xff]
        %v1104 = vld [vmem:[#allocation8 + $0x168] sm:$0xff]
        %v1105 = vld [vmem:[#allocation8 + $0x170] sm:$0xff]
        %v1106 = vld [vmem:[#allocation8 + $0x178] sm:$0xff]
        %v1107 = vld [vmem:[#allocation8 + $0x180] sm:$0xff]
        %v1108 = vld [vmem:[#allocation8 + $0x188] sm:$0xff]
        %v1109 = vld [vmem:[#allocation8 + $0x190] sm:$0xff]
        %v1110 = vld [vmem:[#allocation8 + $0x198] sm:$0xff]
        %v1111 = vld [vmem:[#allocation8 + $0x1a0] sm:$0xff]
        %v1112 = vld [vmem:[#allocation8 + $0x1a8] sm:$0xff]
        %v1113 = vld [vmem:[#allocation8 + $0x1b0] sm:$0xff]
        %v1114 = vld [vmem:[#allocation8 + $0x1b8] sm:$0xff]
        %v1115 = vld [vmem:[#allocation8 + $0x1c0] sm:$0xff]
        %v1116 = vld [vmem:[#allocation8 + $0x1c8] sm:$0xff]
        %v1117 = vld [vmem:[#allocation8 + $0x1d0] sm:$0xff]
        %v1118 = vld [vmem:[#allocation8 + $0x1d8] sm:$0xff]
        %v1119 = vld [vmem:[#allocation8 + $0x1e0] sm:$0xff]
        %v1120 = vld [vmem:[#allocation8 + $0x1e8] sm:$0xff]
        %v1121 = vld [vmem:[#allocation8 + $0x1f0] sm:$0xff]
        %v1122 = vld [vmem:[#allocation8 + $0x1f8] sm:$0xff]
        %v1123 = vld [vmem:[#allocation8 + $0x200] sm:$0xff]
        %v1124 = vld [vmem:[#allocation8 + $0x208] sm:$0xff]
        %v1125 = vld [vmem:[#allocation8 + $0x210] sm:$0xff]
        %v1126 = vld [vmem:[#allocation8 + $0x218] sm:$0xff]
        %v1127 = vld [vmem:[#allocation8 + $0x220] sm:$0xff]
        %v1128 = vld [vmem:[#allocation8 + $0x228] sm:$0xff]
        %v1129 = vld [vmem:[#allocation8 + $0x230] sm:$0xff]
        %v1130 = vld [vmem:[#allocation8 + $0x238] sm:$0xff]
        %v1131 = vld [vmem:[#allocation8 + $0x240] sm:$0xff]
        %v1132 = vld [vmem:[#allocation8 + $0x248] sm:$0xff]
        %v1133 = vld [vmem:[#allocation8 + $0x250] sm:$0xff]
        %v1134 = vld [vmem:[#allocation8 + $0x258] sm:$0xff]
        %v1135 = vld [vmem:[#allocation8 + $0x260] sm:$0xff]
        %v1136 = vld [vmem:[#allocation8 + $0x268] sm:$0xff]
        %v1137 = vld [vmem:[#allocation8 + $0x270] sm:$0xff]
        %v1138 = vld [vmem:[#allocation8 + $0x278] sm:$0xff]
        %v1139 = vld [vmem:[#allocation8 + $0x280] sm:$0xff]
        %v1140 = vld [vmem:[#allocation8 + $0x288] sm:$0xff]
        %v1141 = vld [vmem:[#allocation8 + $0x290] sm:$0xff]
        %v1142 = vld [vmem:[#allocation8 + $0x298] sm:$0xff]
        %v1143 = vld [vmem:[#allocation8 + $0x2a0] sm:$0xff]
        %v1144 = vld [vmem:[#allocation8 + $0x2a8] sm:$0xff]
        %v1145 = vld [vmem:[#allocation8 + $0x2b0] sm:$0xff]
        %v1146 = vld [vmem:[#allocation8 + $0x2b8] sm:$0xff]
        %v1147 = vld [vmem:[#allocation8 + $0x2c0] sm:$0xff]
        %v1148 = vld [vmem:[#allocation8 + $0x2c8] sm:$0xff]
        %v1149 = vld [vmem:[#allocation8 + $0x2d0] sm:$0xff]
        %v1150 = vld [vmem:[#allocation8 + $0x2d8] sm:$0xff]
        %v1151 = vld [vmem:[#allocation8 + $0x2e0] sm:$0xff]
        %v1152 = vld [vmem:[#allocation8 + $0x2e8] sm:$0xff]
        %v1153 = vld [vmem:[#allocation8 + $0x2f0] sm:$0xff]
        %v1154 = vld [vmem:[#allocation8 + $0x2f8] sm:$0xff]
        %v1155 = vld [vmem:[#allocation8 + $0x300] sm:$0xff]
        %v1156 = vld [vmem:[#allocation8 + $0x308] sm:$0xff]
        %v1157 = vld [vmem:[#allocation8 + $0x310] sm:$0xff]
        %v1158 = vld [vmem:[#allocation8 + $0x318] sm:$0xff]
        %v1159 = vld [vmem:[#allocation8 + $0x320] sm:$0xff]
        %v1160 = vld [vmem:[#allocation8 + $0x328] sm:$0xff]
        %v1161 = vld [vmem:[#allocation8 + $0x330] sm:$0xff]
        %v1162 = vld [vmem:[#allocation8 + $0x338] sm:$0xff]
        %v1163 = vld [vmem:[#allocation8 + $0x340] sm:$0xff]
        %v1164 = vld [vmem:[#allocation8 + $0x348] sm:$0xff]
        %v1165 = vld [vmem:[#allocation8 + $0x350] sm:$0xff]
        %v1166 = vld [vmem:[#allocation8 + $0x358] sm:$0xff]
        %v1167 = vld [vmem:[#allocation8 + $0x360] sm:$0xff]
        %v1168 = vld [vmem:[#allocation8 + $0x368] sm:$0xff]
        %v1169 = vld [vmem:[#allocation8 + $0x370] sm:$0xff]
        %v1170 = vld [vmem:[#allocation8 + $0x378] sm:$0xff]
        %v1171 = vld [vmem:[#allocation8 + $0x380] sm:$0xff]
        %v1172 = vld [vmem:[#allocation8 + $0x388] sm:$0xff]
        %v1173 = vld [vmem:[#allocation8 + $0x390] sm:$0xff]
        %v1174 = vld [vmem:[#allocation8 + $0x398] sm:$0xff]
        %v1175 = vld [vmem:[#allocation8 + $0x3a0] sm:$0xff]
        %v1176 = vld [vmem:[#allocation8 + $0x3a8] sm:$0xff]
        %v1177 = vld [vmem:[#allocation8 + $0x3b0] sm:$0xff]
        %v1178 = vld [vmem:[#allocation8 + $0x3b8] sm:$0xff]
        %v1179 = vld [vmem:[#allocation8 + $0x3c0] sm:$0xff]
        %v1180 = vld [vmem:[#allocation8 + $0x3c8] sm:$0xff]
        %v1181 = vld [vmem:[#allocation8 + $0x3d0] sm:$0xff]
        %v1182 = vld [vmem:[#allocation8 + $0x3d8] sm:$0xff]
        %v1183 = vld [vmem:[#allocation8 + $0x3e0] sm:$0xff]
        %v1184 = vld [vmem:[#allocation8 + $0x3e8] sm:$0xff]
        %v1185 = vld [vmem:[#allocation8 + $0x3f0] sm:$0xff]
        %v1186 = vld [vmem:[#allocation8 + $0x3f8] sm:$0xff]
        %v1187 = vld [vmem:[#allocation8 + $0x400] sm:$0xff]
        %v1188 = vld [vmem:[#allocation8 + $0x408] sm:$0xff]
        %v1189 = vld [vmem:[#allocation8 + $0x410] sm:$0xff]
        %v1190 = vld [vmem:[#allocation8 + $0x418] sm:$0xff]
        %v1191 = vld [vmem:[#allocation8 + $0x420] sm:$0xff]
        %v1192 = vld [vmem:[#allocation8 + $0x428] sm:$0xff]
        %v1193 = vld [vmem:[#allocation8 + $0x430] sm:$0xff]
        %v1194 = vld [vmem:[#allocation8 + $0x438] sm:$0xff]
        %v1195 = vld [vmem:[#allocation8 + $0x440] sm:$0xff]
        %v1196 = vld [vmem:[#allocation8 + $0x448] sm:$0xff]
        %v1197 = vld [vmem:[#allocation8 + $0x450] sm:$0xff]
        %v1198 = vld [vmem:[#allocation8 + $0x458] sm:$0xff]
        %v1199 = vld [vmem:[#allocation8 + $0x460] sm:$0xff]
        %v1200 = vld [vmem:[#allocation8 + $0x468] sm:$0xff]
        %v1201 = vld [vmem:[#allocation8 + $0x470] sm:$0xff]
        %v1202 = vld [vmem:[#allocation8 + $0x478] sm:$0xff]
        %v1203 = vld [vmem:[#allocation8 + $0x480] sm:$0xff]
        %v1204 = vld [vmem:[#allocation8 + $0x488] sm:$0xff]
        %v1205 = vld [vmem:[#allocation8 + $0x490] sm:$0xff]
        %v1206 = vld [vmem:[#allocation8 + $0x498] sm:$0xff]
        %v1207 = vld [vmem:[#allocation8 + $0x4a0] sm:$0xff]
        %v1208 = vld [vmem:[#allocation8 + $0x4a8] sm:$0xff]
        %v1209 = vld [vmem:[#allocation8 + $0x4b0] sm:$0xff]
        %v1210 = vld [vmem:[#allocation8 + $0x4b8] sm:$0xff]
        %v1211 = vld [vmem:[#allocation8 + $0x4c0] sm:$0xff]
        %v1212 = vld [vmem:[#allocation8 + $0x4c8] sm:$0xff]
        %v1213 = vld [vmem:[#allocation8 + $0x4d0] sm:$0xff]
        %v1214 = vld [vmem:[#allocation8 + $0x4d8] sm:$0xff]
        %v1215 = vld [vmem:[#allocation8 + $0x4e0] sm:$0xff]
        %v1216 = vld [vmem:[#allocation8 + $0x4e8] sm:$0xff]
        %v1217 = vld [vmem:[#allocation8 + $0x4f0] sm:$0xff]
        %v1218 = vld [vmem:[#allocation8 + $0x4f8] sm:$0xff]
        %v1219 = vld [vmem:[#allocation8 + $0x500] sm:$0xff]
        %v1220 = vld [vmem:[#allocation8 + $0x508] sm:$0xff]
        %v1221 = vld [vmem:[#allocation8 + $0x510] sm:$0xff]
        %v1222 = vld [vmem:[#allocation8 + $0x518] sm:$0xff]
        %v1223 = vld [vmem:[#allocation8 + $0x520] sm:$0xff]
        %v1224 = vld [vmem:[#allocation8 + $0x528] sm:$0xff]
        %v1225 = vld [vmem:[#allocation8 + $0x530] sm:$0xff]
        %v1226 = vld [vmem:[#allocation8 + $0x538] sm:$0xff]
        %v1227 = vld [vmem:[#allocation8 + $0x540] sm:$0xff]
        %v1228 = vld [vmem:[#allocation8 + $0x548] sm:$0xff]
        %v1229 = vld [vmem:[#allocation8 + $0x550] sm:$0xff]
        %v1230 = vld [vmem:[#allocation8 + $0x558] sm:$0xff]
        %v1231 = vld [vmem:[#allocation8 + $0x560] sm:$0xff]
        %v1232 = vld [vmem:[#allocation8 + $0x568] sm:$0xff]
        %v1233 = vld [vmem:[#allocation8 + $0x570] sm:$0xff]
        %v1234 = vld [vmem:[#allocation8 + $0x578] sm:$0xff]
        %v1235 = vld [vmem:[#allocation8 + $0x580] sm:$0xff]
        %v1236 = vld [vmem:[#allocation8 + $0x588] sm:$0xff]
        %v1237 = vld [vmem:[#allocation8 + $0x590] sm:$0xff]
        %v1238 = vld [vmem:[#allocation8 + $0x598] sm:$0xff]
        %v1239 = vld [vmem:[#allocation8 + $0x5a0] sm:$0xff]
        %v1240 = vld [vmem:[#allocation8 + $0x5a8] sm:$0xff]
        %v1241 = vld [vmem:[#allocation8 + $0x5b0] sm:$0xff]
        %v1242 = vld [vmem:[#allocation8 + $0x5b8] sm:$0xff]
        %v1243 = vld [vmem:[#allocation8 + $0x5c0] sm:$0xff]
        %v1244 = vld [vmem:[#allocation8 + $0x5c8] sm:$0xff]
        %v1245 = vld [vmem:[#allocation8 + $0x5d0] sm:$0xff]
        %v1246 = vld [vmem:[#allocation8 + $0x5d8] sm:$0xff]
        %v1247 = vld [vmem:[#allocation8 + $0x5e0] sm:$0xff]
        %v1248 = vld [vmem:[#allocation8 + $0x5e8] sm:$0xff]
        %v1249 = vld [vmem:[#allocation8 + $0x5f0] sm:$0xff]
        %v1250 = vld [vmem:[#allocation8 + $0x5f8] sm:$0xff]
        %v1251 = vld [vmem:[#allocation8 + $0x600] sm:$0xff]
        %v1252 = vld [vmem:[#allocation8 + $0x608] sm:$0xff]
        %v1253 = vld [vmem:[#allocation8 + $0x610] sm:$0xff]
        %v1254 = vld [vmem:[#allocation8 + $0x618] sm:$0xff]
        %v1255 = vld [vmem:[#allocation8 + $0x620] sm:$0xff]
        %v1256 = vld [vmem:[#allocation8 + $0x628] sm:$0xff]
        %v1257 = vld [vmem:[#allocation8 + $0x630] sm:$0xff]
        %v1258 = vld [vmem:[#allocation8 + $0x638] sm:$0xff]
        %v1259 = vld [vmem:[#allocation8 + $0x640] sm:$0xff]
        %v1260 = vld [vmem:[#allocation8 + $0x648] sm:$0xff]
        %v1261 = vld [vmem:[#allocation8 + $0x650] sm:$0xff]
        %v1262 = vld [vmem:[#allocation8 + $0x658] sm:$0xff]
        %v1263 = vld [vmem:[#allocation8 + $0x660] sm:$0xff]
        %v1264 = vld [vmem:[#allocation8 + $0x668] sm:$0xff]
        %v1265 = vld [vmem:[#allocation8 + $0x670] sm:$0xff]
        %v1266 = vld [vmem:[#allocation8 + $0x678] sm:$0xff]
        %v1267 = vld [vmem:[#allocation8 + $0x680] sm:$0xff]
        %v1268 = vld [vmem:[#allocation8 + $0x688] sm:$0xff]
        %v1269 = vld [vmem:[#allocation8 + $0x690] sm:$0xff]
        %v1270 = vld [vmem:[#allocation8 + $0x698] sm:$0xff]
        %v1271 = vld [vmem:[#allocation8 + $0x6a0] sm:$0xff]
        %v1272 = vld [vmem:[#allocation8 + $0x6a8] sm:$0xff]
        %v1273 = vld [vmem:[#allocation8 + $0x6b0] sm:$0xff]
        %v1274 = vld [vmem:[#allocation8 + $0x6b8] sm:$0xff]
        %v1275 = vld [vmem:[#allocation8 + $0x6c0] sm:$0xff]
        %v1276 = vld [vmem:[#allocation8 + $0x6c8] sm:$0xff]
        %v1277 = vld [vmem:[#allocation8 + $0x6d0] sm:$0xff]
        %v1278 = vld [vmem:[#allocation8 + $0x6d8] sm:$0xff]
        %v1279 = vld [vmem:[#allocation8 + $0x6e0] sm:$0xff]
        %v1280 = vld [vmem:[#allocation8 + $0x6e8] sm:$0xff]
        %v1281 = vld [vmem:[#allocation8 + $0x6f0] sm:$0xff]
        %v1282 = vld [vmem:[#allocation8 + $0x6f8] sm:$0xff]
        %v1283 = vld [vmem:[#allocation8 + $0x700] sm:$0xff]
        %v1284 = vld [vmem:[#allocation8 + $0x708] sm:$0xff]
        %v1285 = vld [vmem:[#allocation8 + $0x710] sm:$0xff]
        %v1286 = vld [vmem:[#allocation8 + $0x718] sm:$0xff]
        %v1287 = vld [vmem:[#allocation8 + $0x720] sm:$0xff]
        %v1288 = vld [vmem:[#allocation8 + $0x728] sm:$0xff]
        %v1289 = vld [vmem:[#allocation8 + $0x730] sm:$0xff]
        %v1290 = vld [vmem:[#allocation8 + $0x738] sm:$0xff]
        %v1291 = vld [vmem:[#allocation8 + $0x740] sm:$0xff]
        %v1292 = vld [vmem:[#allocation8 + $0x748] sm:$0xff]
        %v1293 = vld [vmem:[#allocation8 + $0x750] sm:$0xff]
        %v1294 = vld [vmem:[#allocation8 + $0x758] sm:$0xff]
        %v1295 = vld [vmem:[#allocation8 + $0x760] sm:$0xff]
        %v1296 = vld [vmem:[#allocation8 + $0x768] sm:$0xff]
        %v1297 = vld [vmem:[#allocation8 + $0x770] sm:$0xff]
        %v1298 = vld [vmem:[#allocation8 + $0x778] sm:$0xff]
        %v1299 = vld [vmem:[#allocation8 + $0x780] sm:$0xff]
        %v1300 = vld [vmem:[#allocation8 + $0x788] sm:$0xff]
        %v1301 = vld [vmem:[#allocation8 + $0x790] sm:$0xff]
        %v1302 = vld [vmem:[#allocation8 + $0x798] sm:$0xff]
        %v1303 = vld [vmem:[#allocation8 + $0x7a0] sm:$0xff]
        %v1304 = vld [vmem:[#allocation8 + $0x7a8] sm:$0xff]
        %v1305 = vld [vmem:[#allocation8 + $0x7b0] sm:$0xff]
        %v1306 = vld [vmem:[#allocation8 + $0x7b8] sm:$0xff]
        %v1307 = vld [vmem:[#allocation8 + $0x7c0] sm:$0xff]
        %v1308 = vld [vmem:[#allocation8 + $0x7c8] sm:$0xff]
        %v1309 = vld [vmem:[#allocation8 + $0x7d0] sm:$0xff]
        %v1310 = vld [vmem:[#allocation8 + $0x7d8] sm:$0xff]
        %v1311 = vld [vmem:[#allocation8 + $0x7e0] sm:$0xff]
        %v1312 = vld [vmem:[#allocation8 + $0x7e8] sm:$0xff]
        %v1313 = vld [vmem:[#allocation8 + $0x7f0] sm:$0xff]
        %v1314 = vld [vmem:[#allocation8 + $0x7f8] sm:$0xff]
        %v1315 = vld [vmem:[#allocation8 + $0x800] sm:$0xff]
        %v1316 = vld [vmem:[#allocation8 + $0x808] sm:$0xff]
        %v1317 = vld [vmem:[#allocation8 + $0x810] sm:$0xff]
        %v1318 = vld [vmem:[#allocation8 + $0x818] sm:$0xff]
        %v1319 = vld [vmem:[#allocation8 + $0x820] sm:$0xff]
        %v1320 = vld [vmem:[#allocation8 + $0x828] sm:$0xff]
        %v1321 = vld [vmem:[#allocation8 + $0x830] sm:$0xff]
        %v1322 = vld [vmem:[#allocation8 + $0x838] sm:$0xff]
        %v1323 = vld [vmem:[#allocation8 + $0x840] sm:$0xff]
        %v1324 = vld [vmem:[#allocation8 + $0x848] sm:$0xff]
        %v1325 = vld [vmem:[#allocation8 + $0x850] sm:$0xff]
        %v1326 = vld [vmem:[#allocation8 + $0x858] sm:$0xff]
        %v1327 = vld [vmem:[#allocation8 + $0x860] sm:$0xff]
        %v1328 = vld [vmem:[#allocation8 + $0x868] sm:$0xff]
        %v1329 = vld [vmem:[#allocation8 + $0x870] sm:$0xff]
        %v1330 = vld [vmem:[#allocation8 + $0x878] sm:$0xff]
        %v1331 = vld [vmem:[#allocation8 + $0x880] sm:$0xff]
        %v1332 = vld [vmem:[#allocation8 + $0x888] sm:$0xff]
        %v1333 = vld [vmem:[#allocation8 + $0x890] sm:$0xff]
        %v1334 = vld [vmem:[#allocation8 + $0x898] sm:$0xff]
        %v1335 = vld [vmem:[#allocation8 + $0x8a0] sm:$0xff]
        %v1336 = vld [vmem:[#allocation8 + $0x8a8] sm:$0xff]
        %v1337 = vld [vmem:[#allocation8 + $0x8b0] sm:$0xff]
        %v1338 = vld [vmem:[#allocation8 + $0x8b8] sm:$0xff]
        %v1339 = vld [vmem:[#allocation8 + $0x8c0] sm:$0xff]
        %v1340 = vld [vmem:[#allocation8 + $0x8c8] sm:$0xff]
        %v1341 = vld [vmem:[#allocation8 + $0x8d0] sm:$0xff]
        %v1342 = vld [vmem:[#allocation8 + $0x8d8] sm:$0xff]
        %v1343 = vld [vmem:[#allocation8 + $0x8e0] sm:$0xff]
        %v1344 = vld [vmem:[#allocation8 + $0x8e8] sm:$0xff]
        %v1345 = vld [vmem:[#allocation8 + $0x8f0] sm:$0xff]
        %v1346 = vld [vmem:[#allocation8 + $0x8f8] sm:$0xff]
        %v1635 = vunpack.c.l.b16 %v1059
        %v1636 = vunpack.c.h.b16 %v1059
        %v1637 = vunpack.c.l.b16 %v1060
        %v1638 = vunpack.c.h.b16 %v1060
        %v1639 = vunpack.c.l.b16 %v1061
        %v1640 = vunpack.c.h.b16 %v1061
        %v1641 = vunpack.c.l.b16 %v1062
        %v1642 = vunpack.c.h.b16 %v1062
        %v1643 = vunpack.c.l.b16 %v1063
        %v1644 = vunpack.c.h.b16 %v1063
        %v1645 = vunpack.c.l.b16 %v1064
        %v1646 = vunpack.c.h.b16 %v1064
        %v1647 = vunpack.c.l.b16 %v1065
        %v1648 = vunpack.c.h.b16 %v1065
        %v1649 = vunpack.c.l.b16 %v1066
        %v1650 = vunpack.c.h.b16 %v1066
        %v1651 = vunpack.c.l.b16 %v1067
        %v1652 = vunpack.c.h.b16 %v1067
        %v1653 = vunpack.c.l.b16 %v1068
        %v1654 = vunpack.c.h.b16 %v1068
        %v1655 = vunpack.c.l.b16 %v1069
        %v1656 = vunpack.c.h.b16 %v1069
        %v1657 = vunpack.c.l.b16 %v1070
        %v1658 = vunpack.c.h.b16 %v1070
        %v1659 = vunpack.c.l.b16 %v1071
        %v1660 = vunpack.c.h.b16 %v1071
        %v1661 = vunpack.c.l.b16 %v1072
        %v1662 = vunpack.c.h.b16 %v1072
        %v1663 = vunpack.c.l.b16 %v1073
        %v1664 = vunpack.c.h.b16 %v1073
        %v1665 = vunpack.c.l.b16 %v1074
        %v1666 = vunpack.c.h.b16 %v1074
        %v1667 = vunpack.c.l.b16 %v1075
        %v1668 = vunpack.c.h.b16 %v1075
        %v1669 = vunpack.c.l.b16 %v1076
        %v1670 = vunpack.c.h.b16 %v1076
        %v1671 = vunpack.c.l.b16 %v1077
        %v1672 = vunpack.c.h.b16 %v1077
        %v1673 = vunpack.c.l.b16 %v1078
        %v1674 = vunpack.c.h.b16 %v1078
        %v1675 = vunpack.c.l.b16 %v1079
        %v1676 = vunpack.c.h.b16 %v1079
        %v1677 = vunpack.c.l.b16 %v1080
        %v1678 = vunpack.c.h.b16 %v1080
        %v1679 = vunpack.c.l.b16 %v1081
        %v1680 = vunpack.c.h.b16 %v1081
        %v1681 = vunpack.c.l.b16 %v1082
        %v1682 = vunpack.c.h.b16 %v1082
        %v1683 = vunpack.c.l.b16 %v1083
        %v1684 = vunpack.c.h.b16 %v1083
        %v1685 = vunpack.c.l.b16 %v1084
        %v1686 = vunpack.c.h.b16 %v1084
        %v1687 = vunpack.c.l.b16 %v1085
        %v1688 = vunpack.c.h.b16 %v1085
        %v1689 = vunpack.c.l.b16 %v1086
        %v1690 = vunpack.c.h.b16 %v1086
        %v1691 = vunpack.c.l.b16 %v1087
        %v1692 = vunpack.c.h.b16 %v1087
        %v1693 = vunpack.c.l.b16 %v1088
        %v1694 = vunpack.c.h.b16 %v1088
        %v1695 = vunpack.c.l.b16 %v1089
        %v1696 = vunpack.c.h.b16 %v1089
        %v1697 = vunpack.c.l.b16 %v1090
        %v1698 = vunpack.c.h.b16 %v1090
        %v1699 = vunpack.c.l.b16 %v1091
        %v1700 = vunpack.c.h.b16 %v1091
        %v1701 = vunpack.c.l.b16 %v1092
        %v1702 = vunpack.c.h.b16 %v1092
        %v1703 = vunpack.c.l.b16 %v1093
        %v1704 = vunpack.c.h.b16 %v1093
        %v1705 = vunpack.c.l.b16 %v1094
        %v1706 = vunpack.c.h.b16 %v1094
        %v1707 = vunpack.c.l.b16 %v1095
        %v1708 = vunpack.c.h.b16 %v1095
        %v1709 = vunpack.c.l.b16 %v1096
        %v1710 = vunpack.c.h.b16 %v1096
        %v1711 = vunpack.c.l.b16 %v1097
        %v1712 = vunpack.c.h.b16 %v1097
        %v1713 = vunpack.c.l.b16 %v1098
        %v1714 = vunpack.c.h.b16 %v1098
        %v1715 = vunpack.c.l.b16 %v1099
        %v1716 = vunpack.c.h.b16 %v1099
        %v1717 = vunpack.c.l.b16 %v1100
        %v1718 = vunpack.c.h.b16 %v1100
        %v1719 = vunpack.c.l.b16 %v1101
        %v1720 = vunpack.c.h.b16 %v1101
        %v1721 = vunpack.c.l.b16 %v1102
        %v1722 = vunpack.c.h.b16 %v1102
        %v1723 = vunpack.c.l.b16 %v1103
        %v1724 = vunpack.c.h.b16 %v1103
        %v1725 = vunpack.c.l.b16 %v1104
        %v1726 = vunpack.c.h.b16 %v1104
        %v1727 = vunpack.c.l.b16 %v1105
        %v1728 = vunpack.c.h.b16 %v1105
        %v1729 = vunpack.c.l.b16 %v1106
        %v1730 = vunpack.c.h.b16 %v1106
        %v1731 = vunpack.c.l.b16 %v1107
        %v1732 = vunpack.c.h.b16 %v1107
        %v1733 = vunpack.c.l.b16 %v1108
        %v1734 = vunpack.c.h.b16 %v1108
        %v1735 = vunpack.c.l.b16 %v1109
        %v1736 = vunpack.c.h.b16 %v1109
        %v1737 = vunpack.c.l.b16 %v1110
        %v1738 = vunpack.c.h.b16 %v1110
        %v1739 = vunpack.c.l.b16 %v1111
        %v1740 = vunpack.c.h.b16 %v1111
        %v1741 = vunpack.c.l.b16 %v1112
        %v1742 = vunpack.c.h.b16 %v1112
        %v1743 = vunpack.c.l.b16 %v1113
        %v1744 = vunpack.c.h.b16 %v1113
        %v1745 = vunpack.c.l.b16 %v1114
        %v1746 = vunpack.c.h.b16 %v1114
        %v1747 = vunpack.c.l.b16 %v1115
        %v1748 = vunpack.c.h.b16 %v1115
        %v1749 = vunpack.c.l.b16 %v1116
        %v1750 = vunpack.c.h.b16 %v1116
        %v1751 = vunpack.c.l.b16 %v1117
        %v1752 = vunpack.c.h.b16 %v1117
        %v1753 = vunpack.c.l.b16 %v1118
        %v1754 = vunpack.c.h.b16 %v1118
        %v1755 = vunpack.c.l.b16 %v1119
        %v1756 = vunpack.c.h.b16 %v1119
        %v1757 = vunpack.c.l.b16 %v1120
        %v1758 = vunpack.c.h.b16 %v1120
        %v1759 = vunpack.c.l.b16 %v1121
        %v1760 = vunpack.c.h.b16 %v1121
        %v1761 = vunpack.c.l.b16 %v1122
        %v1762 = vunpack.c.h.b16 %v1122
        %v1763 = vunpack.c.l.b16 %v1123
        %v1764 = vunpack.c.h.b16 %v1123
        %v1765 = vunpack.c.l.b16 %v1124
        %v1766 = vunpack.c.h.b16 %v1124
        %v1767 = vunpack.c.l.b16 %v1125
        %v1768 = vunpack.c.h.b16 %v1125
        %v1769 = vunpack.c.l.b16 %v1126
        %v1770 = vunpack.c.h.b16 %v1126
        %v1771 = vunpack.c.l.b16 %v1127
        %v1772 = vunpack.c.h.b16 %v1127
        %v1773 = vunpack.c.l.b16 %v1128
        %v1774 = vunpack.c.h.b16 %v1128
        %v1775 = vunpack.c.l.b16 %v1129
        %v1776 = vunpack.c.h.b16 %v1129
        %v1777 = vunpack.c.l.b16 %v1130
        %v1778 = vunpack.c.h.b16 %v1130
        %v1779 = vunpack.c.l.b16 %v1131
        %v1780 = vunpack.c.h.b16 %v1131
        %v1781 = vunpack.c.l.b16 %v1132
        %v1782 = vunpack.c.h.b16 %v1132
        %v1783 = vunpack.c.l.b16 %v1133
        %v1784 = vunpack.c.h.b16 %v1133
        %v1785 = vunpack.c.l.b16 %v1134
        %v1786 = vunpack.c.h.b16 %v1134
        %v1787 = vunpack.c.l.b16 %v1135
        %v1788 = vunpack.c.h.b16 %v1135
        %v1789 = vunpack.c.l.b16 %v1136
        %v1790 = vunpack.c.h.b16 %v1136
        %v1791 = vunpack.c.l.b16 %v1137
        %v1792 = vunpack.c.h.b16 %v1137
        %v1793 = vunpack.c.l.b16 %v1138
        %v1794 = vunpack.c.h.b16 %v1138
        %v1795 = vunpack.c.l.b16 %v1139
        %v1796 = vunpack.c.h.b16 %v1139
        %v1797 = vunpack.c.l.b16 %v1140
        %v1798 = vunpack.c.h.b16 %v1140
        %v1799 = vunpack.c.l.b16 %v1141
        %v1800 = vunpack.c.h.b16 %v1141
        %v1801 = vunpack.c.l.b16 %v1142
        %v1802 = vunpack.c.h.b16 %v1142
        %v1803 = vunpack.c.l.b16 %v1143
        %v1804 = vunpack.c.h.b16 %v1143
        %v1805 = vunpack.c.l.b16 %v1144
        %v1806 = vunpack.c.h.b16 %v1144
        %v1807 = vunpack.c.l.b16 %v1145
        %v1808 = vunpack.c.h.b16 %v1145
        %v1809 = vunpack.c.l.b16 %v1146
        %v1810 = vunpack.c.h.b16 %v1146
        %v1811 = vunpack.c.l.b16 %v1147
        %v1812 = vunpack.c.h.b16 %v1147
        %v1813 = vunpack.c.l.b16 %v1148
        %v1814 = vunpack.c.h.b16 %v1148
        %v1815 = vunpack.c.l.b16 %v1149
        %v1816 = vunpack.c.h.b16 %v1149
        %v1817 = vunpack.c.l.b16 %v1150
        %v1818 = vunpack.c.h.b16 %v1150
        %v1819 = vunpack.c.l.b16 %v1151
        %v1820 = vunpack.c.h.b16 %v1151
        %v1821 = vunpack.c.l.b16 %v1152
        %v1822 = vunpack.c.h.b16 %v1152
        %v1823 = vunpack.c.l.b16 %v1153
        %v1824 = vunpack.c.h.b16 %v1153
        %v1825 = vunpack.c.l.b16 %v1154
        %v1826 = vunpack.c.h.b16 %v1154
        %v1827 = vunpack.c.l.b16 %v1155
        %v1828 = vunpack.c.h.b16 %v1155
        %v1829 = vunpack.c.l.b16 %v1156
        %v1830 = vunpack.c.h.b16 %v1156
        %v1831 = vunpack.c.l.b16 %v1157
        %v1832 = vunpack.c.h.b16 %v1157
        %v1833 = vunpack.c.l.b16 %v1158
        %v1834 = vunpack.c.h.b16 %v1158
        %v1835 = vunpack.c.l.b16 %v1159
        %v1836 = vunpack.c.h.b16 %v1159
        %v1837 = vunpack.c.l.b16 %v1160
        %v1838 = vunpack.c.h.b16 %v1160
        %v1839 = vunpack.c.l.b16 %v1161
        %v1840 = vunpack.c.h.b16 %v1161
        %v1841 = vunpack.c.l.b16 %v1162
        %v1842 = vunpack.c.h.b16 %v1162
        %v1843 = vunpack.c.l.b16 %v1163
        %v1844 = vunpack.c.h.b16 %v1163
        %v1845 = vunpack.c.l.b16 %v1164
        %v1846 = vunpack.c.h.b16 %v1164
        %v1847 = vunpack.c.l.b16 %v1165
        %v1848 = vunpack.c.h.b16 %v1165
        %v1849 = vunpack.c.l.b16 %v1166
        %v1850 = vunpack.c.h.b16 %v1166
        %v1851 = vunpack.c.l.b16 %v1167
        %v1852 = vunpack.c.h.b16 %v1167
        %v1853 = vunpack.c.l.b16 %v1168
        %v1854 = vunpack.c.h.b16 %v1168
        %v1855 = vunpack.c.l.b16 %v1169
        %v1856 = vunpack.c.h.b16 %v1169
        %v1857 = vunpack.c.l.b16 %v1170
        %v1858 = vunpack.c.h.b16 %v1170
        %v1859 = vunpack.c.l.b16 %v1171
        %v1860 = vunpack.c.h.b16 %v1171
        %v1861 = vunpack.c.l.b16 %v1172
        %v1862 = vunpack.c.h.b16 %v1172
        %v1863 = vunpack.c.l.b16 %v1173
        %v1864 = vunpack.c.h.b16 %v1173
        %v1865 = vunpack.c.l.b16 %v1174
        %v1866 = vunpack.c.h.b16 %v1174
        %v1867 = vunpack.c.l.b16 %v1175
        %v1868 = vunpack.c.h.b16 %v1175
        %v1869 = vunpack.c.l.b16 %v1176
        %v1870 = vunpack.c.h.b16 %v1176
        %v1871 = vunpack.c.l.b16 %v1177
        %v1872 = vunpack.c.h.b16 %v1177
        %v1873 = vunpack.c.l.b16 %v1178
        %v1874 = vunpack.c.h.b16 %v1178
        %v1875 = vunpack.c.l.b16 %v1179
        %v1876 = vunpack.c.h.b16 %v1179
        %v1877 = vunpack.c.l.b16 %v1180
        %v1878 = vunpack.c.h.b16 %v1180
        %v1879 = vunpack.c.l.b16 %v1181
        %v1880 = vunpack.c.h.b16 %v1181
        %v1881 = vunpack.c.l.b16 %v1182
        %v1882 = vunpack.c.h.b16 %v1182
        %v1883 = vunpack.c.l.b16 %v1183
        %v1884 = vunpack.c.h.b16 %v1183
        %v1885 = vunpack.c.l.b16 %v1184
        %v1886 = vunpack.c.h.b16 %v1184
        %v1887 = vunpack.c.l.b16 %v1185
        %v1888 = vunpack.c.h.b16 %v1185
        %v1889 = vunpack.c.l.b16 %v1186
        %v1890 = vunpack.c.h.b16 %v1186
        %v1891 = vunpack.c.l.b16 %v1187
        %v1892 = vunpack.c.h.b16 %v1187
        %v1893 = vunpack.c.l.b16 %v1188
        %v1894 = vunpack.c.h.b16 %v1188
        %v1895 = vunpack.c.l.b16 %v1189
        %v1896 = vunpack.c.h.b16 %v1189
        %v1897 = vunpack.c.l.b16 %v1190
        %v1898 = vunpack.c.h.b16 %v1190
        %v1899 = vunpack.c.l.b16 %v1191
        %v1900 = vunpack.c.h.b16 %v1191
        %v1901 = vunpack.c.l.b16 %v1192
        %v1902 = vunpack.c.h.b16 %v1192
        %v1903 = vunpack.c.l.b16 %v1193
        %v1904 = vunpack.c.h.b16 %v1193
        %v1905 = vunpack.c.l.b16 %v1194
        %v1906 = vunpack.c.h.b16 %v1194
        %v1907 = vunpack.c.l.b16 %v1195
        %v1908 = vunpack.c.h.b16 %v1195
        %v1909 = vunpack.c.l.b16 %v1196
        %v1910 = vunpack.c.h.b16 %v1196
        %v1911 = vunpack.c.l.b16 %v1197
        %v1912 = vunpack.c.h.b16 %v1197
        %v1913 = vunpack.c.l.b16 %v1198
        %v1914 = vunpack.c.h.b16 %v1198
        %v1915 = vunpack.c.l.b16 %v1199
        %v1916 = vunpack.c.h.b16 %v1199
        %v1917 = vunpack.c.l.b16 %v1200
        %v1918 = vunpack.c.h.b16 %v1200
        %v1919 = vunpack.c.l.b16 %v1201
        %v1920 = vunpack.c.h.b16 %v1201
        %v1921 = vunpack.c.l.b16 %v1202
        %v1922 = vunpack.c.h.b16 %v1202
        %v1923 = vunpack.c.l.b16 %v1203
        %v1924 = vunpack.c.h.b16 %v1203
        %v1925 = vunpack.c.l.b16 %v1204
        %v1926 = vunpack.c.h.b16 %v1204
        %v1927 = vunpack.c.l.b16 %v1205
        %v1928 = vunpack.c.h.b16 %v1205
        %v1929 = vunpack.c.l.b16 %v1206
        %v1930 = vunpack.c.h.b16 %v1206
        %v1931 = vunpack.c.l.b16 %v1207
        %v1932 = vunpack.c.h.b16 %v1207
        %v1933 = vunpack.c.l.b16 %v1208
        %v1934 = vunpack.c.h.b16 %v1208
        %v1935 = vunpack.c.l.b16 %v1209
        %v1936 = vunpack.c.h.b16 %v1209
        %v1937 = vunpack.c.l.b16 %v1210
        %v1938 = vunpack.c.h.b16 %v1210
        %v1939 = vunpack.c.l.b16 %v1211
        %v1940 = vunpack.c.h.b16 %v1211
        %v1941 = vunpack.c.l.b16 %v1212
        %v1942 = vunpack.c.h.b16 %v1212
        %v1943 = vunpack.c.l.b16 %v1213
        %v1944 = vunpack.c.h.b16 %v1213
        %v1945 = vunpack.c.l.b16 %v1214
        %v1946 = vunpack.c.h.b16 %v1214
        %v1947 = vunpack.c.l.b16 %v1215
        %v1948 = vunpack.c.h.b16 %v1215
        %v1949 = vunpack.c.l.b16 %v1216
        %v1950 = vunpack.c.h.b16 %v1216
        %v1951 = vunpack.c.l.b16 %v1217
        %v1952 = vunpack.c.h.b16 %v1217
        %v1953 = vunpack.c.l.b16 %v1218
        %v1954 = vunpack.c.h.b16 %v1218
        %v1955 = vunpack.c.l.b16 %v1219
        %v1956 = vunpack.c.h.b16 %v1219
        %v1957 = vunpack.c.l.b16 %v1220
        %v1958 = vunpack.c.h.b16 %v1220
        %v1959 = vunpack.c.l.b16 %v1221
        %v1960 = vunpack.c.h.b16 %v1221
        %v1961 = vunpack.c.l.b16 %v1222
        %v1962 = vunpack.c.h.b16 %v1222
        %v1963 = vunpack.c.l.b16 %v1223
        %v1964 = vunpack.c.h.b16 %v1223
        %v1965 = vunpack.c.l.b16 %v1224
        %v1966 = vunpack.c.h.b16 %v1224
        %v1967 = vunpack.c.l.b16 %v1225
        %v1968 = vunpack.c.h.b16 %v1225
        %v1969 = vunpack.c.l.b16 %v1226
        %v1970 = vunpack.c.h.b16 %v1226
        %v1971 = vunpack.c.l.b16 %v1227
        %v1972 = vunpack.c.h.b16 %v1227
        %v1973 = vunpack.c.l.b16 %v1228
        %v1974 = vunpack.c.h.b16 %v1228
        %v1975 = vunpack.c.l.b16 %v1229
        %v1976 = vunpack.c.h.b16 %v1229
        %v1977 = vunpack.c.l.b16 %v1230
        %v1978 = vunpack.c.h.b16 %v1230
        %v1979 = vunpack.c.l.b16 %v1231
        %v1980 = vunpack.c.h.b16 %v1231
        %v1981 = vunpack.c.l.b16 %v1232
        %v1982 = vunpack.c.h.b16 %v1232
        %v1983 = vunpack.c.l.b16 %v1233
        %v1984 = vunpack.c.h.b16 %v1233
        %v1985 = vunpack.c.l.b16 %v1234
        %v1986 = vunpack.c.h.b16 %v1234
        %v1987 = vunpack.c.l.b16 %v1235
        %v1988 = vunpack.c.h.b16 %v1235
        %v1989 = vunpack.c.l.b16 %v1236
        %v1990 = vunpack.c.h.b16 %v1236
        %v1991 = vunpack.c.l.b16 %v1237
        %v1992 = vunpack.c.h.b16 %v1237
        %v1993 = vunpack.c.l.b16 %v1238
        %v1994 = vunpack.c.h.b16 %v1238
        %v1995 = vunpack.c.l.b16 %v1239
        %v1996 = vunpack.c.h.b16 %v1239
        %v1997 = vunpack.c.l.b16 %v1240
        %v1998 = vunpack.c.h.b16 %v1240
        %v1999 = vunpack.c.l.b16 %v1241
        %v2000 = vunpack.c.h.b16 %v1241
        %v2001 = vunpack.c.l.b16 %v1242
        %v2002 = vunpack.c.h.b16 %v1242
        %v2003 = vunpack.c.l.b16 %v1243
        %v2004 = vunpack.c.h.b16 %v1243
        %v2005 = vunpack.c.l.b16 %v1244
        %v2006 = vunpack.c.h.b16 %v1244
        %v2007 = vunpack.c.l.b16 %v1245
        %v2008 = vunpack.c.h.b16 %v1245
        %v2009 = vunpack.c.l.b16 %v1246
        %v2010 = vunpack.c.h.b16 %v1246
        %v2011 = vunpack.c.l.b16 %v1247
        %v2012 = vunpack.c.h.b16 %v1247
        %v2013 = vunpack.c.l.b16 %v1248
        %v2014 = vunpack.c.h.b16 %v1248
        %v2015 = vunpack.c.l.b16 %v1249
        %v2016 = vunpack.c.h.b16 %v1249
        %v2017 = vunpack.c.l.b16 %v1250
        %v2018 = vunpack.c.h.b16 %v1250
        %v2019 = vunpack.c.l.b16 %v1251
        %v2020 = vunpack.c.h.b16 %v1251
        %v2021 = vunpack.c.l.b16 %v1252
        %v2022 = vunpack.c.h.b16 %v1252
        %v2023 = vunpack.c.l.b16 %v1253
        %v2024 = vunpack.c.h.b16 %v1253
        %v2025 = vunpack.c.l.b16 %v1254
        %v2026 = vunpack.c.h.b16 %v1254
        %v2027 = vunpack.c.l.b16 %v1255
        %v2028 = vunpack.c.h.b16 %v1255
        %v2029 = vunpack.c.l.b16 %v1256
        %v2030 = vunpack.c.h.b16 %v1256
        %v2031 = vunpack.c.l.b16 %v1257
        %v2032 = vunpack.c.h.b16 %v1257
        %v2033 = vunpack.c.l.b16 %v1258
        %v2034 = vunpack.c.h.b16 %v1258
        %v2035 = vunpack.c.l.b16 %v1259
        %v2036 = vunpack.c.h.b16 %v1259
        %v2037 = vunpack.c.l.b16 %v1260
        %v2038 = vunpack.c.h.b16 %v1260
        %v2039 = vunpack.c.l.b16 %v1261
        %v2040 = vunpack.c.h.b16 %v1261
        %v2041 = vunpack.c.l.b16 %v1262
        %v2042 = vunpack.c.h.b16 %v1262
        %v2043 = vunpack.c.l.b16 %v1263
        %v2044 = vunpack.c.h.b16 %v1263
        %v2045 = vunpack.c.l.b16 %v1264
        %v2046 = vunpack.c.h.b16 %v1264
        %v2047 = vunpack.c.l.b16 %v1265
        %v2048 = vunpack.c.h.b16 %v1265
        %v2049 = vunpack.c.l.b16 %v1266
        %v2050 = vunpack.c.h.b16 %v1266
        %v2051 = vunpack.c.l.b16 %v1267
        %v2052 = vunpack.c.h.b16 %v1267
        %v2053 = vunpack.c.l.b16 %v1268
        %v2054 = vunpack.c.h.b16 %v1268
        %v2055 = vunpack.c.l.b16 %v1269
        %v2056 = vunpack.c.h.b16 %v1269
        %v2057 = vunpack.c.l.b16 %v1270
        %v2058 = vunpack.c.h.b16 %v1270
        %v2059 = vunpack.c.l.b16 %v1271
        %v2060 = vunpack.c.h.b16 %v1271
        %v2061 = vunpack.c.l.b16 %v1272
        %v2062 = vunpack.c.h.b16 %v1272
        %v2063 = vunpack.c.l.b16 %v1273
        %v2064 = vunpack.c.h.b16 %v1273
        %v2065 = vunpack.c.l.b16 %v1274
        %v2066 = vunpack.c.h.b16 %v1274
        %v2067 = vunpack.c.l.b16 %v1275
        %v2068 = vunpack.c.h.b16 %v1275
        %v2069 = vunpack.c.l.b16 %v1276
        %v2070 = vunpack.c.h.b16 %v1276
        %v2071 = vunpack.c.l.b16 %v1277
        %v2072 = vunpack.c.h.b16 %v1277
        %v2073 = vunpack.c.l.b16 %v1278
        %v2074 = vunpack.c.h.b16 %v1278
        %v2075 = vunpack.c.l.b16 %v1279
        %v2076 = vunpack.c.h.b16 %v1279
        %v2077 = vunpack.c.l.b16 %v1280
        %v2078 = vunpack.c.h.b16 %v1280
        %v2079 = vunpack.c.l.b16 %v1281
        %v2080 = vunpack.c.h.b16 %v1281
        %v2081 = vunpack.c.l.b16 %v1282
        %v2082 = vunpack.c.h.b16 %v1282
        %v2083 = vunpack.c.l.b16 %v1283
        %v2084 = vunpack.c.h.b16 %v1283
        %v2085 = vunpack.c.l.b16 %v1284
        %v2086 = vunpack.c.h.b16 %v1284
        %v2087 = vunpack.c.l.b16 %v1285
        %v2088 = vunpack.c.h.b16 %v1285
        %v2089 = vunpack.c.l.b16 %v1286
        %v2090 = vunpack.c.h.b16 %v1286
        %v2091 = vunpack.c.l.b16 %v1287
        %v2092 = vunpack.c.h.b16 %v1287
        %v2093 = vunpack.c.l.b16 %v1288
        %v2094 = vunpack.c.h.b16 %v1288
        %v2095 = vunpack.c.l.b16 %v1289
        %v2096 = vunpack.c.h.b16 %v1289
        %v2097 = vunpack.c.l.b16 %v1290
        %v2098 = vunpack.c.h.b16 %v1290
        %v2099 = vunpack.c.l.b16 %v1291
        %v2100 = vunpack.c.h.b16 %v1291
        %v2101 = vunpack.c.l.b16 %v1292
        %v2102 = vunpack.c.h.b16 %v1292
        %v2103 = vunpack.c.l.b16 %v1293
        %v2104 = vunpack.c.h.b16 %v1293
        %v2105 = vunpack.c.l.b16 %v1294
        %v2106 = vunpack.c.h.b16 %v1294
        %v2107 = vunpack.c.l.b16 %v1295
        %v2108 = vunpack.c.h.b16 %v1295
        %v2109 = vunpack.c.l.b16 %v1296
        %v2110 = vunpack.c.h.b16 %v1296
        %v2111 = vunpack.c.l.b16 %v1297
        %v2112 = vunpack.c.h.b16 %v1297
        %v2113 = vunpack.c.l.b16 %v1298
        %v2114 = vunpack.c.h.b16 %v1298
        %v2115 = vunpack.c.l.b16 %v1299
        %v2116 = vunpack.c.h.b16 %v1299
        %v2117 = vunpack.c.l.b16 %v1300
        %v2118 = vunpack.c.h.b16 %v1300
        %v2119 = vunpack.c.l.b16 %v1301
        %v2120 = vunpack.c.h.b16 %v1301
        %v2121 = vunpack.c.l.b16 %v1302
        %v2122 = vunpack.c.h.b16 %v1302
        %v2123 = vunpack.c.l.b16 %v1303
        %v2124 = vunpack.c.h.b16 %v1303
        %v2125 = vunpack.c.l.b16 %v1304
        %v2126 = vunpack.c.h.b16 %v1304
        %v2127 = vunpack.c.l.b16 %v1305
        %v2128 = vunpack.c.h.b16 %v1305
        %v2129 = vunpack.c.l.b16 %v1306
        %v2130 = vunpack.c.h.b16 %v1306
        %v2131 = vunpack.c.l.b16 %v1307
        %v2132 = vunpack.c.h.b16 %v1307
        %v2133 = vunpack.c.l.b16 %v1308
        %v2134 = vunpack.c.h.b16 %v1308
        %v2135 = vunpack.c.l.b16 %v1309
        %v2136 = vunpack.c.h.b16 %v1309
        %v2137 = vunpack.c.l.b16 %v1310
        %v2138 = vunpack.c.h.b16 %v1310
        %v2139 = vunpack.c.l.b16 %v1311
        %v2140 = vunpack.c.h.b16 %v1311
        %v2141 = vunpack.c.l.b16 %v1312
        %v2142 = vunpack.c.h.b16 %v1312
        %v2143 = vunpack.c.l.b16 %v1313
        %v2144 = vunpack.c.h.b16 %v1313
        %v2145 = vunpack.c.l.b16 %v1314
        %v2146 = vunpack.c.h.b16 %v1314
        %v2147 = vunpack.c.l.b16 %v1315
        %v2148 = vunpack.c.h.b16 %v1315
        %v2149 = vunpack.c.l.b16 %v1316
        %v2150 = vunpack.c.h.b16 %v1316
        %v2151 = vunpack.c.l.b16 %v1317
        %v2152 = vunpack.c.h.b16 %v1317
        %v2153 = vunpack.c.l.b16 %v1318
        %v2154 = vunpack.c.h.b16 %v1318
        %v2155 = vunpack.c.l.b16 %v1319
        %v2156 = vunpack.c.h.b16 %v1319
        %v2157 = vunpack.c.l.b16 %v1320
        %v2158 = vunpack.c.h.b16 %v1320
        %v2159 = vunpack.c.l.b16 %v1321
        %v2160 = vunpack.c.h.b16 %v1321
        %v2161 = vunpack.c.l.b16 %v1322
        %v2162 = vunpack.c.h.b16 %v1322
        %v2163 = vunpack.c.l.b16 %v1323
        %v2164 = vunpack.c.h.b16 %v1323
        %v2165 = vunpack.c.l.b16 %v1324
        %v2166 = vunpack.c.h.b16 %v1324
        %v2167 = vunpack.c.l.b16 %v1325
        %v2168 = vunpack.c.h.b16 %v1325
        %v2169 = vunpack.c.l.b16 %v1326
        %v2170 = vunpack.c.h.b16 %v1326
        %v2171 = vunpack.c.l.b16 %v1327
        %v2172 = vunpack.c.h.b16 %v1327
        %v2173 = vunpack.c.l.b16 %v1328
        %v2174 = vunpack.c.h.b16 %v1328
        %v2175 = vunpack.c.l.b16 %v1329
        %v2176 = vunpack.c.h.b16 %v1329
        %v2177 = vunpack.c.l.b16 %v1330
        %v2178 = vunpack.c.h.b16 %v1330
        %v2179 = vunpack.c.l.b16 %v1331
        %v2180 = vunpack.c.h.b16 %v1331
        %v2181 = vunpack.c.l.b16 %v1332
        %v2182 = vunpack.c.h.b16 %v1332
        %v2183 = vunpack.c.l.b16 %v1333
        %v2184 = vunpack.c.h.b16 %v1333
        %v2185 = vunpack.c.l.b16 %v1334
        %v2186 = vunpack.c.h.b16 %v1334
        %v2187 = vunpack.c.l.b16 %v1335
        %v2188 = vunpack.c.h.b16 %v1335
        %v2189 = vunpack.c.l.b16 %v1336
        %v2190 = vunpack.c.h.b16 %v1336
        %v2191 = vunpack.c.l.b16 %v1337
        %v2192 = vunpack.c.h.b16 %v1337
        %v2193 = vunpack.c.l.b16 %v1338
        %v2194 = vunpack.c.h.b16 %v1338
        %v2195 = vunpack.c.l.b16 %v1339
        %v2196 = vunpack.c.h.b16 %v1339
        %v2197 = vunpack.c.l.b16 %v1340
        %v2198 = vunpack.c.h.b16 %v1340
        %v2199 = vunpack.c.l.b16 %v1341
        %v2200 = vunpack.c.h.b16 %v1341
        %v2201 = vunpack.c.l.b16 %v1342
        %v2202 = vunpack.c.h.b16 %v1342
        %v2203 = vunpack.c.l.b16 %v1343
        %v2204 = vunpack.c.h.b16 %v1343
        %v2205 = vunpack.c.l.b16 %v1344
        %v2206 = vunpack.c.h.b16 %v1344
        %v2207 = vunpack.c.l.b16 %v1345
        %v2208 = vunpack.c.h.b16 %v1345
        %v2209 = vunpack.c.l.b16 %v1346
        %v2210 = vunpack.c.h.b16 %v1346
        %v2211 = vpack.c.b16 %v1653, %v1635
        %v2212 = vpack.c.b16 %v1654, %v1636
        %v2213 = vpack.c.b16 %v1655, %v1637
        %v2214 = vpack.c.b16 %v1656, %v1638
        %v2215 = vpack.c.b16 %v1657, %v1639
        %v2216 = vpack.c.b16 %v1658, %v1640
        %v2217 = vpack.c.b16 %v1659, %v1641
        %v2218 = vpack.c.b16 %v1660, %v1642
        %v2219 = vpack.c.b16 %v1661, %v1643
        %v2220 = vpack.c.b16 %v1662, %v1644
        %v2221 = vpack.c.b16 %v1663, %v1645
        %v2222 = vpack.c.b16 %v1664, %v1646
        %v2223 = vpack.c.b16 %v1665, %v1647
        %v2224 = vpack.c.b16 %v1666, %v1648
        %v2225 = vpack.c.b16 %v1667, %v1649
        %v2226 = vpack.c.b16 %v1668, %v1650
        %v2227 = vpack.c.b16 %v1669, %v1651
        %v2228 = vpack.c.b16 %v1670, %v1652
        %v2229 = vpack.c.b16 %v1689, %v1671
        %v2230 = vpack.c.b16 %v1690, %v1672
        %v2231 = vpack.c.b16 %v1691, %v1673
        %v2232 = vpack.c.b16 %v1692, %v1674
        %v2233 = vpack.c.b16 %v1693, %v1675
        %v2234 = vpack.c.b16 %v1694, %v1676
        %v2235 = vpack.c.b16 %v1695, %v1677
        %v2236 = vpack.c.b16 %v1696, %v1678
        %v2237 = vpack.c.b16 %v1697, %v1679
        %v2238 = vpack.c.b16 %v1698, %v1680
        %v2239 = vpack.c.b16 %v1699, %v1681
        %v2240 = vpack.c.b16 %v1700, %v1682
        %v2241 = vpack.c.b16 %v1701, %v1683
        %v2242 = vpack.c.b16 %v1702, %v1684
        %v2243 = vpack.c.b16 %v1703, %v1685
        %v2244 = vpack.c.b16 %v1704, %v1686
        %v2245 = vpack.c.b16 %v1705, %v1687
        %v2246 = vpack.c.b16 %v1706, %v1688
        %v2247 = vpack.c.b16 %v1725, %v1707
        %v2248 = vpack.c.b16 %v1726, %v1708
        %v2249 = vpack.c.b16 %v1727, %v1709
        %v2250 = vpack.c.b16 %v1728, %v1710
        %v2251 = vpack.c.b16 %v1729, %v1711
        %v2252 = vpack.c.b16 %v1730, %v1712
        %v2253 = vpack.c.b16 %v1731, %v1713
        %v2254 = vpack.c.b16 %v1732, %v1714
        %v2255 = vpack.c.b16 %v1733, %v1715
        %v2256 = vpack.c.b16 %v1734, %v1716
        %v2257 = vpack.c.b16 %v1735, %v1717
        %v2258 = vpack.c.b16 %v1736, %v1718
        %v2259 = vpack.c.b16 %v1737, %v1719
        %v2260 = vpack.c.b16 %v1738, %v1720
        %v2261 = vpack.c.b16 %v1739, %v1721
        %v2262 = vpack.c.b16 %v1740, %v1722
        %v2263 = vpack.c.b16 %v1741, %v1723
        %v2264 = vpack.c.b16 %v1742, %v1724
        %v2265 = vpack.c.b16 %v1761, %v1743
        %v2266 = vpack.c.b16 %v1762, %v1744
        %v2267 = vpack.c.b16 %v1763, %v1745
        %v2268 = vpack.c.b16 %v1764, %v1746
        %v2269 = vpack.c.b16 %v1765, %v1747
        %v2270 = vpack.c.b16 %v1766, %v1748
        %v2271 = vpack.c.b16 %v1767, %v1749
        %v2272 = vpack.c.b16 %v1768, %v1750
        %v2273 = vpack.c.b16 %v1769, %v1751
        %v2274 = vpack.c.b16 %v1770, %v1752
        %v2275 = vpack.c.b16 %v1771, %v1753
        %v2276 = vpack.c.b16 %v1772, %v1754
        %v2277 = vpack.c.b16 %v1773, %v1755
        %v2278 = vpack.c.b16 %v1774, %v1756
        %v2279 = vpack.c.b16 %v1775, %v1757
        %v2280 = vpack.c.b16 %v1776, %v1758
        %v2281 = vpack.c.b16 %v1777, %v1759
        %v2282 = vpack.c.b16 %v1778, %v1760
        %v2283 = vpack.c.b16 %v1797, %v1779
        %v2284 = vpack.c.b16 %v1798, %v1780
        %v2285 = vpack.c.b16 %v1799, %v1781
        %v2286 = vpack.c.b16 %v1800, %v1782
        %v2287 = vpack.c.b16 %v1801, %v1783
        %v2288 = vpack.c.b16 %v1802, %v1784
        %v2289 = vpack.c.b16 %v1803, %v1785
        %v2290 = vpack.c.b16 %v1804, %v1786
        %v2291 = vpack.c.b16 %v1805, %v1787
        %v2292 = vpack.c.b16 %v1806, %v1788
        %v2293 = vpack.c.b16 %v1807, %v1789
        %v2294 = vpack.c.b16 %v1808, %v1790
        %v2295 = vpack.c.b16 %v1809, %v1791
        %v2296 = vpack.c.b16 %v1810, %v1792
        %v2297 = vpack.c.b16 %v1811, %v1793
        %v2298 = vpack.c.b16 %v1812, %v1794
        %v2299 = vpack.c.b16 %v1813, %v1795
        %v2300 = vpack.c.b16 %v1814, %v1796
        %v2301 = vpack.c.b16 %v1833, %v1815
        %v2302 = vpack.c.b16 %v1834, %v1816
        %v2303 = vpack.c.b16 %v1835, %v1817
        %v2304 = vpack.c.b16 %v1836, %v1818
        %v2305 = vpack.c.b16 %v1837, %v1819
        %v2306 = vpack.c.b16 %v1838, %v1820
        %v2307 = vpack.c.b16 %v1839, %v1821
        %v2308 = vpack.c.b16 %v1840, %v1822
        %v2309 = vpack.c.b16 %v1841, %v1823
        %v2310 = vpack.c.b16 %v1842, %v1824
        %v2311 = vpack.c.b16 %v1843, %v1825
        %v2312 = vpack.c.b16 %v1844, %v1826
        %v2313 = vpack.c.b16 %v1845, %v1827
        %v2314 = vpack.c.b16 %v1846, %v1828
        %v2315 = vpack.c.b16 %v1847, %v1829
        %v2316 = vpack.c.b16 %v1848, %v1830
        %v2317 = vpack.c.b16 %v1849, %v1831
        %v2318 = vpack.c.b16 %v1850, %v1832
        %v2319 = vpack.c.b16 %v1869, %v1851
        %v2320 = vpack.c.b16 %v1870, %v1852
        %v2321 = vpack.c.b16 %v1871, %v1853
        %v2322 = vpack.c.b16 %v1872, %v1854
        %v2323 = vpack.c.b16 %v1873, %v1855
        %v2324 = vpack.c.b16 %v1874, %v1856
        %v2325 = vpack.c.b16 %v1875, %v1857
        %v2326 = vpack.c.b16 %v1876, %v1858
        %v2327 = vpack.c.b16 %v1877, %v1859
        %v2328 = vpack.c.b16 %v1878, %v1860
        %v2329 = vpack.c.b16 %v1879, %v1861
        %v2330 = vpack.c.b16 %v1880, %v1862
        %v2331 = vpack.c.b16 %v1881, %v1863
        %v2332 = vpack.c.b16 %v1882, %v1864
        %v2333 = vpack.c.b16 %v1883, %v1865
        %v2334 = vpack.c.b16 %v1884, %v1866
        %v2335 = vpack.c.b16 %v1885, %v1867
        %v2336 = vpack.c.b16 %v1886, %v1868
        %v2337 = vpack.c.b16 %v1905, %v1887
        %v2338 = vpack.c.b16 %v1906, %v1888
        %v2339 = vpack.c.b16 %v1907, %v1889
        %v2340 = vpack.c.b16 %v1908, %v1890
        %v2341 = vpack.c.b16 %v1909, %v1891
        %v2342 = vpack.c.b16 %v1910, %v1892
        %v2343 = vpack.c.b16 %v1911, %v1893
        %v2344 = vpack.c.b16 %v1912, %v1894
        %v2345 = vpack.c.b16 %v1913, %v1895
        %v2346 = vpack.c.b16 %v1914, %v1896
        %v2347 = vpack.c.b16 %v1915, %v1897
        %v2348 = vpack.c.b16 %v1916, %v1898
        %v2349 = vpack.c.b16 %v1917, %v1899
        %v2350 = vpack.c.b16 %v1918, %v1900
        %v2351 = vpack.c.b16 %v1919, %v1901
        %v2352 = vpack.c.b16 %v1920, %v1902
        %v2353 = vpack.c.b16 %v1921, %v1903
        %v2354 = vpack.c.b16 %v1922, %v1904
        %v2355 = vpack.c.b16 %v1941, %v1923
        %v2356 = vpack.c.b16 %v1942, %v1924
        %v2357 = vpack.c.b16 %v1943, %v1925
        %v2358 = vpack.c.b16 %v1944, %v1926
        %v2359 = vpack.c.b16 %v1945, %v1927
        %v2360 = vpack.c.b16 %v1946, %v1928
        %v2361 = vpack.c.b16 %v1947, %v1929
        %v2362 = vpack.c.b16 %v1948, %v1930
        %v2363 = vpack.c.b16 %v1949, %v1931
        %v2364 = vpack.c.b16 %v1950, %v1932
        %v2365 = vpack.c.b16 %v1951, %v1933
        %v2366 = vpack.c.b16 %v1952, %v1934
        %v2367 = vpack.c.b16 %v1953, %v1935
        %v2368 = vpack.c.b16 %v1954, %v1936
        %v2369 = vpack.c.b16 %v1955, %v1937
        %v2370 = vpack.c.b16 %v1956, %v1938
        %v2371 = vpack.c.b16 %v1957, %v1939
        %v2372 = vpack.c.b16 %v1958, %v1940
        %v2373 = vpack.c.b16 %v1977, %v1959
        %v2374 = vpack.c.b16 %v1978, %v1960
        %v2375 = vpack.c.b16 %v1979, %v1961
        %v2376 = vpack.c.b16 %v1980, %v1962
        %v2377 = vpack.c.b16 %v1981, %v1963
        %v2378 = vpack.c.b16 %v1982, %v1964
        %v2379 = vpack.c.b16 %v1983, %v1965
        %v2380 = vpack.c.b16 %v1984, %v1966
        %v2381 = vpack.c.b16 %v1985, %v1967
        %v2382 = vpack.c.b16 %v1986, %v1968
        %v2383 = vpack.c.b16 %v1987, %v1969
        %v2384 = vpack.c.b16 %v1988, %v1970
        %v2385 = vpack.c.b16 %v1989, %v1971
        %v2386 = vpack.c.b16 %v1990, %v1972
        %v2387 = vpack.c.b16 %v1991, %v1973
        %v2388 = vpack.c.b16 %v1992, %v1974
        %v2389 = vpack.c.b16 %v1993, %v1975
        %v2390 = vpack.c.b16 %v1994, %v1976
        %v2391 = vpack.c.b16 %v2013, %v1995
        %v2392 = vpack.c.b16 %v2014, %v1996
        %v2393 = vpack.c.b16 %v2015, %v1997
        %v2394 = vpack.c.b16 %v2016, %v1998
        %v2395 = vpack.c.b16 %v2017, %v1999
        %v2396 = vpack.c.b16 %v2018, %v2000
        %v2397 = vpack.c.b16 %v2019, %v2001
        %v2398 = vpack.c.b16 %v2020, %v2002
        %v2399 = vpack.c.b16 %v2021, %v2003
        %v2400 = vpack.c.b16 %v2022, %v2004
        %v2401 = vpack.c.b16 %v2023, %v2005
        %v2402 = vpack.c.b16 %v2024, %v2006
        %v2403 = vpack.c.b16 %v2025, %v2007
        %v2404 = vpack.c.b16 %v2026, %v2008
        %v2405 = vpack.c.b16 %v2027, %v2009
        %v2406 = vpack.c.b16 %v2028, %v2010
        %v2407 = vpack.c.b16 %v2029, %v2011
        %v2408 = vpack.c.b16 %v2030, %v2012
        %v2409 = vpack.c.b16 %v2049, %v2031
        %v2410 = vpack.c.b16 %v2050, %v2032
        %v2411 = vpack.c.b16 %v2051, %v2033
        %v2412 = vpack.c.b16 %v2052, %v2034
        %v2413 = vpack.c.b16 %v2053, %v2035
        %v2414 = vpack.c.b16 %v2054, %v2036
        %v2415 = vpack.c.b16 %v2055, %v2037
        %v2416 = vpack.c.b16 %v2056, %v2038
        %v2417 = vpack.c.b16 %v2057, %v2039
        %v2418 = vpack.c.b16 %v2058, %v2040
        %v2419 = vpack.c.b16 %v2059, %v2041
        %v2420 = vpack.c.b16 %v2060, %v2042
        %v2421 = vpack.c.b16 %v2061, %v2043
        %v2422 = vpack.c.b16 %v2062, %v2044
        %v2423 = vpack.c.b16 %v2063, %v2045
        %v2424 = vpack.c.b16 %v2064, %v2046
        %v2425 = vpack.c.b16 %v2065, %v2047
        %v2426 = vpack.c.b16 %v2066, %v2048
        %v2427 = vpack.c.b16 %v2085, %v2067
        %v2428 = vpack.c.b16 %v2086, %v2068
        %v2429 = vpack.c.b16 %v2087, %v2069
        %v2430 = vpack.c.b16 %v2088, %v2070
        %v2431 = vpack.c.b16 %v2089, %v2071
        %v2432 = vpack.c.b16 %v2090, %v2072
        %v2433 = vpack.c.b16 %v2091, %v2073
        %v2434 = vpack.c.b16 %v2092, %v2074
        %v2435 = vpack.c.b16 %v2093, %v2075
        %v2436 = vpack.c.b16 %v2094, %v2076
        %v2437 = vpack.c.b16 %v2095, %v2077
        %v2438 = vpack.c.b16 %v2096, %v2078
        %v2439 = vpack.c.b16 %v2097, %v2079
        %v2440 = vpack.c.b16 %v2098, %v2080
        %v2441 = vpack.c.b16 %v2099, %v2081
        %v2442 = vpack.c.b16 %v2100, %v2082
        %v2443 = vpack.c.b16 %v2101, %v2083
        %v2444 = vpack.c.b16 %v2102, %v2084
        %v2445 = vpack.c.b16 %v2121, %v2103
        %v2446 = vpack.c.b16 %v2122, %v2104
        %v2447 = vpack.c.b16 %v2123, %v2105
        %v2448 = vpack.c.b16 %v2124, %v2106
        %v2449 = vpack.c.b16 %v2125, %v2107
        %v2450 = vpack.c.b16 %v2126, %v2108
        %v2451 = vpack.c.b16 %v2127, %v2109
        %v2452 = vpack.c.b16 %v2128, %v2110
        %v2453 = vpack.c.b16 %v2129, %v2111
        %v2454 = vpack.c.b16 %v2130, %v2112
        %v2455 = vpack.c.b16 %v2131, %v2113
        %v2456 = vpack.c.b16 %v2132, %v2114
        %v2457 = vpack.c.b16 %v2133, %v2115
        %v2458 = vpack.c.b16 %v2134, %v2116
        %v2459 = vpack.c.b16 %v2135, %v2117
        %v2460 = vpack.c.b16 %v2136, %v2118
        %v2461 = vpack.c.b16 %v2137, %v2119
        %v2462 = vpack.c.b16 %v2138, %v2120
        %v2463 = vpack.c.b16 %v2157, %v2139
        %v2464 = vpack.c.b16 %v2158, %v2140
        %v2465 = vpack.c.b16 %v2159, %v2141
        %v2466 = vpack.c.b16 %v2160, %v2142
        %v2467 = vpack.c.b16 %v2161, %v2143
        %v2468 = vpack.c.b16 %v2162, %v2144
        %v2469 = vpack.c.b16 %v2163, %v2145
        %v2470 = vpack.c.b16 %v2164, %v2146
        %v2471 = vpack.c.b16 %v2165, %v2147
        %v2472 = vpack.c.b16 %v2166, %v2148
        %v2473 = vpack.c.b16 %v2167, %v2149
        %v2474 = vpack.c.b16 %v2168, %v2150
        %v2475 = vpack.c.b16 %v2169, %v2151
        %v2476 = vpack.c.b16 %v2170, %v2152
        %v2477 = vpack.c.b16 %v2171, %v2153
        %v2478 = vpack.c.b16 %v2172, %v2154
        %v2479 = vpack.c.b16 %v2173, %v2155
        %v2480 = vpack.c.b16 %v2174, %v2156
        %v2481 = vpack.c.b16 %v2193, %v2175
        %v2482 = vpack.c.b16 %v2194, %v2176
        %v2483 = vpack.c.b16 %v2195, %v2177
        %v2484 = vpack.c.b16 %v2196, %v2178
        %v2485 = vpack.c.b16 %v2197, %v2179
        %v2486 = vpack.c.b16 %v2198, %v2180
        %v2487 = vpack.c.b16 %v2199, %v2181
        %v2488 = vpack.c.b16 %v2200, %v2182
        %v2489 = vpack.c.b16 %v2201, %v2183
        %v2490 = vpack.c.b16 %v2202, %v2184
        %v2491 = vpack.c.b16 %v2203, %v2185
        %v2492 = vpack.c.b16 %v2204, %v2186
        %v2493 = vpack.c.b16 %v2205, %v2187
        %v2494 = vpack.c.b16 %v2206, %v2188
        %v2495 = vpack.c.b16 %v2207, %v2189
        %v2496 = vpack.c.b16 %v2208, %v2190
        %v2497 = vpack.c.b16 %v2209, %v2191
        %v2498 = vpack.c.b16 %v2210, %v2192
        %2787 = vmatprep.subr.bf16.mxu0 %v2212
        %2788 = vmatpush1.bf16.msra.mxu0 %v2211
        %2789 = vmatprep.subr.bf16.mxu0 %v2230
        %2790 = vmatpush1.bf16.msra.mxu0 %v2229
        %2791 = vmatprep.subr.bf16.mxu0 %v2248
        %2792 = vmatpush1.bf16.msra.mxu0 %v2247
        %2793 = vmatprep.subr.bf16.mxu0 %v2266
        %2794 = vmatpush1.bf16.msra.mxu0 %v2265
        %2795 = vmatprep.subr.bf16.mxu0 %v2284
        %2796 = vmatpush1.bf16.msra.mxu0 %v2283
        %2797 = vmatprep.subr.bf16.mxu0 %v2302
        %2798 = vmatpush1.bf16.msra.mxu0 %v2301
        %2799 = vmatprep.subr.bf16.mxu0 %v2320
        %2800 = vmatpush1.bf16.msra.mxu0 %v2319
        %2801 = vmatprep.subr.bf16.mxu0 %v2338
        %2802 = vmatpush1.bf16.msra.mxu0 %v2337
        %2803 = vmatprep.subr.bf16.mxu0 %v2356
        %2804 = vmatpush1.bf16.msra.mxu0 %v2355
        %2805 = vmatprep.subr.bf16.mxu0 %v2374
        %2806 = vmatpush1.bf16.msra.mxu0 %v2373
        %2807 = vmatprep.subr.bf16.mxu0 %v2392
        %2808 = vmatpush1.bf16.msra.mxu0 %v2391
        %2809 = vmatprep.subr.bf16.mxu0 %v2410
        %2810 = vmatpush1.bf16.msra.mxu0 %v2409
        %2811 = vmatprep.subr.bf16.mxu0 %v2428
        %2812 = vmatpush1.bf16.msra.mxu0 %v2427
        %2813 = vmatprep.subr.bf16.mxu0 %v2446
        %2814 = vmatpush1.bf16.msra.mxu0 %v2445
        %2815 = vmatprep.subr.bf16.mxu0 %v2464
        %2816 = vmatpush1.bf16.msra.mxu0 %v2463
        %2817 = vmatprep.subr.bf16.mxu0 %v2482
        %2818 = vmatpush1.bf16.msra.mxu0 %v2481
        %2819 = vmatprep.mubr.bf16.mxu0 %v1056
        %2820 = vmatmul.mubr.bf16.gmra.mrb[0].mxu0 %v1055
        %v2821 = vpop.f32.mrb[0].mxu0
        %v2822 = vadd.f32 0.0, %v2821
        %v2823 = vpop.f32.mrb[0].mxu0
        %v2824 = vadd.f32 0.0, %v2823
        %v2825 = vpop.f32.mrb[0].mxu0
        %v2826 = vadd.f32 0.0, %v2825
        %v2827 = vpop.f32.mrb[0].mxu0
        %v2828 = vadd.f32 0.0, %v2827
        %2829 = vmatprep.mubr.bf16.mxu0 %v1058
        %2830 = vmatmul.mubr.bf16.gmra.mrb[0].mxu0 %v1057
        %v2831 = vpop.f32.mrb[0].mxu0
        %v2832 = vadd.f32 0.0, %v2831
        %v2833 = vpop.f32.mrb[0].mxu0
        %v2834 = vadd.f32 0.0, %v2833
        %v2835 = vpop.f32.mrb[0].mxu0
        %v2836 = vpop.f32.mrb[0].mxu0
        %2837 = vdwg.mxu0
        %2838 = vmatprep.subr.bf16.mxu0 %v2214
        %2839 = vmatpush1.bf16.msra.mxu0 %v2213
        %2840 = vmatprep.subr.bf16.mxu0 %v2232
        %2841 = vmatpush1.bf16.msra.mxu0 %v2231
        %2842 = vmatprep.subr.bf16.mxu0 %v2250
        %2843 = vmatpush1.bf16.msra.mxu0 %v2249
        %2844 = vmatprep.subr.bf16.mxu0 %v2268
        %2845 = vmatpush1.bf16.msra.mxu0 %v2267
        %2846 = vmatprep.subr.bf16.mxu0 %v2286
        %2847 = vmatpush1.bf16.msra.mxu0 %v2285
        %2848 = vmatprep.subr.bf16.mxu0 %v2304
        %2849 = vmatpush1.bf16.msra.mxu0 %v2303
        %2850 = vmatprep.subr.bf16.mxu0 %v2322
        %2851 = vmatpush1.bf16.msra.mxu0 %v2321
        %2852 = vmatprep.subr.bf16.mxu0 %v2340
        %2853 = vmatpush1.bf16.msra.mxu0 %v2339
        %2854 = vmatprep.subr.bf16.mxu0 %v2358
        %2855 = vmatpush1.bf16.msra.mxu0 %v2357
        %2856 = vmatprep.subr.bf16.mxu0 %v2376
        %2857 = vmatpush1.bf16.msra.mxu0 %v2375
        %2858 = vmatprep.subr.bf16.mxu0 %v2394
        %2859 = vmatpush1.bf16.msra.mxu0 %v2393
        %2860 = vmatprep.subr.bf16.mxu0 %v2412
        %2861 = vmatpush1.bf16.msra.mxu0 %v2411
        %2862 = vmatprep.subr.bf16.mxu0 %v2430
        %2863 = vmatpush1.bf16.msra.mxu0 %v2429
        %2864 = vmatprep.subr.bf16.mxu0 %v2448
        %2865 = vmatpush1.bf16.msra.mxu0 %v2447
        %2866 = vmatprep.subr.bf16.mxu0 %v2466
        %2867 = vmatpush1.bf16.msra.mxu0 %v2465
        %2868 = vmatprep.subr.bf16.mxu0 %v2484
        %2869 = vmatpush1.bf16.msra.mxu0 %v2483
        %2870 = vmatprep.mubr.bf16.mxu0 %v1056
        %2871 = vmatmul.mubr.bf16.gmra.mrb[0].mxu0 %v1055
        %v2872 = vpop.f32.mrb[0].mxu0
        %v2873 = vadd.f32 0.0, %v2872
        %v2874 = vpop.f32.mrb[0].mxu0
        %v2875 = vadd.f32 0.0, %v2874
        %v2876 = vpop.f32.mrb[0].mxu0
        %v2877 = vadd.f32 0.0, %v2876
        %v2878 = vpop.f32.mrb[0].mxu0
        %v2879 = vadd.f32 0.0, %v2878
        %2880 = vmatprep.mubr.bf16.mxu0 %v1058
        %2881 = vmatmul.mubr.bf16.gmra.mrb[0].mxu0 %v1057
        %v2882 = vpop.f32.mrb[0].mxu0
        %v2883 = vadd.f32 0.0, %v2882
        %v2884 = vpop.f32.mrb[0].mxu0
        %v2885 = vadd.f32 0.0, %v2884
        %v2886 = vpop.f32.mrb[0].mxu0
        %v2887 = vpop.f32.mrb[0].mxu0
        %2888 = vdwg.mxu0
        %2889 = vmatprep.subr.bf16.mxu0 %v2216
        %2890 = vmatpush1.bf16.msra.mxu0 %v2215
        %2891 = vmatprep.subr.bf16.mxu0 %v2234
        %2892 = vmatpush1.bf16.msra.mxu0 %v2233
        %2893 = vmatprep.subr.bf16.mxu0 %v2252
        %2894 = vmatpush1.bf16.msra.mxu0 %v2251
        %2895 = vmatprep.subr.bf16.mxu0 %v2270
        %2896 = vmatpush1.bf16.msra.mxu0 %v2269
        %2897 = vmatprep.subr.bf16.mxu0 %v2288
        %2898 = vmatpush1.bf16.msra.mxu0 %v2287
        %2899 = vmatprep.subr.bf16.mxu0 %v2306
        %2900 = vmatpush1.bf16.msra.mxu0 %v2305
        %2901 = vmatprep.subr.bf16.mxu0 %v2324
        %2902 = vmatpush1.bf16.msra.mxu0 %v2323
        %2903 = vmatprep.subr.bf16.mxu0 %v2342
        %2904 = vmatpush1.bf16.msra.mxu0 %v2341
        %2905 = vmatprep.subr.bf16.mxu0 %v2360
        %2906 = vmatpush1.bf16.msra.mxu0 %v2359
        %2907 = vmatprep.subr.bf16.mxu0 %v2378
        %2908 = vmatpush1.bf16.msra.mxu0 %v2377
        %2909 = vmatprep.subr.bf16.mxu0 %v2396
        %2910 = vmatpush1.bf16.msra.mxu0 %v2395
        %2911 = vmatprep.subr.bf16.mxu0 %v2414
        %2912 = vmatpush1.bf16.msra.mxu0 %v2413
        %2913 = vmatprep.subr.bf16.mxu0 %v2432
        %2914 = vmatpush1.bf16.msra.mxu0 %v2431
        %2915 = vmatprep.subr.bf16.mxu0 %v2450
        %2916 = vmatpush1.bf16.msra.mxu0 %v2449
        %2917 = vmatprep.subr.bf16.mxu0 %v2468
        %2918 = vmatpush1.bf16.msra.mxu0 %v2467
        %2919 = vmatprep.subr.bf16.mxu0 %v2486
        %2920 = vmatpush1.bf16.msra.mxu0 %v2485
        %2921 = vmatprep.mubr.bf16.mxu0 %v1056
        %2922 = vmatmul.mubr.bf16.gmra.mrb[0].mxu0 %v1055
        %v2923 = vpop.f32.mrb[0].mxu0
        %v2924 = vadd.f32 0.0, %v2923
        %v2925 = vpop.f32.mrb[0].mxu0
        %v2926 = vadd.f32 0.0, %v2925
        %v2927 = vpop.f32.mrb[0].mxu0
        %v2928 = vadd.f32 0.0, %v2927
        %v2929 = vpop.f32.mrb[0].mxu0
        %v2930 = vadd.f32 0.0, %v2929
        %2931 = vmatprep.mubr.bf16.mxu0 %v1058
        %2932 = vmatmul.mubr.bf16.gmra.mrb[0].mxu0 %v1057
        %v2933 = vpop.f32.mrb[0].mxu0
        %v2934 = vadd.f32 0.0, %v2933
        %v2935 = vpop.f32.mrb[0].mxu0
        %v2936 = vadd.f32 0.0, %v2935
        %v2937 = vpop.f32.mrb[0].mxu0
        %v2938 = vpop.f32.mrb[0].mxu0
        %2939 = vdwg.mxu0
        %2940 = vmatprep.subr.bf16.mxu0 %v2218
        %2941 = vmatpush1.bf16.msra.mxu0 %v2217
        %2942 = vmatprep.subr.bf16.mxu0 %v2236
        %2943 = vmatpush1.bf16.msra.mxu0 %v2235
        %2944 = vmatprep.subr.bf16.mxu0 %v2254
        %2945 = vmatpush1.bf16.msra.mxu0 %v2253
        %2946 = vmatprep.subr.bf16.mxu0 %v2272
        %2947 = vmatpush1.bf16.msra.mxu0 %v2271
        %2948 = vmatprep.subr.bf16.mxu0 %v2290
        %2949 = vmatpush1.bf16.msra.mxu0 %v2289
        %2950 = vmatprep.subr.bf16.mxu0 %v2308
        %2951 = vmatpush1.bf16.msra.mxu0 %v2307
        %2952 = vmatprep.subr.bf16.mxu0 %v2326
        %2953 = vmatpush1.bf16.msra.mxu0 %v2325
        %2954 = vmatprep.subr.bf16.mxu0 %v2344
        %2955 = vmatpush1.bf16.msra.mxu0 %v2343
        %2956 = vmatprep.subr.bf16.mxu0 %v2362
        %2957 = vmatpush1.bf16.msra.mxu0 %v2361
        %2958 = vmatprep.subr.bf16.mxu0 %v2380
        %2959 = vmatpush1.bf16.msra.mxu0 %v2379
        %2960 = vmatprep.subr.bf16.mxu0 %v2398
        %2961 = vmatpush1.bf16.msra.mxu0 %v2397
        %2962 = vmatprep.subr.bf16.mxu0 %v2416
        %2963 = vmatpush1.bf16.msra.mxu0 %v2415
        %2964 = vmatprep.subr.bf16.mxu0 %v2434
        %2965 = vmatpush1.bf16.msra.mxu0 %v2433
        %2966 = vmatprep.subr.bf16.mxu0 %v2452
        %2967 = vmatpush1.bf16.msra.mxu0 %v2451
        %2968 = vmatprep.subr.bf16.mxu0 %v2470
        %2969 = vmatpush1.bf16.msra.mxu0 %v2469
        %2970 = vmatprep.subr.bf16.mxu0 %v2488
        %2971 = vmatpush1.bf16.msra.mxu0 %v2487
        %2972 = vmatprep.mubr.bf16.mxu0 %v1056
        %2973 = vmatmul.mubr.bf16.gmra.mrb[0].mxu0 %v1055
        %v2974 = vpop.f32.mrb[0].mxu0
        %v2975 = vadd.f32 0.0, %v2974
        %v2976 = vpop.f32.mrb[0].mxu0
        %v2977 = vadd.f32 0.0, %v2976
        %v2978 = vpop.f32.mrb[0].mxu0
        %v2979 = vadd.f32 0.0, %v2978
        %v2980 = vpop.f32.mrb[0].mxu0
        %v2981 = vadd.f32 0.0, %v2980
        %2982 = vmatprep.mubr.bf16.mxu0 %v1058
        %2983 = vmatmul.mubr.bf16.gmra.mrb[0].mxu0 %v1057
        %v2984 = vpop.f32.mrb[0].mxu0
        %v2985 = vadd.f32 0.0, %v2984
        %v2986 = vpop.f32.mrb[0].mxu0
        %v2987 = vadd.f32 0.0, %v2986
        %v2988 = vpop.f32.mrb[0].mxu0
        %v2989 = vpop.f32.mrb[0].mxu0
        %2990 = vdwg.mxu0
        %2991 = vmatprep.subr.bf16.mxu0 %v2220
        %2992 = vmatpush1.bf16.msra.mxu0 %v2219
        %2993 = vmatprep.subr.bf16.mxu0 %v2238
        %2994 = vmatpush1.bf16.msra.mxu0 %v2237
        %2995 = vmatprep.subr.bf16.mxu0 %v2256
        %2996 = vmatpush1.bf16.msra.mxu0 %v2255
        %2997 = vmatprep.subr.bf16.mxu0 %v2274
        %2998 = vmatpush1.bf16.msra.mxu0 %v2273
        %2999 = vmatprep.subr.bf16.mxu0 %v2292
        %3000 = vmatpush1.bf16.msra.mxu0 %v2291
        %3001 = vmatprep.subr.bf16.mxu0 %v2310
        %3002 = vmatpush1.bf16.msra.mxu0 %v2309
        %3003 = vmatprep.subr.bf16.mxu0 %v2328
        %3004 = vmatpush1.bf16.msra.mxu0 %v2327
        %3005 = vmatprep.subr.bf16.mxu0 %v2346
        %3006 = vmatpush1.bf16.msra.mxu0 %v2345
        %3007 = vmatprep.subr.bf16.mxu0 %v2364
        %3008 = vmatpush1.bf16.msra.mxu0 %v2363
        %3009 = vmatprep.subr.bf16.mxu0 %v2382
        %3010 = vmatpush1.bf16.msra.mxu0 %v2381
        %3011 = vmatprep.subr.bf16.mxu0 %v2400
        %3012 = vmatpush1.bf16.msra.mxu0 %v2399
        %3013 = vmatprep.subr.bf16.mxu0 %v2418
        %3014 = vmatpush1.bf16.msra.mxu0 %v2417
        %3015 = vmatprep.subr.bf16.mxu0 %v2436
        %3016 = vmatpush1.bf16.msra.mxu0 %v2435
        %3017 = vmatprep.subr.bf16.mxu0 %v2454
        %3018 = vmatpush1.bf16.msra.mxu0 %v2453
        %3019 = vmatprep.subr.bf16.mxu0 %v2472
        %3020 = vmatpush1.bf16.msra.mxu0 %v2471
        %3021 = vmatprep.subr.bf16.mxu0 %v2490
        %3022 = vmatpush1.bf16.msra.mxu0 %v2489
        %3023 = vmatprep.mubr.bf16.mxu0 %v1056
        %3024 = vmatmul.mubr.bf16.gmra.mrb[0].mxu0 %v1055
        %v3025 = vpop.f32.mrb[0].mxu0
        %v3026 = vadd.f32 0.0, %v3025
        %v3027 = vpop.f32.mrb[0].mxu0
        %v3028 = vadd.f32 0.0, %v3027
        %v3029 = vpop.f32.mrb[0].mxu0
        %v3030 = vadd.f32 0.0, %v3029
        %v3031 = vpop.f32.mrb[0].mxu0
        %v3032 = vadd.f32 0.0, %v3031
        %3033 = vmatprep.mubr.bf16.mxu0 %v1058
        %3034 = vmatmul.mubr.bf16.gmra.mrb[0].mxu0 %v1057
        %v3035 = vpop.f32.mrb[0].mxu0
        %v3036 = vadd.f32 0.0, %v3035
        %v3037 = vpop.f32.mrb[0].mxu0
        %v3038 = vadd.f32 0.0, %v3037
        %v3039 = vpop.f32.mrb[0].mxu0
        %v3040 = vpop.f32.mrb[0].mxu0
        %3041 = vdwg.mxu0
        %3042 = vmatprep.subr.bf16.mxu0 %v2222
        %3043 = vmatpush1.bf16.msra.mxu0 %v2221
        %3044 = vmatprep.subr.bf16.mxu0 %v2240
        %3045 = vmatpush1.bf16.msra.mxu0 %v2239
        %3046 = vmatprep.subr.bf16.mxu0 %v2258
        %3047 = vmatpush1.bf16.msra.mxu0 %v2257
        %3048 = vmatprep.subr.bf16.mxu0 %v2276
        %3049 = vmatpush1.bf16.msra.mxu0 %v2275
        %3050 = vmatprep.subr.bf16.mxu0 %v2294
        %3051 = vmatpush1.bf16.msra.mxu0 %v2293
        %3052 = vmatprep.subr.bf16.mxu0 %v2312
        %3053 = vmatpush1.bf16.msra.mxu0 %v2311
        %3054 = vmatprep.subr.bf16.mxu0 %v2330
        %3055 = vmatpush1.bf16.msra.mxu0 %v2329
        %3056 = vmatprep.subr.bf16.mxu0 %v2348
        %3057 = vmatpush1.bf16.msra.mxu0 %v2347
        %3058 = vmatprep.subr.bf16.mxu0 %v2366
        %3059 = vmatpush1.bf16.msra.mxu0 %v2365
        %3060 = vmatprep.subr.bf16.mxu0 %v2384
        %3061 = vmatpush1.bf16.msra.mxu0 %v2383
        %3062 = vmatprep.subr.bf16.mxu0 %v2402
        %3063 = vmatpush1.bf16.msra.mxu0 %v2401
        %3064 = vmatprep.subr.bf16.mxu0 %v2420
        %3065 = vmatpush1.bf16.msra.mxu0 %v2419
        %3066 = vmatprep.subr.bf16.mxu0 %v2438
        %3067 = vmatpush1.bf16.msra.mxu0 %v2437
        %3068 = vmatprep.subr.bf16.mxu0 %v2456
        %3069 = vmatpush1.bf16.msra.mxu0 %v2455
        %3070 = vmatprep.subr.bf16.mxu0 %v2474
        %3071 = vmatpush1.bf16.msra.mxu0 %v2473
        %3072 = vmatprep.subr.bf16.mxu0 %v2492
        %3073 = vmatpush1.bf16.msra.mxu0 %v2491
        %3074 = vmatprep.mubr.bf16.mxu0 %v1056
        %3075 = vmatmul.mubr.bf16.gmra.mrb[0].mxu0 %v1055
        %v3076 = vpop.f32.mrb[0].mxu0
        %v3077 = vadd.f32 0.0, %v3076
        %v3078 = vpop.f32.mrb[0].mxu0
        %v3079 = vadd.f32 0.0, %v3078
        %v3080 = vpop.f32.mrb[0].mxu0
        %v3081 = vadd.f32 0.0, %v3080
        %v3082 = vpop.f32.mrb[0].mxu0
        %v3083 = vadd.f32 0.0, %v3082
        %3084 = vmatprep.mubr.bf16.mxu0 %v1058
        %3085 = vmatmul.mubr.bf16.gmra.mrb[0].mxu0 %v1057
        %v3086 = vpop.f32.mrb[0].mxu0
        %v3087 = vadd.f32 0.0, %v3086
        %v3088 = vpop.f32.mrb[0].mxu0
        %v3089 = vadd.f32 0.0, %v3088
        %v3090 = vpop.f32.mrb[0].mxu0
        %v3091 = vpop.f32.mrb[0].mxu0
        %3092 = vdwg.mxu0
        %3093 = vmatprep.subr.bf16.mxu0 %v2224
        %3094 = vmatpush1.bf16.msra.mxu0 %v2223
        %3095 = vmatprep.subr.bf16.mxu0 %v2242
        %3096 = vmatpush1.bf16.msra.mxu0 %v2241
        %3097 = vmatprep.subr.bf16.mxu0 %v2260
        %3098 = vmatpush1.bf16.msra.mxu0 %v2259
        %3099 = vmatprep.subr.bf16.mxu0 %v2278
        %3100 = vmatpush1.bf16.msra.mxu0 %v2277
        %3101 = vmatprep.subr.bf16.mxu0 %v2296
        %3102 = vmatpush1.bf16.msra.mxu0 %v2295
        %3103 = vmatprep.subr.bf16.mxu0 %v2314
        %3104 = vmatpush1.bf16.msra.mxu0 %v2313
        %3105 = vmatprep.subr.bf16.mxu0 %v2332
        %3106 = vmatpush1.bf16.msra.mxu0 %v2331
        %3107 = vmatprep.subr.bf16.mxu0 %v2350
        %3108 = vmatpush1.bf16.msra.mxu0 %v2349
        %3109 = vmatprep.subr.bf16.mxu0 %v2368
        %3110 = vmatpush1.bf16.msra.mxu0 %v2367
        %3111 = vmatprep.subr.bf16.mxu0 %v2386
        %3112 = vmatpush1.bf16.msra.mxu0 %v2385
        %3113 = vmatprep.subr.bf16.mxu0 %v2404
        %3114 = vmatpush1.bf16.msra.mxu0 %v2403
        %3115 = vmatprep.subr.bf16.mxu0 %v2422
        %3116 = vmatpush1.bf16.msra.mxu0 %v2421
        %3117 = vmatprep.subr.bf16.mxu0 %v2440
        %3118 = vmatpush1.bf16.msra.mxu0 %v2439
        %3119 = vmatprep.subr.bf16.mxu0 %v2458
        %3120 = vmatpush1.bf16.msra.mxu0 %v2457
        %3121 = vmatprep.subr.bf16.mxu0 %v2476
        %3122 = vmatpush1.bf16.msra.mxu0 %v2475
        %3123 = vmatprep.subr.bf16.mxu0 %v2494
        %3124 = vmatpush1.bf16.msra.mxu0 %v2493
        %3125 = vmatprep.mubr.bf16.mxu0 %v1056
        %3126 = vmatmul.mubr.bf16.gmra.mrb[0].mxu0 %v1055
        %v3127 = vpop.f32.mrb[0].mxu0
        %v3128 = vadd.f32 0.0, %v3127
        %v3129 = vpop.f32.mrb[0].mxu0
        %v3130 = vadd.f32 0.0, %v3129
        %v3131 = vpop.f32.mrb[0].mxu0
        %v3132 = vadd.f32 0.0, %v3131
        %v3133 = vpop.f32.mrb[0].mxu0
        %v3134 = vadd.f32 0.0, %v3133
        %3135 = vmatprep.mubr.bf16.mxu0 %v1058
        %3136 = vmatmul.mubr.bf16.gmra.mrb[0].mxu0 %v1057
        %v3137 = vpop.f32.mrb[0].mxu0
        %v3138 = vadd.f32 0.0, %v3137
        %v3139 = vpop.f32.mrb[0].mxu0
        %v3140 = vadd.f32 0.0, %v3139
        %v3141 = vpop.f32.mrb[0].mxu0
        %v3142 = vpop.f32.mrb[0].mxu0
        %3143 = vdwg.mxu0
        %3144 = vmatprep.subr.bf16.mxu0 %v2226
        %3145 = vmatpush1.bf16.msra.mxu0 %v2225
        %3146 = vmatprep.subr.bf16.mxu0 %v2244
        %3147 = vmatpush1.bf16.msra.mxu0 %v2243
        %3148 = vmatprep.subr.bf16.mxu0 %v2262
        %3149 = vmatpush1.bf16.msra.mxu0 %v2261
        %3150 = vmatprep.subr.bf16.mxu0 %v2280
        %3151 = vmatpush1.bf16.msra.mxu0 %v2279
        %3152 = vmatprep.subr.bf16.mxu0 %v2298
        %3153 = vmatpush1.bf16.msra.mxu0 %v2297
        %3154 = vmatprep.subr.bf16.mxu0 %v2316
        %3155 = vmatpush1.bf16.msra.mxu0 %v2315
        %3156 = vmatprep.subr.bf16.mxu0 %v2334
        %3157 = vmatpush1.bf16.msra.mxu0 %v2333
        %3158 = vmatprep.subr.bf16.mxu0 %v2352
        %3159 = vmatpush1.bf16.msra.mxu0 %v2351
        %3160 = vmatprep.subr.bf16.mxu0 %v2370
        %3161 = vmatpush1.bf16.msra.mxu0 %v2369
        %3162 = vmatprep.subr.bf16.mxu0 %v2388
        %3163 = vmatpush1.bf16.msra.mxu0 %v2387
        %3164 = vmatprep.subr.bf16.mxu0 %v2406
        %3165 = vmatpush1.bf16.msra.mxu0 %v2405
        %3166 = vmatprep.subr.bf16.mxu0 %v2424
        %3167 = vmatpush1.bf16.msra.mxu0 %v2423
        %3168 = vmatprep.subr.bf16.mxu0 %v2442
        %3169 = vmatpush1.bf16.msra.mxu0 %v2441
        %3170 = vmatprep.subr.bf16.mxu0 %v2460
        %3171 = vmatpush1.bf16.msra.mxu0 %v2459
        %3172 = vmatprep.subr.bf16.mxu0 %v2478
        %3173 = vmatpush1.bf16.msra.mxu0 %v2477
        %3174 = vmatprep.subr.bf16.mxu0 %v2496
        %3175 = vmatpush1.bf16.msra.mxu0 %v2495
        %3176 = vmatprep.mubr.bf16.mxu0 %v1056
        %3177 = vmatmul.mubr.bf16.gmra.mrb[0].mxu0 %v1055
        %v3178 = vpop.f32.mrb[0].mxu0
        %v3179 = vadd.f32 0.0, %v3178
        %v3180 = vpop.f32.mrb[0].mxu0
        %v3181 = vadd.f32 0.0, %v3180
        %v3182 = vpop.f32.mrb[0].mxu0
        %v3183 = vadd.f32 0.0, %v3182
        %v3184 = vpop.f32.mrb[0].mxu0
        %v3185 = vadd.f32 0.0, %v3184
        %3186 = vmatprep.mubr.bf16.mxu0 %v1058
        %3187 = vmatmul.mubr.bf16.gmra.mrb[0].mxu0 %v1057
        %v3188 = vpop.f32.mrb[0].mxu0
        %v3189 = vadd.f32 0.0, %v3188
        %v3190 = vpop.f32.mrb[0].mxu0
        %v3191 = vadd.f32 0.0, %v3190
        %v3192 = vpop.f32.mrb[0].mxu0
        %v3193 = vpop.f32.mrb[0].mxu0
        %3194 = vdwg.mxu0
        %3195 = vmatprep.subr.bf16.mxu0 %v2228
        %3196 = vmatpush1.bf16.msra.mxu0 %v2227
        %3197 = vmatprep.subr.bf16.mxu0 %v2246
        %3198 = vmatpush1.bf16.msra.mxu0 %v2245
        %3199 = vmatprep.subr.bf16.mxu0 %v2264
        %3200 = vmatpush1.bf16.msra.mxu0 %v2263
        %3201 = vmatprep.subr.bf16.mxu0 %v2282
        %3202 = vmatpush1.bf16.msra.mxu0 %v2281
        %3203 = vmatprep.subr.bf16.mxu0 %v2300
        %3204 = vmatpush1.bf16.msra.mxu0 %v2299
        %3205 = vmatprep.subr.bf16.mxu0 %v2318
        %3206 = vmatpush1.bf16.msra.mxu0 %v2317
        %3207 = vmatprep.subr.bf16.mxu0 %v2336
        %3208 = vmatpush1.bf16.msra.mxu0 %v2335
        %3209 = vmatprep.subr.bf16.mxu0 %v2354
        %3210 = vmatpush1.bf16.msra.mxu0 %v2353
        %3211 = vmatprep.subr.bf16.mxu0 %v2372
        %3212 = vmatpush1.bf16.msra.mxu0 %v2371
        %3213 = vmatprep.subr.bf16.mxu0 %v2390
        %3214 = vmatpush1.bf16.msra.mxu0 %v2389
        %3215 = vmatprep.subr.bf16.mxu0 %v2408
        %3216 = vmatpush1.bf16.msra.mxu0 %v2407
        %3217 = vmatprep.subr.bf16.mxu0 %v2426
        %3218 = vmatpush1.bf16.msra.mxu0 %v2425
        %3219 = vmatprep.subr.bf16.mxu0 %v2444
        %3220 = vmatpush1.bf16.msra.mxu0 %v2443
        %3221 = vmatprep.subr.bf16.mxu0 %v2462
        %3222 = vmatpush1.bf16.msra.mxu0 %v2461
        %3223 = vmatprep.subr.bf16.mxu0 %v2480
        %3224 = vmatpush1.bf16.msra.mxu0 %v2479
        %3225 = vmatprep.subr.bf16.mxu0 %v2498
        %3226 = vmatpush1.bf16.msra.mxu0 %v2497
        %3227 = vmatprep.mubr.bf16.mxu0 %v1056
        %3228 = vmatmul.mubr.bf16.gmra.mrb[0].mxu0 %v1055
        %v3229 = vpop.f32.mrb[0].mxu0
        %v3230 = vadd.f32 0.0, %v3229
        %v3231 = vpop.f32.mrb[0].mxu0
        %v3232 = vadd.f32 0.0, %v3231
        %v3233 = vpop.f32.mrb[0].mxu0
        %v3234 = vadd.f32 0.0, %v3233
        %v3235 = vpop.f32.mrb[0].mxu0
        %v3236 = vadd.f32 0.0, %v3235
        %3237 = vmatprep.mubr.bf16.mxu0 %v1058
        %3238 = vmatmul.mubr.bf16.gmra.mrb[0].mxu0 %v1057
        %v3239 = vpop.f32.mrb[0].mxu0
        %v3240 = vadd.f32 0.0, %v3239
        %v3241 = vpop.f32.mrb[0].mxu0
        %v3242 = vadd.f32 0.0, %v3241
        %v3243 = vpop.f32.mrb[0].mxu0
        %v3244 = vpop.f32.mrb[0].mxu0
        %3245 = vdwg.mxu0
        %v3246 = vld [vmem:[#allocation15] sm:$0xff]
        %v3247 = vpack.c.bf16 %v2826, %v2822
        %v3248 = vpack.c.bf16 %v2828, %v2824
        %v3249 = vpack.c.bf16 %v2873, %v2832
        %v3250 = vpack.c.bf16 %v2875, %v2834
        %v3251 = vpack.c.bf16 %v2883, %v2877
        %v3252 = vpack.c.bf16 %v2885, %v2879
        %v3253 = vpack.c.bf16 %v2928, %v2924
        %v3254 = vpack.c.bf16 %v2930, %v2926
        %v3255 = vpack.c.bf16 %v2975, %v2934
        %v3256 = vpack.c.bf16 %v2977, %v2936
        %v3257 = vpack.c.bf16 %v2985, %v2979
        %v3258 = vpack.c.bf16 %v2987, %v2981
        %v3259 = vpack.c.bf16 %v3030, %v3026
        %v3260 = vpack.c.bf16 %v3032, %v3028
        %v3261 = vpack.c.bf16 %v3077, %v3036
        %v3262 = vpack.c.bf16 %v3079, %v3038
        %v3263 = vpack.c.bf16 %v3087, %v3081
        %v3264 = vpack.c.bf16 %v3089, %v3083
        %v3265 = vpack.c.bf16 %v3132, %v3128
        %v3266 = vpack.c.bf16 %v3134, %v3130
        %v3267 = vpack.c.bf16 %v3179, %v3138
        %v3268 = vpack.c.bf16 %v3181, %v3140
        %v3269 = vpack.c.bf16 %v3189, %v3183
        %v3270 = vpack.c.bf16 %v3191, %v3185
        %v3271 = vpack.c.bf16 %v3234, %v3230
        %v3272 = vpack.c.bf16 %v3236, %v3232
        %v3273 = vpack.c.bf16 %v3240, %v3240
        %v3274 = vpack.c.bf16 %v3242, %v3242
        %v3275 = vld [vmem:[%s18] sm:$0xff]
        %3277 = vset.pattern.permute.xlu0 0
        %3278 = vperm.xlu0 %3277, %v3275
        %v3279 = vpop.permute.xlu0 %3278
        %v3282 = vunpack.c.l.b16 %v3246
        %v3283 = vunpack.c.h.b16 %v3246
        %v3284 = vpack.c.b16 %v3282, %v3282
        %v3285 = vpack.c.b16 %v3283, %v3283
        %vm3287 = vcmask 719872
        %v3289 = vsel %vm3287, %v3285, 0
        %vm3291 = vcmask 1043456
        %v3293 = vsel %vm3291, %v3273, 0
        %v3296 = vsel %vm3291, %v3274, 0
        %3298 = vmatprep.subr.bf16.mxu0 %v3248
        %3299 = vmatpush1.bf16.msra.mxu0 %v3247
        %3300 = vmatprep.subr.bf16.mxu0 %v3250
        %3301 = vmatpush1.bf16.msra.mxu0 %v3249
        %3302 = vmatprep.subr.bf16.mxu0 %v3252
        %3303 = vmatpush1.bf16.msra.mxu0 %v3251
        %3304 = vmatprep.subr.bf16.mxu0 %v3254
        %3305 = vmatpush1.bf16.msra.mxu0 %v3253
        %3306 = vmatprep.subr.bf16.mxu0 %v3256
        %3307 = vmatpush1.bf16.msra.mxu0 %v3255
        %3308 = vmatprep.subr.bf16.mxu0 %v3258
        %3309 = vmatpush1.bf16.msra.mxu0 %v3257
        %3310 = vmatprep.subr.bf16.mxu0 %v3260
        %3311 = vmatpush1.bf16.msra.mxu0 %v3259
        %3312 = vmatprep.subr.bf16.mxu0 %v3262
        %3313 = vmatpush1.bf16.msra.mxu0 %v3261
        %3314 = vmatprep.subr.bf16.mxu0 %v3264
        %3315 = vmatpush1.bf16.msra.mxu0 %v3263
        %3316 = vmatprep.subr.bf16.mxu0 %v3266
        %3317 = vmatpush1.bf16.msra.mxu0 %v3265
        %3318 = vmatprep.subr.bf16.mxu0 %v3268
        %3319 = vmatpush1.bf16.msra.mxu0 %v3267
        %3320 = vmatprep.subr.bf16.mxu0 %v3270
        %3321 = vmatpush1.bf16.msra.mxu0 %v3269
        %3322 = vmatprep.subr.bf16.mxu0 %v3272
        %3323 = vmatpush1.bf16.msra.mxu0 %v3271
        %3324 = vmatprep.subr.bf16.mxu0 %v3296
        %3325 = vmatpush1.bf16.msra.mxu0 %v3293
        %3326 = vmatprep.subr.bf16.mxu0 0
        %3327 = vmatpush1.bf16.msra.mxu0 0
        %3328 = vmatprep.subr.bf16.mxu0 0
        %3329 = vmatpush1.bf16.msra.mxu0 0
        %3330 = vmatprep.mubr.bf16.mxu0 %v3289
        %3331 = vmatmul.mubr.bf16.gmra.mrb[0].mxu0 %v3284
        %v3332 = vpop.f32.mrb[0].mxu0
        %v3333 = vadd.f32 %v3279, %v3332
        %v3334 = vpop.f32.mrb[0].mxu0
        %v3335 = vadd.f32 %v3279, %v3334
        %v3336 = vpop.f32.mrb[0].mxu0
        %v3337 = vpop.f32.mrb[0].mxu0
        %3338 = vdwg.mxu0
        %v3339 = vmax.f32 %v3333, 0.0
        %v3340 = vmax.f32 %v3335, 0.0
        %v3341 = vpack.c.bf16 %v3339, %v3339
        %v3342 = vpack.c.bf16 %v3340, %v3340
        %v3343 = vld [vmem:[%s5] sm:$0xff]
        %v3344 = vld [vmem:[%s5 + $0x8] sm:$0xff]
        %v3345 = vld [vmem:[%s5 + $0x10] sm:$0xf]
        %v3346 = vld [vmem:[%s5 + $0x14] sm:$0xff]
        %v3347 = vld [vmem:[%s5 + $0x1c] sm:$0xff]
        %v3348 = vld [vmem:[%s5 + $0x24] sm:$0xf]
        %v3349 = vld [vmem:[%s5 + $0x28] sm:$0xff]
        %v3350 = vld [vmem:[%s5 + $0x30] sm:$0xff]
        %v3351 = vld [vmem:[%s5 + $0x38] sm:$0xf]
        %v3352 = vld [vmem:[%s5 + $0x3c] sm:$0xff]
        %v3353 = vld [vmem:[%s5 + $0x44] sm:$0xff]
        %v3354 = vld [vmem:[%s5 + $0x4c] sm:$0xf]
        %v3355 = vld [vmem:[%s5 + $0x50] sm:$0xff]
        %v3356 = vld [vmem:[%s5 + $0x58] sm:$0xff]
        %v3357 = vld [vmem:[%s5 + $0x60] sm:$0xf]
        %v3358 = vld [vmem:[%s5 + $0x64] sm:$0xff]
        %v3359 = vld [vmem:[%s5 + $0x6c] sm:$0xff]
        %v3360 = vld [vmem:[%s5 + $0x74] sm:$0xf]
        %v3361 = vld [vmem:[%s5 + $0x78] sm:$0xff]
        %v3362 = vld [vmem:[%s5 + $0x80] sm:$0xff]
        %v3363 = vld [vmem:[%s5 + $0x88] sm:$0xf]
        %v3364 = vld [vmem:[%s5 + $0x8c] sm:$0xff]
        %v3365 = vld [vmem:[%s5 + $0x94] sm:$0xff]
        %v3366 = vld [vmem:[%s5 + $0x9c] sm:$0xf]
        %v3367 = vld [vmem:[%s5 + $0xa0] sm:$0xff]
        %v3368 = vld [vmem:[%s5 + $0xa8] sm:$0xff]
        %v3369 = vld [vmem:[%s5 + $0xb0] sm:$0xf]
        %v3370 = vld [vmem:[%s5 + $0xb4] sm:$0xff]
        %v3371 = vld [vmem:[%s5 + $0xbc] sm:$0xff]
        %v3372 = vld [vmem:[%s5 + $0xc4] sm:$0xf]
        %v3373 = vld [vmem:[%s5 + $0xc8] sm:$0xff]
        %v3374 = vld [vmem:[%s5 + $0xd0] sm:$0xff]
        %v3375 = vld [vmem:[%s5 + $0xd8] sm:$0xf]
        %v3376 = vld [vmem:[%s5 + $0xdc] sm:$0xff]
        %v3377 = vld [vmem:[%s5 + $0xe4] sm:$0xff]
        %v3378 = vld [vmem:[%s5 + $0xec] sm:$0xf]
        %v3379 = vld [vmem:[%s5 + $0xf0] sm:$0xff]
        %v3380 = vld [vmem:[%s5 + $0xf8] sm:$0xff]
        %v3381 = vld [vmem:[%s5 + $0x100] sm:$0xf]
        %v3382 = vld [vmem:[%s5 + $0x104] sm:$0xff]
        %v3383 = vld [vmem:[%s5 + $0x10c] sm:$0xff]
        %v3384 = vld [vmem:[%s5 + $0x114] sm:$0xf]
        %v3385 = vld [vmem:[%s5 + $0x118] sm:$0xff]
        %v3386 = vld [vmem:[%s5 + $0x120] sm:$0xff]
        %v3387 = vld [vmem:[%s5 + $0x128] sm:$0xf]
        %v3388 = vld [vmem:[%s5 + $0x12c] sm:$0xff]
        %v3389 = vld [vmem:[%s5 + $0x134] sm:$0xff]
        %v3390 = vld [vmem:[%s5 + $0x13c] sm:$0xf]
        %v3391 = vld [vmem:[%s5 + $0x140] sm:$0xff]
        %v3392 = vld [vmem:[%s5 + $0x148] sm:$0xff]
        %v3393 = vld [vmem:[%s5 + $0x150] sm:$0xf]
        %v3394 = vld [vmem:[%s5 + $0x154] sm:$0xff]
        %v3395 = vld [vmem:[%s5 + $0x15c] sm:$0xff]
        %v3396 = vld [vmem:[%s5 + $0x164] sm:$0xf]
        %v3397 = vld [vmem:[%s5 + $0x168] sm:$0xff]
        %v3398 = vld [vmem:[%s5 + $0x170] sm:$0xff]
        %v3399 = vld [vmem:[%s5 + $0x178] sm:$0xf]
        %v3400 = vld [vmem:[%s5 + $0x17c] sm:$0xff]
        %v3401 = vld [vmem:[%s5 + $0x184] sm:$0xff]
        %v3402 = vld [vmem:[%s5 + $0x18c] sm:$0xf]
        %v3403 = vld [vmem:[%s5 + $0x190] sm:$0xff]
        %v3404 = vld [vmem:[%s5 + $0x198] sm:$0xff]
        %v3405 = vld [vmem:[%s5 + $0x1a0] sm:$0xf]
        %v3406 = vld [vmem:[%s5 + $0x1a4] sm:$0xff]
        %v3407 = vld [vmem:[%s5 + $0x1ac] sm:$0xff]
        %v3408 = vld [vmem:[%s5 + $0x1b4] sm:$0xf]
        %v3409 = vld [vmem:[%s5 + $0x1b8] sm:$0xff]
        %v3410 = vld [vmem:[%s5 + $0x1c0] sm:$0xff]
        %v3411 = vld [vmem:[%s5 + $0x1c8] sm:$0xf]
        %v3412 = vld [vmem:[%s5 + $0x1cc] sm:$0xff]
        %v3413 = vld [vmem:[%s5 + $0x1d4] sm:$0xff]
        %v3414 = vld [vmem:[%s5 + $0x1dc] sm:$0xf]
        %v3415 = vld [vmem:[%s5 + $0x1e0] sm:$0xff]
        %v3416 = vld [vmem:[%s5 + $0x1e8] sm:$0xff]
        %v3417 = vld [vmem:[%s5 + $0x1f0] sm:$0xf]
        %v3418 = vld [vmem:[%s5 + $0x1f4] sm:$0xff]
        %v3419 = vld [vmem:[%s5 + $0x1fc] sm:$0xff]
        %v3420 = vld [vmem:[%s5 + $0x204] sm:$0xf]
        %v3421 = vld [vmem:[%s5 + $0x208] sm:$0xff]
        %v3422 = vld [vmem:[%s5 + $0x210] sm:$0xff]
        %v3423 = vld [vmem:[%s5 + $0x218] sm:$0xf]
        %v3424 = vld [vmem:[%s5 + $0x21c] sm:$0xff]
        %v3425 = vld [vmem:[%s5 + $0x224] sm:$0xff]
        %v3426 = vld [vmem:[%s5 + $0x22c] sm:$0xf]
        %v3427 = vld [vmem:[%s5 + $0x230] sm:$0xff]
        %v3428 = vld [vmem:[%s5 + $0x238] sm:$0xff]
        %v3429 = vld [vmem:[%s5 + $0x240] sm:$0xf]
        %v3430 = vld [vmem:[%s5 + $0x244] sm:$0xff]
        %v3431 = vld [vmem:[%s5 + $0x24c] sm:$0xff]
        %v3432 = vld [vmem:[%s5 + $0x254] sm:$0xf]
        %v3433 = vld [vmem:[%s5 + $0x258] sm:$0xff]
        %v3434 = vld [vmem:[%s5 + $0x260] sm:$0xff]
        %v3435 = vld [vmem:[%s5 + $0x268] sm:$0xf]
        %v3436 = vld [vmem:[%s5 + $0x26c] sm:$0xff]
        %v3437 = vld [vmem:[%s5 + $0x274] sm:$0xff]
        %v3438 = vld [vmem:[%s5 + $0x27c] sm:$0xf]
        %v3535 = vunpack.c.l.b16 %v3343
        %v3536 = vunpack.c.h.b16 %v3343
        %v3537 = vunpack.c.l.b16 %v3344
        %v3538 = vunpack.c.h.b16 %v3344
        %v3539 = vunpack.c.l.b16 %v3345
        %v3540 = vunpack.c.l.b16 %v3346
        %v3541 = vunpack.c.h.b16 %v3346
        %v3542 = vunpack.c.l.b16 %v3347
        %v3543 = vunpack.c.h.b16 %v3347
        %v3544 = vunpack.c.l.b16 %v3348
        %v3545 = vunpack.c.l.b16 %v3349
        %v3546 = vunpack.c.h.b16 %v3349
        %v3547 = vunpack.c.l.b16 %v3350
        %v3548 = vunpack.c.h.b16 %v3350
        %v3549 = vunpack.c.l.b16 %v3351
        %v3550 = vunpack.c.l.b16 %v3352
        %v3551 = vunpack.c.h.b16 %v3352
        %v3552 = vunpack.c.l.b16 %v3353
        %v3553 = vunpack.c.h.b16 %v3353
        %v3554 = vunpack.c.l.b16 %v3354
        %v3555 = vunpack.c.l.b16 %v3355
        %v3556 = vunpack.c.h.b16 %v3355
        %v3557 = vunpack.c.l.b16 %v3356
        %v3558 = vunpack.c.h.b16 %v3356
        %v3559 = vunpack.c.l.b16 %v3357
        %v3560 = vunpack.c.l.b16 %v3358
        %v3561 = vunpack.c.h.b16 %v3358
        %v3562 = vunpack.c.l.b16 %v3359
        %v3563 = vunpack.c.h.b16 %v3359
        %v3564 = vunpack.c.l.b16 %v3360
        %v3565 = vunpack.c.l.b16 %v3361
        %v3566 = vunpack.c.h.b16 %v3361
        %v3567 = vunpack.c.l.b16 %v3362
        %v3568 = vunpack.c.h.b16 %v3362
        %v3569 = vunpack.c.l.b16 %v3363
        %v3570 = vunpack.c.l.b16 %v3364
        %v3571 = vunpack.c.h.b16 %v3364
        %v3572 = vunpack.c.l.b16 %v3365
        %v3573 = vunpack.c.h.b16 %v3365
        %v3574 = vunpack.c.l.b16 %v3366
        %v3575 = vunpack.c.l.b16 %v3367
        %v3576 = vunpack.c.h.b16 %v3367
        %v3577 = vunpack.c.l.b16 %v3368
        %v3578 = vunpack.c.h.b16 %v3368
        %v3579 = vunpack.c.l.b16 %v3369
        %v3580 = vunpack.c.l.b16 %v3370
        %v3581 = vunpack.c.h.b16 %v3370
        %v3582 = vunpack.c.l.b16 %v3371
        %v3583 = vunpack.c.h.b16 %v3371
        %v3584 = vunpack.c.l.b16 %v3372
        %v3585 = vunpack.c.l.b16 %v3373
        %v3586 = vunpack.c.h.b16 %v3373
        %v3587 = vunpack.c.l.b16 %v3374
        %v3588 = vunpack.c.h.b16 %v3374
        %v3589 = vunpack.c.l.b16 %v3375
        %v3590 = vunpack.c.l.b16 %v3376
        %v3591 = vunpack.c.h.b16 %v3376
        %v3592 = vunpack.c.l.b16 %v3377
        %v3593 = vunpack.c.h.b16 %v3377
        %v3594 = vunpack.c.l.b16 %v3378
        %v3595 = vunpack.c.l.b16 %v3379
        %v3596 = vunpack.c.h.b16 %v3379
        %v3597 = vunpack.c.l.b16 %v3380
        %v3598 = vunpack.c.h.b16 %v3380
        %v3599 = vunpack.c.l.b16 %v3381
        %v3600 = vunpack.c.l.b16 %v3382
        %v3601 = vunpack.c.h.b16 %v3382
        %v3602 = vunpack.c.l.b16 %v3383
        %v3603 = vunpack.c.h.b16 %v3383
        %v3604 = vunpack.c.l.b16 %v3384
        %v3605 = vunpack.c.l.b16 %v3385
        %v3606 = vunpack.c.h.b16 %v3385
        %v3607 = vunpack.c.l.b16 %v3386
        %v3608 = vunpack.c.h.b16 %v3386
        %v3609 = vunpack.c.l.b16 %v3387
        %v3610 = vunpack.c.l.b16 %v3388
        %v3611 = vunpack.c.h.b16 %v3388
        %v3612 = vunpack.c.l.b16 %v3389
        %v3613 = vunpack.c.h.b16 %v3389
        %v3614 = vunpack.c.l.b16 %v3390
        %v3615 = vunpack.c.l.b16 %v3391
        %v3616 = vunpack.c.h.b16 %v3391
        %v3617 = vunpack.c.l.b16 %v3392
        %v3618 = vunpack.c.h.b16 %v3392
        %v3619 = vunpack.c.l.b16 %v3393
        %v3620 = vunpack.c.l.b16 %v3394
        %v3621 = vunpack.c.h.b16 %v3394
        %v3622 = vunpack.c.l.b16 %v3395
        %v3623 = vunpack.c.h.b16 %v3395
        %v3624 = vunpack.c.l.b16 %v3396
        %v3625 = vunpack.c.l.b16 %v3397
        %v3626 = vunpack.c.h.b16 %v3397
        %v3627 = vunpack.c.l.b16 %v3398
        %v3628 = vunpack.c.h.b16 %v3398
        %v3629 = vunpack.c.l.b16 %v3399
        %v3630 = vunpack.c.l.b16 %v3400
        %v3631 = vunpack.c.h.b16 %v3400
        %v3632 = vunpack.c.l.b16 %v3401
        %v3633 = vunpack.c.h.b16 %v3401
        %v3634 = vunpack.c.l.b16 %v3402
        %v3635 = vunpack.c.l.b16 %v3403
        %v3636 = vunpack.c.h.b16 %v3403
        %v3637 = vunpack.c.l.b16 %v3404
        %v3638 = vunpack.c.h.b16 %v3404
        %v3639 = vunpack.c.l.b16 %v3405
        %v3640 = vunpack.c.l.b16 %v3406
        %v3641 = vunpack.c.h.b16 %v3406
        %v3642 = vunpack.c.l.b16 %v3407
        %v3643 = vunpack.c.h.b16 %v3407
        %v3644 = vunpack.c.l.b16 %v3408
        %v3645 = vunpack.c.l.b16 %v3409
        %v3646 = vunpack.c.h.b16 %v3409
        %v3647 = vunpack.c.l.b16 %v3410
        %v3648 = vunpack.c.h.b16 %v3410
        %v3649 = vunpack.c.l.b16 %v3411
        %v3650 = vunpack.c.l.b16 %v3412
        %v3651 = vunpack.c.h.b16 %v3412
        %v3652 = vunpack.c.l.b16 %v3413
        %v3653 = vunpack.c.h.b16 %v3413
        %v3654 = vunpack.c.l.b16 %v3414
        %v3655 = vunpack.c.l.b16 %v3415
        %v3656 = vunpack.c.h.b16 %v3415
        %v3657 = vunpack.c.l.b16 %v3416
        %v3658 = vunpack.c.h.b16 %v3416
        %v3659 = vunpack.c.l.b16 %v3417
        %v3660 = vunpack.c.l.b16 %v3418
        %v3661 = vunpack.c.h.b16 %v3418
        %v3662 = vunpack.c.l.b16 %v3419
        %v3663 = vunpack.c.h.b16 %v3419
        %v3664 = vunpack.c.l.b16 %v3420
        %v3665 = vunpack.c.l.b16 %v3421
        %v3666 = vunpack.c.h.b16 %v3421
        %v3667 = vunpack.c.l.b16 %v3422
        %v3668 = vunpack.c.h.b16 %v3422
        %v3669 = vunpack.c.l.b16 %v3423
        %v3670 = vunpack.c.l.b16 %v3424
        %v3671 = vunpack.c.h.b16 %v3424
        %v3672 = vunpack.c.l.b16 %v3425
        %v3673 = vunpack.c.h.b16 %v3425
        %v3674 = vunpack.c.l.b16 %v3426
        %v3675 = vunpack.c.l.b16 %v3427
        %v3676 = vunpack.c.h.b16 %v3427
        %v3677 = vunpack.c.l.b16 %v3428
        %v3678 = vunpack.c.h.b16 %v3428
        %v3679 = vunpack.c.l.b16 %v3429
        %v3680 = vunpack.c.l.b16 %v3430
        %v3681 = vunpack.c.h.b16 %v3430
        %v3682 = vunpack.c.l.b16 %v3431
        %v3683 = vunpack.c.h.b16 %v3431
        %v3684 = vunpack.c.l.b16 %v3432
        %v3685 = vunpack.c.l.b16 %v3433
        %v3686 = vunpack.c.h.b16 %v3433
        %v3687 = vunpack.c.l.b16 %v3434
        %v3688 = vunpack.c.h.b16 %v3434
        %v3689 = vunpack.c.l.b16 %v3435
        %v3690 = vunpack.c.l.b16 %v3436
        %v3691 = vunpack.c.h.b16 %v3436
        %v3692 = vunpack.c.l.b16 %v3437
        %v3693 = vunpack.c.h.b16 %v3437
        %v3694 = vunpack.c.l.b16 %v3438
        %v3695 = vpack.c.b16 %v3540, %v3535
        %v3696 = vpack.c.b16 %v3541, %v3536
        %v3697 = vpack.c.b16 %v3542, %v3537
        %v3698 = vpack.c.b16 %v3543, %v3538
        %v3699 = vpack.c.b16 %v3544, %v3539
        %v3700 = vpack.c.b16 %v3550, %v3545
        %v3701 = vpack.c.b16 %v3551, %v3546
        %v3702 = vpack.c.b16 %v3552, %v3547
        %v3703 = vpack.c.b16 %v3553, %v3548
        %v3704 = vpack.c.b16 %v3554, %v3549
        %v3705 = vpack.c.b16 %v3560, %v3555
        %v3706 = vpack.c.b16 %v3561, %v3556
        %v3707 = vpack.c.b16 %v3562, %v3557
        %v3708 = vpack.c.b16 %v3563, %v3558
        %v3709 = vpack.c.b16 %v3564, %v3559
        %v3710 = vpack.c.b16 %v3570, %v3565
        %v3711 = vpack.c.b16 %v3571, %v3566
        %v3712 = vpack.c.b16 %v3572, %v3567
        %v3713 = vpack.c.b16 %v3573, %v3568
        %v3714 = vpack.c.b16 %v3574, %v3569
        %v3715 = vpack.c.b16 %v3580, %v3575
        %v3716 = vpack.c.b16 %v3581, %v3576
        %v3717 = vpack.c.b16 %v3582, %v3577
        %v3718 = vpack.c.b16 %v3583, %v3578
        %v3719 = vpack.c.b16 %v3584, %v3579
        %v3720 = vpack.c.b16 %v3590, %v3585
        %v3721 = vpack.c.b16 %v3591, %v3586
        %v3722 = vpack.c.b16 %v3592, %v3587
        %v3723 = vpack.c.b16 %v3593, %v3588
        %v3724 = vpack.c.b16 %v3594, %v3589
        %v3725 = vpack.c.b16 %v3600, %v3595
        %v3726 = vpack.c.b16 %v3601, %v3596
        %v3727 = vpack.c.b16 %v3602, %v3597
        %v3728 = vpack.c.b16 %v3603, %v3598
        %v3729 = vpack.c.b16 %v3604, %v3599
        %v3730 = vpack.c.b16 %v3610, %v3605
        %v3731 = vpack.c.b16 %v3611, %v3606
        %v3732 = vpack.c.b16 %v3612, %v3607
        %v3733 = vpack.c.b16 %v3613, %v3608
        %v3734 = vpack.c.b16 %v3614, %v3609
        %v3735 = vpack.c.b16 %v3620, %v3615
        %v3736 = vpack.c.b16 %v3621, %v3616
        %v3737 = vpack.c.b16 %v3622, %v3617
        %v3738 = vpack.c.b16 %v3623, %v3618
        %v3739 = vpack.c.b16 %v3624, %v3619
        %v3740 = vpack.c.b16 %v3630, %v3625
        %v3741 = vpack.c.b16 %v3631, %v3626
        %v3742 = vpack.c.b16 %v3632, %v3627
        %v3743 = vpack.c.b16 %v3633, %v3628
        %v3744 = vpack.c.b16 %v3634, %v3629
        %v3745 = vpack.c.b16 %v3640, %v3635
        %v3746 = vpack.c.b16 %v3641, %v3636
        %v3747 = vpack.c.b16 %v3642, %v3637
        %v3748 = vpack.c.b16 %v3643, %v3638
        %v3749 = vpack.c.b16 %v3644, %v3639
        %v3750 = vpack.c.b16 %v3650, %v3645
        %v3751 = vpack.c.b16 %v3651, %v3646
        %v3752 = vpack.c.b16 %v3652, %v3647
        %v3753 = vpack.c.b16 %v3653, %v3648
        %v3754 = vpack.c.b16 %v3654, %v3649
        %v3755 = vpack.c.b16 %v3660, %v3655
        %v3756 = vpack.c.b16 %v3661, %v3656
        %v3757 = vpack.c.b16 %v3662, %v3657
        %v3758 = vpack.c.b16 %v3663, %v3658
        %v3759 = vpack.c.b16 %v3664, %v3659
        %v3760 = vpack.c.b16 %v3670, %v3665
        %v3761 = vpack.c.b16 %v3671, %v3666
        %v3762 = vpack.c.b16 %v3672, %v3667
        %v3763 = vpack.c.b16 %v3673, %v3668
        %v3764 = vpack.c.b16 %v3674, %v3669
        %v3765 = vpack.c.b16 %v3680, %v3675
        %v3766 = vpack.c.b16 %v3681, %v3676
        %v3767 = vpack.c.b16 %v3682, %v3677
        %v3768 = vpack.c.b16 %v3683, %v3678
        %v3769 = vpack.c.b16 %v3684, %v3679
        %v3770 = vpack.c.b16 %v3690, %v3685
        %v3771 = vpack.c.b16 %v3691, %v3686
        %v3772 = vpack.c.b16 %v3692, %v3687
        %v3773 = vpack.c.b16 %v3693, %v3688
        %v3774 = vpack.c.b16 %v3694, %v3689
        %3855 = vmatprep.subr.bf16.mxu0 %v3696
        %3856 = vmatpush1.bf16.msra.mxu0 %v3695
        %3857 = vmatprep.subr.bf16.mxu0 %v3701
        %3858 = vmatpush1.bf16.msra.mxu0 %v3700
        %3859 = vmatprep.subr.bf16.mxu0 %v3706
        %3860 = vmatpush1.bf16.msra.mxu0 %v3705
        %3861 = vmatprep.subr.bf16.mxu0 %v3711
        %3862 = vmatpush1.bf16.msra.mxu0 %v3710
        %3863 = vmatprep.subr.bf16.mxu0 %v3716
        %3864 = vmatpush1.bf16.msra.mxu0 %v3715
        %3865 = vmatprep.subr.bf16.mxu0 %v3721
        %3866 = vmatpush1.bf16.msra.mxu0 %v3720
        %3867 = vmatprep.subr.bf16.mxu0 %v3726
        %3868 = vmatpush1.bf16.msra.mxu0 %v3725
        %3869 = vmatprep.subr.bf16.mxu0 %v3731
        %3870 = vmatpush1.bf16.msra.mxu0 %v3730
        %3871 = vmatprep.subr.bf16.mxu0 %v3736
        %3872 = vmatpush1.bf16.msra.mxu0 %v3735
        %3873 = vmatprep.subr.bf16.mxu0 %v3741
        %3874 = vmatpush1.bf16.msra.mxu0 %v3740
        %3875 = vmatprep.subr.bf16.mxu0 %v3746
        %3876 = vmatpush1.bf16.msra.mxu0 %v3745
        %3877 = vmatprep.subr.bf16.mxu0 %v3751
        %3878 = vmatpush1.bf16.msra.mxu0 %v3750
        %3879 = vmatprep.subr.bf16.mxu0 %v3756
        %3880 = vmatpush1.bf16.msra.mxu0 %v3755
        %3881 = vmatprep.subr.bf16.mxu0 %v3761
        %3882 = vmatpush1.bf16.msra.mxu0 %v3760
        %3883 = vmatprep.subr.bf16.mxu0 %v3766
        %3884 = vmatpush1.bf16.msra.mxu0 %v3765
        %3885 = vmatprep.subr.bf16.mxu0 %v3771
        %3886 = vmatpush1.bf16.msra.mxu0 %v3770
        %3887 = vmatprep.mubr.bf16.mxu0 %v3342
        %3888 = vmatmul.mubr.bf16.gmra.mrb[0].mxu0 %v3341
        %v3889 = vpop.f32.mrb[0].mxu0
        %v3890 = vadd.f32 0.0, %v3889
        %v3891 = vpop.f32.mrb[0].mxu0
        %v3892 = vadd.f32 0.0, %v3891
        %v3893 = vpop.f32.mrb[0].mxu0
        %v3894 = vpop.f32.mrb[0].mxu0
        %3895 = vdwg.mxu0
        %3896 = vmatprep.subr.bf16.mxu0 %v3698
        %3897 = vmatpush1.bf16.msra.mxu0 %v3697
        %3898 = vmatprep.subr.bf16.mxu0 %v3703
        %3899 = vmatpush1.bf16.msra.mxu0 %v3702
        %3900 = vmatprep.subr.bf16.mxu0 %v3708
        %3901 = vmatpush1.bf16.msra.mxu0 %v3707
        %3902 = vmatprep.subr.bf16.mxu0 %v3713
        %3903 = vmatpush1.bf16.msra.mxu0 %v3712
        %3904 = vmatprep.subr.bf16.mxu0 %v3718
        %3905 = vmatpush1.bf16.msra.mxu0 %v3717
        %3906 = vmatprep.subr.bf16.mxu0 %v3723
        %3907 = vmatpush1.bf16.msra.mxu0 %v3722
        %3908 = vmatprep.subr.bf16.mxu0 %v3728
        %3909 = vmatpush1.bf16.msra.mxu0 %v3727
        %3910 = vmatprep.subr.bf16.mxu0 %v3733
        %3911 = vmatpush1.bf16.msra.mxu0 %v3732
        %3912 = vmatprep.subr.bf16.mxu0 %v3738
        %3913 = vmatpush1.bf16.msra.mxu0 %v3737
        %3914 = vmatprep.subr.bf16.mxu0 %v3743
        %3915 = vmatpush1.bf16.msra.mxu0 %v3742
        %3916 = vmatprep.subr.bf16.mxu0 %v3748
        %3917 = vmatpush1.bf16.msra.mxu0 %v3747
        %3918 = vmatprep.subr.bf16.mxu0 %v3753
        %3919 = vmatpush1.bf16.msra.mxu0 %v3752
        %3920 = vmatprep.subr.bf16.mxu0 %v3758
        %3921 = vmatpush1.bf16.msra.mxu0 %v3757
        %3922 = vmatprep.subr.bf16.mxu0 %v3763
        %3923 = vmatpush1.bf16.msra.mxu0 %v3762
        %3924 = vmatprep.subr.bf16.mxu0 %v3768
        %3925 = vmatpush1.bf16.msra.mxu0 %v3767
        %3926 = vmatprep.subr.bf16.mxu0 %v3773
        %3927 = vmatpush1.bf16.msra.mxu0 %v3772
        %3928 = vmatprep.mubr.bf16.mxu0 %v3342
        %3929 = vmatmul.mubr.bf16.gmra.mrb[0].mxu0 %v3341
        %v3930 = vpop.f32.mrb[0].mxu0
        %v3931 = vadd.f32 0.0, %v3930
        %v3932 = vpop.f32.mrb[0].mxu0
        %v3933 = vadd.f32 0.0, %v3932
        %v3934 = vpop.f32.mrb[0].mxu0
        %v3935 = vpop.f32.mrb[0].mxu0
        %3936 = vdwg.mxu0
        %3937 = vmatprep.subr.bf16.mxu0 0
        %3938 = vmatpush1.bf16.msra.mxu0 %v3699
        %3939 = vmatprep.subr.bf16.mxu0 0
        %3940 = vmatpush1.bf16.msra.mxu0 %v3704
        %3941 = vmatprep.subr.bf16.mxu0 0
        %3942 = vmatpush1.bf16.msra.mxu0 %v3709
        %3943 = vmatprep.subr.bf16.mxu0 0
        %3944 = vmatpush1.bf16.msra.mxu0 %v3714
        %3945 = vmatprep.subr.bf16.mxu0 0
        %3946 = vmatpush1.bf16.msra.mxu0 %v3719
        %3947 = vmatprep.subr.bf16.mxu0 0
        %3948 = vmatpush1.bf16.msra.mxu0 %v3724
        %3949 = vmatprep.subr.bf16.mxu0 0
        %3950 = vmatpush1.bf16.msra.mxu0 %v3729
        %3951 = vmatprep.subr.bf16.mxu0 0
        %3952 = vmatpush1.bf16.msra.mxu0 %v3734
        %3953 = vmatprep.subr.bf16.mxu0 0
        %3954 = vmatpush1.bf16.msra.mxu0 %v3739
        %3955 = vmatprep.subr.bf16.mxu0 0
        %3956 = vmatpush1.bf16.msra.mxu0 %v3744
        %3957 = vmatprep.subr.bf16.mxu0 0
        %3958 = vmatpush1.bf16.msra.mxu0 %v3749
        %3959 = vmatprep.subr.bf16.mxu0 0
        %3960 = vmatpush1.bf16.msra.mxu0 %v3754
        %3961 = vmatprep.subr.bf16.mxu0 0
        %3962 = vmatpush1.bf16.msra.mxu0 %v3759
        %3963 = vmatprep.subr.bf16.mxu0 0
        %3964 = vmatpush1.bf16.msra.mxu0 %v3764
        %3965 = vmatprep.subr.bf16.mxu0 0
        %3966 = vmatpush1.bf16.msra.mxu0 %v3769
        %3967 = vmatprep.subr.bf16.mxu0 0
        %3968 = vmatpush1.bf16.msra.mxu0 %v3774
        %3969 = vmatprep.mubr.bf16.mxu0 %v3342
        %3970 = vmatmul.mubr.bf16.gmra.mrb[0].mxu0 %v3341
        %v3971 = vpop.f32.mrb[0].mxu0
        %v3972 = vadd.f32 0.0, %v3971
        %v3973 = vpop.f32.mrb[0].mxu0
        %v3974 = vpop.f32.mrb[0].mxu0
        %v3975 = vpop.f32.mrb[0].mxu0
        %3976 = vdwg.mxu0
        %3978 = vrot.lane.b32.xlu0 %v3890, 64
        %v3979 = vpop.permute.xlu0 %3978
        %3982 = vrot.lane.b32.xlu0 %v3892, 64
        %v3983 = vpop.permute.xlu0 %3982
        %3986 = vrot.lane.b32.xlu0 %v3931, 64
        %v3987 = vpop.permute.xlu0 %3986
        %3990 = vrot.lane.b32.xlu0 %v3933, 64
        %v3991 = vpop.permute.xlu0 %3990
        %v3993 = vld [vmem:[#allocation17] sm:$0xf]
        %v3994 = vld [vmem:[#allocation17 + $0x4] sm:$0xf]
        %v3995 = vpack.c.bf16 %v3979, %v3890
        %v3996 = vpack.c.bf16 %v3983, %v3892
        %v3997 = vpack.c.bf16 %v3987, %v3931
        %v3998 = vpack.c.bf16 %v3991, %v3933
        %v3999 = vpack.c.bf16 %v3972, %v3972
        %v4000 = vld [vmem:[%s19] sm:$0xff]
        %v4001 = vld [vmem:[%s19 + $0x8] sm:$0xff]
        %4003 = vset.pattern.permute.xlu0 0
        %4004 = vperm.xlu0 %4003, %v4000
        %v4005 = vpop.permute.xlu0 %4004
        %4008 = vset.pattern.permute.xlu0 0
        %4009 = vperm.xlu0 %4008, %v4001
        %v4010 = vpop.permute.xlu0 %4009
        %v4014 = vunpack.c.l.b16 %v3993
        %v4015 = vunpack.c.l.b16 %v3994
        %v4016 = vpack.c.b16 %v4015, %v4014
        %vm4017 = vcmask 588800
        %v4019 = vsel %vm4017, %v4016, 0
        %v4022 = vsel %vm3291, %v3999, 0
        %4024 = vmatprep.subr.bf16.mxu0 0
        %4025 = vmatpush1.bf16.msra.mxu0 %v3995
        %4026 = vmatprep.subr.bf16.mxu0 0
        %4027 = vmatpush1.bf16.msra.mxu0 %v3996
        %4028 = vmatprep.subr.bf16.mxu0 0
        %4029 = vmatpush1.bf16.msra.mxu0 %v3997
        %4030 = vmatprep.subr.bf16.mxu0 0
        %4031 = vmatpush1.bf16.msra.mxu0 %v3998
        %4032 = vmatprep.subr.bf16.mxu0 0
        %4033 = vmatpush1.bf16.msra.mxu0 %v4022
        %4034 = vmatprep.subr.bf16.mxu0 0
        %4035 = vmatpush1.bf16.msra.mxu0 0
        %4036 = vmatprep.subr.bf16.mxu0 0
        %4037 = vmatpush1.bf16.msra.mxu0 0
        %4038 = vmatprep.subr.bf16.mxu0 0
        %4039 = vmatpush1.bf16.msra.mxu0 0
        %4040 = vmatprep.subr.bf16.mxu0 0
        %4041 = vmatpush1.bf16.msra.mxu0 0
        %4042 = vmatprep.subr.bf16.mxu0 0
        %4043 = vmatpush1.bf16.msra.mxu0 0
        %4044 = vmatprep.subr.bf16.mxu0 0
        %4045 = vmatpush1.bf16.msra.mxu0 0
        %4046 = vmatprep.subr.bf16.mxu0 0
        %4047 = vmatpush1.bf16.msra.mxu0 0
        %4048 = vmatprep.subr.bf16.mxu0 0
        %4049 = vmatpush1.bf16.msra.mxu0 0
        %4050 = vmatprep.subr.bf16.mxu0 0
        %4051 = vmatpush1.bf16.msra.mxu0 0
        %4052 = vmatprep.subr.bf16.mxu0 0
        %4053 = vmatpush1.bf16.msra.mxu0 0
        %4054 = vmatprep.subr.bf16.mxu0 0
        %4055 = vmatpush1.bf16.msra.mxu0 0
        %4056 = vmatprep.mubr.bf16.mxu0 0
        %4057 = vmatmul.mubr.bf16.gmra.mrb[0].mxu0 %v4019
        %v4058 = vpop.f32.mrb[0].mxu0
        %v4059 = vadd.f32 %v4005, %v4058
        %v4060 = vpop.f32.mrb[0].mxu0
        %v4061 = vpop.f32.mrb[0].mxu0
        %v4062 = vadd.f32 %v4010, %v4061
        %v4063 = vpop.f32.mrb[0].mxu0
        %4064 = vdwg.mxu0
        %v4065 = vmax.f32 %v4059, 0.0
        %v4066 = vmax.f32 %v4062, 0.0
        %v4067 = vpack.c.bf16 %v4066, %v4065
        %v4068 = vld [vmem:[#allocation9] sm:$0xff]
        %v4069 = vld [vmem:[#allocation9 + $0x8] sm:$0xff]
        %v4070 = vld [vmem:[#allocation9 + $0x10] sm:$0xff]
        %v4071 = vld [vmem:[#allocation9 + $0x18] sm:$0xff]
        %v4072 = vld [vmem:[#allocation9 + $0x20] sm:$0xff]
        %v4073 = vld [vmem:[#allocation9 + $0x28] sm:$0xff]
        %v4074 = vld [vmem:[#allocation9 + $0x30] sm:$0xff]
        %v4075 = vld [vmem:[#allocation9 + $0x38] sm:$0xff]
        %v4084 = vunpack.c.l.b16 %v4068
        %v4085 = vunpack.c.h.b16 %v4068
        %v4086 = vunpack.c.l.b16 %v4069
        %v4087 = vunpack.c.h.b16 %v4069
        %v4088 = vunpack.c.l.b16 %v4070
        %v4089 = vunpack.c.h.b16 %v4070
        %v4090 = vunpack.c.l.b16 %v4071
        %v4091 = vunpack.c.h.b16 %v4071
        %v4092 = vunpack.c.l.b16 %v4072
        %v4093 = vunpack.c.h.b16 %v4072
        %v4094 = vunpack.c.l.b16 %v4073
        %v4095 = vunpack.c.h.b16 %v4073
        %v4096 = vunpack.c.l.b16 %v4074
        %v4097 = vunpack.c.h.b16 %v4074
        %v4098 = vunpack.c.l.b16 %v4075
        %v4099 = vunpack.c.h.b16 %v4075
        %v4100 = vpack.c.b16 %v4086, %v4084
        %v4101 = vpack.c.b16 %v4087, %v4085
        %v4102 = vpack.c.b16 %v4090, %v4088
        %v4103 = vpack.c.b16 %v4091, %v4089
        %v4104 = vpack.c.b16 %v4094, %v4092
        %v4105 = vpack.c.b16 %v4095, %v4093
        %v4106 = vpack.c.b16 %v4098, %v4096
        %v4107 = vpack.c.b16 %v4099, %v4097
        %vm4116 = vcmask 523264
        %v4118 = vsel %vm4116, %v4067, 0
        %4120 = vmatprep.subr.bf16.mxu0 %v4101
        %4121 = vmatpush1.bf16.msra.mxu0 %v4100
        %4122 = vmatprep.subr.bf16.mxu0 %v4103
        %4123 = vmatpush1.bf16.msra.mxu0 %v4102
        %4124 = vmatprep.subr.bf16.mxu0 %v4105
        %4125 = vmatpush1.bf16.msra.mxu0 %v4104
        %4126 = vmatprep.subr.bf16.mxu0 %v4107
        %4127 = vmatpush1.bf16.msra.mxu0 %v4106
        %4128 = vmatprep.subr.bf16.mxu0 0
        %4129 = vmatpush1.bf16.msra.mxu0 0
        %4130 = vmatprep.subr.bf16.mxu0 0
        %4131 = vmatpush1.bf16.msra.mxu0 0
        %4132 = vmatprep.subr.bf16.mxu0 0
        %4133 = vmatpush1.bf16.msra.mxu0 0
        %4134 = vmatprep.subr.bf16.mxu0 0
        %4135 = vmatpush1.bf16.msra.mxu0 0
        %4136 = vmatprep.subr.bf16.mxu0 0
        %4137 = vmatpush1.bf16.msra.mxu0 0
        %4138 = vmatprep.subr.bf16.mxu0 0
        %4139 = vmatpush1.bf16.msra.mxu0 0
        %4140 = vmatprep.subr.bf16.mxu0 0
        %4141 = vmatpush1.bf16.msra.mxu0 0
        %4142 = vmatprep.subr.bf16.mxu0 0
        %4143 = vmatpush1.bf16.msra.mxu0 0
        %4144 = vmatprep.subr.bf16.mxu0 0
        %4145 = vmatpush1.bf16.msra.mxu0 0
        %4146 = vmatprep.subr.bf16.mxu0 0
        %4147 = vmatpush1.bf16.msra.mxu0 0
        %4148 = vmatprep.subr.bf16.mxu0 0
        %4149 = vmatpush1.bf16.msra.mxu0 0
        %4150 = vmatprep.subr.bf16.mxu0 0
        %4151 = vmatpush1.bf16.msra.mxu0 0
        %4152 = vmatprep.mubr.bf16.mxu0 0
        %4153 = vmatmul.mubr.bf16.gmra.mrb[0].mxu0 %v4118
        %v4154 = vpop.f32.mrb[0].mxu0
        %v4155 = vadd.f32 0.0, %v4154
        %v4156 = vpop.f32.mrb[0].mxu0
        %v4157 = vadd.f32 0.0, %v4156
        %v4158 = vpop.f32.mrb[0].mxu0
        %v4159 = vadd.f32 0.0, %v4158
        %v4160 = vpop.f32.mrb[0].mxu0
        %v4161 = vadd.f32 0.0, %v4160
        %4162 = vdwg.mxu0
        %4165 = vrot.lane.b32.xlu0 %v4155, 112
        %v4166 = vpop.permute.xlu0 %4165
        %4167 = vrot.lane.b32.xlu0 %v4159, 112
        %v4168 = vpop.permute.xlu0 %4167
        %4171 = vrot.lane.b32.xlu0 %v4155, 96
        %v4172 = vpop.permute.xlu0 %4171
        %4173 = vrot.lane.b32.xlu0 %v4159, 96
        %v4174 = vpop.permute.xlu0 %4173
        %4177 = vrot.lane.b32.xlu0 %v4155, 80
        %v4178 = vpop.permute.xlu0 %4177
        %4179 = vrot.lane.b32.xlu0 %v4159, 80
        %v4180 = vpop.permute.xlu0 %4179
        %4183 = vrot.lane.b32.xlu0 %v4155, 64
        %v4184 = vpop.permute.xlu0 %4183
        %4185 = vrot.lane.b32.xlu0 %v4159, 64
        %v4186 = vpop.permute.xlu0 %4185
        %4189 = vrot.lane.b32.xlu0 %v4155, 48
        %v4190 = vpop.permute.xlu0 %4189
        %4191 = vrot.lane.b32.xlu0 %v4159, 48
        %v4192 = vpop.permute.xlu0 %4191
        %4195 = vrot.lane.b32.xlu0 %v4155, 32
        %v4196 = vpop.permute.xlu0 %4195
        %4197 = vrot.lane.b32.xlu0 %v4159, 32
        %v4198 = vpop.permute.xlu0 %4197
        %4201 = vrot.lane.b32.xlu0 %v4155, 16
        %v4202 = vpop.permute.xlu0 %4201
        %4203 = vrot.lane.b32.xlu0 %v4159, 16
        %v4204 = vpop.permute.xlu0 %4203
        %v4207 = vld [vmem:[#allocation18] sm:$0xff]
        %v4208 = vld [vmem:[#allocation18 + $0x8] sm:$0xff]
        %v4209 = vld [vmem:[#allocation18 + $0x10] sm:$0xff]
        %v4210 = vld [vmem:[#allocation18 + $0x18] sm:$0xff]
        %v4211 = vpack.c.bf16 %v4159, %v4155
        %v4212 = vpack.c.bf16 %v4168, %v4166
        %v4213 = vpack.c.bf16 %v4174, %v4172
        %v4214 = vpack.c.bf16 %v4180, %v4178
        %v4215 = vpack.c.bf16 %v4186, %v4184
        %v4216 = vpack.c.bf16 %v4192, %v4190
        %v4217 = vpack.c.bf16 %v4198, %v4196
        %v4218 = vpack.c.bf16 %v4204, %v4202
        %v4219 = vpack.c.bf16 %v4161, %v4157
        %v4220 = vld [vmem:[%s20] sm:$0xff]
        %v4221 = vld [vmem:[%s20 + $0x8] sm:$0xff]
        %v4222 = vld [vmem:[%s20 + $0x10] sm:$0xff]
        %v4223 = vld [vmem:[%s20 + $0x18] sm:$0xff]
        %4225 = vset.pattern.permute.xlu0 0
        %4226 = vperm.xlu0 %4225, %v4220
        %v4227 = vpop.permute.xlu0 %4226
        %4230 = vset.pattern.permute.xlu0 0
        %4231 = vperm.xlu0 %4230, %v4221
        %v4232 = vpop.permute.xlu0 %4231
        %4235 = vset.pattern.permute.xlu0 0
        %4236 = vperm.xlu0 %4235, %v4222
        %v4237 = vpop.permute.xlu0 %4236
        %4240 = vset.pattern.permute.xlu0 0
        %4241 = vperm.xlu0 %4240, %v4223
        %v4242 = vpop.permute.xlu0 %4241
        %v4248 = vunpack.c.l.b16 %v4207
        %v4249 = vunpack.c.h.b16 %v4207
        %v4250 = vunpack.c.l.b16 %v4208
        %v4251 = vunpack.c.h.b16 %v4208
        %v4252 = vunpack.c.l.b16 %v4209
        %v4253 = vunpack.c.h.b16 %v4209
        %v4254 = vunpack.c.l.b16 %v4210
        %v4255 = vunpack.c.h.b16 %v4210
        %v4256 = vpack.c.b16 %v4250, %v4248
        %v4257 = vpack.c.b16 %v4251, %v4249
        %v4258 = vpack.c.b16 %v4254, %v4252
        %v4259 = vpack.c.b16 %v4255, %v4253
        %vm4262 = vcmask 130048
        %v4264 = vsel %vm4262, %v4257, 0
        %v4267 = vsel %vm4262, %v4259, 0
        %4269 = vmatprep.subr.bf16.mxu0 0
        %4270 = vmatpush1.bf16.msra.mxu0 %v4211
        %4271 = vmatprep.subr.bf16.mxu0 0
        %4272 = vmatpush1.bf16.msra.mxu0 %v4212
        %4273 = vmatprep.subr.bf16.mxu0 0
        %4274 = vmatpush1.bf16.msra.mxu0 %v4213
        %4275 = vmatprep.subr.bf16.mxu0 0
        %4276 = vmatpush1.bf16.msra.mxu0 %v4214
        %4277 = vmatprep.subr.bf16.mxu0 0
        %4278 = vmatpush1.bf16.msra.mxu0 %v4215
        %4279 = vmatprep.subr.bf16.mxu0 0
        %4280 = vmatpush1.bf16.msra.mxu0 %v4216
        %4281 = vmatprep.subr.bf16.mxu0 0
        %4282 = vmatpush1.bf16.msra.mxu0 %v4217
        %4283 = vmatprep.subr.bf16.mxu0 0
        %4284 = vmatpush1.bf16.msra.mxu0 %v4218
        %4285 = vmatprep.subr.bf16.mxu0 0
        %4286 = vmatpush1.bf16.msra.mxu0 %v4219
        %4287 = vmatprep.subr.bf16.mxu0 0
        %4288 = vmatpush1.bf16.msra.mxu0 0
        %4289 = vmatprep.subr.bf16.mxu0 0
        %4290 = vmatpush1.bf16.msra.mxu0 0
        %4291 = vmatprep.subr.bf16.mxu0 0
        %4292 = vmatpush1.bf16.msra.mxu0 0
        %4293 = vmatprep.subr.bf16.mxu0 0
        %4294 = vmatpush1.bf16.msra.mxu0 0
        %4295 = vmatprep.subr.bf16.mxu0 0
        %4296 = vmatpush1.bf16.msra.mxu0 0
        %4297 = vmatprep.subr.bf16.mxu0 0
        %4298 = vmatpush1.bf16.msra.mxu0 0
        %4299 = vmatprep.subr.bf16.mxu0 0
        %4300 = vmatpush1.bf16.msra.mxu0 0
        %4301 = vmatprep.mubr.bf16.mxu0 %v4264
        %4302 = vmatmul.mubr.bf16.gmra.mrb[0].mxu0 %v4256
        %v4303 = vpop.f32.mrb[0].mxu0
        %v4304 = vadd.f32 %v4227, %v4303
        %v4305 = vpop.f32.mrb[0].mxu0
        %v4306 = vpop.f32.mrb[0].mxu0
        %v4307 = vadd.f32 %v4232, %v4306
        %v4308 = vpop.f32.mrb[0].mxu0
        %4309 = vmatprep.mubr.bf16.mxu0 %v4267
        %4310 = vmatmul.mubr.bf16.gmra.mrb[0].mxu0 %v4258
        %v4311 = vpop.f32.mrb[0].mxu0
        %v4312 = vadd.f32 %v4237, %v4311
        %v4313 = vpop.f32.mrb[0].mxu0
        %v4314 = vpop.f32.mrb[0].mxu0
        %v4315 = vadd.f32 %v4242, %v4314
        %v4316 = vpop.f32.mrb[0].mxu0
        %4317 = vdwg.mxu0
        %v4318 = vmax.f32 %v4304, 0.0
        %v4319 = vmax.f32 %v4307, 0.0
        %v4320 = vmax.f32 %v4312, 0.0
        %v4321 = vmax.f32 %v4315, 0.0
        %v4322 = vpack.c.bf16 %v4319, %v4318
        %v4323 = vpack.c.bf16 %v4321, %v4320
        %v4324 = vld [vmem:[#allocation11] sm:$0xff]
        %v4325 = vld [vmem:[#allocation11 + $0x8] sm:$0xff]
        %v4328 = vunpack.c.l.b16 %v4324
        %v4329 = vunpack.c.h.b16 %v4324
        %v4330 = vunpack.c.l.b16 %v4325
        %v4331 = vunpack.c.h.b16 %v4325
        %v4332 = vpack.c.b16 %v4330, %v4328
        %v4333 = vpack.c.b16 %v4331, %v4329
        %v4337 = vsel %vm4262, %v4322, 0
        %v4340 = vsel %vm4262, %v4323, 0
        %4342 = vmatprep.subr.bf16.mxu0 %v4333
        %4343 = vmatpush1.bf16.msra.mxu0 %v4332
        %4344 = vmatprep.subr.bf16.mxu0 0
        %4345 = vmatpush1.bf16.msra.mxu0 0
        %4346 = vmatprep.subr.bf16.mxu0 0
        %4347 = vmatpush1.bf16.msra.mxu0 0
        %4348 = vmatprep.subr.bf16.mxu0 0
        %4349 = vmatpush1.bf16.msra.mxu0 0
        %4350 = vmatprep.subr.bf16.mxu0 0
        %4351 = vmatpush1.bf16.msra.mxu0 0
        %4352 = vmatprep.subr.bf16.mxu0 0
        %4353 = vmatpush1.bf16.msra.mxu0 0
        %4354 = vmatprep.subr.bf16.mxu0 0
        %4355 = vmatpush1.bf16.msra.mxu0 0
        %4356 = vmatprep.subr.bf16.mxu0 0
        %4357 = vmatpush1.bf16.msra.mxu0 0
        %4358 = vmatprep.subr.bf16.mxu0 0
        %4359 = vmatpush1.bf16.msra.mxu0 0
        %4360 = vmatprep.subr.bf16.mxu0 0
        %4361 = vmatpush1.bf16.msra.mxu0 0
        %4362 = vmatprep.subr.bf16.mxu0 0
        %4363 = vmatpush1.bf16.msra.mxu0 0
        %4364 = vmatprep.subr.bf16.mxu0 0
        %4365 = vmatpush1.bf16.msra.mxu0 0
        %4366 = vmatprep.subr.bf16.mxu0 0
        %4367 = vmatpush1.bf16.msra.mxu0 0
        %4368 = vmatprep.subr.bf16.mxu0 0
        %4369 = vmatpush1.bf16.msra.mxu0 0
        %4370 = vmatprep.subr.bf16.mxu0 0
        %4371 = vmatpush1.bf16.msra.mxu0 0
        %4372 = vmatprep.subr.bf16.mxu0 0
        %4373 = vmatpush1.bf16.msra.mxu0 0
        %4374 = vmatprep.mubr.bf16.mxu0 0
        %4375 = vmatmul.mubr.bf16.gmra.mrb[0].mxu0 %v4337
        %v4376 = vpop.f32.mrb[0].mxu0
        %v4377 = vadd.f32 0.0, %v4376
        %v4378 = vpop.f32.mrb[0].mxu0
        %v4379 = vadd.f32 0.0, %v4378
        %v4380 = vpop.f32.mrb[0].mxu0
        %v4381 = vadd.f32 0.0, %v4380
        %v4382 = vpop.f32.mrb[0].mxu0
        %v4383 = vadd.f32 0.0, %v4382
        %4384 = vmatprep.mubr.bf16.mxu0 0
        %4385 = vmatmul.mubr.bf16.gmra.mrb[0].mxu0 %v4340
        %v4386 = vpop.f32.mrb[0].mxu0
        %v4387 = vadd.f32 0.0, %v4386
        %v4388 = vpop.f32.mrb[0].mxu0
        %v4389 = vadd.f32 0.0, %v4388
        %v4390 = vpop.f32.mrb[0].mxu0
        %v4391 = vadd.f32 0.0, %v4390
        %v4392 = vpop.f32.mrb[0].mxu0
        %v4393 = vadd.f32 0.0, %v4392
        %4394 = vdwg.mxu0
        %4399 = vrot.lane.b32.xlu0 %v4377, 112
        %v4400 = vpop.permute.xlu0 %4399
        %4401 = vrot.lane.b32.xlu0 %v4381, 112
        %v4402 = vpop.permute.xlu0 %4401
        %4403 = vrot.lane.b32.xlu0 %v4387, 112
        %v4404 = vpop.permute.xlu0 %4403
        %4405 = vrot.lane.b32.xlu0 %v4391, 112
        %v4406 = vpop.permute.xlu0 %4405
        %4411 = vrot.lane.b32.xlu0 %v4377, 96
        %v4412 = vpop.permute.xlu0 %4411
        %4413 = vrot.lane.b32.xlu0 %v4381, 96
        %v4414 = vpop.permute.xlu0 %4413
        %4415 = vrot.lane.b32.xlu0 %v4387, 96
        %v4416 = vpop.permute.xlu0 %4415
        %4417 = vrot.lane.b32.xlu0 %v4391, 96
        %v4418 = vpop.permute.xlu0 %4417
        %4423 = vrot.lane.b32.xlu0 %v4377, 80
        %v4424 = vpop.permute.xlu0 %4423
        %4425 = vrot.lane.b32.xlu0 %v4381, 80
        %v4426 = vpop.permute.xlu0 %4425
        %4427 = vrot.lane.b32.xlu0 %v4387, 80
        %v4428 = vpop.permute.xlu0 %4427
        %4429 = vrot.lane.b32.xlu0 %v4391, 80
        %v4430 = vpop.permute.xlu0 %4429
        %4435 = vrot.lane.b32.xlu0 %v4377, 64
        %v4436 = vpop.permute.xlu0 %4435
        %4437 = vrot.lane.b32.xlu0 %v4381, 64
        %v4438 = vpop.permute.xlu0 %4437
        %4439 = vrot.lane.b32.xlu0 %v4387, 64
        %v4440 = vpop.permute.xlu0 %4439
        %4441 = vrot.lane.b32.xlu0 %v4391, 64
        %v4442 = vpop.permute.xlu0 %4441
        %4447 = vrot.lane.b32.xlu0 %v4377, 48
        %v4448 = vpop.permute.xlu0 %4447
        %4449 = vrot.lane.b32.xlu0 %v4381, 48
        %v4450 = vpop.permute.xlu0 %4449
        %4451 = vrot.lane.b32.xlu0 %v4387, 48
        %v4452 = vpop.permute.xlu0 %4451
        %4453 = vrot.lane.b32.xlu0 %v4391, 48
        %v4454 = vpop.permute.xlu0 %4453
        %4459 = vrot.lane.b32.xlu0 %v4377, 32
        %v4460 = vpop.permute.xlu0 %4459
        %4461 = vrot.lane.b32.xlu0 %v4381, 32
        %v4462 = vpop.permute.xlu0 %4461
        %4463 = vrot.lane.b32.xlu0 %v4387, 32
        %v4464 = vpop.permute.xlu0 %4463
        %4465 = vrot.lane.b32.xlu0 %v4391, 32
        %v4466 = vpop.permute.xlu0 %4465
        %4471 = vrot.lane.b32.xlu0 %v4377, 16
        %v4472 = vpop.permute.xlu0 %4471
        %4473 = vrot.lane.b32.xlu0 %v4381, 16
        %v4474 = vpop.permute.xlu0 %4473
        %4475 = vrot.lane.b32.xlu0 %v4387, 16
        %v4476 = vpop.permute.xlu0 %4475
        %4477 = vrot.lane.b32.xlu0 %v4391, 16
        %v4478 = vpop.permute.xlu0 %4477
        %v4483 = vld [vmem:[#allocation20] sm:$0xff]
        %v4484 = vld [vmem:[#allocation20 + $0x8] sm:$0xf]
        %v4485 = vld [vmem:[#allocation20 + $0xc] sm:$0xff]
        %v4486 = vld [vmem:[#allocation20 + $0x14] sm:$0xf]
        %v4487 = vld [vmem:[#allocation20 + $0x18] sm:$0xff]
        %v4488 = vld [vmem:[#allocation20 + $0x20] sm:$0xf]
        %v4489 = vld [vmem:[#allocation20 + $0x24] sm:$0xff]
        %v4490 = vld [vmem:[#allocation20 + $0x2c] sm:$0xf]
        %v4491 = vpack.c.bf16 %v4381, %v4377
        %v4492 = vpack.c.bf16 %v4391, %v4387
        %v4493 = vpack.c.bf16 %v4402, %v4400
        %v4494 = vpack.c.bf16 %v4406, %v4404
        %v4495 = vpack.c.bf16 %v4414, %v4412
        %v4496 = vpack.c.bf16 %v4418, %v4416
        %v4497 = vpack.c.bf16 %v4426, %v4424
        %v4498 = vpack.c.bf16 %v4430, %v4428
        %v4499 = vpack.c.bf16 %v4438, %v4436
        %v4500 = vpack.c.bf16 %v4442, %v4440
        %v4501 = vpack.c.bf16 %v4450, %v4448
        %v4502 = vpack.c.bf16 %v4454, %v4452
        %v4503 = vpack.c.bf16 %v4462, %v4460
        %v4504 = vpack.c.bf16 %v4466, %v4464
        %v4505 = vpack.c.bf16 %v4474, %v4472
        %v4506 = vpack.c.bf16 %v4478, %v4476
        %v4507 = vpack.c.bf16 %v4383, %v4379
        %v4508 = vpack.c.bf16 %v4393, %v4389
        %v4509 = vld [vmem:[%s21] sm:$0xff]
        %v4510 = vld [vmem:[%s21 + $0x8] sm:$0xff]
        %v4511 = vld [vmem:[%s21 + $0x10] sm:$0xff]
        %v4512 = vld [vmem:[%s21 + $0x18] sm:$0xff]
        %4514 = vset.pattern.permute.xlu0 0
        %4515 = vperm.xlu0 %4514, %v4509
        %v4516 = vpop.permute.xlu0 %4515
        %4519 = vset.pattern.permute.xlu0 0
        %4520 = vperm.xlu0 %4519, %v4510
        %v4521 = vpop.permute.xlu0 %4520
        %4524 = vset.pattern.permute.xlu0 0
        %4525 = vperm.xlu0 %4524, %v4511
        %v4526 = vpop.permute.xlu0 %4525
        %4529 = vset.pattern.permute.xlu0 0
        %4530 = vperm.xlu0 %4529, %v4512
        %v4531 = vpop.permute.xlu0 %4530
        %v4541 = vunpack.c.l.b16 %v4483
        %v4542 = vunpack.c.h.b16 %v4483
        %v4543 = vunpack.c.l.b16 %v4484
        %v4544 = vunpack.c.l.b16 %v4485
        %v4545 = vunpack.c.h.b16 %v4485
        %v4546 = vunpack.c.l.b16 %v4486
        %v4547 = vunpack.c.l.b16 %v4487
        %v4548 = vunpack.c.h.b16 %v4487
        %v4549 = vunpack.c.l.b16 %v4488
        %v4550 = vunpack.c.l.b16 %v4489
        %v4551 = vunpack.c.h.b16 %v4489
        %v4552 = vunpack.c.l.b16 %v4490
        %v4553 = vpack.c.b16 %v4544, %v4541
        %v4554 = vpack.c.b16 %v4545, %v4542
        %v4555 = vpack.c.b16 %v4546, %v4543
        %v4556 = vpack.c.b16 %v4550, %v4547
        %v4557 = vpack.c.b16 %v4551, %v4548
        %v4558 = vpack.c.b16 %v4552, %v4549
        %vm4563 = vcmask 261120
        %v4565 = vsel %vm4563, %v4555, 0
        %v4568 = vsel %vm4563, %v4558, 0
        %4570 = vmatprep.subr.bf16.mxu0 0
        %4571 = vmatpush1.bf16.msra.mxu0 %v4491
        %4572 = vmatprep.subr.bf16.mxu0 0
        %4573 = vmatpush1.bf16.msra.mxu0 %v4492
        %4574 = vmatprep.subr.bf16.mxu0 0
        %4575 = vmatpush1.bf16.msra.mxu0 %v4493
        %4576 = vmatprep.subr.bf16.mxu0 0
        %4577 = vmatpush1.bf16.msra.mxu0 %v4494
        %4578 = vmatprep.subr.bf16.mxu0 0
        %4579 = vmatpush1.bf16.msra.mxu0 %v4495
        %4580 = vmatprep.subr.bf16.mxu0 0
        %4581 = vmatpush1.bf16.msra.mxu0 %v4496
        %4582 = vmatprep.subr.bf16.mxu0 0
        %4583 = vmatpush1.bf16.msra.mxu0 %v4497
        %4584 = vmatprep.subr.bf16.mxu0 0
        %4585 = vmatpush1.bf16.msra.mxu0 %v4498
        %4586 = vmatprep.subr.bf16.mxu0 0
        %4587 = vmatpush1.bf16.msra.mxu0 %v4499
        %4588 = vmatprep.subr.bf16.mxu0 0
        %4589 = vmatpush1.bf16.msra.mxu0 %v4500
        %4590 = vmatprep.subr.bf16.mxu0 0
        %4591 = vmatpush1.bf16.msra.mxu0 %v4501
        %4592 = vmatprep.subr.bf16.mxu0 0
        %4593 = vmatpush1.bf16.msra.mxu0 %v4502
        %4594 = vmatprep.subr.bf16.mxu0 0
        %4595 = vmatpush1.bf16.msra.mxu0 %v4503
        %4596 = vmatprep.subr.bf16.mxu0 0
        %4597 = vmatpush1.bf16.msra.mxu0 %v4504
        %4598 = vmatprep.subr.bf16.mxu0 0
        %4599 = vmatpush1.bf16.msra.mxu0 %v4505
        %4600 = vmatprep.subr.bf16.mxu0 0
        %4601 = vmatpush1.bf16.msra.mxu0 %v4506
        %4602 = vmatprep.mubr.bf16.mxu0 %v4554
        %4603 = vmatmul.mubr.bf16.gmra.mrb[0].mxu0 %v4553
        %v4604 = vpop.f32.mrb[0].mxu0
        %v4605 = vadd.f32 %v4516, %v4604
        %v4606 = vpop.f32.mrb[0].mxu0
        %v4607 = vpop.f32.mrb[0].mxu0
        %v4608 = vadd.f32 %v4521, %v4607
        %v4609 = vpop.f32.mrb[0].mxu0
        %4610 = vmatprep.mubr.bf16.mxu0 %v4557
        %4611 = vmatmul.mubr.bf16.gmra.mrb[0].mxu0 %v4556
        %v4612 = vpop.f32.mrb[0].mxu0
        %v4613 = vadd.f32 %v4526, %v4612
        %v4614 = vpop.f32.mrb[0].mxu0
        %v4615 = vpop.f32.mrb[0].mxu0
        %v4616 = vadd.f32 %v4531, %v4615
        %v4617 = vpop.f32.mrb[0].mxu0
        %4618 = vdwg.mxu0
        %4619 = vmatprep.subr.bf16.mxu0 0
        %4620 = vmatpush1.bf16.msra.mxu0 %v4507
        %4621 = vmatprep.subr.bf16.mxu0 0
        %4622 = vmatpush1.bf16.msra.mxu0 %v4508
        %4623 = vmatprep.subr.bf16.mxu0 0
        %4624 = vmatpush1.bf16.msra.mxu0 0
        %4625 = vmatprep.subr.bf16.mxu0 0
        %4626 = vmatpush1.bf16.msra.mxu0 0
        %4627 = vmatprep.subr.bf16.mxu0 0
        %4628 = vmatpush1.bf16.msra.mxu0 0
        %4629 = vmatprep.subr.bf16.mxu0 0
        %4630 = vmatpush1.bf16.msra.mxu0 0
        %4631 = vmatprep.subr.bf16.mxu0 0
        %4632 = vmatpush1.bf16.msra.mxu0 0
        %4633 = vmatprep.subr.bf16.mxu0 0
        %4634 = vmatpush1.bf16.msra.mxu0 0
        %4635 = vmatprep.subr.bf16.mxu0 0
        %4636 = vmatpush1.bf16.msra.mxu0 0
        %4637 = vmatprep.subr.bf16.mxu0 0
        %4638 = vmatpush1.bf16.msra.mxu0 0
        %4639 = vmatprep.subr.bf16.mxu0 0
        %4640 = vmatpush1.bf16.msra.mxu0 0
        %4641 = vmatprep.subr.bf16.mxu0 0
        %4642 = vmatpush1.bf16.msra.mxu0 0
        %4643 = vmatprep.subr.bf16.mxu0 0
        %4644 = vmatpush1.bf16.msra.mxu0 0
        %4645 = vmatprep.subr.bf16.mxu0 0
        %4646 = vmatpush1.bf16.msra.mxu0 0
        %4647 = vmatprep.subr.bf16.mxu0 0
        %4648 = vmatpush1.bf16.msra.mxu0 0
        %4649 = vmatprep.subr.bf16.mxu0 0
        %4650 = vmatpush1.bf16.msra.mxu0 0
        %4651 = vmatprep.mubr.bf16.mxu0 0
        %4652 = vmatmul.mubr.bf16.gmra.mrb[0].mxu0 %v4565
        %v4653 = vpop.f32.mrb[0].mxu0
        %v4654 = vadd.f32 %v4605, %v4653
        %v4655 = vpop.f32.mrb[0].mxu0
        %v4656 = vpop.f32.mrb[0].mxu0
        %v4657 = vadd.f32 %v4608, %v4656
        %v4658 = vpop.f32.mrb[0].mxu0
        %4659 = vmatprep.mubr.bf16.mxu0 0
        %4660 = vmatmul.mubr.bf16.gmra.mrb[0].mxu0 %v4568
        %v4661 = vpop.f32.mrb[0].mxu0
        %v4662 = vadd.f32 %v4613, %v4661
        %v4663 = vpop.f32.mrb[0].mxu0
        %v4664 = vpop.f32.mrb[0].mxu0
        %v4665 = vadd.f32 %v4616, %v4664
        %v4666 = vpop.f32.mrb[0].mxu0
        %4667 = vdwg.mxu0
        %v4668 = vmax.f32 %v4654, 0.0
        %v4669 = vmax.f32 %v4657, 0.0
        %v4670 = vmax.f32 %v4662, 0.0
        %v4671 = vmax.f32 %v4665, 0.0
        %v4672 = vadd.f32 %v4668, %v4318
        %v4673 = vadd.f32 %v4669, %v4319
        %v4674 = vadd.f32 %v4670, %v4320
        %v4675 = vadd.f32 %v4671, %v4321
        %v4676 = vpack.c.bf16 %v4673, %v4672
        %v4677 = vpack.c.bf16 %v4675, %v4674
        %v4679 = vsel %vm4262, %v4676, 0
        %v4682 = vsel %vm4262, %v4677, 0
        %4684 = vmatprep.subr.bf16.mxu0 %v4333
        %4685 = vmatpush1.bf16.msra.mxu0 %v4332
        %4686 = vmatprep.subr.bf16.mxu0 0
        %4687 = vmatpush1.bf16.msra.mxu0 0
        %4688 = vmatprep.subr.bf16.mxu0 0
        %4689 = vmatpush1.bf16.msra.mxu0 0
        %4690 = vmatprep.subr.bf16.mxu0 0
        %4691 = vmatpush1.bf16.msra.mxu0 0
        %4692 = vmatprep.subr.bf16.mxu0 0
        %4693 = vmatpush1.bf16.msra.mxu0 0
        %4694 = vmatprep.subr.bf16.mxu0 0
        %4695 = vmatpush1.bf16.msra.mxu0 0
        %4696 = vmatprep.subr.bf16.mxu0 0
        %4697 = vmatpush1.bf16.msra.mxu0 0
        %4698 = vmatprep.subr.bf16.mxu0 0
        %4699 = vmatpush1.bf16.msra.mxu0 0
        %4700 = vmatprep.subr.bf16.mxu0 0
        %4701 = vmatpush1.bf16.msra.mxu0 0
        %4702 = vmatprep.subr.bf16.mxu0 0
        %4703 = vmatpush1.bf16.msra.mxu0 0
        %4704 = vmatprep.subr.bf16.mxu0 0
        %4705 = vmatpush1.bf16.msra.mxu0 0
        %4706 = vmatprep.subr.bf16.mxu0 0
        %4707 = vmatpush1.bf16.msra.mxu0 0
        %4708 = vmatprep.subr.bf16.mxu0 0
        %4709 = vmatpush1.bf16.msra.mxu0 0
        %4710 = vmatprep.subr.bf16.mxu0 0
        %4711 = vmatpush1.bf16.msra.mxu0 0
        %4712 = vmatprep.subr.bf16.mxu0 0
        %4713 = vmatpush1.bf16.msra.mxu0 0
        %4714 = vmatprep.subr.bf16.mxu0 0
        %4715 = vmatpush1.bf16.msra.mxu0 0
        %4716 = vmatprep.mubr.bf16.mxu0 0
        %4717 = vmatmul.mubr.bf16.gmra.mrb[0].mxu0 %v4679
        %v4718 = vpop.f32.mrb[0].mxu0
        %v4719 = vadd.f32 0.0, %v4718
        %v4720 = vpop.f32.mrb[0].mxu0
        %v4721 = vadd.f32 0.0, %v4720
        %v4722 = vpop.f32.mrb[0].mxu0
        %v4723 = vadd.f32 0.0, %v4722
        %v4724 = vpop.f32.mrb[0].mxu0
        %v4725 = vadd.f32 0.0, %v4724
        %4726 = vmatprep.mubr.bf16.mxu0 0
        %4727 = vmatmul.mubr.bf16.gmra.mrb[0].mxu0 %v4682
        %v4728 = vpop.f32.mrb[0].mxu0
        %v4729 = vadd.f32 0.0, %v4728
        %v4730 = vpop.f32.mrb[0].mxu0
        %v4731 = vadd.f32 0.0, %v4730
        %v4732 = vpop.f32.mrb[0].mxu0
        %v4733 = vadd.f32 0.0, %v4732
        %v4734 = vpop.f32.mrb[0].mxu0
        %v4735 = vadd.f32 0.0, %v4734
        %4736 = vdwg.mxu0
        %4741 = vrot.lane.b32.xlu0 %v4719, 112
        %v4742 = vpop.permute.xlu0 %4741
        %4743 = vrot.lane.b32.xlu0 %v4723, 112
        %v4744 = vpop.permute.xlu0 %4743
        %4745 = vrot.lane.b32.xlu0 %v4729, 112
        %v4746 = vpop.permute.xlu0 %4745
        %4747 = vrot.lane.b32.xlu0 %v4733, 112
        %v4748 = vpop.permute.xlu0 %4747
        %4753 = vrot.lane.b32.xlu0 %v4719, 96
        %v4754 = vpop.permute.xlu0 %4753
        %4755 = vrot.lane.b32.xlu0 %v4723, 96
        %v4756 = vpop.permute.xlu0 %4755
        %4757 = vrot.lane.b32.xlu0 %v4729, 96
        %v4758 = vpop.permute.xlu0 %4757
        %4759 = vrot.lane.b32.xlu0 %v4733, 96
        %v4760 = vpop.permute.xlu0 %4759
        %4765 = vrot.lane.b32.xlu0 %v4719, 80
        %v4766 = vpop.permute.xlu0 %4765
        %4767 = vrot.lane.b32.xlu0 %v4723, 80
        %v4768 = vpop.permute.xlu0 %4767
        %4769 = vrot.lane.b32.xlu0 %v4729, 80
        %v4770 = vpop.permute.xlu0 %4769
        %4771 = vrot.lane.b32.xlu0 %v4733, 80
        %v4772 = vpop.permute.xlu0 %4771
        %4777 = vrot.lane.b32.xlu0 %v4719, 64
        %v4778 = vpop.permute.xlu0 %4777
        %4779 = vrot.lane.b32.xlu0 %v4723, 64
        %v4780 = vpop.permute.xlu0 %4779
        %4781 = vrot.lane.b32.xlu0 %v4729, 64
        %v4782 = vpop.permute.xlu0 %4781
        %4783 = vrot.lane.b32.xlu0 %v4733, 64
        %v4784 = vpop.permute.xlu0 %4783
        %4789 = vrot.lane.b32.xlu0 %v4719, 48
        %v4790 = vpop.permute.xlu0 %4789
        %4791 = vrot.lane.b32.xlu0 %v4723, 48
        %v4792 = vpop.permute.xlu0 %4791
        %4793 = vrot.lane.b32.xlu0 %v4729, 48
        %v4794 = vpop.permute.xlu0 %4793
        %4795 = vrot.lane.b32.xlu0 %v4733, 48
        %v4796 = vpop.permute.xlu0 %4795
        %4801 = vrot.lane.b32.xlu0 %v4719, 32
        %v4802 = vpop.permute.xlu0 %4801
        %4803 = vrot.lane.b32.xlu0 %v4723, 32
        %v4804 = vpop.permute.xlu0 %4803
        %4805 = vrot.lane.b32.xlu0 %v4729, 32
        %v4806 = vpop.permute.xlu0 %4805
        %4807 = vrot.lane.b32.xlu0 %v4733, 32
        %v4808 = vpop.permute.xlu0 %4807
        %4813 = vrot.lane.b32.xlu0 %v4719, 16
        %v4814 = vpop.permute.xlu0 %4813
        %4815 = vrot.lane.b32.xlu0 %v4723, 16
        %v4816 = vpop.permute.xlu0 %4815
        %4817 = vrot.lane.b32.xlu0 %v4729, 16
        %v4818 = vpop.permute.xlu0 %4817
        %4819 = vrot.lane.b32.xlu0 %v4733, 16
        %v4820 = vpop.permute.xlu0 %4819
        %v4825 = vld [vmem:[#allocation21] sm:$0xff]
        %v4826 = vld [vmem:[#allocation21 + $0x8] sm:$0xf]
        %v4827 = vld [vmem:[#allocation21 + $0xc] sm:$0xff]
        %v4828 = vld [vmem:[#allocation21 + $0x14] sm:$0xf]
        %v4829 = vld [vmem:[#allocation21 + $0x18] sm:$0xff]
        %v4830 = vld [vmem:[#allocation21 + $0x20] sm:$0xf]
        %v4831 = vld [vmem:[#allocation21 + $0x24] sm:$0xff]
        %v4832 = vld [vmem:[#allocation21 + $0x2c] sm:$0xf]
        %v4833 = vpack.c.bf16 %v4723, %v4719
        %v4834 = vpack.c.bf16 %v4733, %v4729
        %v4835 = vpack.c.bf16 %v4744, %v4742
        %v4836 = vpack.c.bf16 %v4748, %v4746
        %v4837 = vpack.c.bf16 %v4756, %v4754
        %v4838 = vpack.c.bf16 %v4760, %v4758
        %v4839 = vpack.c.bf16 %v4768, %v4766
        %v4840 = vpack.c.bf16 %v4772, %v4770
        %v4841 = vpack.c.bf16 %v4780, %v4778
        %v4842 = vpack.c.bf16 %v4784, %v4782
        %v4843 = vpack.c.bf16 %v4792, %v4790
        %v4844 = vpack.c.bf16 %v4796, %v4794
        %v4845 = vpack.c.bf16 %v4804, %v4802
        %v4846 = vpack.c.bf16 %v4808, %v4806
        %v4847 = vpack.c.bf16 %v4816, %v4814
        %v4848 = vpack.c.bf16 %v4820, %v4818
        %v4849 = vpack.c.bf16 %v4725, %v4721
        %v4850 = vpack.c.bf16 %v4735, %v4731
        %v4851 = vld [vmem:[%s22] sm:$0xff]
        %v4852 = vld [vmem:[%s22 + $0x8] sm:$0xff]
        %v4853 = vld [vmem:[%s22 + $0x10] sm:$0xff]
        %v4854 = vld [vmem:[%s22 + $0x18] sm:$0xff]
        %4856 = vset.pattern.permute.xlu0 0
        %4857 = vperm.xlu0 %4856, %v4851
        %v4858 = vpop.permute.xlu0 %4857
        %4861 = vset.pattern.permute.xlu0 0
        %4862 = vperm.xlu0 %4861, %v4852
        %v4863 = vpop.permute.xlu0 %4862
        %4866 = vset.pattern.permute.xlu0 0
        %4867 = vperm.xlu0 %4866, %v4853
        %v4868 = vpop.permute.xlu0 %4867
        %4871 = vset.pattern.permute.xlu0 0
        %4872 = vperm.xlu0 %4871, %v4854
        %v4873 = vpop.permute.xlu0 %4872
        %v4883 = vunpack.c.l.b16 %v4825
        %v4884 = vunpack.c.h.b16 %v4825
        %v4885 = vunpack.c.l.b16 %v4826
        %v4886 = vunpack.c.l.b16 %v4827
        %v4887 = vunpack.c.h.b16 %v4827
        %v4888 = vunpack.c.l.b16 %v4828
        %v4889 = vunpack.c.l.b16 %v4829
        %v4890 = vunpack.c.h.b16 %v4829
        %v4891 = vunpack.c.l.b16 %v4830
        %v4892 = vunpack.c.l.b16 %v4831
        %v4893 = vunpack.c.h.b16 %v4831
        %v4894 = vunpack.c.l.b16 %v4832
        %v4895 = vpack.c.b16 %v4886, %v4883
        %v4896 = vpack.c.b16 %v4887, %v4884
        %v4897 = vpack.c.b16 %v4888, %v4885
        %v4898 = vpack.c.b16 %v4892, %v4889
        %v4899 = vpack.c.b16 %v4893, %v4890
        %v4900 = vpack.c.b16 %v4894, %v4891
        %v4906 = vsel %vm4563, %v4897, 0
        %v4909 = vsel %vm4563, %v4900, 0
        %4911 = vmatprep.subr.bf16.mxu0 0
        %4912 = vmatpush1.bf16.msra.mxu0 %v4833
        %4913 = vmatprep.subr.bf16.mxu0 0
        %4914 = vmatpush1.bf16.msra.mxu0 %v4834
        %4915 = vmatprep.subr.bf16.mxu0 0
        %4916 = vmatpush1.bf16.msra.mxu0 %v4835
        %4917 = vmatprep.subr.bf16.mxu0 0
        %4918 = vmatpush1.bf16.msra.mxu0 %v4836
        %4919 = vmatprep.subr.bf16.mxu0 0
        %4920 = vmatpush1.bf16.msra.mxu0 %v4837
        %4921 = vmatprep.subr.bf16.mxu0 0
        %4922 = vmatpush1.bf16.msra.mxu0 %v4838
        %4923 = vmatprep.subr.bf16.mxu0 0
        %4924 = vmatpush1.bf16.msra.mxu0 %v4839
        %4925 = vmatprep.subr.bf16.mxu0 0
        %4926 = vmatpush1.bf16.msra.mxu0 %v4840
        %4927 = vmatprep.subr.bf16.mxu0 0
        %4928 = vmatpush1.bf16.msra.mxu0 %v4841
        %4929 = vmatprep.subr.bf16.mxu0 0
        %4930 = vmatpush1.bf16.msra.mxu0 %v4842
        %4931 = vmatprep.subr.bf16.mxu0 0
        %4932 = vmatpush1.bf16.msra.mxu0 %v4843
        %4933 = vmatprep.subr.bf16.mxu0 0
        %4934 = vmatpush1.bf16.msra.mxu0 %v4844
        %4935 = vmatprep.subr.bf16.mxu0 0
        %4936 = vmatpush1.bf16.msra.mxu0 %v4845
        %4937 = vmatprep.subr.bf16.mxu0 0
        %4938 = vmatpush1.bf16.msra.mxu0 %v4846
        %4939 = vmatprep.subr.bf16.mxu0 0
        %4940 = vmatpush1.bf16.msra.mxu0 %v4847
        %4941 = vmatprep.subr.bf16.mxu0 0
        %4942 = vmatpush1.bf16.msra.mxu0 %v4848
        %4943 = vmatprep.mubr.bf16.mxu0 %v4896
        %4944 = vmatmul.mubr.bf16.gmra.mrb[0].mxu0 %v4895
        %v4945 = vpop.f32.mrb[0].mxu0
        %v4946 = vadd.f32 %v4858, %v4945
        %v4947 = vpop.f32.mrb[0].mxu0
        %v4948 = vpop.f32.mrb[0].mxu0
        %v4949 = vadd.f32 %v4863, %v4948
        %v4950 = vpop.f32.mrb[0].mxu0
        %4951 = vmatprep.mubr.bf16.mxu0 %v4899
        %4952 = vmatmul.mubr.bf16.gmra.mrb[0].mxu0 %v4898
        %v4953 = vpop.f32.mrb[0].mxu0
        %v4954 = vadd.f32 %v4868, %v4953
        %v4955 = vpop.f32.mrb[0].mxu0
        %v4956 = vpop.f32.mrb[0].mxu0
        %v4957 = vadd.f32 %v4873, %v4956
        %v4958 = vpop.f32.mrb[0].mxu0
        %4959 = vdwg.mxu0
        %4960 = vmatprep.subr.bf16.mxu0 0
        %4961 = vmatpush1.bf16.msra.mxu0 %v4849
        %4962 = vmatprep.subr.bf16.mxu0 0
        %4963 = vmatpush1.bf16.msra.mxu0 %v4850
        %4964 = vmatprep.subr.bf16.mxu0 0
        %4965 = vmatpush1.bf16.msra.mxu0 0
        %4966 = vmatprep.subr.bf16.mxu0 0
        %4967 = vmatpush1.bf16.msra.mxu0 0
        %4968 = vmatprep.subr.bf16.mxu0 0
        %4969 = vmatpush1.bf16.msra.mxu0 0
        %4970 = vmatprep.subr.bf16.mxu0 0
        %4971 = vmatpush1.bf16.msra.mxu0 0
        %4972 = vmatprep.subr.bf16.mxu0 0
        %4973 = vmatpush1.bf16.msra.mxu0 0
        %4974 = vmatprep.subr.bf16.mxu0 0
        %4975 = vmatpush1.bf16.msra.mxu0 0
        %4976 = vmatprep.subr.bf16.mxu0 0
        %4977 = vmatpush1.bf16.msra.mxu0 0
        %4978 = vmatprep.subr.bf16.mxu0 0
        %4979 = vmatpush1.bf16.msra.mxu0 0
        %4980 = vmatprep.subr.bf16.mxu0 0
        %4981 = vmatpush1.bf16.msra.mxu0 0
        %4982 = vmatprep.subr.bf16.mxu0 0
        %4983 = vmatpush1.bf16.msra.mxu0 0
        %4984 = vmatprep.subr.bf16.mxu0 0
        %4985 = vmatpush1.bf16.msra.mxu0 0
        %4986 = vmatprep.subr.bf16.mxu0 0
        %4987 = vmatpush1.bf16.msra.mxu0 0
        %4988 = vmatprep.subr.bf16.mxu0 0
        %4989 = vmatpush1.bf16.msra.mxu0 0
        %4990 = vmatprep.subr.bf16.mxu0 0
        %4991 = vmatpush1.bf16.msra.mxu0 0
        %4992 = vmatprep.mubr.bf16.mxu0 0
        %4993 = vmatmul.mubr.bf16.gmra.mrb[0].mxu0 %v4906
        %v4994 = vpop.f32.mrb[0].mxu0
        %v4995 = vadd.f32 %v4946, %v4994
        %v4996 = vpop.f32.mrb[0].mxu0
        %v4997 = vpop.f32.mrb[0].mxu0
        %v4998 = vadd.f32 %v4949, %v4997
        %v4999 = vpop.f32.mrb[0].mxu0
        %5000 = vmatprep.mubr.bf16.mxu0 0
        %5001 = vmatmul.mubr.bf16.gmra.mrb[0].mxu0 %v4909
        %v5002 = vpop.f32.mrb[0].mxu0
        %v5003 = vadd.f32 %v4954, %v5002
        %v5004 = vpop.f32.mrb[0].mxu0
        %v5005 = vpop.f32.mrb[0].mxu0
        %v5006 = vadd.f32 %v4957, %v5005
        %v5007 = vpop.f32.mrb[0].mxu0
        %5008 = vdwg.mxu0
        %v5009 = vmax.f32 %v4995, 0.0
        %v5010 = vmax.f32 %v4998, 0.0
        %v5011 = vmax.f32 %v5003, 0.0
        %v5012 = vmax.f32 %v5006, 0.0
        %v5013 = vadd.f32 %v5009, %v4672
        %v5014 = vadd.f32 %v5010, %v4673
        %v5015 = vadd.f32 %v5011, %v4674
        %v5016 = vadd.f32 %v5012, %v4675
        %v5017 = vpack.c.bf16 %v5014, %v5013
        %v5018 = vpack.c.bf16 %v5016, %v5015
        %v5019 = vld [vmem:[#allocation12] sm:$0xff]
        %v5020 = vld [vmem:[#allocation12 + $0x8] sm:$0xff]
        %v5021 = vld [vmem:[#allocation12 + $0x10] sm:$0xf]
        %v5022 = vld [vmem:[#allocation12 + $0x14] sm:$0xff]
        %v5023 = vld [vmem:[#allocation12 + $0x1c] sm:$0xff]
        %v5024 = vld [vmem:[#allocation12 + $0x24] sm:$0xf]
        %v5031 = vunpack.c.l.b16 %v5019
        %v5032 = vunpack.c.h.b16 %v5019
        %v5033 = vunpack.c.l.b16 %v5020
        %v5034 = vunpack.c.h.b16 %v5020
        %v5035 = vunpack.c.l.b16 %v5021
        %v5036 = vunpack.c.l.b16 %v5022
        %v5037 = vunpack.c.h.b16 %v5022
        %v5038 = vunpack.c.l.b16 %v5023
        %v5039 = vunpack.c.h.b16 %v5023
        %v5040 = vunpack.c.l.b16 %v5024
        %v5041 = vpack.c.b16 %v5036, %v5031
        %v5042 = vpack.c.b16 %v5037, %v5032
        %v5043 = vpack.c.b16 %v5038, %v5033
        %v5044 = vpack.c.b16 %v5039, %v5034
        %v5045 = vpack.c.b16 %v5040, %v5035
        %v5052 = vsel %vm4262, %v5017, 0
        %v5055 = vsel %vm4262, %v5018, 0
        %5057 = vmatprep.subr.bf16.mxu0 %v5042
        %5058 = vmatpush1.bf16.msra.mxu0 %v5041
        %5059 = vmatprep.subr.bf16.mxu0 0
        %5060 = vmatpush1.bf16.msra.mxu0 0
        %5061 = vmatprep.subr.bf16.mxu0 0
        %5062 = vmatpush1.bf16.msra.mxu0 0
        %5063 = vmatprep.subr.bf16.mxu0 0
        %5064 = vmatpush1.bf16.msra.mxu0 0
        %5065 = vmatprep.subr.bf16.mxu0 0
        %5066 = vmatpush1.bf16.msra.mxu0 0
        %5067 = vmatprep.subr.bf16.mxu0 0
        %5068 = vmatpush1.bf16.msra.mxu0 0
        %5069 = vmatprep.subr.bf16.mxu0 0
        %5070 = vmatpush1.bf16.msra.mxu0 0
        %5071 = vmatprep.subr.bf16.mxu0 0
        %5072 = vmatpush1.bf16.msra.mxu0 0
        %5073 = vmatprep.subr.bf16.mxu0 0
        %5074 = vmatpush1.bf16.msra.mxu0 0
        %5075 = vmatprep.subr.bf16.mxu0 0
        %5076 = vmatpush1.bf16.msra.mxu0 0
        %5077 = vmatprep.subr.bf16.mxu0 0
        %5078 = vmatpush1.bf16.msra.mxu0 0
        %5079 = vmatprep.subr.bf16.mxu0 0
        %5080 = vmatpush1.bf16.msra.mxu0 0
        %5081 = vmatprep.subr.bf16.mxu0 0
        %5082 = vmatpush1.bf16.msra.mxu0 0
        %5083 = vmatprep.subr.bf16.mxu0 0
        %5084 = vmatpush1.bf16.msra.mxu0 0
        %5085 = vmatprep.subr.bf16.mxu0 0
        %5086 = vmatpush1.bf16.msra.mxu0 0
        %5087 = vmatprep.subr.bf16.mxu0 0
        %5088 = vmatpush1.bf16.msra.mxu0 0
        %5089 = vmatprep.mubr.bf16.mxu0 0
        %5090 = vmatmul.mubr.bf16.gmra.mrb[0].mxu0 %v5052
        %v5091 = vpop.f32.mrb[0].mxu0
        %v5092 = vadd.f32 0.0, %v5091
        %v5093 = vpop.f32.mrb[0].mxu0
        %v5094 = vadd.f32 0.0, %v5093
        %v5095 = vpop.f32.mrb[0].mxu0
        %v5096 = vadd.f32 0.0, %v5095
        %v5097 = vpop.f32.mrb[0].mxu0
        %v5098 = vadd.f32 0.0, %v5097
        %5099 = vmatprep.mubr.bf16.mxu0 0
        %5100 = vmatmul.mubr.bf16.gmra.mrb[0].mxu0 %v5055
        %v5101 = vpop.f32.mrb[0].mxu0
        %v5102 = vadd.f32 0.0, %v5101
        %v5103 = vpop.f32.mrb[0].mxu0
        %v5104 = vadd.f32 0.0, %v5103
        %v5105 = vpop.f32.mrb[0].mxu0
        %v5106 = vadd.f32 0.0, %v5105
        %v5107 = vpop.f32.mrb[0].mxu0
        %v5108 = vadd.f32 0.0, %v5107
        %5109 = vdwg.mxu0
        %5110 = vmatprep.subr.bf16.mxu0 %v5044
        %5111 = vmatpush1.bf16.msra.mxu0 %v5043
        %5112 = vmatprep.subr.bf16.mxu0 0
        %5113 = vmatpush1.bf16.msra.mxu0 0
        %5114 = vmatprep.subr.bf16.mxu0 0
        %5115 = vmatpush1.bf16.msra.mxu0 0
        %5116 = vmatprep.subr.bf16.mxu0 0
        %5117 = vmatpush1.bf16.msra.mxu0 0
        %5118 = vmatprep.subr.bf16.mxu0 0
        %5119 = vmatpush1.bf16.msra.mxu0 0
        %5120 = vmatprep.subr.bf16.mxu0 0
        %5121 = vmatpush1.bf16.msra.mxu0 0
        %5122 = vmatprep.subr.bf16.mxu0 0
        %5123 = vmatpush1.bf16.msra.mxu0 0
        %5124 = vmatprep.subr.bf16.mxu0 0
        %5125 = vmatpush1.bf16.msra.mxu0 0
        %5126 = vmatprep.subr.bf16.mxu0 0
        %5127 = vmatpush1.bf16.msra.mxu0 0
        %5128 = vmatprep.subr.bf16.mxu0 0
        %5129 = vmatpush1.bf16.msra.mxu0 0
        %5130 = vmatprep.subr.bf16.mxu0 0
        %5131 = vmatpush1.bf16.msra.mxu0 0
        %5132 = vmatprep.subr.bf16.mxu0 0
        %5133 = vmatpush1.bf16.msra.mxu0 0
        %5134 = vmatprep.subr.bf16.mxu0 0
        %5135 = vmatpush1.bf16.msra.mxu0 0
        %5136 = vmatprep.subr.bf16.mxu0 0
        %5137 = vmatpush1.bf16.msra.mxu0 0
        %5138 = vmatprep.subr.bf16.mxu0 0
        %5139 = vmatpush1.bf16.msra.mxu0 0
        %5140 = vmatprep.subr.bf16.mxu0 0
        %5141 = vmatpush1.bf16.msra.mxu0 0
        %5142 = vmatprep.mubr.bf16.mxu0 0
        %5143 = vmatmul.mubr.bf16.gmra.mrb[0].mxu0 %v5052
        %v5144 = vpop.f32.mrb[0].mxu0
        %v5145 = vadd.f32 0.0, %v5144
        %v5146 = vpop.f32.mrb[0].mxu0
        %v5147 = vadd.f32 0.0, %v5146
        %v5148 = vpop.f32.mrb[0].mxu0
        %v5149 = vadd.f32 0.0, %v5148
        %v5150 = vpop.f32.mrb[0].mxu0
        %v5151 = vadd.f32 0.0, %v5150
        %5152 = vmatprep.mubr.bf16.mxu0 0
        %5153 = vmatmul.mubr.bf16.gmra.mrb[0].mxu0 %v5055
        %v5154 = vpop.f32.mrb[0].mxu0
        %v5155 = vadd.f32 0.0, %v5154
        %v5156 = vpop.f32.mrb[0].mxu0
        %v5157 = vadd.f32 0.0, %v5156
        %v5158 = vpop.f32.mrb[0].mxu0
        %v5159 = vadd.f32 0.0, %v5158
        %v5160 = vpop.f32.mrb[0].mxu0
        %v5161 = vadd.f32 0.0, %v5160
        %5162 = vdwg.mxu0
        %5163 = vmatprep.subr.bf16.mxu0 0
        %5164 = vmatpush1.bf16.msra.mxu0 %v5045
        %5165 = vmatprep.subr.bf16.mxu0 0
        %5166 = vmatpush1.bf16.msra.mxu0 0
        %5167 = vmatprep.subr.bf16.mxu0 0
        %5168 = vmatpush1.bf16.msra.mxu0 0
        %5169 = vmatprep.subr.bf16.mxu0 0
        %5170 = vmatpush1.bf16.msra.mxu0 0
        %5171 = vmatprep.subr.bf16.mxu0 0
        %5172 = vmatpush1.bf16.msra.mxu0 0
        %5173 = vmatprep.subr.bf16.mxu0 0
        %5174 = vmatpush1.bf16.msra.mxu0 0
        %5175 = vmatprep.subr.bf16.mxu0 0
        %5176 = vmatpush1.bf16.msra.mxu0 0
        %5177 = vmatprep.subr.bf16.mxu0 0
        %5178 = vmatpush1.bf16.msra.mxu0 0
        %5179 = vmatprep.subr.bf16.mxu0 0
        %5180 = vmatpush1.bf16.msra.mxu0 0
        %5181 = vmatprep.subr.bf16.mxu0 0
        %5182 = vmatpush1.bf16.msra.mxu0 0
        %5183 = vmatprep.subr.bf16.mxu0 0
        %5184 = vmatpush1.bf16.msra.mxu0 0
        %5185 = vmatprep.subr.bf16.mxu0 0
        %5186 = vmatpush1.bf16.msra.mxu0 0
        %5187 = vmatprep.subr.bf16.mxu0 0
        %5188 = vmatpush1.bf16.msra.mxu0 0
        %5189 = vmatprep.subr.bf16.mxu0 0
        %5190 = vmatpush1.bf16.msra.mxu0 0
        %5191 = vmatprep.subr.bf16.mxu0 0
        %5192 = vmatpush1.bf16.msra.mxu0 0
        %5193 = vmatprep.subr.bf16.mxu0 0
        %5194 = vmatpush1.bf16.msra.mxu0 0
        %5195 = vmatprep.mubr.bf16.mxu0 0
        %5196 = vmatmul.mubr.bf16.gmra.mrb[0].mxu0 %v5052
        %v5197 = vpop.f32.mrb[0].mxu0
        %v5198 = vadd.f32 0.0, %v5197
        %v5199 = vpop.f32.mrb[0].mxu0
        %v5200 = vpop.f32.mrb[0].mxu0
        %v5201 = vadd.f32 0.0, %v5200
        %v5202 = vpop.f32.mrb[0].mxu0
        %5203 = vmatprep.mubr.bf16.mxu0 0
        %5204 = vmatmul.mubr.bf16.gmra.mrb[0].mxu0 %v5055
        %v5205 = vpop.f32.mrb[0].mxu0
        %v5206 = vadd.f32 0.0, %v5205
        %v5207 = vpop.f32.mrb[0].mxu0
        %v5208 = vpop.f32.mrb[0].mxu0
        %v5209 = vadd.f32 0.0, %v5208
        %v5210 = vpop.f32.mrb[0].mxu0
        %5211 = vdwg.mxu0
        %5216 = vrot.lane.b32.xlu0 %v5092, 64
        %v5217 = vpop.permute.xlu0 %5216
        %5218 = vrot.lane.b32.xlu0 %v5096, 64
        %v5219 = vpop.permute.xlu0 %5218
        %5220 = vrot.lane.b32.xlu0 %v5102, 64
        %v5221 = vpop.permute.xlu0 %5220
        %5222 = vrot.lane.b32.xlu0 %v5106, 64
        %v5223 = vpop.permute.xlu0 %5222
        %5232 = vrot.lane.b32.xlu0 %v5094, 64
        %v5233 = vpop.permute.xlu0 %5232
        %5234 = vrot.lane.b32.xlu0 %v5098, 64
        %v5235 = vpop.permute.xlu0 %5234
        %5236 = vrot.lane.b32.xlu0 %v5104, 64
        %v5237 = vpop.permute.xlu0 %5236
        %5238 = vrot.lane.b32.xlu0 %v5108, 64
        %v5239 = vpop.permute.xlu0 %5238
        %5248 = vrot.lane.b32.xlu0 %v5145, 64
        %v5249 = vpop.permute.xlu0 %5248
        %5250 = vrot.lane.b32.xlu0 %v5149, 64
        %v5251 = vpop.permute.xlu0 %5250
        %5252 = vrot.lane.b32.xlu0 %v5155, 64
        %v5253 = vpop.permute.xlu0 %5252
        %5254 = vrot.lane.b32.xlu0 %v5159, 64
        %v5255 = vpop.permute.xlu0 %5254
        %5264 = vrot.lane.b32.xlu0 %v5147, 64
        %v5265 = vpop.permute.xlu0 %5264
        %5266 = vrot.lane.b32.xlu0 %v5151, 64
        %v5267 = vpop.permute.xlu0 %5266
        %5268 = vrot.lane.b32.xlu0 %v5157, 64
        %v5269 = vpop.permute.xlu0 %5268
        %5270 = vrot.lane.b32.xlu0 %v5161, 64
        %v5271 = vpop.permute.xlu0 %5270
        %v5276 = vld [vmem:[#allocation23] sm:$0xff]
        %v5277 = vld [vmem:[#allocation23 + $0x8] sm:$0xf]
        %v5278 = vld [vmem:[#allocation23 + $0xc] sm:$0xff]
        %v5279 = vld [vmem:[#allocation23 + $0x14] sm:$0xf]
        %v5280 = vpack.c.bf16 %v5096, %v5092
        %v5281 = vpack.c.bf16 %v5106, %v5102
        %v5282 = vpack.c.bf16 %v5219, %v5217
        %v5283 = vpack.c.bf16 %v5223, %v5221
        %v5284 = vpack.c.bf16 %v5098, %v5094
        %v5285 = vpack.c.bf16 %v5108, %v5104
        %v5286 = vpack.c.bf16 %v5235, %v5233
        %v5287 = vpack.c.bf16 %v5239, %v5237
        %v5288 = vpack.c.bf16 %v5149, %v5145
        %v5289 = vpack.c.bf16 %v5159, %v5155
        %v5290 = vpack.c.bf16 %v5251, %v5249
        %v5291 = vpack.c.bf16 %v5255, %v5253
        %v5292 = vpack.c.bf16 %v5151, %v5147
        %v5293 = vpack.c.bf16 %v5161, %v5157
        %v5294 = vpack.c.bf16 %v5267, %v5265
        %v5295 = vpack.c.bf16 %v5271, %v5269
        %v5296 = vpack.c.bf16 %v5201, %v5198
        %v5297 = vpack.c.bf16 %v5209, %v5206
        %v5298 = vld [vmem:[%s23] sm:$0xff]
        %v5299 = vld [vmem:[%s23 + $0x8] sm:$0xff]
        %5301 = vset.pattern.permute.xlu0 0
        %5302 = vperm.xlu0 %5301, %v5298
        %v5303 = vpop.permute.xlu0 %5302
        %5306 = vset.pattern.permute.xlu0 0
        %5307 = vperm.xlu0 %5306, %v5299
        %v5308 = vpop.permute.xlu0 %5307
        %v5314 = vunpack.c.l.b16 %v5276
        %v5315 = vunpack.c.h.b16 %v5276
        %v5316 = vunpack.c.l.b16 %v5277
        %v5317 = vunpack.c.l.b16 %v5278
        %v5318 = vunpack.c.h.b16 %v5278
        %v5319 = vunpack.c.l.b16 %v5279
        %v5320 = vpack.c.b16 %v5317, %v5314
        %v5321 = vpack.c.b16 %v5318, %v5315
        %v5322 = vpack.c.b16 %v5319, %v5316
        %v5326 = vsel %vm4563, %v5322, 0
        %5328 = vmatprep.subr.bf16.mxu0 0
        %5329 = vmatpush1.bf16.msra.mxu0 %v5280
        %5330 = vmatprep.subr.bf16.mxu0 0
        %5331 = vmatpush1.bf16.msra.mxu0 %v5281
        %5332 = vmatprep.subr.bf16.mxu0 0
        %5333 = vmatpush1.bf16.msra.mxu0 %v5282
        %5334 = vmatprep.subr.bf16.mxu0 0
        %5335 = vmatpush1.bf16.msra.mxu0 %v5283
        %5336 = vmatprep.subr.bf16.mxu0 0
        %5337 = vmatpush1.bf16.msra.mxu0 %v5284
        %5338 = vmatprep.subr.bf16.mxu0 0
        %5339 = vmatpush1.bf16.msra.mxu0 %v5285
        %5340 = vmatprep.subr.bf16.mxu0 0
        %5341 = vmatpush1.bf16.msra.mxu0 %v5286
        %5342 = vmatprep.subr.bf16.mxu0 0
        %5343 = vmatpush1.bf16.msra.mxu0 %v5287
        %5344 = vmatprep.subr.bf16.mxu0 0
        %5345 = vmatpush1.bf16.msra.mxu0 %v5288
        %5346 = vmatprep.subr.bf16.mxu0 0
        %5347 = vmatpush1.bf16.msra.mxu0 %v5289
        %5348 = vmatprep.subr.bf16.mxu0 0
        %5349 = vmatpush1.bf16.msra.mxu0 %v5290
        %5350 = vmatprep.subr.bf16.mxu0 0
        %5351 = vmatpush1.bf16.msra.mxu0 %v5291
        %5352 = vmatprep.subr.bf16.mxu0 0
        %5353 = vmatpush1.bf16.msra.mxu0 %v5292
        %5354 = vmatprep.subr.bf16.mxu0 0
        %5355 = vmatpush1.bf16.msra.mxu0 %v5293
        %5356 = vmatprep.subr.bf16.mxu0 0
        %5357 = vmatpush1.bf16.msra.mxu0 %v5294
        %5358 = vmatprep.subr.bf16.mxu0 0
        %5359 = vmatpush1.bf16.msra.mxu0 %v5295
        %5360 = vmatprep.mubr.bf16.mxu0 %v5321
        %5361 = vmatmul.mubr.bf16.gmra.mrb[0].mxu0 %v5320
        %v5362 = vpop.f32.mrb[0].mxu0
        %v5363 = vadd.f32 %v5303, %v5362
        %v5364 = vpop.f32.mrb[0].mxu0
        %v5365 = vpop.f32.mrb[0].mxu0
        %v5366 = vadd.f32 %v5308, %v5365
        %v5367 = vpop.f32.mrb[0].mxu0
        %5368 = vdwg.mxu0
        %5369 = vmatprep.subr.bf16.mxu0 0
        %5370 = vmatpush1.bf16.msra.mxu0 %v5296
        %5371 = vmatprep.subr.bf16.mxu0 0
        %5372 = vmatpush1.bf16.msra.mxu0 %v5297
        %5373 = vmatprep.subr.bf16.mxu0 0
        %5374 = vmatpush1.bf16.msra.mxu0 0
        %5375 = vmatprep.subr.bf16.mxu0 0
        %5376 = vmatpush1.bf16.msra.mxu0 0
        %5377 = vmatprep.subr.bf16.mxu0 0
        %5378 = vmatpush1.bf16.msra.mxu0 0
        %5379 = vmatprep.subr.bf16.mxu0 0
        %5380 = vmatpush1.bf16.msra.mxu0 0
        %5381 = vmatprep.subr.bf16.mxu0 0
        %5382 = vmatpush1.bf16.msra.mxu0 0
        %5383 = vmatprep.subr.bf16.mxu0 0
        %5384 = vmatpush1.bf16.msra.mxu0 0
        %5385 = vmatprep.subr.bf16.mxu0 0
        %5386 = vmatpush1.bf16.msra.mxu0 0
        %5387 = vmatprep.subr.bf16.mxu0 0
        %5388 = vmatpush1.bf16.msra.mxu0 0
        %5389 = vmatprep.subr.bf16.mxu0 0
        %5390 = vmatpush1.bf16.msra.mxu0 0
        %5391 = vmatprep.subr.bf16.mxu0 0
        %5392 = vmatpush1.bf16.msra.mxu0 0
        %5393 = vmatprep.subr.bf16.mxu0 0
        %5394 = vmatpush1.bf16.msra.mxu0 0
        %5395 = vmatprep.subr.bf16.mxu0 0
        %5396 = vmatpush1.bf16.msra.mxu0 0
        %5397 = vmatprep.subr.bf16.mxu0 0
        %5398 = vmatpush1.bf16.msra.mxu0 0
        %5399 = vmatprep.subr.bf16.mxu0 0
        %5400 = vmatpush1.bf16.msra.mxu0 0
        %5401 = vmatprep.mubr.bf16.mxu0 0
        %5402 = vmatmul.mubr.bf16.gmra.mrb[0].mxu0 %v5326
        %v5403 = vpop.f32.mrb[0].mxu0
        %v5404 = vadd.f32 %v5363, %v5403
        %v5405 = vpop.f32.mrb[0].mxu0
        %v5406 = vpop.f32.mrb[0].mxu0
        %v5407 = vadd.f32 %v5366, %v5406
        %v5408 = vpop.f32.mrb[0].mxu0
        %5409 = vdwg.mxu0
        %v5410 = vmax.f32 %v5404, 0.0
        %v5411 = vmax.f32 %v5407, 0.0
        %v5412 = vpack.c.bf16 %v5411, %v5410
        %v5413 = vld [vmem:[#allocation14] sm:$0xff]
        %v5414 = vld [vmem:[#allocation14 + $0x8] sm:$0xff]
        %v5415 = vld [vmem:[#allocation14 + $0x10] sm:$0xff]
        %v5416 = vld [vmem:[#allocation14 + $0x18] sm:$0xff]
        %v5417 = vld [vmem:[#allocation14 + $0x20] sm:$0xff]
        %v5418 = vld [vmem:[#allocation14 + $0x28] sm:$0xff]
        %v5419 = vld [vmem:[#allocation14 + $0x30] sm:$0xff]
        %v5420 = vld [vmem:[#allocation14 + $0x38] sm:$0xff]
        %v5421 = vld [vmem:[#allocation14 + $0x40] sm:$0xff]
        %v5422 = vld [vmem:[#allocation14 + $0x48] sm:$0xff]
        %v5423 = vld [vmem:[#allocation14 + $0x50] sm:$0xff]
        %v5424 = vld [vmem:[#allocation14 + $0x58] sm:$0xff]
        %v5425 = vld [vmem:[#allocation14 + $0x60] sm:$0xff]
        %v5426 = vld [vmem:[#allocation14 + $0x68] sm:$0xff]
        %v5427 = vld [vmem:[#allocation14 + $0x70] sm:$0xff]
        %v5428 = vld [vmem:[#allocation14 + $0x78] sm:$0xff]
        %v5429 = vld [vmem:[#allocation14 + $0x80] sm:$0xff]
        %v5430 = vld [vmem:[#allocation14 + $0x88] sm:$0xff]
        %v5431 = vld [vmem:[#allocation14 + $0x90] sm:$0xff]
        %v5432 = vld [vmem:[#allocation14 + $0x98] sm:$0xff]
        %v5433 = vld [vmem:[#allocation14 + $0xa0] sm:$0xff]
        %v5434 = vld [vmem:[#allocation14 + $0xa8] sm:$0xff]
        %v5435 = vld [vmem:[#allocation14 + $0xb0] sm:$0xff]
        %v5436 = vld [vmem:[#allocation14 + $0xb8] sm:$0xff]
        %v5437 = vld [vmem:[#allocation14 + $0xc0] sm:$0xff]
        %v5438 = vld [vmem:[#allocation14 + $0xc8] sm:$0xff]
        %v5439 = vld [vmem:[#allocation14 + $0xd0] sm:$0xff]
        %v5440 = vld [vmem:[#allocation14 + $0xd8] sm:$0xff]
        %v5441 = vld [vmem:[#allocation14 + $0xe0] sm:$0xff]
        %v5442 = vld [vmem:[#allocation14 + $0xe8] sm:$0xff]
        %v5443 = vld [vmem:[#allocation14 + $0xf0] sm:$0xff]
        %v5444 = vld [vmem:[#allocation14 + $0xf8] sm:$0xff]
        %v5445 = vld [vmem:[#allocation14 + $0x100] sm:$0xff]
        %v5446 = vld [vmem:[#allocation14 + $0x108] sm:$0xff]
        %v5447 = vld [vmem:[#allocation14 + $0x110] sm:$0xff]
        %v5448 = vld [vmem:[#allocation14 + $0x118] sm:$0xff]
        %v5449 = vld [vmem:[#allocation14 + $0x120] sm:$0xff]
        %v5450 = vld [vmem:[#allocation14 + $0x128] sm:$0xff]
        %v5451 = vld [vmem:[#allocation14 + $0x130] sm:$0xff]
        %v5452 = vld [vmem:[#allocation14 + $0x138] sm:$0xff]
        %v5453 = vld [vmem:[#allocation14 + $0x140] sm:$0xff]
        %v5454 = vld [vmem:[#allocation14 + $0x148] sm:$0xff]
        %v5455 = vld [vmem:[#allocation14 + $0x150] sm:$0xff]
        %v5456 = vld [vmem:[#allocation14 + $0x158] sm:$0xff]
        %v5457 = vld [vmem:[#allocation14 + $0x160] sm:$0xff]
        %v5458 = vld [vmem:[#allocation14 + $0x168] sm:$0xff]
        %v5459 = vld [vmem:[#allocation14 + $0x170] sm:$0xff]
        %v5460 = vld [vmem:[#allocation14 + $0x178] sm:$0xff]
        %v5461 = vld [vmem:[#allocation14 + $0x180] sm:$0xff]
        %v5462 = vld [vmem:[#allocation14 + $0x188] sm:$0xff]
        %v5463 = vld [vmem:[#allocation14 + $0x190] sm:$0xff]
        %v5464 = vld [vmem:[#allocation14 + $0x198] sm:$0xff]
        %v5465 = vld [vmem:[#allocation14 + $0x1a0] sm:$0xff]
        %v5466 = vld [vmem:[#allocation14 + $0x1a8] sm:$0xff]
        %v5467 = vld [vmem:[#allocation14 + $0x1b0] sm:$0xff]
        %v5468 = vld [vmem:[#allocation14 + $0x1b8] sm:$0xff]
        %v5469 = vld [vmem:[#allocation14 + $0x1c0] sm:$0xff]
        %v5470 = vld [vmem:[#allocation14 + $0x1c8] sm:$0xff]
        %v5471 = vld [vmem:[#allocation14 + $0x1d0] sm:$0xff]
        %v5472 = vld [vmem:[#allocation14 + $0x1d8] sm:$0xff]
        %v5473 = vld [vmem:[#allocation14 + $0x1e0] sm:$0xff]
        %v5474 = vld [vmem:[#allocation14 + $0x1e8] sm:$0xff]
        %v5475 = vld [vmem:[#allocation14 + $0x1f0] sm:$0xff]
        %v5476 = vld [vmem:[#allocation14 + $0x1f8] sm:$0xff]
        %v5477 = vld [vmem:[#allocation14 + $0x200] sm:$0xff]
        %v5478 = vld [vmem:[#allocation14 + $0x208] sm:$0xff]
        %v5479 = vld [vmem:[#allocation14 + $0x210] sm:$0xff]
        %v5480 = vld [vmem:[#allocation14 + $0x218] sm:$0xff]
        %v5481 = vld [vmem:[#allocation14 + $0x220] sm:$0xff]
        %v5482 = vld [vmem:[#allocation14 + $0x228] sm:$0xff]
        %v5483 = vld [vmem:[#allocation14 + $0x230] sm:$0xff]
        %v5484 = vld [vmem:[#allocation14 + $0x238] sm:$0xff]
        %v5557 = vunpack.c.l.b16 %v5413
        %v5558 = vunpack.c.h.b16 %v5413
        %v5559 = vunpack.c.l.b16 %v5414
        %v5560 = vunpack.c.h.b16 %v5414
        %v5561 = vunpack.c.l.b16 %v5415
        %v5562 = vunpack.c.h.b16 %v5415
        %v5563 = vunpack.c.l.b16 %v5416
        %v5564 = vunpack.c.h.b16 %v5416
        %v5565 = vunpack.c.l.b16 %v5417
        %v5566 = vunpack.c.h.b16 %v5417
        %v5567 = vunpack.c.l.b16 %v5418
        %v5568 = vunpack.c.h.b16 %v5418
        %v5569 = vunpack.c.l.b16 %v5419
        %v5570 = vunpack.c.h.b16 %v5419
        %v5571 = vunpack.c.l.b16 %v5420
        %v5572 = vunpack.c.h.b16 %v5420
        %v5573 = vunpack.c.l.b16 %v5421
        %v5574 = vunpack.c.h.b16 %v5421
        %v5575 = vunpack.c.l.b16 %v5422
        %v5576 = vunpack.c.h.b16 %v5422
        %v5577 = vunpack.c.l.b16 %v5423
        %v5578 = vunpack.c.h.b16 %v5423
        %v5579 = vunpack.c.l.b16 %v5424
        %v5580 = vunpack.c.h.b16 %v5424
        %v5581 = vunpack.c.l.b16 %v5425
        %v5582 = vunpack.c.h.b16 %v5425
        %v5583 = vunpack.c.l.b16 %v5426
        %v5584 = vunpack.c.h.b16 %v5426
        %v5585 = vunpack.c.l.b16 %v5427
        %v5586 = vunpack.c.h.b16 %v5427
        %v5587 = vunpack.c.l.b16 %v5428
        %v5588 = vunpack.c.h.b16 %v5428
        %v5589 = vunpack.c.l.b16 %v5429
        %v5590 = vunpack.c.h.b16 %v5429
        %v5591 = vunpack.c.l.b16 %v5430
        %v5592 = vunpack.c.h.b16 %v5430
        %v5593 = vunpack.c.l.b16 %v5431
        %v5594 = vunpack.c.h.b16 %v5431
        %v5595 = vunpack.c.l.b16 %v5432
        %v5596 = vunpack.c.h.b16 %v5432
        %v5597 = vunpack.c.l.b16 %v5433
        %v5598 = vunpack.c.h.b16 %v5433
        %v5599 = vunpack.c.l.b16 %v5434
        %v5600 = vunpack.c.h.b16 %v5434
        %v5601 = vunpack.c.l.b16 %v5435
        %v5602 = vunpack.c.h.b16 %v5435
        %v5603 = vunpack.c.l.b16 %v5436
        %v5604 = vunpack.c.h.b16 %v5436
        %v5605 = vunpack.c.l.b16 %v5437
        %v5606 = vunpack.c.h.b16 %v5437
        %v5607 = vunpack.c.l.b16 %v5438
        %v5608 = vunpack.c.h.b16 %v5438
        %v5609 = vunpack.c.l.b16 %v5439
        %v5610 = vunpack.c.h.b16 %v5439
        %v5611 = vunpack.c.l.b16 %v5440
        %v5612 = vunpack.c.h.b16 %v5440
        %v5613 = vunpack.c.l.b16 %v5441
        %v5614 = vunpack.c.h.b16 %v5441
        %v5615 = vunpack.c.l.b16 %v5442
        %v5616 = vunpack.c.h.b16 %v5442
        %v5617 = vunpack.c.l.b16 %v5443
        %v5618 = vunpack.c.h.b16 %v5443
        %v5619 = vunpack.c.l.b16 %v5444
        %v5620 = vunpack.c.h.b16 %v5444
        %v5621 = vunpack.c.l.b16 %v5445
        %v5622 = vunpack.c.h.b16 %v5445
        %v5623 = vunpack.c.l.b16 %v5446
        %v5624 = vunpack.c.h.b16 %v5446
        %v5625 = vunpack.c.l.b16 %v5447
        %v5626 = vunpack.c.h.b16 %v5447
        %v5627 = vunpack.c.l.b16 %v5448
        %v5628 = vunpack.c.h.b16 %v5448
        %v5629 = vunpack.c.l.b16 %v5449
        %v5630 = vunpack.c.h.b16 %v5449
        %v5631 = vunpack.c.l.b16 %v5450
        %v5632 = vunpack.c.h.b16 %v5450
        %v5633 = vunpack.c.l.b16 %v5451
        %v5634 = vunpack.c.h.b16 %v5451
        %v5635 = vunpack.c.l.b16 %v5452
        %v5636 = vunpack.c.h.b16 %v5452
        %v5637 = vunpack.c.l.b16 %v5453
        %v5638 = vunpack.c.h.b16 %v5453
        %v5639 = vunpack.c.l.b16 %v5454
        %v5640 = vunpack.c.h.b16 %v5454
        %v5641 = vunpack.c.l.b16 %v5455
        %v5642 = vunpack.c.h.b16 %v5455
        %v5643 = vunpack.c.l.b16 %v5456
        %v5644 = vunpack.c.h.b16 %v5456
        %v5645 = vunpack.c.l.b16 %v5457
        %v5646 = vunpack.c.h.b16 %v5457
        %v5647 = vunpack.c.l.b16 %v5458
        %v5648 = vunpack.c.h.b16 %v5458
        %v5649 = vunpack.c.l.b16 %v5459
        %v5650 = vunpack.c.h.b16 %v5459
        %v5651 = vunpack.c.l.b16 %v5460
        %v5652 = vunpack.c.h.b16 %v5460
        %v5653 = vunpack.c.l.b16 %v5461
        %v5654 = vunpack.c.h.b16 %v5461
        %v5655 = vunpack.c.l.b16 %v5462
        %v5656 = vunpack.c.h.b16 %v5462
        %v5657 = vunpack.c.l.b16 %v5463
        %v5658 = vunpack.c.h.b16 %v5463
        %v5659 = vunpack.c.l.b16 %v5464
        %v5660 = vunpack.c.h.b16 %v5464
        %v5661 = vunpack.c.l.b16 %v5465
        %v5662 = vunpack.c.h.b16 %v5465
        %v5663 = vunpack.c.l.b16 %v5466
        %v5664 = vunpack.c.h.b16 %v5466
        %v5665 = vunpack.c.l.b16 %v5467
        %v5666 = vunpack.c.h.b16 %v5467
        %v5667 = vunpack.c.l.b16 %v5468
        %v5668 = vunpack.c.h.b16 %v5468
        %v5669 = vunpack.c.l.b16 %v5469
        %v5670 = vunpack.c.h.b16 %v5469
        %v5671 = vunpack.c.l.b16 %v5470
        %v5672 = vunpack.c.h.b16 %v5470
        %v5673 = vunpack.c.l.b16 %v5471
        %v5674 = vunpack.c.h.b16 %v5471
        %v5675 = vunpack.c.l.b16 %v5472
        %v5676 = vunpack.c.h.b16 %v5472
        %v5677 = vunpack.c.l.b16 %v5473
        %v5678 = vunpack.c.h.b16 %v5473
        %v5679 = vunpack.c.l.b16 %v5474
        %v5680 = vunpack.c.h.b16 %v5474
        %v5681 = vunpack.c.l.b16 %v5475
        %v5682 = vunpack.c.h.b16 %v5475
        %v5683 = vunpack.c.l.b16 %v5476
        %v5684 = vunpack.c.h.b16 %v5476
        %v5685 = vunpack.c.l.b16 %v5477
        %v5686 = vunpack.c.h.b16 %v5477
        %v5687 = vunpack.c.l.b16 %v5478
        %v5688 = vunpack.c.h.b16 %v5478
        %v5689 = vunpack.c.l.b16 %v5479
        %v5690 = vunpack.c.h.b16 %v5479
        %v5691 = vunpack.c.l.b16 %v5480
        %v5692 = vunpack.c.h.b16 %v5480
        %v5693 = vunpack.c.l.b16 %v5481
        %v5694 = vunpack.c.h.b16 %v5481
        %v5695 = vunpack.c.l.b16 %v5482
        %v5696 = vunpack.c.h.b16 %v5482
        %v5697 = vunpack.c.l.b16 %v5483
        %v5698 = vunpack.c.h.b16 %v5483
        %v5699 = vunpack.c.l.b16 %v5484
        %v5700 = vunpack.c.h.b16 %v5484
        %v5701 = vpack.c.b16 %v5575, %v5557
        %v5702 = vpack.c.b16 %v5576, %v5558
        %v5703 = vpack.c.b16 %v5577, %v5559
        %v5704 = vpack.c.b16 %v5578, %v5560
        %v5705 = vpack.c.b16 %v5579, %v5561
        %v5706 = vpack.c.b16 %v5580, %v5562
        %v5707 = vpack.c.b16 %v5581, %v5563
        %v5708 = vpack.c.b16 %v5582, %v5564
        %v5709 = vpack.c.b16 %v5583, %v5565
        %v5710 = vpack.c.b16 %v5584, %v5566
        %v5711 = vpack.c.b16 %v5585, %v5567
        %v5712 = vpack.c.b16 %v5586, %v5568
        %v5713 = vpack.c.b16 %v5587, %v5569
        %v5714 = vpack.c.b16 %v5588, %v5570
        %v5715 = vpack.c.b16 %v5589, %v5571
        %v5716 = vpack.c.b16 %v5590, %v5572
        %v5717 = vpack.c.b16 %v5591, %v5573
        %v5718 = vpack.c.b16 %v5592, %v5574
        %v5719 = vpack.c.b16 %v5611, %v5593
        %v5720 = vpack.c.b16 %v5612, %v5594
        %v5721 = vpack.c.b16 %v5613, %v5595
        %v5722 = vpack.c.b16 %v5614, %v5596
        %v5723 = vpack.c.b16 %v5615, %v5597
        %v5724 = vpack.c.b16 %v5616, %v5598
        %v5725 = vpack.c.b16 %v5617, %v5599
        %v5726 = vpack.c.b16 %v5618, %v5600
        %v5727 = vpack.c.b16 %v5619, %v5601
        %v5728 = vpack.c.b16 %v5620, %v5602
        %v5729 = vpack.c.b16 %v5621, %v5603
        %v5730 = vpack.c.b16 %v5622, %v5604
        %v5731 = vpack.c.b16 %v5623, %v5605
        %v5732 = vpack.c.b16 %v5624, %v5606
        %v5733 = vpack.c.b16 %v5625, %v5607
        %v5734 = vpack.c.b16 %v5626, %v5608
        %v5735 = vpack.c.b16 %v5627, %v5609
        %v5736 = vpack.c.b16 %v5628, %v5610
        %v5737 = vpack.c.b16 %v5647, %v5629
        %v5738 = vpack.c.b16 %v5648, %v5630
        %v5739 = vpack.c.b16 %v5649, %v5631
        %v5740 = vpack.c.b16 %v5650, %v5632
        %v5741 = vpack.c.b16 %v5651, %v5633
        %v5742 = vpack.c.b16 %v5652, %v5634
        %v5743 = vpack.c.b16 %v5653, %v5635
        %v5744 = vpack.c.b16 %v5654, %v5636
        %v5745 = vpack.c.b16 %v5655, %v5637
        %v5746 = vpack.c.b16 %v5656, %v5638
        %v5747 = vpack.c.b16 %v5657, %v5639
        %v5748 = vpack.c.b16 %v5658, %v5640
        %v5749 = vpack.c.b16 %v5659, %v5641
        %v5750 = vpack.c.b16 %v5660, %v5642
        %v5751 = vpack.c.b16 %v5661, %v5643
        %v5752 = vpack.c.b16 %v5662, %v5644
        %v5753 = vpack.c.b16 %v5663, %v5645
        %v5754 = vpack.c.b16 %v5664, %v5646
        %v5755 = vpack.c.b16 %v5683, %v5665
        %v5756 = vpack.c.b16 %v5684, %v5666
        %v5757 = vpack.c.b16 %v5685, %v5667
        %v5758 = vpack.c.b16 %v5686, %v5668
        %v5759 = vpack.c.b16 %v5687, %v5669
        %v5760 = vpack.c.b16 %v5688, %v5670
        %v5761 = vpack.c.b16 %v5689, %v5671
        %v5762 = vpack.c.b16 %v5690, %v5672
        %v5763 = vpack.c.b16 %v5691, %v5673
        %v5764 = vpack.c.b16 %v5692, %v5674
        %v5765 = vpack.c.b16 %v5693, %v5675
        %v5766 = vpack.c.b16 %v5694, %v5676
        %v5767 = vpack.c.b16 %v5695, %v5677
        %v5768 = vpack.c.b16 %v5696, %v5678
        %v5769 = vpack.c.b16 %v5697, %v5679
        %v5770 = vpack.c.b16 %v5698, %v5680
        %v5771 = vpack.c.b16 %v5699, %v5681
        %v5772 = vpack.c.b16 %v5700, %v5682
        %v5846 = vsel %vm4116, %v5412, 0
        %5848 = vmatprep.subr.bf16.mxu0 %v5702
        %5849 = vmatpush1.bf16.msra.mxu0 %v5701
        %5850 = vmatprep.subr.bf16.mxu0 %v5720
        %5851 = vmatpush1.bf16.msra.mxu0 %v5719
        %5852 = vmatprep.subr.bf16.mxu0 %v5738
        %5853 = vmatpush1.bf16.msra.mxu0 %v5737
        %5854 = vmatprep.subr.bf16.mxu0 %v5756
        %5855 = vmatpush1.bf16.msra.mxu0 %v5755
        %5856 = vmatprep.subr.bf16.mxu0 0
        %5857 = vmatpush1.bf16.msra.mxu0 0
        %5858 = vmatprep.subr.bf16.mxu0 0
        %5859 = vmatpush1.bf16.msra.mxu0 0
        %5860 = vmatprep.subr.bf16.mxu0 0
        %5861 = vmatpush1.bf16.msra.mxu0 0
        %5862 = vmatprep.subr.bf16.mxu0 0
        %5863 = vmatpush1.bf16.msra.mxu0 0
        %5864 = vmatprep.subr.bf16.mxu0 0
        %5865 = vmatpush1.bf16.msra.mxu0 0
        %5866 = vmatprep.subr.bf16.mxu0 0
        %5867 = vmatpush1.bf16.msra.mxu0 0
        %5868 = vmatprep.subr.bf16.mxu0 0
        %5869 = vmatpush1.bf16.msra.mxu0 0
        %5870 = vmatprep.subr.bf16.mxu0 0
        %5871 = vmatpush1.bf16.msra.mxu0 0
        %5872 = vmatprep.subr.bf16.mxu0 0
        %5873 = vmatpush1.bf16.msra.mxu0 0
        %5874 = vmatprep.subr.bf16.mxu0 0
        %5875 = vmatpush1.bf16.msra.mxu0 0
        %5876 = vmatprep.subr.bf16.mxu0 0
        %5877 = vmatpush1.bf16.msra.mxu0 0
        %5878 = vmatprep.subr.bf16.mxu0 0
        %5879 = vmatpush1.bf16.msra.mxu0 0
        %5880 = vmatprep.mubr.bf16.mxu0 0
        %5881 = vmatmul.mubr.bf16.gmra.mrb[0].mxu0 %v5846
        %v5882 = vpop.f32.mrb[0].mxu0
        %v5883 = vadd.f32 0.0, %v5882
        %v5884 = vpop.f32.mrb[0].mxu0
        %v5885 = vadd.f32 0.0, %v5884
        %v5886 = vpop.f32.mrb[0].mxu0
        %v5887 = vadd.f32 0.0, %v5886
        %v5888 = vpop.f32.mrb[0].mxu0
        %v5889 = vadd.f32 0.0, %v5888
        %5890 = vdwg.mxu0
        %5891 = vmatprep.subr.bf16.mxu0 %v5704
        %5892 = vmatpush1.bf16.msra.mxu0 %v5703
        %5893 = vmatprep.subr.bf16.mxu0 %v5722
        %5894 = vmatpush1.bf16.msra.mxu0 %v5721
        %5895 = vmatprep.subr.bf16.mxu0 %v5740
        %5896 = vmatpush1.bf16.msra.mxu0 %v5739
        %5897 = vmatprep.subr.bf16.mxu0 %v5758
        %5898 = vmatpush1.bf16.msra.mxu0 %v5757
        %5899 = vmatprep.subr.bf16.mxu0 0
        %5900 = vmatpush1.bf16.msra.mxu0 0
        %5901 = vmatprep.subr.bf16.mxu0 0
        %5902 = vmatpush1.bf16.msra.mxu0 0
        %5903 = vmatprep.subr.bf16.mxu0 0
        %5904 = vmatpush1.bf16.msra.mxu0 0
        %5905 = vmatprep.subr.bf16.mxu0 0
        %5906 = vmatpush1.bf16.msra.mxu0 0
        %5907 = vmatprep.subr.bf16.mxu0 0
        %5908 = vmatpush1.bf16.msra.mxu0 0
        %5909 = vmatprep.subr.bf16.mxu0 0
        %5910 = vmatpush1.bf16.msra.mxu0 0
        %5911 = vmatprep.subr.bf16.mxu0 0
        %5912 = vmatpush1.bf16.msra.mxu0 0
        %5913 = vmatprep.subr.bf16.mxu0 0
        %5914 = vmatpush1.bf16.msra.mxu0 0
        %5915 = vmatprep.subr.bf16.mxu0 0
        %5916 = vmatpush1.bf16.msra.mxu0 0
        %5917 = vmatprep.subr.bf16.mxu0 0
        %5918 = vmatpush1.bf16.msra.mxu0 0
        %5919 = vmatprep.subr.bf16.mxu0 0
        %5920 = vmatpush1.bf16.msra.mxu0 0
        %5921 = vmatprep.subr.bf16.mxu0 0
        %5922 = vmatpush1.bf16.msra.mxu0 0
        %5923 = vmatprep.mubr.bf16.mxu0 0
        %5924 = vmatmul.mubr.bf16.gmra.mrb[0].mxu0 %v5846
        %v5925 = vpop.f32.mrb[0].mxu0
        %v5926 = vadd.f32 0.0, %v5925
        %v5927 = vpop.f32.mrb[0].mxu0
        %v5928 = vadd.f32 0.0, %v5927
        %v5929 = vpop.f32.mrb[0].mxu0
        %v5930 = vadd.f32 0.0, %v5929
        %v5931 = vpop.f32.mrb[0].mxu0
        %v5932 = vadd.f32 0.0, %v5931
        %5933 = vdwg.mxu0
        %5934 = vmatprep.subr.bf16.mxu0 %v5706
        %5935 = vmatpush1.bf16.msra.mxu0 %v5705
        %5936 = vmatprep.subr.bf16.mxu0 %v5724
        %5937 = vmatpush1.bf16.msra.mxu0 %v5723
        %5938 = vmatprep.subr.bf16.mxu0 %v5742
        %5939 = vmatpush1.bf16.msra.mxu0 %v5741
        %5940 = vmatprep.subr.bf16.mxu0 %v5760
        %5941 = vmatpush1.bf16.msra.mxu0 %v5759
        %5942 = vmatprep.subr.bf16.mxu0 0
        %5943 = vmatpush1.bf16.msra.mxu0 0
        %5944 = vmatprep.subr.bf16.mxu0 0
        %5945 = vmatpush1.bf16.msra.mxu0 0
        %5946 = vmatprep.subr.bf16.mxu0 0
        %5947 = vmatpush1.bf16.msra.mxu0 0
        %5948 = vmatprep.subr.bf16.mxu0 0
        %5949 = vmatpush1.bf16.msra.mxu0 0
        %5950 = vmatprep.subr.bf16.mxu0 0
        %5951 = vmatpush1.bf16.msra.mxu0 0
        %5952 = vmatprep.subr.bf16.mxu0 0
        %5953 = vmatpush1.bf16.msra.mxu0 0
        %5954 = vmatprep.subr.bf16.mxu0 0
        %5955 = vmatpush1.bf16.msra.mxu0 0
        %5956 = vmatprep.subr.bf16.mxu0 0
        %5957 = vmatpush1.bf16.msra.mxu0 0
        %5958 = vmatprep.subr.bf16.mxu0 0
        %5959 = vmatpush1.bf16.msra.mxu0 0
        %5960 = vmatprep.subr.bf16.mxu0 0
        %5961 = vmatpush1.bf16.msra.mxu0 0
        %5962 = vmatprep.subr.bf16.mxu0 0
        %5963 = vmatpush1.bf16.msra.mxu0 0
        %5964 = vmatprep.subr.bf16.mxu0 0
        %5965 = vmatpush1.bf16.msra.mxu0 0
        %5966 = vmatprep.mubr.bf16.mxu0 0
        %5967 = vmatmul.mubr.bf16.gmra.mrb[0].mxu0 %v5846
        %v5968 = vpop.f32.mrb[0].mxu0
        %v5969 = vadd.f32 0.0, %v5968
        %v5970 = vpop.f32.mrb[0].mxu0
        %v5971 = vadd.f32 0.0, %v5970
        %v5972 = vpop.f32.mrb[0].mxu0
        %v5973 = vadd.f32 0.0, %v5972
        %v5974 = vpop.f32.mrb[0].mxu0
        %v5975 = vadd.f32 0.0, %v5974
        %5976 = vdwg.mxu0
        %5977 = vmatprep.subr.bf16.mxu0 %v5708
        %5978 = vmatpush1.bf16.msra.mxu0 %v5707
        %5979 = vmatprep.subr.bf16.mxu0 %v5726
        %5980 = vmatpush1.bf16.msra.mxu0 %v5725
        %5981 = vmatprep.subr.bf16.mxu0 %v5744
        %5982 = vmatpush1.bf16.msra.mxu0 %v5743
        %5983 = vmatprep.subr.bf16.mxu0 %v5762
        %5984 = vmatpush1.bf16.msra.mxu0 %v5761
        %5985 = vmatprep.subr.bf16.mxu0 0
        %5986 = vmatpush1.bf16.msra.mxu0 0
        %5987 = vmatprep.subr.bf16.mxu0 0
        %5988 = vmatpush1.bf16.msra.mxu0 0
        %5989 = vmatprep.subr.bf16.mxu0 0
        %5990 = vmatpush1.bf16.msra.mxu0 0
        %5991 = vmatprep.subr.bf16.mxu0 0
        %5992 = vmatpush1.bf16.msra.mxu0 0
        %5993 = vmatprep.subr.bf16.mxu0 0
        %5994 = vmatpush1.bf16.msra.mxu0 0
        %5995 = vmatprep.subr.bf16.mxu0 0
        %5996 = vmatpush1.bf16.msra.mxu0 0
        %5997 = vmatprep.subr.bf16.mxu0 0
        %5998 = vmatpush1.bf16.msra.mxu0 0
        %5999 = vmatprep.subr.bf16.mxu0 0
        %6000 = vmatpush1.bf16.msra.mxu0 0
        %6001 = vmatprep.subr.bf16.mxu0 0
        %6002 = vmatpush1.bf16.msra.mxu0 0
        %6003 = vmatprep.subr.bf16.mxu0 0
        %6004 = vmatpush1.bf16.msra.mxu0 0
        %6005 = vmatprep.subr.bf16.mxu0 0
        %6006 = vmatpush1.bf16.msra.mxu0 0
        %6007 = vmatprep.subr.bf16.mxu0 0
        %6008 = vmatpush1.bf16.msra.mxu0 0
        %6009 = vmatprep.mubr.bf16.mxu0 0
        %6010 = vmatmul.mubr.bf16.gmra.mrb[0].mxu0 %v5846
        %v6011 = vpop.f32.mrb[0].mxu0
        %v6012 = vadd.f32 0.0, %v6011
        %v6013 = vpop.f32.mrb[0].mxu0
        %v6014 = vadd.f32 0.0, %v6013
        %v6015 = vpop.f32.mrb[0].mxu0
        %v6016 = vadd.f32 0.0, %v6015
        %v6017 = vpop.f32.mrb[0].mxu0
        %v6018 = vadd.f32 0.0, %v6017
        %6019 = vdwg.mxu0
        %6020 = vmatprep.subr.bf16.mxu0 %v5710
        %6021 = vmatpush1.bf16.msra.mxu0 %v5709
        %6022 = vmatprep.subr.bf16.mxu0 %v5728
        %6023 = vmatpush1.bf16.msra.mxu0 %v5727
        %6024 = vmatprep.subr.bf16.mxu0 %v5746
        %6025 = vmatpush1.bf16.msra.mxu0 %v5745
        %6026 = vmatprep.subr.bf16.mxu0 %v5764
        %6027 = vmatpush1.bf16.msra.mxu0 %v5763
        %6028 = vmatprep.subr.bf16.mxu0 0
        %6029 = vmatpush1.bf16.msra.mxu0 0
        %6030 = vmatprep.subr.bf16.mxu0 0
        %6031 = vmatpush1.bf16.msra.mxu0 0
        %6032 = vmatprep.subr.bf16.mxu0 0
        %6033 = vmatpush1.bf16.msra.mxu0 0
        %6034 = vmatprep.subr.bf16.mxu0 0
        %6035 = vmatpush1.bf16.msra.mxu0 0
        %6036 = vmatprep.subr.bf16.mxu0 0
        %6037 = vmatpush1.bf16.msra.mxu0 0
        %6038 = vmatprep.subr.bf16.mxu0 0
        %6039 = vmatpush1.bf16.msra.mxu0 0
        %6040 = vmatprep.subr.bf16.mxu0 0
        %6041 = vmatpush1.bf16.msra.mxu0 0
        %6042 = vmatprep.subr.bf16.mxu0 0
        %6043 = vmatpush1.bf16.msra.mxu0 0
        %6044 = vmatprep.subr.bf16.mxu0 0
        %6045 = vmatpush1.bf16.msra.mxu0 0
        %6046 = vmatprep.subr.bf16.mxu0 0
        %6047 = vmatpush1.bf16.msra.mxu0 0
        %6048 = vmatprep.subr.bf16.mxu0 0
        %6049 = vmatpush1.bf16.msra.mxu0 0
        %6050 = vmatprep.subr.bf16.mxu0 0
        %6051 = vmatpush1.bf16.msra.mxu0 0
        %6052 = vmatprep.mubr.bf16.mxu0 0
        %6053 = vmatmul.mubr.bf16.gmra.mrb[0].mxu0 %v5846
        %v6054 = vpop.f32.mrb[0].mxu0
        %v6055 = vadd.f32 0.0, %v6054
        %v6056 = vpop.f32.mrb[0].mxu0
        %v6057 = vadd.f32 0.0, %v6056
        %v6058 = vpop.f32.mrb[0].mxu0
        %v6059 = vadd.f32 0.0, %v6058
        %v6060 = vpop.f32.mrb[0].mxu0
        %v6061 = vadd.f32 0.0, %v6060
        %6062 = vdwg.mxu0
        %6063 = vmatprep.subr.bf16.mxu0 %v5712
        %6064 = vmatpush1.bf16.msra.mxu0 %v5711
        %6065 = vmatprep.subr.bf16.mxu0 %v5730
        %6066 = vmatpush1.bf16.msra.mxu0 %v5729
        %6067 = vmatprep.subr.bf16.mxu0 %v5748
        %6068 = vmatpush1.bf16.msra.mxu0 %v5747
        %6069 = vmatprep.subr.bf16.mxu0 %v5766
        %6070 = vmatpush1.bf16.msra.mxu0 %v5765
        %6071 = vmatprep.subr.bf16.mxu0 0
        %6072 = vmatpush1.bf16.msra.mxu0 0
        %6073 = vmatprep.subr.bf16.mxu0 0
        %6074 = vmatpush1.bf16.msra.mxu0 0
        %6075 = vmatprep.subr.bf16.mxu0 0
        %6076 = vmatpush1.bf16.msra.mxu0 0
        %6077 = vmatprep.subr.bf16.mxu0 0
        %6078 = vmatpush1.bf16.msra.mxu0 0
        %6079 = vmatprep.subr.bf16.mxu0 0
        %6080 = vmatpush1.bf16.msra.mxu0 0
        %6081 = vmatprep.subr.bf16.mxu0 0
        %6082 = vmatpush1.bf16.msra.mxu0 0
        %6083 = vmatprep.subr.bf16.mxu0 0
        %6084 = vmatpush1.bf16.msra.mxu0 0
        %6085 = vmatprep.subr.bf16.mxu0 0
        %6086 = vmatpush1.bf16.msra.mxu0 0
        %6087 = vmatprep.subr.bf16.mxu0 0
        %6088 = vmatpush1.bf16.msra.mxu0 0
        %6089 = vmatprep.subr.bf16.mxu0 0
        %6090 = vmatpush1.bf16.msra.mxu0 0
        %6091 = vmatprep.subr.bf16.mxu0 0
        %6092 = vmatpush1.bf16.msra.mxu0 0
        %6093 = vmatprep.subr.bf16.mxu0 0
        %6094 = vmatpush1.bf16.msra.mxu0 0
        %6095 = vmatprep.mubr.bf16.mxu0 0
        %6096 = vmatmul.mubr.bf16.gmra.mrb[0].mxu0 %v5846
        %v6097 = vpop.f32.mrb[0].mxu0
        %v6098 = vadd.f32 0.0, %v6097
        %v6099 = vpop.f32.mrb[0].mxu0
        %v6100 = vadd.f32 0.0, %v6099
        %v6101 = vpop.f32.mrb[0].mxu0
        %v6102 = vadd.f32 0.0, %v6101
        %v6103 = vpop.f32.mrb[0].mxu0
        %v6104 = vadd.f32 0.0, %v6103
        %6105 = vdwg.mxu0
        %6106 = vmatprep.subr.bf16.mxu0 %v5714
        %6107 = vmatpush1.bf16.msra.mxu0 %v5713
        %6108 = vmatprep.subr.bf16.mxu0 %v5732
        %6109 = vmatpush1.bf16.msra.mxu0 %v5731
        %6110 = vmatprep.subr.bf16.mxu0 %v5750
        %6111 = vmatpush1.bf16.msra.mxu0 %v5749
        %6112 = vmatprep.subr.bf16.mxu0 %v5768
        %6113 = vmatpush1.bf16.msra.mxu0 %v5767
        %6114 = vmatprep.subr.bf16.mxu0 0
        %6115 = vmatpush1.bf16.msra.mxu0 0
        %6116 = vmatprep.subr.bf16.mxu0 0
        %6117 = vmatpush1.bf16.msra.mxu0 0
        %6118 = vmatprep.subr.bf16.mxu0 0
        %6119 = vmatpush1.bf16.msra.mxu0 0
        %6120 = vmatprep.subr.bf16.mxu0 0
        %6121 = vmatpush1.bf16.msra.mxu0 0
        %6122 = vmatprep.subr.bf16.mxu0 0
        %6123 = vmatpush1.bf16.msra.mxu0 0
        %6124 = vmatprep.subr.bf16.mxu0 0
        %6125 = vmatpush1.bf16.msra.mxu0 0
        %6126 = vmatprep.subr.bf16.mxu0 0
        %6127 = vmatpush1.bf16.msra.mxu0 0
        %6128 = vmatprep.subr.bf16.mxu0 0
        %6129 = vmatpush1.bf16.msra.mxu0 0
        %6130 = vmatprep.subr.bf16.mxu0 0
        %6131 = vmatpush1.bf16.msra.mxu0 0
        %6132 = vmatprep.subr.bf16.mxu0 0
        %6133 = vmatpush1.bf16.msra.mxu0 0
        %6134 = vmatprep.subr.bf16.mxu0 0
        %6135 = vmatpush1.bf16.msra.mxu0 0
        %6136 = vmatprep.subr.bf16.mxu0 0
        %6137 = vmatpush1.bf16.msra.mxu0 0
        %6138 = vmatprep.mubr.bf16.mxu0 0
        %6139 = vmatmul.mubr.bf16.gmra.mrb[0].mxu0 %v5846
        %v6140 = vpop.f32.mrb[0].mxu0
        %v6141 = vadd.f32 0.0, %v6140
        %v6142 = vpop.f32.mrb[0].mxu0
        %v6143 = vadd.f32 0.0, %v6142
        %v6144 = vpop.f32.mrb[0].mxu0
        %v6145 = vadd.f32 0.0, %v6144
        %v6146 = vpop.f32.mrb[0].mxu0
        %v6147 = vadd.f32 0.0, %v6146
        %6148 = vdwg.mxu0
        %6149 = vmatprep.subr.bf16.mxu0 %v5716
        %6150 = vmatpush1.bf16.msra.mxu0 %v5715
        %6151 = vmatprep.subr.bf16.mxu0 %v5734
        %6152 = vmatpush1.bf16.msra.mxu0 %v5733
        %6153 = vmatprep.subr.bf16.mxu0 %v5752
        %6154 = vmatpush1.bf16.msra.mxu0 %v5751
        %6155 = vmatprep.subr.bf16.mxu0 %v5770
        %6156 = vmatpush1.bf16.msra.mxu0 %v5769
        %6157 = vmatprep.subr.bf16.mxu0 0
        %6158 = vmatpush1.bf16.msra.mxu0 0
        %6159 = vmatprep.subr.bf16.mxu0 0
        %6160 = vmatpush1.bf16.msra.mxu0 0
        %6161 = vmatprep.subr.bf16.mxu0 0
        %6162 = vmatpush1.bf16.msra.mxu0 0
        %6163 = vmatprep.subr.bf16.mxu0 0
        %6164 = vmatpush1.bf16.msra.mxu0 0
        %6165 = vmatprep.subr.bf16.mxu0 0
        %6166 = vmatpush1.bf16.msra.mxu0 0
        %6167 = vmatprep.subr.bf16.mxu0 0
        %6168 = vmatpush1.bf16.msra.mxu0 0
        %6169 = vmatprep.subr.bf16.mxu0 0
        %6170 = vmatpush1.bf16.msra.mxu0 0
        %6171 = vmatprep.subr.bf16.mxu0 0
        %6172 = vmatpush1.bf16.msra.mxu0 0
        %6173 = vmatprep.subr.bf16.mxu0 0
        %6174 = vmatpush1.bf16.msra.mxu0 0
        %6175 = vmatprep.subr.bf16.mxu0 0
        %6176 = vmatpush1.bf16.msra.mxu0 0
        %6177 = vmatprep.subr.bf16.mxu0 0
        %6178 = vmatpush1.bf16.msra.mxu0 0
        %6179 = vmatprep.subr.bf16.mxu0 0
        %6180 = vmatpush1.bf16.msra.mxu0 0
        %6181 = vmatprep.mubr.bf16.mxu0 0
        %6182 = vmatmul.mubr.bf16.gmra.mrb[0].mxu0 %v5846
        %v6183 = vpop.f32.mrb[0].mxu0
        %v6184 = vadd.f32 0.0, %v6183
        %v6185 = vpop.f32.mrb[0].mxu0
        %v6186 = vadd.f32 0.0, %v6185
        %v6187 = vpop.f32.mrb[0].mxu0
        %v6188 = vadd.f32 0.0, %v6187
        %v6189 = vpop.f32.mrb[0].mxu0
        %v6190 = vadd.f32 0.0, %v6189
        %6191 = vdwg.mxu0
        %6192 = vmatprep.subr.bf16.mxu0 %v5718
        %6193 = vmatpush1.bf16.msra.mxu0 %v5717
        %6194 = vmatprep.subr.bf16.mxu0 %v5736
        %6195 = vmatpush1.bf16.msra.mxu0 %v5735
        %6196 = vmatprep.subr.bf16.mxu0 %v5754
        %6197 = vmatpush1.bf16.msra.mxu0 %v5753
        %6198 = vmatprep.subr.bf16.mxu0 %v5772
        %6199 = vmatpush1.bf16.msra.mxu0 %v5771
        %6200 = vmatprep.subr.bf16.mxu0 0
        %6201 = vmatpush1.bf16.msra.mxu0 0
        %6202 = vmatprep.subr.bf16.mxu0 0
        %6203 = vmatpush1.bf16.msra.mxu0 0
        %6204 = vmatprep.subr.bf16.mxu0 0
        %6205 = vmatpush1.bf16.msra.mxu0 0
        %6206 = vmatprep.subr.bf16.mxu0 0
        %6207 = vmatpush1.bf16.msra.mxu0 0
        %6208 = vmatprep.subr.bf16.mxu0 0
        %6209 = vmatpush1.bf16.msra.mxu0 0
        %6210 = vmatprep.subr.bf16.mxu0 0
        %6211 = vmatpush1.bf16.msra.mxu0 0
        %6212 = vmatprep.subr.bf16.mxu0 0
        %6213 = vmatpush1.bf16.msra.mxu0 0
        %6214 = vmatprep.subr.bf16.mxu0 0
        %6215 = vmatpush1.bf16.msra.mxu0 0
        %6216 = vmatprep.subr.bf16.mxu0 0
        %6217 = vmatpush1.bf16.msra.mxu0 0
        %6218 = vmatprep.subr.bf16.mxu0 0
        %6219 = vmatpush1.bf16.msra.mxu0 0
        %6220 = vmatprep.subr.bf16.mxu0 0
        %6221 = vmatpush1.bf16.msra.mxu0 0
        %6222 = vmatprep.subr.bf16.mxu0 0
        %6223 = vmatpush1.bf16.msra.mxu0 0
        %6224 = vmatprep.mubr.bf16.mxu0 0
        %6225 = vmatmul.mubr.bf16.gmra.mrb[0].mxu0 %v5846
        %v6226 = vpop.f32.mrb[0].mxu0
        %v6227 = vadd.f32 0.0, %v6226
        %v6228 = vpop.f32.mrb[0].mxu0
        %v6229 = vadd.f32 0.0, %v6228
        %v6230 = vpop.f32.mrb[0].mxu0
        %v6231 = vadd.f32 0.0, %v6230
        %v6232 = vpop.f32.mrb[0].mxu0
        %v6233 = vadd.f32 0.0, %v6232
        %6234 = vdwg.mxu0
        %v6235 = vld [vmem:[#allocation24] sm:$0xff]
        %v6236 = vpack.c.bf16 %v5887, %v5883
        %v6237 = vpack.c.bf16 %v5889, %v5885
        %v6238 = vpack.c.bf16 %v5930, %v5926
        %v6239 = vpack.c.bf16 %v5932, %v5928
        %v6240 = vpack.c.bf16 %v5973, %v5969
        %v6241 = vpack.c.bf16 %v5975, %v5971
        %v6242 = vpack.c.bf16 %v6016, %v6012
        %v6243 = vpack.c.bf16 %v6018, %v6014
        %v6244 = vpack.c.bf16 %v6059, %v6055
        %v6245 = vpack.c.bf16 %v6061, %v6057
        %v6246 = vpack.c.bf16 %v6102, %v6098
        %v6247 = vpack.c.bf16 %v6104, %v6100
        %v6248 = vpack.c.bf16 %v6145, %v6141
        %v6249 = vpack.c.bf16 %v6147, %v6143
        %v6250 = vpack.c.bf16 %v6188, %v6184
        %v6251 = vpack.c.bf16 %v6190, %v6186
        %v6252 = vpack.c.bf16 %v6231, %v6227
        %v6253 = vpack.c.bf16 %v6233, %v6229
        %v6254 = vld [vmem:[%s24] sm:$0xff]
        %6256 = vset.pattern.permute.xlu0 0
        %6257 = vperm.xlu0 %6256, %v6254
        %v6258 = vpop.permute.xlu0 %6257
        %v6261 = vunpack.c.l.b16 %v6235
        %v6262 = vunpack.c.h.b16 %v6235
        %v6263 = vpack.c.b16 %v6261, %v6261
        %v6264 = vpack.c.b16 %v6262, %v6262
        %v6267 = vsel %vm4262, %v6264, 0
        %6269 = vmatprep.subr.bf16.mxu0 %v6237
        %6270 = vmatpush1.bf16.msra.mxu0 %v6236
        %6271 = vmatprep.subr.bf16.mxu0 %v6239
        %6272 = vmatpush1.bf16.msra.mxu0 %v6238
        %6273 = vmatprep.subr.bf16.mxu0 %v6241
        %6274 = vmatpush1.bf16.msra.mxu0 %v6240
        %6275 = vmatprep.subr.bf16.mxu0 %v6243
        %6276 = vmatpush1.bf16.msra.mxu0 %v6242
        %6277 = vmatprep.subr.bf16.mxu0 %v6245
        %6278 = vmatpush1.bf16.msra.mxu0 %v6244
        %6279 = vmatprep.subr.bf16.mxu0 %v6247
        %6280 = vmatpush1.bf16.msra.mxu0 %v6246
        %6281 = vmatprep.subr.bf16.mxu0 %v6249
        %6282 = vmatpush1.bf16.msra.mxu0 %v6248
        %6283 = vmatprep.subr.bf16.mxu0 %v6251
        %6284 = vmatpush1.bf16.msra.mxu0 %v6250
        %6285 = vmatprep.subr.bf16.mxu0 %v6253
        %6286 = vmatpush1.bf16.msra.mxu0 %v6252
        %6287 = vmatprep.subr.bf16.mxu0 0
        %6288 = vmatpush1.bf16.msra.mxu0 0
        %6289 = vmatprep.subr.bf16.mxu0 0
        %6290 = vmatpush1.bf16.msra.mxu0 0
        %6291 = vmatprep.subr.bf16.mxu0 0
        %6292 = vmatpush1.bf16.msra.mxu0 0
        %6293 = vmatprep.subr.bf16.mxu0 0
        %6294 = vmatpush1.bf16.msra.mxu0 0
        %6295 = vmatprep.subr.bf16.mxu0 0
        %6296 = vmatpush1.bf16.msra.mxu0 0
        %6297 = vmatprep.subr.bf16.mxu0 0
        %6298 = vmatpush1.bf16.msra.mxu0 0
        %6299 = vmatprep.subr.bf16.mxu0 0
        %6300 = vmatpush1.bf16.msra.mxu0 0
        %6301 = vmatprep.mubr.bf16.mxu0 %v6267
        %6302 = vmatmul.mubr.bf16.gmra.mrb[0].mxu0 %v6263
        %v6303 = vpop.f32.mrb[0].mxu0
        %v6304 = vadd.f32 %v6258, %v6303
        %v6305 = vpop.f32.mrb[0].mxu0
        %v6306 = vadd.f32 %v6258, %v6305
        %v6307 = vpop.f32.mrb[0].mxu0
        %v6308 = vpop.f32.mrb[0].mxu0
        %6309 = vdwg.mxu0
        %v6310 = vmax.f32 %v6304, 0.0
        %v6311 = vmax.f32 %v6306, 0.0
        %v6312 = vpack.c.bf16 %v6310, %v6310
        %v6313 = vpack.c.bf16 %v6311, %v6311
        %6314 = vmatprep.subr.bf16.mxu0 %v2212
        %6315 = vmatpush1.bf16.msra.mxu0 %v2211
        %6316 = vmatprep.subr.bf16.mxu0 %v2230
        %6317 = vmatpush1.bf16.msra.mxu0 %v2229
        %6318 = vmatprep.subr.bf16.mxu0 %v2248
        %6319 = vmatpush1.bf16.msra.mxu0 %v2247
        %6320 = vmatprep.subr.bf16.mxu0 %v2266
        %6321 = vmatpush1.bf16.msra.mxu0 %v2265
        %6322 = vmatprep.subr.bf16.mxu0 %v2284
        %6323 = vmatpush1.bf16.msra.mxu0 %v2283
        %6324 = vmatprep.subr.bf16.mxu0 %v2302
        %6325 = vmatpush1.bf16.msra.mxu0 %v2301
        %6326 = vmatprep.subr.bf16.mxu0 %v2320
        %6327 = vmatpush1.bf16.msra.mxu0 %v2319
        %6328 = vmatprep.subr.bf16.mxu0 %v2338
        %6329 = vmatpush1.bf16.msra.mxu0 %v2337
        %6330 = vmatprep.subr.bf16.mxu0 %v2356
        %6331 = vmatpush1.bf16.msra.mxu0 %v2355
        %6332 = vmatprep.subr.bf16.mxu0 %v2374
        %6333 = vmatpush1.bf16.msra.mxu0 %v2373
        %6334 = vmatprep.subr.bf16.mxu0 %v2392
        %6335 = vmatpush1.bf16.msra.mxu0 %v2391
        %6336 = vmatprep.subr.bf16.mxu0 %v2410
        %6337 = vmatpush1.bf16.msra.mxu0 %v2409
        %6338 = vmatprep.subr.bf16.mxu0 %v2428
        %6339 = vmatpush1.bf16.msra.mxu0 %v2427
        %6340 = vmatprep.subr.bf16.mxu0 %v2446
        %6341 = vmatpush1.bf16.msra.mxu0 %v2445
        %6342 = vmatprep.subr.bf16.mxu0 %v2464
        %6343 = vmatpush1.bf16.msra.mxu0 %v2463
        %6344 = vmatprep.subr.bf16.mxu0 %v2482
        %6345 = vmatpush1.bf16.msra.mxu0 %v2481
        %6346 = vmatprep.mubr.bf16.mxu0 %v6313
        %6347 = vmatmul.mubr.bf16.gmra.mrb[0].mxu0 %v6312
        %v6348 = vpop.f32.mrb[0].mxu0
        %v6349 = vadd.f32 0.0, %v6348
        %v6350 = vpop.f32.mrb[0].mxu0
        %v6351 = vadd.f32 0.0, %v6350
        %v6352 = vpop.f32.mrb[0].mxu0
        %v6353 = vpop.f32.mrb[0].mxu0
        %6354 = vdwg.mxu0
        %6355 = vmatprep.subr.bf16.mxu0 %v2214
        %6356 = vmatpush1.bf16.msra.mxu0 %v2213
        %6357 = vmatprep.subr.bf16.mxu0 %v2232
        %6358 = vmatpush1.bf16.msra.mxu0 %v2231
        %6359 = vmatprep.subr.bf16.mxu0 %v2250
        %6360 = vmatpush1.bf16.msra.mxu0 %v2249
        %6361 = vmatprep.subr.bf16.mxu0 %v2268
        %6362 = vmatpush1.bf16.msra.mxu0 %v2267
        %6363 = vmatprep.subr.bf16.mxu0 %v2286
        %6364 = vmatpush1.bf16.msra.mxu0 %v2285
        %6365 = vmatprep.subr.bf16.mxu0 %v2304
        %6366 = vmatpush1.bf16.msra.mxu0 %v2303
        %6367 = vmatprep.subr.bf16.mxu0 %v2322
        %6368 = vmatpush1.bf16.msra.mxu0 %v2321
        %6369 = vmatprep.subr.bf16.mxu0 %v2340
        %6370 = vmatpush1.bf16.msra.mxu0 %v2339
        %6371 = vmatprep.subr.bf16.mxu0 %v2358
        %6372 = vmatpush1.bf16.msra.mxu0 %v2357
        %6373 = vmatprep.subr.bf16.mxu0 %v2376
        %6374 = vmatpush1.bf16.msra.mxu0 %v2375
        %6375 = vmatprep.subr.bf16.mxu0 %v2394
        %6376 = vmatpush1.bf16.msra.mxu0 %v2393
        %6377 = vmatprep.subr.bf16.mxu0 %v2412
        %6378 = vmatpush1.bf16.msra.mxu0 %v2411
        %6379 = vmatprep.subr.bf16.mxu0 %v2430
        %6380 = vmatpush1.bf16.msra.mxu0 %v2429
        %6381 = vmatprep.subr.bf16.mxu0 %v2448
        %6382 = vmatpush1.bf16.msra.mxu0 %v2447
        %6383 = vmatprep.subr.bf16.mxu0 %v2466
        %6384 = vmatpush1.bf16.msra.mxu0 %v2465
        %6385 = vmatprep.subr.bf16.mxu0 %v2484
        %6386 = vmatpush1.bf16.msra.mxu0 %v2483
        %6387 = vmatprep.mubr.bf16.mxu0 %v6313
        %6388 = vmatmul.mubr.bf16.gmra.mrb[0].mxu0 %v6312
        %v6389 = vpop.f32.mrb[0].mxu0
        %v6390 = vadd.f32 0.0, %v6389
        %v6391 = vpop.f32.mrb[0].mxu0
        %v6392 = vadd.f32 0.0, %v6391
        %v6393 = vpop.f32.mrb[0].mxu0
        %v6394 = vpop.f32.mrb[0].mxu0
        %6395 = vdwg.mxu0
        %6396 = vmatprep.subr.bf16.mxu0 %v2216
        %6397 = vmatpush1.bf16.msra.mxu0 %v2215
        %6398 = vmatprep.subr.bf16.mxu0 %v2234
        %6399 = vmatpush1.bf16.msra.mxu0 %v2233
        %6400 = vmatprep.subr.bf16.mxu0 %v2252
        %6401 = vmatpush1.bf16.msra.mxu0 %v2251
        %6402 = vmatprep.subr.bf16.mxu0 %v2270
        %6403 = vmatpush1.bf16.msra.mxu0 %v2269
        %6404 = vmatprep.subr.bf16.mxu0 %v2288
        %6405 = vmatpush1.bf16.msra.mxu0 %v2287
        %6406 = vmatprep.subr.bf16.mxu0 %v2306
        %6407 = vmatpush1.bf16.msra.mxu0 %v2305
        %6408 = vmatprep.subr.bf16.mxu0 %v2324
        %6409 = vmatpush1.bf16.msra.mxu0 %v2323
        %6410 = vmatprep.subr.bf16.mxu0 %v2342
        %6411 = vmatpush1.bf16.msra.mxu0 %v2341
        %6412 = vmatprep.subr.bf16.mxu0 %v2360
        %6413 = vmatpush1.bf16.msra.mxu0 %v2359
        %6414 = vmatprep.subr.bf16.mxu0 %v2378
        %6415 = vmatpush1.bf16.msra.mxu0 %v2377
        %6416 = vmatprep.subr.bf16.mxu0 %v2396
        %6417 = vmatpush1.bf16.msra.mxu0 %v2395
        %6418 = vmatprep.subr.bf16.mxu0 %v2414
        %6419 = vmatpush1.bf16.msra.mxu0 %v2413
        %6420 = vmatprep.subr.bf16.mxu0 %v2432
        %6421 = vmatpush1.bf16.msra.mxu0 %v2431
        %6422 = vmatprep.subr.bf16.mxu0 %v2450
        %6423 = vmatpush1.bf16.msra.mxu0 %v2449
        %6424 = vmatprep.subr.bf16.mxu0 %v2468
        %6425 = vmatpush1.bf16.msra.mxu0 %v2467
        %6426 = vmatprep.subr.bf16.mxu0 %v2486
        %6427 = vmatpush1.bf16.msra.mxu0 %v2485
        %6428 = vmatprep.mubr.bf16.mxu0 %v6313
        %6429 = vmatmul.mubr.bf16.gmra.mrb[0].mxu0 %v6312
        %v6430 = vpop.f32.mrb[0].mxu0
        %v6431 = vadd.f32 0.0, %v6430
        %v6432 = vpop.f32.mrb[0].mxu0
        %v6433 = vadd.f32 0.0, %v6432
        %v6434 = vpop.f32.mrb[0].mxu0
        %v6435 = vpop.f32.mrb[0].mxu0
        %6436 = vdwg.mxu0
        %6437 = vmatprep.subr.bf16.mxu0 %v2218
        %6438 = vmatpush1.bf16.msra.mxu0 %v2217
        %6439 = vmatprep.subr.bf16.mxu0 %v2236
        %6440 = vmatpush1.bf16.msra.mxu0 %v2235
        %6441 = vmatprep.subr.bf16.mxu0 %v2254
        %6442 = vmatpush1.bf16.msra.mxu0 %v2253
        %6443 = vmatprep.subr.bf16.mxu0 %v2272
        %6444 = vmatpush1.bf16.msra.mxu0 %v2271
        %6445 = vmatprep.subr.bf16.mxu0 %v2290
        %6446 = vmatpush1.bf16.msra.mxu0 %v2289
        %6447 = vmatprep.subr.bf16.mxu0 %v2308
        %6448 = vmatpush1.bf16.msra.mxu0 %v2307
        %6449 = vmatprep.subr.bf16.mxu0 %v2326
        %6450 = vmatpush1.bf16.msra.mxu0 %v2325
        %6451 = vmatprep.subr.bf16.mxu0 %v2344
        %6452 = vmatpush1.bf16.msra.mxu0 %v2343
        %6453 = vmatprep.subr.bf16.mxu0 %v2362
        %6454 = vmatpush1.bf16.msra.mxu0 %v2361
        %6455 = vmatprep.subr.bf16.mxu0 %v2380
        %6456 = vmatpush1.bf16.msra.mxu0 %v2379
        %6457 = vmatprep.subr.bf16.mxu0 %v2398
        %6458 = vmatpush1.bf16.msra.mxu0 %v2397
        %6459 = vmatprep.subr.bf16.mxu0 %v2416
        %6460 = vmatpush1.bf16.msra.mxu0 %v2415
        %6461 = vmatprep.subr.bf16.mxu0 %v2434
        %6462 = vmatpush1.bf16.msra.mxu0 %v2433
        %6463 = vmatprep.subr.bf16.mxu0 %v2452
        %6464 = vmatpush1.bf16.msra.mxu0 %v2451
        %6465 = vmatprep.subr.bf16.mxu0 %v2470
        %6466 = vmatpush1.bf16.msra.mxu0 %v2469
        %6467 = vmatprep.subr.bf16.mxu0 %v2488
        %6468 = vmatpush1.bf16.msra.mxu0 %v2487
        %6469 = vmatprep.mubr.bf16.mxu0 %v6313
        %6470 = vmatmul.mubr.bf16.gmra.mrb[0].mxu0 %v6312
        %v6471 = vpop.f32.mrb[0].mxu0
        %v6472 = vadd.f32 0.0, %v6471
        %v6473 = vpop.f32.mrb[0].mxu0
        %v6474 = vadd.f32 0.0, %v6473
        %v6475 = vpop.f32.mrb[0].mxu0
        %v6476 = vpop.f32.mrb[0].mxu0
        %6477 = vdwg.mxu0
        %6478 = vmatprep.subr.bf16.mxu0 %v2220
        %6479 = vmatpush1.bf16.msra.mxu0 %v2219
        %6480 = vmatprep.subr.bf16.mxu0 %v2238
        %6481 = vmatpush1.bf16.msra.mxu0 %v2237
        %6482 = vmatprep.subr.bf16.mxu0 %v2256
        %6483 = vmatpush1.bf16.msra.mxu0 %v2255
        %6484 = vmatprep.subr.bf16.mxu0 %v2274
        %6485 = vmatpush1.bf16.msra.mxu0 %v2273
        %6486 = vmatprep.subr.bf16.mxu0 %v2292
        %6487 = vmatpush1.bf16.msra.mxu0 %v2291
        %6488 = vmatprep.subr.bf16.mxu0 %v2310
        %6489 = vmatpush1.bf16.msra.mxu0 %v2309
        %6490 = vmatprep.subr.bf16.mxu0 %v2328
        %6491 = vmatpush1.bf16.msra.mxu0 %v2327
        %6492 = vmatprep.subr.bf16.mxu0 %v2346
        %6493 = vmatpush1.bf16.msra.mxu0 %v2345
        %6494 = vmatprep.subr.bf16.mxu0 %v2364
        %6495 = vmatpush1.bf16.msra.mxu0 %v2363
        %6496 = vmatprep.subr.bf16.mxu0 %v2382
        %6497 = vmatpush1.bf16.msra.mxu0 %v2381
        %6498 = vmatprep.subr.bf16.mxu0 %v2400
        %6499 = vmatpush1.bf16.msra.mxu0 %v2399
        %6500 = vmatprep.subr.bf16.mxu0 %v2418
        %6501 = vmatpush1.bf16.msra.mxu0 %v2417
        %6502 = vmatprep.subr.bf16.mxu0 %v2436
        %6503 = vmatpush1.bf16.msra.mxu0 %v2435
        %6504 = vmatprep.subr.bf16.mxu0 %v2454
        %6505 = vmatpush1.bf16.msra.mxu0 %v2453
        %6506 = vmatprep.subr.bf16.mxu0 %v2472
        %6507 = vmatpush1.bf16.msra.mxu0 %v2471
        %6508 = vmatprep.subr.bf16.mxu0 %v2490
        %6509 = vmatpush1.bf16.msra.mxu0 %v2489
        %6510 = vmatprep.mubr.bf16.mxu0 %v6313
        %6511 = vmatmul.mubr.bf16.gmra.mrb[0].mxu0 %v6312
        %v6512 = vpop.f32.mrb[0].mxu0
        %v6513 = vadd.f32 0.0, %v6512
        %v6514 = vpop.f32.mrb[0].mxu0
        %v6515 = vadd.f32 0.0, %v6514
        %v6516 = vpop.f32.mrb[0].mxu0
        %v6517 = vpop.f32.mrb[0].mxu0
        %6518 = vdwg.mxu0
        %6519 = vmatprep.subr.bf16.mxu0 %v2222
        %6520 = vmatpush1.bf16.msra.mxu0 %v2221
        %6521 = vmatprep.subr.bf16.mxu0 %v2240
        %6522 = vmatpush1.bf16.msra.mxu0 %v2239
        %6523 = vmatprep.subr.bf16.mxu0 %v2258
        %6524 = vmatpush1.bf16.msra.mxu0 %v2257
        %6525 = vmatprep.subr.bf16.mxu0 %v2276
        %6526 = vmatpush1.bf16.msra.mxu0 %v2275
        %6527 = vmatprep.subr.bf16.mxu0 %v2294
        %6528 = vmatpush1.bf16.msra.mxu0 %v2293
        %6529 = vmatprep.subr.bf16.mxu0 %v2312
        %6530 = vmatpush1.bf16.msra.mxu0 %v2311
        %6531 = vmatprep.subr.bf16.mxu0 %v2330
        %6532 = vmatpush1.bf16.msra.mxu0 %v2329
        %6533 = vmatprep.subr.bf16.mxu0 %v2348
        %6534 = vmatpush1.bf16.msra.mxu0 %v2347
        %6535 = vmatprep.subr.bf16.mxu0 %v2366
        %6536 = vmatpush1.bf16.msra.mxu0 %v2365
        %6537 = vmatprep.subr.bf16.mxu0 %v2384
        %6538 = vmatpush1.bf16.msra.mxu0 %v2383
        %6539 = vmatprep.subr.bf16.mxu0 %v2402
        %6540 = vmatpush1.bf16.msra.mxu0 %v2401
        %6541 = vmatprep.subr.bf16.mxu0 %v2420
        %6542 = vmatpush1.bf16.msra.mxu0 %v2419
        %6543 = vmatprep.subr.bf16.mxu0 %v2438
        %6544 = vmatpush1.bf16.msra.mxu0 %v2437
        %6545 = vmatprep.subr.bf16.mxu0 %v2456
        %6546 = vmatpush1.bf16.msra.mxu0 %v2455
        %6547 = vmatprep.subr.bf16.mxu0 %v2474
        %6548 = vmatpush1.bf16.msra.mxu0 %v2473
        %6549 = vmatprep.subr.bf16.mxu0 %v2492
        %6550 = vmatpush1.bf16.msra.mxu0 %v2491
        %6551 = vmatprep.mubr.bf16.mxu0 %v6313
        %6552 = vmatmul.mubr.bf16.gmra.mrb[0].mxu0 %v6312
        %v6553 = vpop.f32.mrb[0].mxu0
        %v6554 = vadd.f32 0.0, %v6553
        %v6555 = vpop.f32.mrb[0].mxu0
        %v6556 = vadd.f32 0.0, %v6555
        %v6557 = vpop.f32.mrb[0].mxu0
        %v6558 = vpop.f32.mrb[0].mxu0
        %6559 = vdwg.mxu0
        %6560 = vmatprep.subr.bf16.mxu0 %v2224
        %6561 = vmatpush1.bf16.msra.mxu0 %v2223
        %6562 = vmatprep.subr.bf16.mxu0 %v2242
        %6563 = vmatpush1.bf16.msra.mxu0 %v2241
        %6564 = vmatprep.subr.bf16.mxu0 %v2260
        %6565 = vmatpush1.bf16.msra.mxu0 %v2259
        %6566 = vmatprep.subr.bf16.mxu0 %v2278
        %6567 = vmatpush1.bf16.msra.mxu0 %v2277
        %6568 = vmatprep.subr.bf16.mxu0 %v2296
        %6569 = vmatpush1.bf16.msra.mxu0 %v2295
        %6570 = vmatprep.subr.bf16.mxu0 %v2314
        %6571 = vmatpush1.bf16.msra.mxu0 %v2313
        %6572 = vmatprep.subr.bf16.mxu0 %v2332
        %6573 = vmatpush1.bf16.msra.mxu0 %v2331
        %6574 = vmatprep.subr.bf16.mxu0 %v2350
        %6575 = vmatpush1.bf16.msra.mxu0 %v2349
        %6576 = vmatprep.subr.bf16.mxu0 %v2368
        %6577 = vmatpush1.bf16.msra.mxu0 %v2367
        %6578 = vmatprep.subr.bf16.mxu0 %v2386
        %6579 = vmatpush1.bf16.msra.mxu0 %v2385
        %6580 = vmatprep.subr.bf16.mxu0 %v2404
        %6581 = vmatpush1.bf16.msra.mxu0 %v2403
        %6582 = vmatprep.subr.bf16.mxu0 %v2422
        %6583 = vmatpush1.bf16.msra.mxu0 %v2421
        %6584 = vmatprep.subr.bf16.mxu0 %v2440
        %6585 = vmatpush1.bf16.msra.mxu0 %v2439
        %6586 = vmatprep.subr.bf16.mxu0 %v2458
        %6587 = vmatpush1.bf16.msra.mxu0 %v2457
        %6588 = vmatprep.subr.bf16.mxu0 %v2476
        %6589 = vmatpush1.bf16.msra.mxu0 %v2475
        %6590 = vmatprep.subr.bf16.mxu0 %v2494
        %6591 = vmatpush1.bf16.msra.mxu0 %v2493
        %6592 = vmatprep.mubr.bf16.mxu0 %v6313
        %6593 = vmatmul.mubr.bf16.gmra.mrb[0].mxu0 %v6312
        %v6594 = vpop.f32.mrb[0].mxu0
        %v6595 = vadd.f32 0.0, %v6594
        %v6596 = vpop.f32.mrb[0].mxu0
        %v6597 = vadd.f32 0.0, %v6596
        %v6598 = vpop.f32.mrb[0].mxu0
        %v6599 = vpop.f32.mrb[0].mxu0
        %6600 = vdwg.mxu0
        %6601 = vmatprep.subr.bf16.mxu0 %v2226
        %6602 = vmatpush1.bf16.msra.mxu0 %v2225
        %6603 = vmatprep.subr.bf16.mxu0 %v2244
        %6604 = vmatpush1.bf16.msra.mxu0 %v2243
        %6605 = vmatprep.subr.bf16.mxu0 %v2262
        %6606 = vmatpush1.bf16.msra.mxu0 %v2261
        %6607 = vmatprep.subr.bf16.mxu0 %v2280
        %6608 = vmatpush1.bf16.msra.mxu0 %v2279
        %6609 = vmatprep.subr.bf16.mxu0 %v2298
        %6610 = vmatpush1.bf16.msra.mxu0 %v2297
        %6611 = vmatprep.subr.bf16.mxu0 %v2316
        %6612 = vmatpush1.bf16.msra.mxu0 %v2315
        %6613 = vmatprep.subr.bf16.mxu0 %v2334
        %6614 = vmatpush1.bf16.msra.mxu0 %v2333
        %6615 = vmatprep.subr.bf16.mxu0 %v2352
        %6616 = vmatpush1.bf16.msra.mxu0 %v2351
        %6617 = vmatprep.subr.bf16.mxu0 %v2370
        %6618 = vmatpush1.bf16.msra.mxu0 %v2369
        %6619 = vmatprep.subr.bf16.mxu0 %v2388
        %6620 = vmatpush1.bf16.msra.mxu0 %v2387
        %6621 = vmatprep.subr.bf16.mxu0 %v2406
        %6622 = vmatpush1.bf16.msra.mxu0 %v2405
        %6623 = vmatprep.subr.bf16.mxu0 %v2424
        %6624 = vmatpush1.bf16.msra.mxu0 %v2423
        %6625 = vmatprep.subr.bf16.mxu0 %v2442
        %6626 = vmatpush1.bf16.msra.mxu0 %v2441
        %6627 = vmatprep.subr.bf16.mxu0 %v2460
        %6628 = vmatpush1.bf16.msra.mxu0 %v2459
        %6629 = vmatprep.subr.bf16.mxu0 %v2478
        %6630 = vmatpush1.bf16.msra.mxu0 %v2477
        %6631 = vmatprep.subr.bf16.mxu0 %v2496
        %6632 = vmatpush1.bf16.msra.mxu0 %v2495
        %6633 = vmatprep.mubr.bf16.mxu0 %v6313
        %6634 = vmatmul.mubr.bf16.gmra.mrb[0].mxu0 %v6312
        %v6635 = vpop.f32.mrb[0].mxu0
        %v6636 = vadd.f32 0.0, %v6635
        %v6637 = vpop.f32.mrb[0].mxu0
        %v6638 = vadd.f32 0.0, %v6637
        %v6639 = vpop.f32.mrb[0].mxu0
        %v6640 = vpop.f32.mrb[0].mxu0
        %6641 = vdwg.mxu0
        %6642 = vmatprep.subr.bf16.mxu0 %v2228
        %6643 = vmatpush1.bf16.msra.mxu0 %v2227
        %6644 = vmatprep.subr.bf16.mxu0 %v2246
        %6645 = vmatpush1.bf16.msra.mxu0 %v2245
        %6646 = vmatprep.subr.bf16.mxu0 %v2264
        %6647 = vmatpush1.bf16.msra.mxu0 %v2263
        %6648 = vmatprep.subr.bf16.mxu0 %v2282
        %6649 = vmatpush1.bf16.msra.mxu0 %v2281
        %6650 = vmatprep.subr.bf16.mxu0 %v2300
        %6651 = vmatpush1.bf16.msra.mxu0 %v2299
        %6652 = vmatprep.subr.bf16.mxu0 %v2318
        %6653 = vmatpush1.bf16.msra.mxu0 %v2317
        %6654 = vmatprep.subr.bf16.mxu0 %v2336
        %6655 = vmatpush1.bf16.msra.mxu0 %v2335
        %6656 = vmatprep.subr.bf16.mxu0 %v2354
        %6657 = vmatpush1.bf16.msra.mxu0 %v2353
        %6658 = vmatprep.subr.bf16.mxu0 %v2372
        %6659 = vmatpush1.bf16.msra.mxu0 %v2371
        %6660 = vmatprep.subr.bf16.mxu0 %v2390
        %6661 = vmatpush1.bf16.msra.mxu0 %v2389
        %6662 = vmatprep.subr.bf16.mxu0 %v2408
        %6663 = vmatpush1.bf16.msra.mxu0 %v2407
        %6664 = vmatprep.subr.bf16.mxu0 %v2426
        %6665 = vmatpush1.bf16.msra.mxu0 %v2425
        %6666 = vmatprep.subr.bf16.mxu0 %v2444
        %6667 = vmatpush1.bf16.msra.mxu0 %v2443
        %6668 = vmatprep.subr.bf16.mxu0 %v2462
        %6669 = vmatpush1.bf16.msra.mxu0 %v2461
        %6670 = vmatprep.subr.bf16.mxu0 %v2480
        %6671 = vmatpush1.bf16.msra.mxu0 %v2479
        %6672 = vmatprep.subr.bf16.mxu0 %v2498
        %6673 = vmatpush1.bf16.msra.mxu0 %v2497
        %6674 = vmatprep.mubr.bf16.mxu0 %v6313
        %6675 = vmatmul.mubr.bf16.gmra.mrb[0].mxu0 %v6312
        %v6676 = vpop.f32.mrb[0].mxu0
        %v6677 = vadd.f32 0.0, %v6676
        %v6678 = vpop.f32.mrb[0].mxu0
        %v6679 = vadd.f32 0.0, %v6678
        %v6680 = vpop.f32.mrb[0].mxu0
        %v6681 = vpop.f32.mrb[0].mxu0
        %6682 = vdwg.mxu0
        %v6683 = vld [vmem:[#allocation26] sm:$0xf]
        %v6684 = vpack.c.bf16 %v6390, %v6349
        %v6685 = vpack.c.bf16 %v6392, %v6351
        %v6686 = vpack.c.bf16 %v6472, %v6431
        %v6687 = vpack.c.bf16 %v6474, %v6433
        %v6688 = vpack.c.bf16 %v6554, %v6513
        %v6689 = vpack.c.bf16 %v6556, %v6515
        %v6690 = vpack.c.bf16 %v6636, %v6595
        %v6691 = vpack.c.bf16 %v6638, %v6597
        %v6692 = vpack.c.bf16 %v6677, %v6677
        %v6693 = vpack.c.bf16 %v6679, %v6679
        %v6695 = vsel %vm4017, %v6683, 0
        %v6698 = vsel %vm3291, %v6692, 0
        %v6701 = vsel %vm3291, %v6693, 0
        %6703 = vmatprep.subr.bf16.mxu0 %v6685
        %6704 = vmatpush1.bf16.msra.mxu0 %v6684
        %6705 = vmatprep.subr.bf16.mxu0 %v6687
        %6706 = vmatpush1.bf16.msra.mxu0 %v6686
        %6707 = vmatprep.subr.bf16.mxu0 %v6689
        %6708 = vmatpush1.bf16.msra.mxu0 %v6688
        %6709 = vmatprep.subr.bf16.mxu0 %v6691
        %6710 = vmatpush1.bf16.msra.mxu0 %v6690
        %6711 = vmatprep.subr.bf16.mxu0 %v6701
        %6712 = vmatpush1.bf16.msra.mxu0 %v6698
        %6713 = vmatprep.subr.bf16.mxu0 0
        %6714 = vmatpush1.bf16.msra.mxu0 0
        %6715 = vmatprep.subr.bf16.mxu0 0
        %6716 = vmatpush1.bf16.msra.mxu0 0
        %6717 = vmatprep.subr.bf16.mxu0 0
        %6718 = vmatpush1.bf16.msra.mxu0 0
        %6719 = vmatprep.subr.bf16.mxu0 0
        %6720 = vmatpush1.bf16.msra.mxu0 0
        %6721 = vmatprep.subr.bf16.mxu0 0
        %6722 = vmatpush1.bf16.msra.mxu0 0
        %6723 = vmatprep.subr.bf16.mxu0 0
        %6724 = vmatpush1.bf16.msra.mxu0 0
        %6725 = vmatprep.subr.bf16.mxu0 0
        %6726 = vmatpush1.bf16.msra.mxu0 0
        %6727 = vmatprep.subr.bf16.mxu0 0
        %6728 = vmatpush1.bf16.msra.mxu0 0
        %6729 = vmatprep.subr.bf16.mxu0 0
        %6730 = vmatpush1.bf16.msra.mxu0 0
        %6731 = vmatprep.subr.bf16.mxu0 0
        %6732 = vmatpush1.bf16.msra.mxu0 0
        %6733 = vmatprep.subr.bf16.mxu0 0
        %6734 = vmatpush1.bf16.msra.mxu0 0
        %6735 = vmatprep.mubr.bf16.mxu0 0
        %6736 = vmatmul.mubr.bf16.gmra.mrb[0].mxu0 %v6695
        %v6737 = vpop.f32.mrb[0].mxu0
        %v6738 = vadd.f32 0.0, %v6737
        %v6739 = vpop.f32.mrb[0].mxu0
        %v6740 = vadd.f32 0.0, %v6739
        %v6741 = vpop.f32.mrb[0].mxu0
        %v6742 = vpop.f32.mrb[0].mxu0
        %6743 = vdwg.mxu0
        %v6746 = vcombine.low %v6738, %v6740
        %6748 = vst [vmem:[%s1047] sm:$0x77] %v6746
        %p6749 = scmp.lt.s32.totalorder %s53, 1
        %s6750 = scalar_select %p6749, %s53, 1
        %s6751 = smul.addr %s6750, 2
        %s6752 = smul.addr %s6751, 4
        %s6753 = scalar_lea.vmem %s26, %s6752
        // Predicated region
        $region181: #{forward.1} parent=119 // pred_check
          %p6754 = pneg %p621
        $region182: #{forward.1} parent=119 // pred_check_branch
          %6756 = sbr.rel (%p6754) target = $region184
        $region183: #{forward.1} parent=119 // pred_region
          _
        $region184: #{forward.1} parent=119 // pred_fallthru
          _
      $region120: #{forward.1} parent=5 // pred_fallthru
        _
      %p6757 = scmp.le.s32.totalorder 2, %s48
      // Predicated region
      $region185: #{forward.1} parent=5 // pred_check
        %p6758 = pneg %p6757
      $region186: #{forward.1} parent=5 // pred_check_branch
        %6760 = sbr.rel (%p6758) target = $region188
      $region187: #{forward.1} parent=5 // pred_region
        %s6761 = ssub.s32 %s48, 2
        // Predicated region
        $region189: #{forward.1} parent=187 // pred_check
          %p6762 = pneg %p627
        $region190: #{forward.1} parent=187 // pred_check_branch
          %6764 = sbr.rel (%p6762) target = $region192
        $region191: #{forward.1} parent=187 // pred_region
          %p6765 = scmp.lt.s32.totalorder %s54, 1
          %s6766 = scalar_select %p6765, %s54, 1
          %s6767 = smul.addr %s6766, 2
          %s6768 = smul.addr %s6767, 4
          %s6769 = scalar_lea.vmem %s26, %s6768
        $region192: #{forward.1} parent=187 // pred_fallthru
          _
      $region188: #{forward.1} parent=5 // pred_fallthru
        _
    $region6: #{forward.1} parent=1 // loop_footer
      %s52 = sadd.s32 1, %s48
    $region7: #{forward.1} parent=1 // loop_footer_branch
      %47 = sbr.rel target = $region3
    $region8: #{forward.1} parent=1 // loop_exit
      _
    %6770 = vsyncpa [#allocation5], 1
    %s6771 = scalar_lea.sflag [#allocation5], 1
    %6772 = vsyncpa %s6771, 1
    %6773 = vsyncpa [#allocation7], 1
    %s6774 = scalar_lea.sflag [#allocation7], 1
    %6775 = vsyncpa %s6774, 1
    %6776 = vsyncpa [#allocation10], 1
    %6777 = vsyncpa [#allocation13], 1
    %6778 = vsyncpa [#allocation16], 1
    %6779 = vsyncpa [#allocation19], 1
    %6780 = vsyncpa [#allocation22], 1
    %6781 = vsyncpa [#allocation25], 1

</llo_original>
